<compile_context>
chip_gen: v7x
topology: tpu7x:2x2x1
jax: 0.10.0
libtpu: 0.0.40
codegen_flags: <defaults>
</compile_context>

<pallas_src>
import functools
import math

import jax
import jax.numpy as jnp
from jax.experimental import pallas as pl
from jax.experimental.pallas import tpu as pltpu


# ---------------------------------------------------------------------------
# Fused BasicBlock kernel (implicit GEMM, both convs + shortcut + ReLUs)
# ---------------------------------------------------------------------------
def _basic_block_kernel(*refs, stride, ho, wo, cin, planes, has_proj):
    nph = 1 if stride == 1 else 4
    x_refs = refs[:nph]
    w1_ref, b1_ref, w2_ref, b2_ref = refs[nph:nph + 4]
    pos = nph + 4
    if has_proj:
        ws_ref = refs[pos]
        pos += 1
    o_ref = refs[pos]
    y1_ref = refs[pos + 1]                      # VMEM scratch: padded conv1 out

    m = ho * wo
    f32 = jnp.float32

    def in_tap(kh, kw):
        # x_pad[s*i + kh, s*j + kw, :] for all (i, j) output positions.
        if stride == 1:
            v = x_refs[0][0, kh:kh + ho, kw:kw + wo, :]
        else:  # stride 2: pick the (row-parity, col-parity) phase view
            ph = x_refs[(kh % 2) * 2 + (kw % 2)]
            v = ph[0, kh // 2:kh // 2 + ho, kw // 2:kw // 2 + wo, :]
        return v.reshape(m, cin)

    # ---- conv1 + bn1 + relu (BN scale folded into w1) ----------------------
    acc = jnp.dot(in_tap(0, 0), w1_ref[0], preferred_element_type=f32)
    for k in range(1, 9):
        acc = acc + jnp.dot(in_tap(k // 3, k % 3), w1_ref[k],
                            preferred_element_type=f32)
    y1 = jnp.maximum(acc + b1_ref[...], 0.0).astype(jnp.bfloat16)

    # Stage the intermediate in a zero-padded VMEM scratch (never hits HBM).
    y1_ref[...] = jnp.zeros_like(y1_ref)
    y1_ref[1:1 + ho, 1:1 + wo, :] = y1.reshape(ho, wo, planes)

    # ---- conv2 + bn2 (stride 1, BN scale folded into w2) -------------------
    acc = jnp.dot(y1_ref[0:ho, 0:wo, :].reshape(m, planes), w2_ref[0],
                  preferred_element_type=f32)
    for k in range(1, 9):
        kh, kw = k // 3, k % 3
        acc = acc + jnp.dot(y1_ref[kh:kh + ho, kw:kw + wo, :].reshape(m, planes),
                            w2_ref[k], preferred_element_type=f32)
    acc = acc + b2_ref[...]                     # bn2 bias (+ shortcut BN bias)

    # ---- shortcut -----------------------------------------------------------
    if has_proj:
        # 1x1 stride-s conv + BN, sampled from the already-loaded input slab.
        if stride == 1:
            ps = x_refs[0][0, 1:1 + ho, 1:1 + wo, :]
        else:
            ps = x_refs[3][0, 0:ho, 0:wo, :]    # phase (odd row, odd col)
        acc = acc + jnp.dot(ps.reshape(m, cin), ws_ref[...],
                            preferred_element_type=f32)
    else:
        res = x_refs[0][0, 1:1 + ho, 1:1 + wo, :]   # identity: the block input
        acc = acc + res.reshape(m, planes).astype(f32)

    o_ref[0] = jnp.maximum(acc, 0.0).reshape(ho, wo, planes).astype(o_ref.dtype)


# ---------------------------------------------------------------------------
# Wrapper
# ---------------------------------------------------------------------------
def _fold_bn(gamma, beta, mean, var, eps=1e-5):
    scale = gamma / jnp.sqrt(var + eps)
    return scale, beta - mean * scale


def _conv3x3_weight(w_oihw, scale):
    # (Cout, Cin, 3, 3) -> (9, Cin, Cout), tap order k = kh*3 + kw,
    # with the BN scale folded into the output channels.
    cout, cin = w_oihw.shape[0], w_oihw.shape[1]
    w = jnp.transpose(w_oihw, (2, 3, 1, 0)).reshape(9, cin, cout)
    return (w * scale).astype(jnp.bfloat16)


def basic_block_forward(x_nchw, params, stride):
    """Fused Pallas implementation of BasicBlock.forward (NCHW in, NCHW bf16 out)."""
    if stride not in (1, 2):
        raise NotImplementedError("BasicBlock only uses stride 1 or 2")

    x = jnp.transpose(x_nchw, (0, 2, 3, 1)).astype(jnp.bfloat16)   # NHWC bf16
    n, h, w, cin = x.shape
    planes = params["conv1_w"].shape[0]
    ho = (h - 1) // stride + 1
    wo = (w - 1) // stride + 1
    has_proj = (stride != 1) or (cin != planes)

    # --- fold BN into weights / biases --------------------------------------
    s1, b1 = _fold_bn(params["bn1_gamma"], params["bn1_beta"],
                      params["bn1_mean"], params["bn1_var"])
    s2, b2 = _fold_bn(params["bn2_gamma"], params["bn2_beta"],
                      params["bn2_mean"], params["bn2_var"])
    w1 = _conv3x3_weight(params["conv1_w"], s1)
    w2 = _conv3x3_weight(params["conv2_w"], s2)
    ws = None
    if has_proj:
        ss, bs = _fold_bn(params["bns_gamma"], params["bns_beta"],
                          params["bns_mean"], params["bns_var"])
        ws = (params["convs_w"][:, :, 0, 0].T * ss).astype(jnp.bfloat16)
        b2 = b2 + bs                      # both epilogue biases pre-summed
    b1v = b1.reshape(1, planes).astype(jnp.float32)
    b2v = b2.reshape(1, planes).astype(jnp.float32)

    # --- activation slab(s): 1-padded NHWC, phase-split for stride 2 --------
    xp = jnp.pad(x, ((0, 0), (1, 1), (1, 1), (0, 0)))
    if stride == 1:
        act = [xp]
    else:
        act = [xp[:, a::2, b::2, :] for a in (0, 1) for b in (0, 1)]

    kernel = functools.partial(_basic_block_kernel, stride=stride, ho=ho,
                               wo=wo, cin=cin, planes=planes, has_proj=has_proj)

    # VMEM working-set estimate -> explicit limit (v5e scoped default ~16 MiB).
    act_bytes = sum(int(math.prod(a.shape[1:])) * 2 for a in act)
    wgt_bytes = (w1.size + w2.size + (ws.size if has_proj else 0)) * 2 \
        + 2 * planes * 4
    out_bytes = ho * wo * planes * 2
    scr_bytes = (ho + 2) * (wo + 2) * planes * 2
    est = 2 * act_bytes + 2 * wgt_bytes + 2 * out_bytes + scr_bytes
    vmem_limit = int(min(48 << 20, max(32 << 20, 2 * est)))

    def call(single_buffer_residents):
        def resident(shape):
            nd = len(shape)
            imap = lambda i: (0,) * nd
            if single_buffer_residents:
                return pl.BlockSpec(shape, imap, pipeline_mode=pl.Buffered(1))
            return pl.BlockSpec(shape, imap)

        in_specs = [pl.BlockSpec((1,) + a.shape[1:], lambda i: (i, 0, 0, 0))
                    for a in act]
        in_args = list(act)
        in_specs += [resident(w1.shape), resident(b1v.shape),
                     resident(w2.shape), resident(b2v.shape)]
        in_args += [w1, b1v, w2, b2v]
        if has_proj:
            in_specs.append(resident(ws.shape))
            in_args.append(ws)

        return pl.pallas_call(
            kernel,
            out_shape=jax.ShapeDtypeStruct((n, ho, wo, planes), jnp.bfloat16),
            grid=(n,),
            in_specs=in_specs,
            out_specs=pl.BlockSpec((1, ho, wo, planes), lambda i: (i, 0, 0, 0)),
            scratch_shapes=[pltpu.VMEM((ho + 2, wo + 2, planes), jnp.bfloat16)],
            compiler_params=pltpu.CompilerParams(
                dimension_semantics=("parallel",),
                vmem_limit_bytes=vmem_limit),
        )(*in_args)

    try:
        out = call(True)
    except Exception:
        # Fall back to default double-buffered residents if Buffered(1) is
        # rejected by this jax/libtpu version.
        out = call(False)

    return jnp.transpose(out, (0, 3, 1, 2))          # -> NCHW, bf16


# ---------------------------------------------------------------------------
# Pure-JAX reference (eval-mode BN) for correctness check
# ---------------------------------------------------------------------------
def _ref_conv(x, w, stride, padding):
    return jax.lax.conv_general_dilated(
        x, w, (stride, stride), [(padding, padding)] * 2,
        dimension_numbers=("NCHW", "OIHW", "NCHW"),
        precision=jax.lax.Precision.HIGHEST)


def _ref_bn(x, gamma, beta, mean, var, eps=1e-5):
    rs = lambda a: a.reshape(1, -1, 1, 1)
    return (x - rs(mean)) / jnp.sqrt(rs(var) + eps) * rs(gamma) + rs(beta)


def basic_block_reference(x, params, stride):
    cin = x.shape[1]
    planes = params["conv1_w"].shape[0]
    out = jax.nn.relu(_ref_bn(_ref_conv(x, params["conv1_w"], stride, 1),
                              params["bn1_gamma"], params["bn1_beta"],
                              params["bn1_mean"], params["bn1_var"]))
    out = _ref_bn(_ref_conv(out, params["conv2_w"], 1, 1),
                  params["bn2_gamma"], params["bn2_beta"],
                  params["bn2_mean"], params["bn2_var"])
    if stride != 1 or cin != planes:
        short = _ref_bn(_ref_conv(x, params["convs_w"], stride, 0),
                        params["bns_gamma"], params["bns_beta"],
                        params["bns_mean"], params["bns_var"])
    else:
        short = x
    return jax.nn.relu(out + short)


# ---------------------------------------------------------------------------
# Main
# ---------------------------------------------------------------------------
def _make_params(key, in_planes, planes, with_shortcut):
    ks = jax.random.split(key, 8)

    def bn(k):
        k1, k2, k3, k4 = jax.random.split(k, 4)
        return (1.0 + 0.1 * jax.random.normal(k1, (planes,), jnp.float32),
                0.1 * jax.random.normal(k2, (planes,), jnp.float32),
                0.1 * jax.random.normal(k3, (planes,), jnp.float32),
                0.5 + jax.random.uniform(k4, (planes,), jnp.float32))

    g1, b1, m1, v1 = bn(ks[3])
    g2, b2, m2, v2 = bn(ks[4])
    p = {
        "conv1_w": 0.2 * jax.random.normal(ks[0], (planes, in_planes, 3, 3),
                                           jnp.float32),
        "conv2_w": 0.2 * jax.random.normal(ks[1], (planes, planes, 3, 3),
                                           jnp.float32),
        "bn1_gamma": g1, "bn1_beta": b1, "bn1_mean": m1, "bn1_var": v1,
        "bn2_gamma": g2, "bn2_beta": b2, "bn2_mean": m2, "bn2_var": v2,
    }
    if with_shortcut:
        gs, bs, ms, vs = bn(ks[5])
        p.update({
            "convs_w": 0.2 * jax.random.normal(ks[2], (planes, in_planes, 1, 1),
                                               jnp.float32),
            "bns_gamma": gs, "bns_beta": bs, "bns_mean": ms, "bns_var": vs,
        })
    return p


if __name__ == "__main__":
    key = jax.random.PRNGKey(0)
    k_a, k_b, k_xa, k_xb = jax.random.split(key, 4)

    # Case A: stride-2 block with 1x1 projection shortcut (fused in-kernel).
    N, in_planes, planes, H, W, stride = 2, 4, 8, 16, 16, 2
    params_a = _make_params(k_a, in_planes, planes, with_shortcut=True)
    x_a = jax.random.normal(k_xa, (N, in_planes, H, W), jnp.float32)
    out_a = jax.block_until_ready(basic_block_forward(x_a, params_a, stride))
    ref_a = jax.block_until_ready(basic_block_reference(x_a, params_a, stride))
    assert out_a.shape == (N, planes, H // stride, W // stride), out_a.shape
    assert jnp.allclose(out_a, ref_a, atol=7e-2, rtol=5e-2), (
        float(jnp.max(jnp.abs(out_a - ref_a))))

    # Case B: stride-1 identity-shortcut block.
    params_b = _make_params(k_b, planes, planes, with_shortcut=False)
    x_b = jax.random.normal(k_xb, (N, planes, H, W), jnp.float32)
    out_b = jax.block_until_ready(basic_block_forward(x_b, params_b, 1))
    ref_b = jax.block_until_ready(basic_block_reference(x_b, params_b, 1))
    assert out_b.shape == (N, planes, H, W), out_b.shape
    assert jnp.allclose(out_b, ref_b, atol=7e-2, rtol=5e-2), (
        float(jnp.max(jnp.abs(out_b - ref_b))))

    print("KERNEL_OK")
</pallas_src>

<mosaic_0001>
module attributes {stable_mosaic.version = 11 : i64} {
  func.func @_basic_block_kernel(%arg0: i32, %arg1: memref<1x9x9x4xbf16, #tpu.memory_space<vmem>>, %arg2: memref<1x9x9x4xbf16, #tpu.memory_space<vmem>>, %arg3: memref<1x9x9x4xbf16, #tpu.memory_space<vmem>>, %arg4: memref<1x9x9x4xbf16, #tpu.memory_space<vmem>>, %arg5: memref<9x4x8xbf16, #tpu.memory_space<vmem>>, %arg6: memref<1x8xf32, #tpu.memory_space<vmem>>, %arg7: memref<9x8x8xbf16, #tpu.memory_space<vmem>>, %arg8: memref<1x8xf32, #tpu.memory_space<vmem>>, %arg9: memref<4x8xbf16, #tpu.memory_space<vmem>>, %arg10: memref<1x8x8x8xbf16, #tpu.memory_space<vmem>>, %arg11: memref<10x10x8xbf16, #tpu.memory_space<vmem>>) attributes {dimension_semantics = [#tpu.dimension_semantics<parallel>], iteration_bounds = array<i64: 2>, scalar_prefetch = 0 : i64, scratch_operands = 1 : i64, tpu.core_type = #tpu.core_type<tc>, window_params = [{transform_indices = @transform_0, window_bounds = array<i64: 1, 9, 9, 4>}, {transform_indices = @transform_1, window_bounds = array<i64: 1, 9, 9, 4>}, {transform_indices = @transform_2, window_bounds = array<i64: 1, 9, 9, 4>}, {transform_indices = @transform_3, window_bounds = array<i64: 1, 9, 9, 4>}, {pipeline_mode = #tpu.pipeline_mode<synchronous>, transform_indices = @transform_4, window_bounds = array<i64: 9, 4, 8>}, {pipeline_mode = #tpu.pipeline_mode<synchronous>, transform_indices = @transform_5, window_bounds = array<i64: 1, 8>}, {pipeline_mode = #tpu.pipeline_mode<synchronous>, transform_indices = @transform_6, window_bounds = array<i64: 9, 8, 8>}, {pipeline_mode = #tpu.pipeline_mode<synchronous>, transform_indices = @transform_7, window_bounds = array<i64: 1, 8>}, {pipeline_mode = #tpu.pipeline_mode<synchronous>, transform_indices = @transform_8, window_bounds = array<i64: 4, 8>}, {transform_indices = @transform_9, window_bounds = array<i64: 1, 8, 8, 8>}]} {
    %c0 = arith.constant 0 : index
    %c0_0 = arith.constant 0 : index
    %c0_1 = arith.constant 0 : index
    %c0_2 = arith.constant 0 : index
    %0 = vector.load %arg1[%c0, %c0_0, %c0_1, %c0_2] : memref<1x9x9x4xbf16, #tpu.memory_space<vmem>>, vector<1x8x8x4xbf16>
    %1 = vector.shape_cast %0 : vector<1x8x8x4xbf16> to vector<8x8x4xbf16>
    %2 = vector.shape_cast %1 : vector<8x8x4xbf16> to vector<64x4xbf16>
    %c0_3 = arith.constant 0 : index
    %c0_4 = arith.constant 0 : index
    %c0_5 = arith.constant 0 : index
    %3 = vector.load %arg5[%c0_3, %c0_4, %c0_5] : memref<9x4x8xbf16, #tpu.memory_space<vmem>>, vector<1x4x8xbf16>
    %4 = vector.shape_cast %3 : vector<1x4x8xbf16> to vector<4x8xbf16>
    %cst = arith.constant dense<0.000000e+00> : vector<64x8xf32>
    %5 = tpu.matmul %2, %4, %cst {dimension_numbers = #tpu.dot_dimension_numbers<[1], [0], [0], [1], [0, 0, 1, 1], [], []>} : vector<64x4xbf16>, vector<4x8xbf16>, vector<64x8xf32> -> vector<64x8xf32>
    %c0_6 = arith.constant 0 : index
    %c0_7 = arith.constant 0 : index
    %c0_8 = arith.constant 0 : index
    %c0_9 = arith.constant 0 : index
    %6 = vector.load %arg2[%c0_6, %c0_7, %c0_8, %c0_9] : memref<1x9x9x4xbf16, #tpu.memory_space<vmem>>, vector<1x8x8x4xbf16>
    %7 = vector.shape_cast %6 : vector<1x8x8x4xbf16> to vector<8x8x4xbf16>
    %8 = vector.shape_cast %7 : vector<8x8x4xbf16> to vector<64x4xbf16>
    %c1 = arith.constant 1 : index
    %c0_10 = arith.constant 0 : index
    %c0_11 = arith.constant 0 : index
    %9 = vector.load %arg5[%c1, %c0_10, %c0_11] : memref<9x4x8xbf16, #tpu.memory_space<vmem>>, vector<1x4x8xbf16>
    %10 = vector.shape_cast %9 : vector<1x4x8xbf16> to vector<4x8xbf16>
    %cst_12 = arith.constant dense<0.000000e+00> : vector<64x8xf32>
    %11 = tpu.matmul %8, %10, %cst_12 {dimension_numbers = #tpu.dot_dimension_numbers<[1], [0], [0], [1], [0, 0, 1, 1], [], []>} : vector<64x4xbf16>, vector<4x8xbf16>, vector<64x8xf32> -> vector<64x8xf32>
    %12 = arith.addf %5, %11 : vector<64x8xf32>
    %c0_13 = arith.constant 0 : index
    %c0_14 = arith.constant 0 : index
    %c1_15 = arith.constant 1 : index
    %c0_16 = arith.constant 0 : index
    %13 = vector.load %arg1[%c0_13, %c0_14, %c1_15, %c0_16] : memref<1x9x9x4xbf16, #tpu.memory_space<vmem>>, vector<1x8x8x4xbf16>
    %14 = vector.shape_cast %13 : vector<1x8x8x4xbf16> to vector<8x8x4xbf16>
    %15 = vector.shape_cast %14 : vector<8x8x4xbf16> to vector<64x4xbf16>
    %c2 = arith.constant 2 : index
    %c0_17 = arith.constant 0 : index
    %c0_18 = arith.constant 0 : index
    %16 = vector.load %arg5[%c2, %c0_17, %c0_18] : memref<9x4x8xbf16, #tpu.memory_space<vmem>>, vector<1x4x8xbf16>
    %17 = vector.shape_cast %16 : vector<1x4x8xbf16> to vector<4x8xbf16>
    %cst_19 = arith.constant dense<0.000000e+00> : vector<64x8xf32>
    %18 = tpu.matmul %15, %17, %cst_19 {dimension_numbers = #tpu.dot_dimension_numbers<[1], [0], [0], [1], [0, 0, 1, 1], [], []>} : vector<64x4xbf16>, vector<4x8xbf16>, vector<64x8xf32> -> vector<64x8xf32>
    %19 = arith.addf %12, %18 : vector<64x8xf32>
    %c0_20 = arith.constant 0 : index
    %c0_21 = arith.constant 0 : index
    %c0_22 = arith.constant 0 : index
    %c0_23 = arith.constant 0 : index
    %20 = vector.load %arg3[%c0_20, %c0_21, %c0_22, %c0_23] : memref<1x9x9x4xbf16, #tpu.memory_space<vmem>>, vector<1x8x8x4xbf16>
    %21 = vector.shape_cast %20 : vector<1x8x8x4xbf16> to vector<8x8x4xbf16>
    %22 = vector.shape_cast %21 : vector<8x8x4xbf16> to vector<64x4xbf16>
    %c3 = arith.constant 3 : index
    %c0_24 = arith.constant 0 : index
    %c0_25 = arith.constant 0 : index
    %23 = vector.load %arg5[%c3, %c0_24, %c0_25] : memref<9x4x8xbf16, #tpu.memory_space<vmem>>, vector<1x4x8xbf16>
    %24 = vector.shape_cast %23 : vector<1x4x8xbf16> to vector<4x8xbf16>
    %cst_26 = arith.constant dense<0.000000e+00> : vector<64x8xf32>
    %25 = tpu.matmul %22, %24, %cst_26 {dimension_numbers = #tpu.dot_dimension_numbers<[1], [0], [0], [1], [0, 0, 1, 1], [], []>} : vector<64x4xbf16>, vector<4x8xbf16>, vector<64x8xf32> -> vector<64x8xf32>
    %26 = arith.addf %19, %25 : vector<64x8xf32>
    %c0_27 = arith.constant 0 : index
    %c0_28 = arith.constant 0 : index
    %c0_29 = arith.constant 0 : index
    %c0_30 = arith.constant 0 : index
    %27 = vector.load %arg4[%c0_27, %c0_28, %c0_29, %c0_30] : memref<1x9x9x4xbf16, #tpu.memory_space<vmem>>, vector<1x8x8x4xbf16>
    %28 = vector.shape_cast %27 : vector<1x8x8x4xbf16> to vector<8x8x4xbf16>
    %29 = vector.shape_cast %28 : vector<8x8x4xbf16> to vector<64x4xbf16>
    %c4 = arith.constant 4 : index
    %c0_31 = arith.constant 0 : index
    %c0_32 = arith.constant 0 : index
    %30 = vector.load %arg5[%c4, %c0_31, %c0_32] : memref<9x4x8xbf16, #tpu.memory_space<vmem>>, vector<1x4x8xbf16>
    %31 = vector.shape_cast %30 : vector<1x4x8xbf16> to vector<4x8xbf16>
    %cst_33 = arith.constant dense<0.000000e+00> : vector<64x8xf32>
    %32 = tpu.matmul %29, %31, %cst_33 {dimension_numbers = #tpu.dot_dimension_numbers<[1], [0], [0], [1], [0, 0, 1, 1], [], []>} : vector<64x4xbf16>, vector<4x8xbf16>, vector<64x8xf32> -> vector<64x8xf32>
    %33 = arith.addf %26, %32 : vector<64x8xf32>
    %c0_34 = arith.constant 0 : index
    %c0_35 = arith.constant 0 : index
    %c1_36 = arith.constant 1 : index
    %c0_37 = arith.constant 0 : index
    %34 = vector.load %arg3[%c0_34, %c0_35, %c1_36, %c0_37] : memref<1x9x9x4xbf16, #tpu.memory_space<vmem>>, vector<1x8x8x4xbf16>
    %35 = vector.shape_cast %34 : vector<1x8x8x4xbf16> to vector<8x8x4xbf16>
    %36 = vector.shape_cast %35 : vector<8x8x4xbf16> to vector<64x4xbf16>
    %c5 = arith.constant 5 : index
    %c0_38 = arith.constant 0 : index
    %c0_39 = arith.constant 0 : index
    %37 = vector.load %arg5[%c5, %c0_38, %c0_39] : memref<9x4x8xbf16, #tpu.memory_space<vmem>>, vector<1x4x8xbf16>
    %38 = vector.shape_cast %37 : vector<1x4x8xbf16> to vector<4x8xbf16>
    %cst_40 = arith.constant dense<0.000000e+00> : vector<64x8xf32>
    %39 = tpu.matmul %36, %38, %cst_40 {dimension_numbers = #tpu.dot_dimension_numbers<[1], [0], [0], [1], [0, 0, 1, 1], [], []>} : vector<64x4xbf16>, vector<4x8xbf16>, vector<64x8xf32> -> vector<64x8xf32>
    %40 = arith.addf %33, %39 : vector<64x8xf32>
    %c0_41 = arith.constant 0 : index
    %c1_42 = arith.constant 1 : index
    %c0_43 = arith.constant 0 : index
    %c0_44 = arith.constant 0 : index
    %41 = vector.load %arg1[%c0_41, %c1_42, %c0_43, %c0_44] : memref<1x9x9x4xbf16, #tpu.memory_space<vmem>>, vector<1x8x8x4xbf16>
    %42 = vector.shape_cast %41 : vector<1x8x8x4xbf16> to vector<8x8x4xbf16>
    %43 = vector.shape_cast %42 : vector<8x8x4xbf16> to vector<64x4xbf16>
    %c6 = arith.constant 6 : index
    %c0_45 = arith.constant 0 : index
    %c0_46 = arith.constant 0 : index
    %44 = vector.load %arg5[%c6, %c0_45, %c0_46] : memref<9x4x8xbf16, #tpu.memory_space<vmem>>, vector<1x4x8xbf16>
    %45 = vector.shape_cast %44 : vector<1x4x8xbf16> to vector<4x8xbf16>
    %cst_47 = arith.constant dense<0.000000e+00> : vector<64x8xf32>
    %46 = tpu.matmul %43, %45, %cst_47 {dimension_numbers = #tpu.dot_dimension_numbers<[1], [0], [0], [1], [0, 0, 1, 1], [], []>} : vector<64x4xbf16>, vector<4x8xbf16>, vector<64x8xf32> -> vector<64x8xf32>
    %47 = arith.addf %40, %46 : vector<64x8xf32>
    %c0_48 = arith.constant 0 : index
    %c1_49 = arith.constant 1 : index
    %c0_50 = arith.constant 0 : index
    %c0_51 = arith.constant 0 : index
    %48 = vector.load %arg2[%c0_48, %c1_49, %c0_50, %c0_51] : memref<1x9x9x4xbf16, #tpu.memory_space<vmem>>, vector<1x8x8x4xbf16>
    %49 = vector.shape_cast %48 : vector<1x8x8x4xbf16> to vector<8x8x4xbf16>
    %50 = vector.shape_cast %49 : vector<8x8x4xbf16> to vector<64x4xbf16>
    %c7 = arith.constant 7 : index
    %c0_52 = arith.constant 0 : index
    %c0_53 = arith.constant 0 : index
    %51 = vector.load %arg5[%c7, %c0_52, %c0_53] : memref<9x4x8xbf16, #tpu.memory_space<vmem>>, vector<1x4x8xbf16>
    %52 = vector.shape_cast %51 : vector<1x4x8xbf16> to vector<4x8xbf16>
    %cst_54 = arith.constant dense<0.000000e+00> : vector<64x8xf32>
    %53 = tpu.matmul %50, %52, %cst_54 {dimension_numbers = #tpu.dot_dimension_numbers<[1], [0], [0], [1], [0, 0, 1, 1], [], []>} : vector<64x4xbf16>, vector<4x8xbf16>, vector<64x8xf32> -> vector<64x8xf32>
    %54 = arith.addf %47, %53 : vector<64x8xf32>
    %c0_55 = arith.constant 0 : index
    %c1_56 = arith.constant 1 : index
    %c1_57 = arith.constant 1 : index
    %c0_58 = arith.constant 0 : index
    %55 = vector.load %arg1[%c0_55, %c1_56, %c1_57, %c0_58] : memref<1x9x9x4xbf16, #tpu.memory_space<vmem>>, vector<1x8x8x4xbf16>
    %56 = vector.shape_cast %55 : vector<1x8x8x4xbf16> to vector<8x8x4xbf16>
    %57 = vector.shape_cast %56 : vector<8x8x4xbf16> to vector<64x4xbf16>
    %c8 = arith.constant 8 : index
    %c0_59 = arith.constant 0 : index
    %c0_60 = arith.constant 0 : index
    %58 = vector.load %arg5[%c8, %c0_59, %c0_60] : memref<9x4x8xbf16, #tpu.memory_space<vmem>>, vector<1x4x8xbf16>
    %59 = vector.shape_cast %58 : vector<1x4x8xbf16> to vector<4x8xbf16>
    %cst_61 = arith.constant dense<0.000000e+00> : vector<64x8xf32>
    %60 = tpu.matmul %57, %59, %cst_61 {dimension_numbers = #tpu.dot_dimension_numbers<[1], [0], [0], [1], [0, 0, 1, 1], [], []>} : vector<64x4xbf16>, vector<4x8xbf16>, vector<64x8xf32> -> vector<64x8xf32>
    %61 = arith.addf %54, %60 : vector<64x8xf32>
    %c0_62 = arith.constant 0 : index
    %c0_63 = arith.constant 0 : index
    %62 = vector.load %arg6[%c0_62, %c0_63] : memref<1x8xf32, #tpu.memory_space<vmem>>, vector<1x8xf32>
    %63 = vector.broadcast %62 : vector<1x8xf32> to vector<64x8xf32>
    %64 = arith.addf %61, %63 : vector<64x8xf32>
    %cst_64 = arith.constant 0.000000e+00 : f32
    %65 = vector.broadcast %cst_64 : f32 to vector<64x8xf32>
    %66 = arith.maximumf %64, %65 : vector<64x8xf32>
    %67 = arith.truncf %66 : vector<64x8xf32> to vector<64x8xbf16>
    %cst_65 = arith.constant 0.000000e+00 : bf16
    %68 = vector.broadcast %cst_65 : bf16 to vector<10x10x8xbf16>
    %c0_66 = arith.constant 0 : index
    %c0_67 = arith.constant 0 : index
    %c0_68 = arith.constant 0 : index
    %69 = vector.load %arg11[%c0_66, %c0_67, %c0_68] : memref<10x10x8xbf16, #tpu.memory_space<vmem>>, vector<10x10x8xbf16>
    tpu.vector_store %arg11[%c0_66, %c0_67, %c0_68], %68 {strides = array<i32>} : memref<10x10x8xbf16, #tpu.memory_space<vmem>>, vector<10x10x8xbf16>,
    %70 = vector.shape_cast %67 : vector<64x8xbf16> to vector<8x8x8xbf16>
    %c1_69 = arith.constant 1 : index
    %c1_70 = arith.constant 1 : index
    %c0_71 = arith.constant 0 : index
    %71 = vector.load %arg11[%c1_69, %c1_70, %c0_71] : memref<10x10x8xbf16, #tpu.memory_space<vmem>>, vector<8x8x8xbf16>
    tpu.vector_store %arg11[%c1_69, %c1_70, %c0_71], %70 {strides = array<i32>} : memref<10x10x8xbf16, #tpu.memory_space<vmem>>, vector<8x8x8xbf16>,
    %c0_72 = arith.constant 0 : index
    %c0_73 = arith.constant 0 : index
    %c0_74 = arith.constant 0 : index
    %72 = vector.load %arg11[%c0_72, %c0_73, %c0_74] : memref<10x10x8xbf16, #tpu.memory_space<vmem>>, vector<8x8x8xbf16>
    %73 = vector.shape_cast %72 : vector<8x8x8xbf16> to vector<64x8xbf16>
    %c0_75 = arith.constant 0 : index
    %c0_76 = arith.constant 0 : index
    %c0_77 = arith.constant 0 : index
    %74 = vector.load %arg7[%c0_75, %c0_76, %c0_77] : memref<9x8x8xbf16, #tpu.memory_space<vmem>>, vector<1x8x8xbf16>
    %75 = vector.shape_cast %74 : vector<1x8x8xbf16> to vector<8x8xbf16>
    %cst_78 = arith.constant dense<0.000000e+00> : vector<64x8xf32>
    %76 = tpu.matmul %73, %75, %cst_78 {dimension_numbers = #tpu.dot_dimension_numbers<[1], [0], [0], [1], [0, 0, 1, 1], [], []>} : vector<64x8xbf16>, vector<8x8xbf16>, vector<64x8xf32> -> vector<64x8xf32>
    %c0_79 = arith.constant 0 : index
    %c1_80 = arith.constant 1 : index
    %c0_81 = arith.constant 0 : index
    %77 = vector.load %arg11[%c0_79, %c1_80, %c0_81] : memref<10x10x8xbf16, #tpu.memory_space<vmem>>, vector<8x8x8xbf16>
    %78 = vector.shape_cast %77 : vector<8x8x8xbf16> to vector<64x8xbf16>
    %c1_82 = arith.constant 1 : index
    %c0_83 = arith.constant 0 : index
    %c0_84 = arith.constant 0 : index
    %79 = vector.load %arg7[%c1_82, %c0_83, %c0_84] : memref<9x8x8xbf16, #tpu.memory_space<vmem>>, vector<1x8x8xbf16>
    %80 = vector.shape_cast %79 : vector<1x8x8xbf16> to vector<8x8xbf16>
    %cst_85 = arith.constant dense<0.000000e+00> : vector<64x8xf32>
    %81 = tpu.matmul %78, %80, %cst_85 {dimension_numbers = #tpu.dot_dimension_numbers<[1], [0], [0], [1], [0, 0, 1, 1], [], []>} : vector<64x8xbf16>, vector<8x8xbf16>, vector<64x8xf32> -> vector<64x8xf32>
    %82 = arith.addf %76, %81 : vector<64x8xf32>
    %c0_86 = arith.constant 0 : index
    %c2_87 = arith.constant 2 : index
    %c0_88 = arith.constant 0 : index
    %83 = vector.load %arg11[%c0_86, %c2_87, %c0_88] : memref<10x10x8xbf16, #tpu.memory_space<vmem>>, vector<8x8x8xbf16>
    %84 = vector.shape_cast %83 : vector<8x8x8xbf16> to vector<64x8xbf16>
    %c2_89 = arith.constant 2 : index
    %c0_90 = arith.constant 0 : index
    %c0_91 = arith.constant 0 : index
    %85 = vector.load %arg7[%c2_89, %c0_90, %c0_91] : memref<9x8x8xbf16, #tpu.memory_space<vmem>>, vector<1x8x8xbf16>
    %86 = vector.shape_cast %85 : vector<1x8x8xbf16> to vector<8x8xbf16>
    %cst_92 = arith.constant dense<0.000000e+00> : vector<64x8xf32>
    %87 = tpu.matmul %84, %86, %cst_92 {dimension_numbers = #tpu.dot_dimension_numbers<[1], [0], [0], [1], [0, 0, 1, 1], [], []>} : vector<64x8xbf16>, vector<8x8xbf16>, vector<64x8xf32> -> vector<64x8xf32>
    %88 = arith.addf %82, %87 : vector<64x8xf32>
    %c1_93 = arith.constant 1 : index
    %c0_94 = arith.constant 0 : index
    %c0_95 = arith.constant 0 : index
    %89 = vector.load %arg11[%c1_93, %c0_94, %c0_95] : memref<10x10x8xbf16, #tpu.memory_space<vmem>>, vector<8x8x8xbf16>
    %90 = vector.shape_cast %89 : vector<8x8x8xbf16> to vector<64x8xbf16>
    %c3_96 = arith.constant 3 : index
    %c0_97 = arith.constant 0 : index
    %c0_98 = arith.constant 0 : index
    %91 = vector.load %arg7[%c3_96, %c0_97, %c0_98] : memref<9x8x8xbf16, #tpu.memory_space<vmem>>, vector<1x8x8xbf16>
    %92 = vector.shape_cast %91 : vector<1x8x8xbf16> to vector<8x8xbf16>
    %cst_99 = arith.constant dense<0.000000e+00> : vector<64x8xf32>
    %93 = tpu.matmul %90, %92, %cst_99 {dimension_numbers = #tpu.dot_dimension_numbers<[1], [0], [0], [1], [0, 0, 1, 1], [], []>} : vector<64x8xbf16>, vector<8x8xbf16>, vector<64x8xf32> -> vector<64x8xf32>
    %94 = arith.addf %88, %93 : vector<64x8xf32>
    %c1_100 = arith.constant 1 : index
    %c1_101 = arith.constant 1 : index
    %c0_102 = arith.constant 0 : index
    %95 = vector.load %arg11[%c1_100, %c1_101, %c0_102] : memref<10x10x8xbf16, #tpu.memory_space<vmem>>, vector<8x8x8xbf16>
    %96 = vector.shape_cast %95 : vector<8x8x8xbf16> to vector<64x8xbf16>
    %c4_103 = arith.constant 4 : index
    %c0_104 = arith.constant 0 : index
    %c0_105 = arith.constant 0 : index
    %97 = vector.load %arg7[%c4_103, %c0_104, %c0_105] : memref<9x8x8xbf16, #tpu.memory_space<vmem>>, vector<1x8x8xbf16>
    %98 = vector.shape_cast %97 : vector<1x8x8xbf16> to vector<8x8xbf16>
    %cst_106 = arith.constant dense<0.000000e+00> : vector<64x8xf32>
    %99 = tpu.matmul %96, %98, %cst_106 {dimension_numbers = #tpu.dot_dimension_numbers<[1], [0], [0], [1], [0, 0, 1, 1], [], []>} : vector<64x8xbf16>, vector<8x8xbf16>, vector<64x8xf32> -> vector<64x8xf32>
    %100 = arith.addf %94, %99 : vector<64x8xf32>
    %c1_107 = arith.constant 1 : index
    %c2_108 = arith.constant 2 : index
    %c0_109 = arith.constant 0 : index
    %101 = vector.load %arg11[%c1_107, %c2_108, %c0_109] : memref<10x10x8xbf16, #tpu.memory_space<vmem>>, vector<8x8x8xbf16>
    %102 = vector.shape_cast %101 : vector<8x8x8xbf16> to vector<64x8xbf16>
    %c5_110 = arith.constant 5 : index
    %c0_111 = arith.constant 0 : index
    %c0_112 = arith.constant 0 : index
    %103 = vector.load %arg7[%c5_110, %c0_111, %c0_112] : memref<9x8x8xbf16, #tpu.memory_space<vmem>>, vector<1x8x8xbf16>
    %104 = vector.shape_cast %103 : vector<1x8x8xbf16> to vector<8x8xbf16>
    %cst_113 = arith.constant dense<0.000000e+00> : vector<64x8xf32>
    %105 = tpu.matmul %102, %104, %cst_113 {dimension_numbers = #tpu.dot_dimension_numbers<[1], [0], [0], [1], [0, 0, 1, 1], [], []>} : vector<64x8xbf16>, vector<8x8xbf16>, vector<64x8xf32> -> vector<64x8xf32>
    %106 = arith.addf %100, %105 : vector<64x8xf32>
    %c2_114 = arith.constant 2 : index
    %c0_115 = arith.constant 0 : index
    %c0_116 = arith.constant 0 : index
    %107 = vector.load %arg11[%c2_114, %c0_115, %c0_116] : memref<10x10x8xbf16, #tpu.memory_space<vmem>>, vector<8x8x8xbf16>
    %108 = vector.shape_cast %107 : vector<8x8x8xbf16> to vector<64x8xbf16>
    %c6_117 = arith.constant 6 : index
    %c0_118 = arith.constant 0 : index
    %c0_119 = arith.constant 0 : index
    %109 = vector.load %arg7[%c6_117, %c0_118, %c0_119] : memref<9x8x8xbf16, #tpu.memory_space<vmem>>, vector<1x8x8xbf16>
    %110 = vector.shape_cast %109 : vector<1x8x8xbf16> to vector<8x8xbf16>
    %cst_120 = arith.constant dense<0.000000e+00> : vector<64x8xf32>
    %111 = tpu.matmul %108, %110, %cst_120 {dimension_numbers = #tpu.dot_dimension_numbers<[1], [0], [0], [1], [0, 0, 1, 1], [], []>} : vector<64x8xbf16>, vector<8x8xbf16>, vector<64x8xf32> -> vector<64x8xf32>
    %112 = arith.addf %106, %111 : vector<64x8xf32>
    %c2_121 = arith.constant 2 : index
    %c1_122 = arith.constant 1 : index
    %c0_123 = arith.constant 0 : index
    %113 = vector.load %arg11[%c2_121, %c1_122, %c0_123] : memref<10x10x8xbf16, #tpu.memory_space<vmem>>, vector<8x8x8xbf16>
    %114 = vector.shape_cast %113 : vector<8x8x8xbf16> to vector<64x8xbf16>
    %c7_124 = arith.constant 7 : index
    %c0_125 = arith.constant 0 : index
    %c0_126 = arith.constant 0 : index
    %115 = vector.load %arg7[%c7_124, %c0_125, %c0_126] : memref<9x8x8xbf16, #tpu.memory_space<vmem>>, vector<1x8x8xbf16>
    %116 = vector.shape_cast %115 : vector<1x8x8xbf16> to vector<8x8xbf16>
    %cst_127 = arith.constant dense<0.000000e+00> : vector<64x8xf32>
    %117 = tpu.matmul %114, %116, %cst_127 {dimension_numbers = #tpu.dot_dimension_numbers<[1], [0], [0], [1], [0, 0, 1, 1], [], []>} : vector<64x8xbf16>, vector<8x8xbf16>, vector<64x8xf32> -> vector<64x8xf32>
    %118 = arith.addf %112, %117 : vector<64x8xf32>
    %c2_128 = arith.constant 2 : index
    %c2_129 = arith.constant 2 : index
    %c0_130 = arith.constant 0 : index
    %119 = vector.load %arg11[%c2_128, %c2_129, %c0_130] : memref<10x10x8xbf16, #tpu.memory_space<vmem>>, vector<8x8x8xbf16>
    %120 = vector.shape_cast %119 : vector<8x8x8xbf16> to vector<64x8xbf16>
    %c8_131 = arith.constant 8 : index
    %c0_132 = arith.constant 0 : index
    %c0_133 = arith.constant 0 : index
    %121 = vector.load %arg7[%c8_131, %c0_132, %c0_133] : memref<9x8x8xbf16, #tpu.memory_space<vmem>>, vector<1x8x8xbf16>
    %122 = vector.shape_cast %121 : vector<1x8x8xbf16> to vector<8x8xbf16>
    %cst_134 = arith.constant dense<0.000000e+00> : vector<64x8xf32>
    %123 = tpu.matmul %120, %122, %cst_134 {dimension_numbers = #tpu.dot_dimension_numbers<[1], [0], [0], [1], [0, 0, 1, 1], [], []>} : vector<64x8xbf16>, vector<8x8xbf16>, vector<64x8xf32> -> vector<64x8xf32>
    %124 = arith.addf %118, %123 : vector<64x8xf32>
    %c0_135 = arith.constant 0 : index
    %c0_136 = arith.constant 0 : index
    %125 = vector.load %arg8[%c0_135, %c0_136] : memref<1x8xf32, #tpu.memory_space<vmem>>, vector<1x8xf32>
    %126 = vector.broadcast %125 : vector<1x8xf32> to vector<64x8xf32>
    %127 = arith.addf %124, %126 : vector<64x8xf32>
    %c0_137 = arith.constant 0 : index
    %c0_138 = arith.constant 0 : index
    %c0_139 = arith.constant 0 : index
    %c0_140 = arith.constant 0 : index
    %128 = vector.load %arg4[%c0_137, %c0_138, %c0_139, %c0_140] : memref<1x9x9x4xbf16, #tpu.memory_space<vmem>>, vector<1x8x8x4xbf16>
    %129 = vector.shape_cast %128 : vector<1x8x8x4xbf16> to vector<8x8x4xbf16>
    %130 = vector.shape_cast %129 : vector<8x8x4xbf16> to vector<64x4xbf16>
    %c0_141 = arith.constant 0 : index
    %c0_142 = arith.constant 0 : index
    %131 = vector.load %arg9[%c0_141, %c0_142] : memref<4x8xbf16, #tpu.memory_space<vmem>>, vector<4x8xbf16>
    %cst_143 = arith.constant dense<0.000000e+00> : vector<64x8xf32>
    %132 = tpu.matmul %130, %131, %cst_143 {dimension_numbers = #tpu.dot_dimension_numbers<[1], [0], [0], [1], [0, 0, 1, 1], [], []>} : vector<64x4xbf16>, vector<4x8xbf16>, vector<64x8xf32> -> vector<64x8xf32>
    %133 = arith.addf %127, %132 : vector<64x8xf32>
    %cst_144 = arith.constant 0.000000e+00 : f32
    %134 = vector.broadcast %cst_144 : f32 to vector<64x8xf32>
    %135 = arith.maximumf %133, %134 : vector<64x8xf32>
    %136 = vector.shape_cast %135 : vector<64x8xf32> to vector<8x8x8xf32>
    %137 = arith.truncf %136 : vector<8x8x8xf32> to vector<8x8x8xbf16>
    %c0_145 = arith.constant 0 : index
    %c0_146 = arith.constant 0 : index
    %c0_147 = arith.constant 0 : index
    %c0_148 = arith.constant 0 : index
    %138 = vector.load %arg10[%c0_145, %c0_146, %c0_147, %c0_148] : memref<1x8x8x8xbf16, #tpu.memory_space<vmem>>, vector<1x8x8x8xbf16>
    %139 = vector.shape_cast %138 : vector<1x8x8x8xbf16> to vector<8x8x8xbf16>
    %140 = vector.shape_cast %137 : vector<8x8x8xbf16> to vector<1x8x8x8xbf16>
    tpu.vector_store %arg10[%c0_145, %c0_146, %c0_147, %c0_148], %140 {strides = array<i32>} : memref<1x8x8x8xbf16, #tpu.memory_space<vmem>>, vector<1x8x8x8xbf16>,
    return
  }
  func.func @transform_0(%arg0: i32) -> (i32, i32, i32, i32) {
    %c0_i32 = arith.constant 0 : i32
    %c0_i32_0 = arith.constant 0 : i32
    %c0_i32_1 = arith.constant 0 : i32
    %c0_i32_2 = arith.constant 0 : i32
    return %arg0, %c0_i32, %c0_i32_0, %c0_i32_1 : i32, i32, i32, i32
  }
  func.func @transform_1(%arg0: i32) -> (i32, i32, i32, i32) {
    %c0_i32 = arith.constant 0 : i32
    %c0_i32_0 = arith.constant 0 : i32
    %c0_i32_1 = arith.constant 0 : i32
    %c0_i32_2 = arith.constant 0 : i32
    return %arg0, %c0_i32, %c0_i32_0, %c0_i32_1 : i32, i32, i32, i32
  }
  func.func @transform_2(%arg0: i32) -> (i32, i32, i32, i32) {
    %c0_i32 = arith.constant 0 : i32
    %c0_i32_0 = arith.constant 0 : i32
    %c0_i32_1 = arith.constant 0 : i32
    %c0_i32_2 = arith.constant 0 : i32
    return %arg0, %c0_i32, %c0_i32_0, %c0_i32_1 : i32, i32, i32, i32
  }
  func.func @transform_3(%arg0: i32) -> (i32, i32, i32, i32) {
    %c0_i32 = arith.constant 0 : i32
    %c0_i32_0 = arith.constant 0 : i32
    %c0_i32_1 = arith.constant 0 : i32
    %c0_i32_2 = arith.constant 0 : i32
    return %arg0, %c0_i32, %c0_i32_0, %c0_i32_1 : i32, i32, i32, i32
  }
  func.func @transform_4(%arg0: i32) -> (i32, i32, i32) {
    %c0_i32 = arith.constant 0 : i32
    %c0_i32_0 = arith.constant 0 : i32
    %c0_i32_1 = arith.constant 0 : i32
    %c0_i32_2 = arith.constant 0 : i32
    return %c0_i32, %c0_i32_0, %c0_i32_1 : i32, i32, i32
  }
  func.func @transform_5(%arg0: i32) -> (i32, i32) {
    %c0_i32 = arith.constant 0 : i32
    %c0_i32_0 = arith.constant 0 : i32
    %c0_i32_1 = arith.constant 0 : i32
    return %c0_i32, %c0_i32_0 : i32, i32
  }
  func.func @transform_6(%arg0: i32) -> (i32, i32, i32) {
    %c0_i32 = arith.constant 0 : i32
    %c0_i32_0 = arith.constant 0 : i32
    %c0_i32_1 = arith.constant 0 : i32
    %c0_i32_2 = arith.constant 0 : i32
    return %c0_i32, %c0_i32_0, %c0_i32_1 : i32, i32, i32
  }
  func.func @transform_7(%arg0: i32) -> (i32, i32) {
    %c0_i32 = arith.constant 0 : i32
    %c0_i32_0 = arith.constant 0 : i32
    %c0_i32_1 = arith.constant 0 : i32
    return %c0_i32, %c0_i32_0 : i32, i32
  }
  func.func @transform_8(%arg0: i32) -> (i32, i32) {
    %c0_i32 = arith.constant 0 : i32
    %c0_i32_0 = arith.constant 0 : i32
    %c0_i32_1 = arith.constant 0 : i32
    return %c0_i32, %c0_i32_0 : i32, i32
  }
  func.func @transform_9(%arg0: i32) -> (i32, i32, i32, i32) {
    %c0_i32 = arith.constant 0 : i32
    %c0_i32_0 = arith.constant 0 : i32
    %c0_i32_1 = arith.constant 0 : i32
    %c0_i32_2 = arith.constant 0 : i32
    return %arg0, %c0_i32, %c0_i32_0, %c0_i32_1 : i32, i32, i32, i32
  }
}

module attributes {stable_mosaic.version = 11 : i64} {
  func.func @_basic_block_kernel(%arg0: i32, %arg1: memref<1x9x9x4xbf16, #tpu.memory_space<vmem>>, %arg2: memref<1x9x9x4xbf16, #tpu.memory_space<vmem>>, %arg3: memref<1x9x9x4xbf16, #tpu.memory_space<vmem>>, %arg4: memref<1x9x9x4xbf16, #tpu.memory_space<vmem>>, %arg5: memref<9x4x8xbf16, #tpu.memory_space<vmem>>, %arg6: memref<1x8xf32, #tpu.memory_space<vmem>>, %arg7: memref<9x8x8xbf16, #tpu.memory_space<vmem>>, %arg8: memref<1x8xf32, #tpu.memory_space<vmem>>, %arg9: memref<4x8xbf16, #tpu.memory_space<vmem>>, %arg10: memref<1x8x8x8xbf16, #tpu.memory_space<vmem>>, %arg11: memref<10x10x8xbf16, #tpu.memory_space<vmem>>) attributes {dimension_semantics = [#tpu.dimension_semantics<parallel>], iteration_bounds = array<i64: 2>, scalar_prefetch = 0 : i64, scratch_operands = 1 : i64, tpu.core_type = #tpu.core_type<tc>, window_params = [{transform_indices = @transform_0, window_bounds = array<i64: 1, 9, 9, 4>}, {transform_indices = @transform_1, window_bounds = array<i64: 1, 9, 9, 4>}, {transform_indices = @transform_2, window_bounds = array<i64: 1, 9, 9, 4>}, {transform_indices = @transform_3, window_bounds = array<i64: 1, 9, 9, 4>}, {pipeline_mode = #tpu.pipeline_mode<synchronous>, transform_indices = @transform_4, window_bounds = array<i64: 9, 4, 8>}, {pipeline_mode = #tpu.pipeline_mode<synchronous>, transform_indices = @transform_5, window_bounds = array<i64: 1, 8>}, {pipeline_mode = #tpu.pipeline_mode<synchronous>, transform_indices = @transform_6, window_bounds = array<i64: 9, 8, 8>}, {pipeline_mode = #tpu.pipeline_mode<synchronous>, transform_indices = @transform_7, window_bounds = array<i64: 1, 8>}, {pipeline_mode = #tpu.pipeline_mode<synchronous>, transform_indices = @transform_8, window_bounds = array<i64: 4, 8>}, {transform_indices = @transform_9, window_bounds = array<i64: 1, 8, 8, 8>}]} {
    %c0 = arith.constant 0 : index
    %c0_0 = arith.constant 0 : index
    %c0_1 = arith.constant 0 : index
    %c0_2 = arith.constant 0 : index
    %0 = vector.load %arg1[%c0, %c0_0, %c0_1, %c0_2] : memref<1x9x9x4xbf16, #tpu.memory_space<vmem>>, vector<1x8x8x4xbf16>
    %1 = vector.shape_cast %0 : vector<1x8x8x4xbf16> to vector<8x8x4xbf16>
    %2 = vector.shape_cast %1 : vector<8x8x4xbf16> to vector<64x4xbf16>
    %c0_3 = arith.constant 0 : index
    %c0_4 = arith.constant 0 : index
    %c0_5 = arith.constant 0 : index
    %3 = vector.load %arg5[%c0_3, %c0_4, %c0_5] : memref<9x4x8xbf16, #tpu.memory_space<vmem>>, vector<1x4x8xbf16>
    %4 = vector.shape_cast %3 : vector<1x4x8xbf16> to vector<4x8xbf16>
    %cst = arith.constant dense<0.000000e+00> : vector<64x8xf32>
    %5 = tpu.matmul %2, %4, %cst {dimension_numbers = #tpu.dot_dimension_numbers<[1], [0], [0], [1], [0, 0, 1, 1], [], []>} : vector<64x4xbf16>, vector<4x8xbf16>, vector<64x8xf32> -> vector<64x8xf32>
    %c0_6 = arith.constant 0 : index
    %c0_7 = arith.constant 0 : index
    %c0_8 = arith.constant 0 : index
    %c0_9 = arith.constant 0 : index
    %6 = vector.load %arg2[%c0_6, %c0_7, %c0_8, %c0_9] : memref<1x9x9x4xbf16, #tpu.memory_space<vmem>>, vector<1x8x8x4xbf16>
    %7 = vector.shape_cast %6 : vector<1x8x8x4xbf16> to vector<8x8x4xbf16>
    %8 = vector.shape_cast %7 : vector<8x8x4xbf16> to vector<64x4xbf16>
    %c1 = arith.constant 1 : index
    %c0_10 = arith.constant 0 : index
    %c0_11 = arith.constant 0 : index
    %9 = vector.load %arg5[%c1, %c0_10, %c0_11] : memref<9x4x8xbf16, #tpu.memory_space<vmem>>, vector<1x4x8xbf16>
    %10 = vector.shape_cast %9 : vector<1x4x8xbf16> to vector<4x8xbf16>
    %cst_12 = arith.constant dense<0.000000e+00> : vector<64x8xf32>
    %11 = tpu.matmul %8, %10, %cst_12 {dimension_numbers = #tpu.dot_dimension_numbers<[1], [0], [0], [1], [0, 0, 1, 1], [], []>} : vector<64x4xbf16>, vector<4x8xbf16>, vector<64x8xf32> -> vector<64x8xf32>
    %12 = arith.addf %5, %11 : vector<64x8xf32>
    %c0_13 = arith.constant 0 : index
    %c0_14 = arith.constant 0 : index
    %c1_15 = arith.constant 1 : index
    %c0_16 = arith.constant 0 : index
    %13 = vector.load %arg1[%c0_13, %c0_14, %c1_15, %c0_16] : memref<1x9x9x4xbf16, #tpu.memory_space<vmem>>, vector<1x8x8x4xbf16>
    %14 = vector.shape_cast %13 : vector<1x8x8x4xbf16> to vector<8x8x4xbf16>
    %15 = vector.shape_cast %14 : vector<8x8x4xbf16> to vector<64x4xbf16>
    %c2 = arith.constant 2 : index
    %c0_17 = arith.constant 0 : index
    %c0_18 = arith.constant 0 : index
    %16 = vector.load %arg5[%c2, %c0_17, %c0_18] : memref<9x4x8xbf16, #tpu.memory_space<vmem>>, vector<1x4x8xbf16>
    %17 = vector.shape_cast %16 : vector<1x4x8xbf16> to vector<4x8xbf16>
    %cst_19 = arith.constant dense<0.000000e+00> : vector<64x8xf32>
    %18 = tpu.matmul %15, %17, %cst_19 {dimension_numbers = #tpu.dot_dimension_numbers<[1], [0], [0], [1], [0, 0, 1, 1], [], []>} : vector<64x4xbf16>, vector<4x8xbf16>, vector<64x8xf32> -> vector<64x8xf32>
    %19 = arith.addf %12, %18 : vector<64x8xf32>
    %c0_20 = arith.constant 0 : index
    %c0_21 = arith.constant 0 : index
    %c0_22 = arith.constant 0 : index
    %c0_23 = arith.constant 0 : index
    %20 = vector.load %arg3[%c0_20, %c0_21, %c0_22, %c0_23] : memref<1x9x9x4xbf16, #tpu.memory_space<vmem>>, vector<1x8x8x4xbf16>
    %21 = vector.shape_cast %20 : vector<1x8x8x4xbf16> to vector<8x8x4xbf16>
    %22 = vector.shape_cast %21 : vector<8x8x4xbf16> to vector<64x4xbf16>
    %c3 = arith.constant 3 : index
    %c0_24 = arith.constant 0 : index
    %c0_25 = arith.constant 0 : index
    %23 = vector.load %arg5[%c3, %c0_24, %c0_25] : memref<9x4x8xbf16, #tpu.memory_space<vmem>>, vector<1x4x8xbf16>
    %24 = vector.shape_cast %23 : vector<1x4x8xbf16> to vector<4x8xbf16>
    %cst_26 = arith.constant dense<0.000000e+00> : vector<64x8xf32>
    %25 = tpu.matmul %22, %24, %cst_26 {dimension_numbers = #tpu.dot_dimension_numbers<[1], [0], [0], [1], [0, 0, 1, 1], [], []>} : vector<64x4xbf16>, vector<4x8xbf16>, vector<64x8xf32> -> vector<64x8xf32>
    %26 = arith.addf %19, %25 : vector<64x8xf32>
    %c0_27 = arith.constant 0 : index
    %c0_28 = arith.constant 0 : index
    %c0_29 = arith.constant 0 : index
    %c0_30 = arith.constant 0 : index
    %27 = vector.load %arg4[%c0_27, %c0_28, %c0_29, %c0_30] : memref<1x9x9x4xbf16, #tpu.memory_space<vmem>>, vector<1x8x8x4xbf16>
    %28 = vector.shape_cast %27 : vector<1x8x8x4xbf16> to vector<8x8x4xbf16>
    %29 = vector.shape_cast %28 : vector<8x8x4xbf16> to vector<64x4xbf16>
    %c4 = arith.constant 4 : index
    %c0_31 = arith.constant 0 : index
    %c0_32 = arith.constant 0 : index
    %30 = vector.load %arg5[%c4, %c0_31, %c0_32] : memref<9x4x8xbf16, #tpu.memory_space<vmem>>, vector<1x4x8xbf16>
    %31 = vector.shape_cast %30 : vector<1x4x8xbf16> to vector<4x8xbf16>
    %cst_33 = arith.constant dense<0.000000e+00> : vector<64x8xf32>
    %32 = tpu.matmul %29, %31, %cst_33 {dimension_numbers = #tpu.dot_dimension_numbers<[1], [0], [0], [1], [0, 0, 1, 1], [], []>} : vector<64x4xbf16>, vector<4x8xbf16>, vector<64x8xf32> -> vector<64x8xf32>
    %33 = arith.addf %26, %32 : vector<64x8xf32>
    %c0_34 = arith.constant 0 : index
    %c0_35 = arith.constant 0 : index
    %c1_36 = arith.constant 1 : index
    %c0_37 = arith.constant 0 : index
    %34 = vector.load %arg3[%c0_34, %c0_35, %c1_36, %c0_37] : memref<1x9x9x4xbf16, #tpu.memory_space<vmem>>, vector<1x8x8x4xbf16>
    %35 = vector.shape_cast %34 : vector<1x8x8x4xbf16> to vector<8x8x4xbf16>
    %36 = vector.shape_cast %35 : vector<8x8x4xbf16> to vector<64x4xbf16>
    %c5 = arith.constant 5 : index
    %c0_38 = arith.constant 0 : index
    %c0_39 = arith.constant 0 : index
    %37 = vector.load %arg5[%c5, %c0_38, %c0_39] : memref<9x4x8xbf16, #tpu.memory_space<vmem>>, vector<1x4x8xbf16>
    %38 = vector.shape_cast %37 : vector<1x4x8xbf16> to vector<4x8xbf16>
    %cst_40 = arith.constant dense<0.000000e+00> : vector<64x8xf32>
    %39 = tpu.matmul %36, %38, %cst_40 {dimension_numbers = #tpu.dot_dimension_numbers<[1], [0], [0], [1], [0, 0, 1, 1], [], []>} : vector<64x4xbf16>, vector<4x8xbf16>, vector<64x8xf32> -> vector<64x8xf32>
    %40 = arith.addf %33, %39 : vector<64x8xf32>
    %c0_41 = arith.constant 0 : index
    %c1_42 = arith.constant 1 : index
    %c0_43 = arith.constant 0 : index
    %c0_44 = arith.constant 0 : index
    %41 = vector.load %arg1[%c0_41, %c1_42, %c0_43, %c0_44] : memref<1x9x9x4xbf16, #tpu.memory_space<vmem>>, vector<1x8x8x4xbf16>
    %42 = vector.shape_cast %41 : vector<1x8x8x4xbf16> to vector<8x8x4xbf16>
    %43 = vector.shape_cast %42 : vector<8x8x4xbf16> to vector<64x4xbf16>
    %c6 = arith.constant 6 : index
    %c0_45 = arith.constant 0 : index
    %c0_46 = arith.constant 0 : index
    %44 = vector.load %arg5[%c6, %c0_45, %c0_46] : memref<9x4x8xbf16, #tpu.memory_space<vmem>>, vector<1x4x8xbf16>
    %45 = vector.shape_cast %44 : vector<1x4x8xbf16> to vector<4x8xbf16>
    %cst_47 = arith.constant dense<0.000000e+00> : vector<64x8xf32>
    %46 = tpu.matmul %43, %45, %cst_47 {dimension_numbers = #tpu.dot_dimension_numbers<[1], [0], [0], [1], [0, 0, 1, 1], [], []>} : vector<64x4xbf16>, vector<4x8xbf16>, vector<64x8xf32> -> vector<64x8xf32>
    %47 = arith.addf %40, %46 : vector<64x8xf32>
    %c0_48 = arith.constant 0 : index
    %c1_49 = arith.constant 1 : index
    %c0_50 = arith.constant 0 : index
    %c0_51 = arith.constant 0 : index
    %48 = vector.load %arg2[%c0_48, %c1_49, %c0_50, %c0_51] : memref<1x9x9x4xbf16, #tpu.memory_space<vmem>>, vector<1x8x8x4xbf16>
    %49 = vector.shape_cast %48 : vector<1x8x8x4xbf16> to vector<8x8x4xbf16>
    %50 = vector.shape_cast %49 : vector<8x8x4xbf16> to vector<64x4xbf16>
    %c7 = arith.constant 7 : index
    %c0_52 = arith.constant 0 : index
    %c0_53 = arith.constant 0 : index
    %51 = vector.load %arg5[%c7, %c0_52, %c0_53] : memref<9x4x8xbf16, #tpu.memory_space<vmem>>, vector<1x4x8xbf16>
    %52 = vector.shape_cast %51 : vector<1x4x8xbf16> to vector<4x8xbf16>
    %cst_54 = arith.constant dense<0.000000e+00> : vector<64x8xf32>
    %53 = tpu.matmul %50, %52, %cst_54 {dimension_numbers = #tpu.dot_dimension_numbers<[1], [0], [0], [1], [0, 0, 1, 1], [], []>} : vector<64x4xbf16>, vector<4x8xbf16>, vector<64x8xf32> -> vector<64x8xf32>
    %54 = arith.addf %47, %53 : vector<64x8xf32>
    %c0_55 = arith.constant 0 : index
    %c1_56 = arith.constant 1 : index
    %c1_57 = arith.constant 1 : index
    %c0_58 = arith.constant 0 : index
    %55 = vector.load %arg1[%c0_55, %c1_56, %c1_57, %c0_58] : memref<1x9x9x4xbf16, #tpu.memory_space<vmem>>, vector<1x8x8x4xbf16>
    %56 = vector.shape_cast %55 : vector<1x8x8x4xbf16> to vector<8x8x4xbf16>
    %57 = vector.shape_cast %56 : vector<8x8x4xbf16> to vector<64x4xbf16>
    %c8 = arith.constant 8 : index
    %c0_59 = arith.constant 0 : index
    %c0_60 = arith.constant 0 : index
    %58 = vector.load %arg5[%c8, %c0_59, %c0_60] : memref<9x4x8xbf16, #tpu.memory_space<vmem>>, vector<1x4x8xbf16>
    %59 = vector.shape_cast %58 : vector<1x4x8xbf16> to vector<4x8xbf16>
    %cst_61 = arith.constant dense<0.000000e+00> : vector<64x8xf32>
    %60 = tpu.matmul %57, %59, %cst_61 {dimension_numbers = #tpu.dot_dimension_numbers<[1], [0], [0], [1], [0, 0, 1, 1], [], []>} : vector<64x4xbf16>, vector<4x8xbf16>, vector<64x8xf32> -> vector<64x8xf32>
    %61 = arith.addf %54, %60 : vector<64x8xf32>
    %c0_62 = arith.constant 0 : index
    %c0_63 = arith.constant 0 : index
    %62 = vector.load %arg6[%c0_62, %c0_63] : memref<1x8xf32, #tpu.memory_space<vmem>>, vector<1x8xf32>
    %63 = vector.broadcast %62 : vector<1x8xf32> to vector<64x8xf32>
    %64 = arith.addf %61, %63 : vector<64x8xf32>
    %cst_64 = arith.constant 0.000000e+00 : f32
    %65 = vector.broadcast %cst_64 : f32 to vector<64x8xf32>
    %66 = arith.maximumf %64, %65 : vector<64x8xf32>
    %67 = arith.truncf %66 : vector<64x8xf32> to vector<64x8xbf16>
    %cst_65 = arith.constant 0.000000e+00 : bf16
    %68 = vector.broadcast %cst_65 : bf16 to vector<10x10x8xbf16>
    %c0_66 = arith.constant 0 : index
    %c0_67 = arith.constant 0 : index
    %c0_68 = arith.constant 0 : index
    %69 = vector.load %arg11[%c0_66, %c0_67, %c0_68] : memref<10x10x8xbf16, #tpu.memory_space<vmem>>, vector<10x10x8xbf16>
    tpu.vector_store %arg11[%c0_66, %c0_67, %c0_68], %68 {strides = array<i32>} : memref<10x10x8xbf16, #tpu.memory_space<vmem>>, vector<10x10x8xbf16>,
    %70 = vector.shape_cast %67 : vector<64x8xbf16> to vector<8x8x8xbf16>
    %c1_69 = arith.constant 1 : index
    %c1_70 = arith.constant 1 : index
    %c0_71 = arith.constant 0 : index
    %71 = vector.load %arg11[%c1_69, %c1_70, %c0_71] : memref<10x10x8xbf16, #tpu.memory_space<vmem>>, vector<8x8x8xbf16>
    tpu.vector_store %arg11[%c1_69, %c1_70, %c0_71], %70 {strides = array<i32>} : memref<10x10x8xbf16, #tpu.memory_space<vmem>>, vector<8x8x8xbf16>,
    %c0_72 = arith.constant 0 : index
    %c0_73 = arith.constant 0 : index
    %c0_74 = arith.constant 0 : index
    %72 = vector.load %arg11[%c0_72, %c0_73, %c0_74] : memref<10x10x8xbf16, #tpu.memory_space<vmem>>, vector<8x8x8xbf16>
    %73 = vector.shape_cast %72 : vector<8x8x8xbf16> to vector<64x8xbf16>
    %c0_75 = arith.constant 0 : index
    %c0_76 = arith.constant 0 : index
    %c0_77 = arith.constant 0 : index
    %74 = vector.load %arg7[%c0_75, %c0_76, %c0_77] : memref<9x8x8xbf16, #tpu.memory_space<vmem>>, vector<1x8x8xbf16>
    %75 = vector.shape_cast %74 : vector<1x8x8xbf16> to vector<8x8xbf16>
    %cst_78 = arith.constant dense<0.000000e+00> : vector<64x8xf32>
    %76 = tpu.matmul %73, %75, %cst_78 {dimension_numbers = #tpu.dot_dimension_numbers<[1], [0], [0], [1], [0, 0, 1, 1], [], []>} : vector<64x8xbf16>, vector<8x8xbf16>, vector<64x8xf32> -> vector<64x8xf32>
    %c0_79 = arith.constant 0 : index
    %c1_80 = arith.constant 1 : index
    %c0_81 = arith.constant 0 : index
    %77 = vector.load %arg11[%c0_79, %c1_80, %c0_81] : memref<10x10x8xbf16, #tpu.memory_space<vmem>>, vector<8x8x8xbf16>
    %78 = vector.shape_cast %77 : vector<8x8x8xbf16> to vector<64x8xbf16>
    %c1_82 = arith.constant 1 : index
    %c0_83 = arith.constant 0 : index
    %c0_84 = arith.constant 0 : index
    %79 = vector.load %arg7[%c1_82, %c0_83, %c0_84] : memref<9x8x8xbf16, #tpu.memory_space<vmem>>, vector<1x8x8xbf16>
    %80 = vector.shape_cast %79 : vector<1x8x8xbf16> to vector<8x8xbf16>
    %cst_85 = arith.constant dense<0.000000e+00> : vector<64x8xf32>
    %81 = tpu.matmul %78, %80, %cst_85 {dimension_numbers = #tpu.dot_dimension_numbers<[1], [0], [0], [1], [0, 0, 1, 1], [], []>} : vector<64x8xbf16>, vector<8x8xbf16>, vector<64x8xf32> -> vector<64x8xf32>
    %82 = arith.addf %76, %81 : vector<64x8xf32>
    %c0_86 = arith.constant 0 : index
    %c2_87 = arith.constant 2 : index
    %c0_88 = arith.constant 0 : index
    %83 = vector.load %arg11[%c0_86, %c2_87, %c0_88] : memref<10x10x8xbf16, #tpu.memory_space<vmem>>, vector<8x8x8xbf16>
    %84 = vector.shape_cast %83 : vector<8x8x8xbf16> to vector<64x8xbf16>
    %c2_89 = arith.constant 2 : index
    %c0_90 = arith.constant 0 : index
    %c0_91 = arith.constant 0 : index
    %85 = vector.load %arg7[%c2_89, %c0_90, %c0_91] : memref<9x8x8xbf16, #tpu.memory_space<vmem>>, vector<1x8x8xbf16>
    %86 = vector.shape_cast %85 : vector<1x8x8xbf16> to vector<8x8xbf16>
    %cst_92 = arith.constant dense<0.000000e+00> : vector<64x8xf32>
    %87 = tpu.matmul %84, %86, %cst_92 {dimension_numbers = #tpu.dot_dimension_numbers<[1], [0], [0], [1], [0, 0, 1, 1], [], []>} : vector<64x8xbf16>, vector<8x8xbf16>, vector<64x8xf32> -> vector<64x8xf32>
    %88 = arith.addf %82, %87 : vector<64x8xf32>
    %c1_93 = arith.constant 1 : index
    %c0_94 = arith.constant 0 : index
    %c0_95 = arith.constant 0 : index
    %89 = vector.load %arg11[%c1_93, %c0_94, %c0_95] : memref<10x10x8xbf16, #tpu.memory_space<vmem>>, vector<8x8x8xbf16>
    %90 = vector.shape_cast %89 : vector<8x8x8xbf16> to vector<64x8xbf16>
    %c3_96 = arith.constant 3 : index
    %c0_97 = arith.constant 0 : index
    %c0_98 = arith.constant 0 : index
    %91 = vector.load %arg7[%c3_96, %c0_97, %c0_98] : memref<9x8x8xbf16, #tpu.memory_space<vmem>>, vector<1x8x8xbf16>
    %92 = vector.shape_cast %91 : vector<1x8x8xbf16> to vector<8x8xbf16>
    %cst_99 = arith.constant dense<0.000000e+00> : vector<64x8xf32>
    %93 = tpu.matmul %90, %92, %cst_99 {dimension_numbers = #tpu.dot_dimension_numbers<[1], [0], [0], [1], [0, 0, 1, 1], [], []>} : vector<64x8xbf16>, vector<8x8xbf16>, vector<64x8xf32> -> vector<64x8xf32>
    %94 = arith.addf %88, %93 : vector<64x8xf32>
    %c1_100 = arith.constant 1 : index
    %c1_101 = arith.constant 1 : index
    %c0_102 = arith.constant 0 : index
    %95 = vector.load %arg11[%c1_100, %c1_101, %c0_102] : memref<10x10x8xbf16, #tpu.memory_space<vmem>>, vector<8x8x8xbf16>
    %96 = vector.shape_cast %95 : vector<8x8x8xbf16> to vector<64x8xbf16>
    %c4_103 = arith.constant 4 : index
    %c0_104 = arith.constant 0 : index
    %c0_105 = arith.constant 0 : index
    %97 = vector.load %arg7[%c4_103, %c0_104, %c0_105] : memref<9x8x8xbf16, #tpu.memory_space<vmem>>, vector<1x8x8xbf16>
    %98 = vector.shape_cast %97 : vector<1x8x8xbf16> to vector<8x8xbf16>
    %cst_106 = arith.constant dense<0.000000e+00> : vector<64x8xf32>
    %99 = tpu.matmul %96, %98, %cst_106 {dimension_numbers = #tpu.dot_dimension_numbers<[1], [0], [0], [1], [0, 0, 1, 1], [], []>} : vector<64x8xbf16>, vector<8x8xbf16>, vector<64x8xf32> -> vector<64x8xf32>
    %100 = arith.addf %94, %99 : vector<64x8xf32>
    %c1_107 = arith.constant 1 : index
    %c2_108 = arith.constant 2 : index
    %c0_109 = arith.constant 0 : index
    %101 = vector.load %arg11[%c1_107, %c2_108, %c0_109] : memref<10x10x8xbf16, #tpu.memory_space<vmem>>, vector<8x8x8xbf16>
    %102 = vector.shape_cast %101 : vector<8x8x8xbf16> to vector<64x8xbf16>
    %c5_110 = arith.constant 5 : index
    %c0_111 = arith.constant 0 : index
    %c0_112 = arith.constant 0 : index
    %103 = vector.load %arg7[%c5_110, %c0_111, %c0_112] : memref<9x8x8xbf16, #tpu.memory_space<vmem>>, vector<1x8x8xbf16>
    %104 = vector.shape_cast %103 : vector<1x8x8xbf16> to vector<8x8xbf16>
    %cst_113 = arith.constant dense<0.000000e+00> : vector<64x8xf32>
    %105 = tpu.matmul %102, %104, %cst_113 {dimension_numbers = #tpu.dot_dimension_numbers<[1], [0], [0], [1], [0, 0, 1, 1], [], []>} : vector<64x8xbf16>, vector<8x8xbf16>, vector<64x8xf32> -> vector<64x8xf32>
    %106 = arith.addf %100, %105 : vector<64x8xf32>
    %c2_114 = arith.constant 2 : index
    %c0_115 = arith.constant 0 : index
    %c0_116 = arith.constant 0 : index
    %107 = vector.load %arg11[%c2_114, %c0_115, %c0_116] : memref<10x10x8xbf16, #tpu.memory_space<vmem>>, vector<8x8x8xbf16>
    %108 = vector.shape_cast %107 : vector<8x8x8xbf16> to vector<64x8xbf16>
    %c6_117 = arith.constant 6 : index
    %c0_118 = arith.constant 0 : index
    %c0_119 = arith.constant 0 : index
    %109 = vector.load %arg7[%c6_117, %c0_118, %c0_119] : memref<9x8x8xbf16, #tpu.memory_space<vmem>>, vector<1x8x8xbf16>
    %110 = vector.shape_cast %109 : vector<1x8x8xbf16> to vector<8x8xbf16>
    %cst_120 = arith.constant dense<0.000000e+00> : vector<64x8xf32>
    %111 = tpu.matmul %108, %110, %cst_120 {dimension_numbers = #tpu.dot_dimension_numbers<[1], [0], [0], [1], [0, 0, 1, 1], [], []>} : vector<64x8xbf16>, vector<8x8xbf16>, vector<64x8xf32> -> vector<64x8xf32>
    %112 = arith.addf %106, %111 : vector<64x8xf32>
    %c2_121 = arith.constant 2 : index
    %c1_122 = arith.constant 1 : index
    %c0_123 = arith.constant 0 : index
    %113 = vector.load %arg11[%c2_121, %c1_122, %c0_123] : memref<10x10x8xbf16, #tpu.memory_space<vmem>>, vector<8x8x8xbf16>
    %114 = vector.shape_cast %113 : vector<8x8x8xbf16> to vector<64x8xbf16>
    %c7_124 = arith.constant 7 : index
    %c0_125 = arith.constant 0 : index
    %c0_126 = arith.constant 0 : index
    %115 = vector.load %arg7[%c7_124, %c0_125, %c0_126] : memref<9x8x8xbf16, #tpu.memory_space<vmem>>, vector<1x8x8xbf16>
    %116 = vector.shape_cast %115 : vector<1x8x8xbf16> to vector<8x8xbf16>
    %cst_127 = arith.constant dense<0.000000e+00> : vector<64x8xf32>
    %117 = tpu.matmul %114, %116, %cst_127 {dimension_numbers = #tpu.dot_dimension_numbers<[1], [0], [0], [1], [0, 0, 1, 1], [], []>} : vector<64x8xbf16>, vector<8x8xbf16>, vector<64x8xf32> -> vector<64x8xf32>
    %118 = arith.addf %112, %117 : vector<64x8xf32>
    %c2_128 = arith.constant 2 : index
    %c2_129 = arith.constant 2 : index
    %c0_130 = arith.constant 0 : index
    %119 = vector.load %arg11[%c2_128, %c2_129, %c0_130] : memref<10x10x8xbf16, #tpu.memory_space<vmem>>, vector<8x8x8xbf16>
    %120 = vector.shape_cast %119 : vector<8x8x8xbf16> to vector<64x8xbf16>
    %c8_131 = arith.constant 8 : index
    %c0_132 = arith.constant 0 : index
    %c0_133 = arith.constant 0 : index
    %121 = vector.load %arg7[%c8_131, %c0_132, %c0_133] : memref<9x8x8xbf16, #tpu.memory_space<vmem>>, vector<1x8x8xbf16>
    %122 = vector.shape_cast %121 : vector<1x8x8xbf16> to vector<8x8xbf16>
    %cst_134 = arith.constant dense<0.000000e+00> : vector<64x8xf32>
    %123 = tpu.matmul %120, %122, %cst_134 {dimension_numbers = #tpu.dot_dimension_numbers<[1], [0], [0], [1], [0, 0, 1, 1], [], []>} : vector<64x8xbf16>, vector<8x8xbf16>, vector<64x8xf32> -> vector<64x8xf32>
    %124 = arith.addf %118, %123 : vector<64x8xf32>
    %c0_135 = arith.constant 0 : index
    %c0_136 = arith.constant 0 : index
    %125 = vector.load %arg8[%c0_135, %c0_136] : memref<1x8xf32, #tpu.memory_space<vmem>>, vector<1x8xf32>
    %126 = vector.broadcast %125 : vector<1x8xf32> to vector<64x8xf32>
    %127 = arith.addf %124, %126 : vector<64x8xf32>
    %c0_137 = arith.constant 0 : index
    %c0_138 = arith.constant 0 : index
    %c0_139 = arith.constant 0 : index
    %c0_140 = arith.constant 0 : index
    %128 = vector.load %arg4[%c0_137, %c0_138, %c0_139, %c0_140] : memref<1x9x9x4xbf16, #tpu.memory_space<vmem>>, vector<1x8x8x4xbf16>
    %129 = vector.shape_cast %128 : vector<1x8x8x4xbf16> to vector<8x8x4xbf16>
    %130 = vector.shape_cast %129 : vector<8x8x4xbf16> to vector<64x4xbf16>
    %c0_141 = arith.constant 0 : index
    %c0_142 = arith.constant 0 : index
    %131 = vector.load %arg9[%c0_141, %c0_142] : memref<4x8xbf16, #tpu.memory_space<vmem>>, vector<4x8xbf16>
    %cst_143 = arith.constant dense<0.000000e+00> : vector<64x8xf32>
    %132 = tpu.matmul %130, %131, %cst_143 {dimension_numbers = #tpu.dot_dimension_numbers<[1], [0], [0], [1], [0, 0, 1, 1], [], []>} : vector<64x4xbf16>, vector<4x8xbf16>, vector<64x8xf32> -> vector<64x8xf32>
    %133 = arith.addf %127, %132 : vector<64x8xf32>
    %cst_144 = arith.constant 0.000000e+00 : f32
    %134 = vector.broadcast %cst_144 : f32 to vector<64x8xf32>
    %135 = arith.maximumf %133, %134 : vector<64x8xf32>
    %136 = vector.shape_cast %135 : vector<64x8xf32> to vector<8x8x8xf32>
    %137 = arith.truncf %136 : vector<8x8x8xf32> to vector<8x8x8xbf16>
    %c0_145 = arith.constant 0 : index
    %c0_146 = arith.constant 0 : index
    %c0_147 = arith.constant 0 : index
    %c0_148 = arith.constant 0 : index
    %138 = vector.load %arg10[%c0_145, %c0_146, %c0_147, %c0_148] : memref<1x8x8x8xbf16, #tpu.memory_space<vmem>>, vector<1x8x8x8xbf16>
    %139 = vector.shape_cast %138 : vector<1x8x8x8xbf16> to vector<8x8x8xbf16>
    %140 = vector.shape_cast %137 : vector<8x8x8xbf16> to vector<1x8x8x8xbf16>
    tpu.vector_store %arg10[%c0_145, %c0_146, %c0_147, %c0_148], %140 {strides = array<i32>} : memref<1x8x8x8xbf16, #tpu.memory_space<vmem>>, vector<1x8x8x8xbf16>,
    return
  }
  func.func @transform_0(%arg0: i32) -> (i32, i32, i32, i32) {
    %c0_i32 = arith.constant 0 : i32
    %c0_i32_0 = arith.constant 0 : i32
    %c0_i32_1 = arith.constant 0 : i32
    %c0_i32_2 = arith.constant 0 : i32
    return %arg0, %c0_i32, %c0_i32_0, %c0_i32_1 : i32, i32, i32, i32
  }
  func.func @transform_1(%arg0: i32) -> (i32, i32, i32, i32) {
    %c0_i32 = arith.constant 0 : i32
    %c0_i32_0 = arith.constant 0 : i32
    %c0_i32_1 = arith.constant 0 : i32
    %c0_i32_2 = arith.constant 0 : i32
    return %arg0, %c0_i32, %c0_i32_0, %c0_i32_1 : i32, i32, i32, i32
  }
  func.func @transform_2(%arg0: i32) -> (i32, i32, i32, i32) {
    %c0_i32 = arith.constant 0 : i32
    %c0_i32_0 = arith.constant 0 : i32
    %c0_i32_1 = arith.constant 0 : i32
    %c0_i32_2 = arith.constant 0 : i32
    return %arg0, %c0_i32, %c0_i32_0, %c0_i32_1 : i32, i32, i32, i32
  }
  func.func @transform_3(%arg0: i32) -> (i32, i32, i32, i32) {
    %c0_i32 = arith.constant 0 : i32
    %c0_i32_0 = arith.constant 0 : i32
    %c0_i32_1 = arith.constant 0 : i32
    %c0_i32_2 = arith.constant 0 : i32
    return %arg0, %c0_i32, %c0_i32_0, %c0_i32_1 : i32, i32, i32, i32
  }
  func.func @transform_4(%arg0: i32) -> (i32, i32, i32) {
    %c0_i32 = arith.constant 0 : i32
    %c0_i32_0 = arith.constant 0 : i32
    %c0_i32_1 = arith.constant 0 : i32
    %c0_i32_2 = arith.constant 0 : i32
    return %c0_i32, %c0_i32_0, %c0_i32_1 : i32, i32, i32
  }
  func.func @transform_5(%arg0: i32) -> (i32, i32) {
    %c0_i32 = arith.constant 0 : i32
    %c0_i32_0 = arith.constant 0 : i32
    %c0_i32_1 = arith.constant 0 : i32
    return %c0_i32, %c0_i32_0 : i32, i32
  }
  func.func @transform_6(%arg0: i32) -> (i32, i32, i32) {
    %c0_i32 = arith.constant 0 : i32
    %c0_i32_0 = arith.constant 0 : i32
    %c0_i32_1 = arith.constant 0 : i32
    %c0_i32_2 = arith.constant 0 : i32
    return %c0_i32, %c0_i32_0, %c0_i32_1 : i32, i32, i32
  }
  func.func @transform_7(%arg0: i32) -> (i32, i32) {
    %c0_i32 = arith.constant 0 : i32
    %c0_i32_0 = arith.constant 0 : i32
    %c0_i32_1 = arith.constant 0 : i32
    return %c0_i32, %c0_i32_0 : i32, i32
  }
  func.func @transform_8(%arg0: i32) -> (i32, i32) {
    %c0_i32 = arith.constant 0 : i32
    %c0_i32_0 = arith.constant 0 : i32
    %c0_i32_1 = arith.constant 0 : i32
    return %c0_i32, %c0_i32_0 : i32, i32
  }
  func.func @transform_9(%arg0: i32) -> (i32, i32, i32, i32) {
    %c0_i32 = arith.constant 0 : i32
    %c0_i32_0 = arith.constant 0 : i32
    %c0_i32_1 = arith.constant 0 : i32
    %c0_i32_2 = arith.constant 0 : i32
    return %arg0, %c0_i32, %c0_i32_0, %c0_i32_1 : i32, i32, i32, i32
  }
}

</mosaic_0001>

<llo_original>
// kernel: tpu_custom_call.1
$region0: #{tpu_custom_call.1}
  #allocation0 [shape = 'u32[]', space=smem, size = 0x4, offset = 0x4, fixed_abs, tag = 'smem constant byte address 0x4 - core index']
  #allocation1 [shape = 'u32[144,128]{1,0:T(1,128)}', space=vmem, size = 0x12000, scoped, tag = 'internal scratch']
  #allocation2 [shape = 'bf16[10,10,8]{2,1,0:T(8,128)(2,1)}', space=vmem, size = 0xa000, scoped, tag = 'scratch operand']
  %s0 = inlined_call_operand.vmem [shape: bf16[2,9,9,4], index: 0, kind: input, shape index: {}]
  %s1 = inlined_call_operand.vmem [shape: bf16[2,9,9,4], index: 1, kind: input, shape index: {}]
  %s2 = inlined_call_operand.vmem [shape: bf16[2,9,9,4], index: 2, kind: input, shape index: {}]
  %s3 = inlined_call_operand.vmem [shape: bf16[2,9,9,4], index: 3, kind: input, shape index: {}]
  %s4 = inlined_call_operand.vmem [shape: bf16[9,4,8], index: 4, kind: input, shape index: {}]
  %s5 = inlined_call_operand.vmem [shape: f32[1,8], index: 5, kind: input, shape index: {}]
  %s6 = inlined_call_operand.vmem [shape: bf16[9,8,8], index: 6, kind: input, shape index: {}]
  %s7 = inlined_call_operand.vmem [shape: f32[1,8], index: 7, kind: input, shape index: {}]
  %s8 = inlined_call_operand.vmem [shape: bf16[4,8], index: 8, kind: input, shape index: {}]
  %s9 = inlined_call_operand.hbm [shape: bf16[2,8,8,8], index: 9, kind: output, shape index: {}]
  %s10 = sld [smem:[#allocation0]]
  $region69: #{tpu_custom_call.1} parent=0
    _
  %s12 = ssub.s32 1, %s10
  %s13 = scalar_select 0, %s12, %s10
  $region1: #{tpu_custom_call.1} parent=0
    #allocation3 [shape = 'u8[32768]{0}', space=vmem, size = 0x8000, scoped, tag = 'output window, operand 0']
    #allocation4 [shape = 's32[2]{0}', space=sflag, size = 0x8, scoped, tag = 'scoped memory for tpu_custom_call.1']
    %14 = vsyncpa [#allocation4], 0
    %s15 = scalar_lea.sflag [#allocation4], 1
    %16 = vsyncpa %s15, 0
    loop: start=0, step=1, limit=4
    $region2: #{tpu_custom_call.1} parent=1 // loop_pre_header
      _
    $region3: #{tpu_custom_call.1} parent=1 // loop_header
      %s18 = sphi 0, %s22
      %p19 = scmp.ge.s32.totalorder %s18, 4
      %s28 = sphi 0, %s30
      %s31 = sphi 0, %s28
      %s32 = sphi 0, %s31
      %s48 = sphi 0, %s32
      %s54 = sphi 0, %s56
      %s57 = sphi 0, %s54
      %s58 = sphi 0, %s57
      %s74 = sphi 0, %s58
      %s80 = sphi 0, %s82
      %s83 = sphi 0, %s80
      %s84 = sphi 0, %s83
      %s100 = sphi 0, %s84
      %s106 = sphi 0, %s108
      %s109 = sphi 0, %s106
      %s110 = sphi 0, %s109
      %s126 = sphi 0, %s110
      %s130 = sphi 0, %s130
      %s132 = sphi 0, %s130
      %s133 = sphi 0, %s132
      %s147 = sphi 0, %s133
      %s151 = sphi 0, %s151
      %s153 = sphi 0, %s151
      %s154 = sphi 0, %s153
      %s168 = sphi 0, %s154
      %s172 = sphi 0, %s172
      %s174 = sphi 0, %s172
      %s175 = sphi 0, %s174
      %s189 = sphi 0, %s175
      %s193 = sphi 0, %s193
      %s195 = sphi 0, %s193
      %s196 = sphi 0, %s195
      %s210 = sphi 0, %s196
      %s214 = sphi 0, %s214
      %s216 = sphi 0, %s214
      %s217 = sphi 0, %s216
      %s231 = sphi 0, %s217
      %s237 = sphi 0, %s239
      %s240 = sphi 0, %s237
      %s241 = sphi 0, %s240
      %s257 = sphi 0, %s241
    $region4: #{tpu_custom_call.1} parent=1 // loop_header_branch
      %21 = sbr.rel (%p19) target = $region8
    $region5: #{tpu_custom_call.1} parent=1 // loop_body
      %s23 = ssub.s32 %s18, 1
      %s24 = ssub.s32 %s18, 2
      %s25 = sadd.s32 %s18, 1
      %s26 = ssub.s32 %s18, %s25
      %p27 = scmp.eq.s32.totalorder %s26, 0
      %s29 = sadd.s32 %s28, 1
      %s30 = scalar_select %p27, %s28, %s29
      %p33 = pneg %p27
      %p34 = scmp.eq.s32.totalorder %s18, 1
      %p35 = por %p33, %p34
      %p36 = scmp.ne.s32.totalorder %s28, %s31
      %p37 = scmp.eq.s32.totalorder %s18, 0
      %p38 = por %p36, %p37
      %p39 = scmp.ne.s32.totalorder %s28, %s31
      %p40 = scmp.eq.s32.totalorder %s23, 1
      %p41 = por %p39, %p40
      %p42 = scmp.ne.s32.totalorder %s31, %s32
      %p43 = scmp.eq.s32.totalorder %s23, 0
      %p44 = por %p42, %p43
      %p45 = scmp.ne.s32.totalorder %s31, %s32
      %p46 = scmp.eq.s32.totalorder %s24, 1
      %p47 = por %p45, %p46
      %p49 = scmp.ne.s32.totalorder %s32, %s48
      %p50 = scmp.eq.s32.totalorder %s24, 0
      %p51 = por %p49, %p50
      %s52 = ssub.s32 %s18, %s25
      %p53 = scmp.eq.s32.totalorder %s52, 0
      %s55 = sadd.s32 %s54, 1
      %s56 = scalar_select %p53, %s54, %s55
      %p59 = pneg %p53
      %p60 = scmp.eq.s32.totalorder %s18, 1
      %p61 = por %p59, %p60
      %p62 = scmp.ne.s32.totalorder %s54, %s57
      %p63 = scmp.eq.s32.totalorder %s18, 0
      %p64 = por %p62, %p63
      %p65 = scmp.ne.s32.totalorder %s54, %s57
      %p66 = scmp.eq.s32.totalorder %s23, 1
      %p67 = por %p65, %p66
      %p68 = scmp.ne.s32.totalorder %s57, %s58
      %p69 = scmp.eq.s32.totalorder %s23, 0
      %p70 = por %p68, %p69
      %p71 = scmp.ne.s32.totalorder %s57, %s58
      %p72 = scmp.eq.s32.totalorder %s24, 1
      %p73 = por %p71, %p72
      %p75 = scmp.ne.s32.totalorder %s58, %s74
      %p76 = scmp.eq.s32.totalorder %s24, 0
      %p77 = por %p75, %p76
      %s78 = ssub.s32 %s18, %s25
      %p79 = scmp.eq.s32.totalorder %s78, 0
      %s81 = sadd.s32 %s80, 1
      %s82 = scalar_select %p79, %s80, %s81
      %p85 = pneg %p79
      %p86 = scmp.eq.s32.totalorder %s18, 1
      %p87 = por %p85, %p86
      %p88 = scmp.ne.s32.totalorder %s80, %s83
      %p89 = scmp.eq.s32.totalorder %s18, 0
      %p90 = por %p88, %p89
      %p91 = scmp.ne.s32.totalorder %s80, %s83
      %p92 = scmp.eq.s32.totalorder %s23, 1
      %p93 = por %p91, %p92
      %p94 = scmp.ne.s32.totalorder %s83, %s84
      %p95 = scmp.eq.s32.totalorder %s23, 0
      %p96 = por %p94, %p95
      %p97 = scmp.ne.s32.totalorder %s83, %s84
      %p98 = scmp.eq.s32.totalorder %s24, 1
      %p99 = por %p97, %p98
      %p101 = scmp.ne.s32.totalorder %s84, %s100
      %p102 = scmp.eq.s32.totalorder %s24, 0
      %p103 = por %p101, %p102
      %s104 = ssub.s32 %s18, %s25
      %p105 = scmp.eq.s32.totalorder %s104, 0
      %s107 = sadd.s32 %s106, 1
      %s108 = scalar_select %p105, %s106, %s107
      %p111 = pneg %p105
      %p112 = scmp.eq.s32.totalorder %s18, 1
      %p113 = por %p111, %p112
      %p114 = scmp.ne.s32.totalorder %s106, %s109
      %p115 = scmp.eq.s32.totalorder %s18, 0
      %p116 = por %p114, %p115
      %p117 = scmp.ne.s32.totalorder %s106, %s109
      %p118 = scmp.eq.s32.totalorder %s23, 1
      %p119 = por %p117, %p118
      %p120 = scmp.ne.s32.totalorder %s109, %s110
      %p121 = scmp.eq.s32.totalorder %s23, 0
      %p122 = por %p120, %p121
      %p123 = scmp.ne.s32.totalorder %s109, %s110
      %p124 = scmp.eq.s32.totalorder %s24, 1
      %p125 = por %p123, %p124
      %p127 = scmp.ne.s32.totalorder %s110, %s126
      %p128 = scmp.eq.s32.totalorder %s24, 0
      %p129 = por %p127, %p128
      %s131 = sadd.s32 %s130, 1
      %p134 = scmp.eq.s32.totalorder %s18, 1
      %p135 = scmp.ne.s32.totalorder %s130, %s132
      %p136 = scmp.eq.s32.totalorder %s18, 0
      %p137 = por %p135, %p136
      %p138 = scmp.ne.s32.totalorder %s130, %s132
      %p139 = scmp.eq.s32.totalorder %s23, 1
      %p140 = por %p138, %p139
      %p141 = scmp.ne.s32.totalorder %s132, %s133
      %p142 = scmp.eq.s32.totalorder %s23, 0
      %p143 = por %p141, %p142
      %p144 = scmp.ne.s32.totalorder %s132, %s133
      %p145 = scmp.eq.s32.totalorder %s24, 1
      %p146 = por %p144, %p145
      %p148 = scmp.ne.s32.totalorder %s133, %s147
      %p149 = scmp.eq.s32.totalorder %s24, 0
      %p150 = por %p148, %p149
      %s152 = sadd.s32 %s151, 1
      %p155 = scmp.eq.s32.totalorder %s18, 1
      %p156 = scmp.ne.s32.totalorder %s151, %s153
      %p157 = scmp.eq.s32.totalorder %s18, 0
      %p158 = por %p156, %p157
      %p159 = scmp.ne.s32.totalorder %s151, %s153
      %p160 = scmp.eq.s32.totalorder %s23, 1
      %p161 = por %p159, %p160
      %p162 = scmp.ne.s32.totalorder %s153, %s154
      %p163 = scmp.eq.s32.totalorder %s23, 0
      %p164 = por %p162, %p163
      %p165 = scmp.ne.s32.totalorder %s153, %s154
      %p166 = scmp.eq.s32.totalorder %s24, 1
      %p167 = por %p165, %p166
      %p169 = scmp.ne.s32.totalorder %s154, %s168
      %p170 = scmp.eq.s32.totalorder %s24, 0
      %p171 = por %p169, %p170
      %s173 = sadd.s32 %s172, 1
      %p176 = scmp.eq.s32.totalorder %s18, 1
      %p177 = scmp.ne.s32.totalorder %s172, %s174
      %p178 = scmp.eq.s32.totalorder %s18, 0
      %p179 = por %p177, %p178
      %p180 = scmp.ne.s32.totalorder %s172, %s174
      %p181 = scmp.eq.s32.totalorder %s23, 1
      %p182 = por %p180, %p181
      %p183 = scmp.ne.s32.totalorder %s174, %s175
      %p184 = scmp.eq.s32.totalorder %s23, 0
      %p185 = por %p183, %p184
      %p186 = scmp.ne.s32.totalorder %s174, %s175
      %p187 = scmp.eq.s32.totalorder %s24, 1
      %p188 = por %p186, %p187
      %p190 = scmp.ne.s32.totalorder %s175, %s189
      %p191 = scmp.eq.s32.totalorder %s24, 0
      %p192 = por %p190, %p191
      %s194 = sadd.s32 %s193, 1
      %p197 = scmp.eq.s32.totalorder %s18, 1
      %p198 = scmp.ne.s32.totalorder %s193, %s195
      %p199 = scmp.eq.s32.totalorder %s18, 0
      %p200 = por %p198, %p199
      %p201 = scmp.ne.s32.totalorder %s193, %s195
      %p202 = scmp.eq.s32.totalorder %s23, 1
      %p203 = por %p201, %p202
      %p204 = scmp.ne.s32.totalorder %s195, %s196
      %p205 = scmp.eq.s32.totalorder %s23, 0
      %p206 = por %p204, %p205
      %p207 = scmp.ne.s32.totalorder %s195, %s196
      %p208 = scmp.eq.s32.totalorder %s24, 1
      %p209 = por %p207, %p208
      %p211 = scmp.ne.s32.totalorder %s196, %s210
      %p212 = scmp.eq.s32.totalorder %s24, 0
      %p213 = por %p211, %p212
      %s215 = sadd.s32 %s214, 1
      %p218 = scmp.eq.s32.totalorder %s18, 1
      %p219 = scmp.ne.s32.totalorder %s214, %s216
      %p220 = scmp.eq.s32.totalorder %s18, 0
      %p221 = por %p219, %p220
      %p222 = scmp.ne.s32.totalorder %s214, %s216
      %p223 = scmp.eq.s32.totalorder %s23, 1
      %p224 = por %p222, %p223
      %p225 = scmp.ne.s32.totalorder %s216, %s217
      %p226 = scmp.eq.s32.totalorder %s23, 0
      %p227 = por %p225, %p226
      %p228 = scmp.ne.s32.totalorder %s216, %s217
      %p229 = scmp.eq.s32.totalorder %s24, 1
      %p230 = por %p228, %p229
      %p232 = scmp.ne.s32.totalorder %s217, %s231
      %p233 = scmp.eq.s32.totalorder %s24, 0
      %p234 = por %p232, %p233
      %s235 = ssub.s32 %s18, %s25
      %p236 = scmp.eq.s32.totalorder %s235, 0
      %s238 = sadd.s32 %s237, 1
      %s239 = scalar_select %p236, %s237, %s238
      %p242 = pneg %p236
      %p243 = scmp.eq.s32.totalorder %s18, 1
      %p244 = por %p242, %p243
      %p245 = scmp.ne.s32.totalorder %s237, %s240
      %p246 = scmp.eq.s32.totalorder %s18, 0
      %p247 = por %p245, %p246
      %p248 = scmp.ne.s32.totalorder %s237, %s240
      %p249 = scmp.eq.s32.totalorder %s23, 1
      %p250 = por %p248, %p249
      %p251 = scmp.ne.s32.totalorder %s240, %s241
      %p252 = scmp.eq.s32.totalorder %s23, 0
      %p253 = por %p251, %p252
      %p254 = scmp.ne.s32.totalorder %s240, %s241
      %p255 = scmp.eq.s32.totalorder %s24, 1
      %p256 = por %p254, %p255
      %p258 = scmp.ne.s32.totalorder %s241, %s257
      %p259 = scmp.eq.s32.totalorder %s24, 0
      %p260 = por %p258, %p259
      %p261 = scmp.le.s32.totalorder 1, %s18
      %p262 = scmp.lt.s32.totalorder %s18, 3
      %p263 = pnand %p261, %p262
      %p264 = pneg %p263
      // Predicated region
      $region9: #{tpu_custom_call.1} parent=5 // pred_check
        _
      $region10: #{tpu_custom_call.1} parent=5 // pred_check_branch
        %266 = sbr.rel (%p263) target = $region12
      $region11: #{tpu_custom_call.1} parent=5 // pred_region
        %s267 = ssub.s32 %s18, 1
        // Predicated region
        $region13: #{tpu_custom_call.1} parent=11 // pred_check
          %p268 = pneg %p143
        $region14: #{tpu_custom_call.1} parent=11 // pred_check_branch
          %270 = sbr.rel (%p268) target = $region16
        $region15: #{tpu_custom_call.1} parent=11 // pred_region
          _
        $region16: #{tpu_custom_call.1} parent=11 // pred_fallthru
          _
        // Predicated region
        $region17: #{tpu_custom_call.1} parent=11 // pred_check
          %p271 = pneg %p164
        $region18: #{tpu_custom_call.1} parent=11 // pred_check_branch
          %273 = sbr.rel (%p271) target = $region20
        $region19: #{tpu_custom_call.1} parent=11 // pred_region
          _
        $region20: #{tpu_custom_call.1} parent=11 // pred_fallthru
          _
        // Predicated region
        $region21: #{tpu_custom_call.1} parent=11 // pred_check
          %p274 = pneg %p185
        $region22: #{tpu_custom_call.1} parent=11 // pred_check_branch
          %276 = sbr.rel (%p274) target = $region24
        $region23: #{tpu_custom_call.1} parent=11 // pred_region
          _
        $region24: #{tpu_custom_call.1} parent=11 // pred_fallthru
          _
        // Predicated region
        $region25: #{tpu_custom_call.1} parent=11 // pred_check
          %p277 = pneg %p206
        $region26: #{tpu_custom_call.1} parent=11 // pred_check_branch
          %279 = sbr.rel (%p277) target = $region28
        $region27: #{tpu_custom_call.1} parent=11 // pred_region
          _
        $region28: #{tpu_custom_call.1} parent=11 // pred_fallthru
          _
        // Predicated region
        $region29: #{tpu_custom_call.1} parent=11 // pred_check
          %p280 = pneg %p227
        $region30: #{tpu_custom_call.1} parent=11 // pred_check_branch
          %282 = sbr.rel (%p280) target = $region32
        $region31: #{tpu_custom_call.1} parent=11 // pred_region
          _
        $region32: #{tpu_custom_call.1} parent=11 // pred_fallthru
          _
      $region12: #{tpu_custom_call.1} parent=5 // pred_fallthru
        _
      %p283 = scmp.lt.s32.totalorder %s18, 2
      // Predicated region
      $region33: #{tpu_custom_call.1} parent=5 // pred_check
        %p284 = pneg %p283
      $region34: #{tpu_custom_call.1} parent=5 // pred_check_branch
        %286 = sbr.rel (%p284) target = $region36
      $region35: #{tpu_custom_call.1} parent=5 // pred_region
        // Predicated region
        $region37: #{tpu_custom_call.1} parent=35 // pred_check
          %p287 = pneg %p38
        $region38: #{tpu_custom_call.1} parent=35 // pred_check_branch
          %289 = sbr.rel (%p287) target = $region40
        $region39: #{tpu_custom_call.1} parent=35 // pred_region
          %p290 = scmp.lt.s32.totalorder %s18, 1
          %s291 = scalar_select %p290, %s18, 1
          %s292 = smul.addr %s291, 18
          %s293 = smul.addr %s292, 4
          %s294 = scalar_lea.vmem %s0, %s293
        $region40: #{tpu_custom_call.1} parent=35 // pred_fallthru
          _
        // Predicated region
        $region41: #{tpu_custom_call.1} parent=35 // pred_check
          %p295 = pneg %p64
        $region42: #{tpu_custom_call.1} parent=35 // pred_check_branch
          %297 = sbr.rel (%p295) target = $region44
        $region43: #{tpu_custom_call.1} parent=35 // pred_region
          %p298 = scmp.lt.s32.totalorder %s18, 1
          %s299 = scalar_select %p298, %s18, 1
          %s300 = smul.addr %s299, 18
          %s301 = smul.addr %s300, 4
          %s302 = scalar_lea.vmem %s1, %s301
        $region44: #{tpu_custom_call.1} parent=35 // pred_fallthru
          _
        // Predicated region
        $region45: #{tpu_custom_call.1} parent=35 // pred_check
          %p303 = pneg %p90
        $region46: #{tpu_custom_call.1} parent=35 // pred_check_branch
          %305 = sbr.rel (%p303) target = $region48
        $region47: #{tpu_custom_call.1} parent=35 // pred_region
          %p306 = scmp.lt.s32.totalorder %s18, 1
          %s307 = scalar_select %p306, %s18, 1
          %s308 = smul.addr %s307, 18
          %s309 = smul.addr %s308, 4
          %s310 = scalar_lea.vmem %s2, %s309
        $region48: #{tpu_custom_call.1} parent=35 // pred_fallthru
          _
        // Predicated region
        $region49: #{tpu_custom_call.1} parent=35 // pred_check
          %p311 = pneg %p116
        $region50: #{tpu_custom_call.1} parent=35 // pred_check_branch
          %313 = sbr.rel (%p311) target = $region52
        $region51: #{tpu_custom_call.1} parent=35 // pred_region
          %p314 = scmp.lt.s32.totalorder %s18, 1
          %s315 = scalar_select %p314, %s18, 1
          %s316 = smul.addr %s315, 18
          %s317 = smul.addr %s316, 4
          %s318 = scalar_lea.vmem %s3, %s317
        $region52: #{tpu_custom_call.1} parent=35 // pred_fallthru
          _
      $region36: #{tpu_custom_call.1} parent=5 // pred_fallthru
        _
      %p319 = scmp.le.s32.totalorder 1, %s18
      %p320 = scmp.lt.s32.totalorder %s18, 3
      %p321 = pnand %p319, %p320
      %p322 = pneg %p321
      // Predicated region
      $region53: #{tpu_custom_call.1} parent=5 // pred_check
        _
      $region54: #{tpu_custom_call.1} parent=5 // pred_check_branch
        %324 = sbr.rel (%p321) target = $region56
      $region55: #{tpu_custom_call.1} parent=5 // pred_region
        %s325 = ssub.s32 %s18, 1
        %p326 = scmp.lt.s32.totalorder %s23, 1
        %s327 = scalar_select %p326, %s23, 1
        %s328 = smul.addr %s327, 18
        %s329 = smul.addr %s328, 4
        %s330 = scalar_lea.vmem %s0, %s329
        %p331 = pneg %p44
        %p332 = pneg %p41
        %p333 = scmp.lt.s32.totalorder %s23, 1
        %s334 = scalar_select %p333, %s23, 1
        %s335 = smul.addr %s334, 18
        %s336 = smul.addr %s335, 4
        %s337 = scalar_lea.vmem %s1, %s336
        %p338 = pneg %p70
        %p339 = pneg %p67
        %p340 = scmp.lt.s32.totalorder %s23, 1
        %s341 = scalar_select %p340, %s23, 1
        %s342 = smul.addr %s341, 18
        %s343 = smul.addr %s342, 4
        %s344 = scalar_lea.vmem %s2, %s343
        %p345 = pneg %p96
        %p346 = pneg %p93
        %p347 = scmp.lt.s32.totalorder %s23, 1
        %s348 = scalar_select %p347, %s23, 1
        %s349 = smul.addr %s348, 18
        %s350 = smul.addr %s349, 4
        %s351 = scalar_lea.vmem %s3, %s350
        %p352 = pneg %p122
        %p353 = pneg %p119
        %p354 = pneg %p143
        %p355 = pneg %p140
        %p356 = pneg %p164
        %p357 = pneg %p161
        %p358 = pneg %p185
        %p359 = pneg %p182
        %p360 = pneg %p206
        %p361 = pneg %p203
        %p362 = pneg %p227
        %p363 = pneg %p224
        %p364 = pneg %p253
        %p365 = pneg %p250
        %s366 = sand.u32 %s240, 1
        %s367 = scalar_lea.sflag [#allocation4], %s366
        %s368 = sand.u32 %s240, 1
        %s369 = smul.addr %s368, 32
        %s370 = scalar_lea.vmem [#allocation3], %s369
        %p371 = scmp.lt.s32.totalorder %s23, 1
        %s372 = scalar_select %p371, %s23, 1
        %s373 = smul.addr %s372, 18
        %s374 = smul.addr %s373, 4
        %s375 = scalar_lea.vmem %s0, %s374
        %p376 = scmp.lt.s32.totalorder %s23, 1
        %s377 = scalar_select %p376, %s23, 1
        %s378 = smul.addr %s377, 18
        %s379 = smul.addr %s378, 4
        %s380 = scalar_lea.vmem %s1, %s379
        %p381 = scmp.lt.s32.totalorder %s23, 1
        %s382 = scalar_select %p381, %s23, 1
        %s383 = smul.addr %s382, 18
        %s384 = smul.addr %s383, 4
        %s385 = scalar_lea.vmem %s2, %s384
        %p386 = scmp.lt.s32.totalorder %s23, 1
        %s387 = scalar_select %p386, %s23, 1
        %s388 = smul.addr %s387, 18
        %s389 = smul.addr %s388, 4
        %s390 = scalar_lea.vmem %s3, %s389
        %v392 = vld [vmem:[%s375] sm:$0xf]
        %v393 = vld [vmem:[%s375 + $0x8] sm:$0xf]
        %v394 = vld [vmem:[%s375 + $0x10] sm:$0xf]
        %v395 = vld [vmem:[%s375 + $0x18] sm:$0xf]
        %v396 = vld [vmem:[%s375 + $0x20] sm:$0xf]
        %v397 = vld [vmem:[%s375 + $0x28] sm:$0xf]
        %v398 = vld [vmem:[%s375 + $0x30] sm:$0xf]
        %v399 = vld [vmem:[%s375 + $0x38] sm:$0xf]
        %v400 = vld [vmem:[%s4] sm:$0x3]
        %v401 = vld [vmem:[%s380] sm:$0xf]
        %v402 = vld [vmem:[%s380 + $0x8] sm:$0xf]
        %v403 = vld [vmem:[%s380 + $0x10] sm:$0xf]
        %v404 = vld [vmem:[%s380 + $0x18] sm:$0xf]
        %v405 = vld [vmem:[%s380 + $0x20] sm:$0xf]
        %v406 = vld [vmem:[%s380 + $0x28] sm:$0xf]
        %v407 = vld [vmem:[%s380 + $0x30] sm:$0xf]
        %v408 = vld [vmem:[%s380 + $0x38] sm:$0xf]
        %s409 = scalar_lea.vmem %s4, 2
        %v410 = vld [vmem:[%s409] sm:$0x3]
        %v419 = vunpack.c.l.b16 %v401
        %v420 = vunpack.c.l.b16 %v402
        %v421 = vunpack.c.l.b16 %v403
        %v422 = vunpack.c.l.b16 %v404
        %v423 = vunpack.c.l.b16 %v405
        %v424 = vunpack.c.l.b16 %v406
        %v425 = vunpack.c.l.b16 %v407
        %v426 = vunpack.c.l.b16 %v408
        %v427 = vpack.c.b16 %v420, %v419
        %v428 = vpack.c.b16 %v422, %v421
        %v429 = vpack.c.b16 %v424, %v423
        %v430 = vpack.c.b16 %v426, %v425
        %vm431 = vcmask 31744
        %v433 = vsel %vm431, %v427, 0
        %v436 = vsel %vm431, %v428, 0
        %v439 = vsel %vm431, %v429, 0
        %v442 = vsel %vm431, %v430, 0
        %vm444 = vcmask 1041408
        %v446 = vsel %vm444, %v410, 0
        %448 = vmatprep.subr.bf16.mxu0 0
        %449 = vmatpush1.bf16.msra.mxu0 %v446
        %450 = vmatprep.subr.bf16.mxu0 0
        %451 = vmatpush1.bf16.msra.mxu0 0
        %452 = vmatprep.subr.bf16.mxu0 0
        %453 = vmatpush1.bf16.msra.mxu0 0
        %454 = vmatprep.subr.bf16.mxu0 0
        %455 = vmatpush1.bf16.msra.mxu0 0
        %456 = vmatprep.subr.bf16.mxu0 0
        %457 = vmatpush1.bf16.msra.mxu0 0
        %458 = vmatprep.subr.bf16.mxu0 0
        %459 = vmatpush1.bf16.msra.mxu0 0
        %460 = vmatprep.subr.bf16.mxu0 0
        %461 = vmatpush1.bf16.msra.mxu0 0
        %462 = vmatprep.subr.bf16.mxu0 0
        %463 = vmatpush1.bf16.msra.mxu0 0
        %464 = vmatprep.subr.bf16.mxu0 0
        %465 = vmatpush1.bf16.msra.mxu0 0
        %466 = vmatprep.subr.bf16.mxu0 0
        %467 = vmatpush1.bf16.msra.mxu0 0
        %468 = vmatprep.subr.bf16.mxu0 0
        %469 = vmatpush1.bf16.msra.mxu0 0
        %470 = vmatprep.subr.bf16.mxu0 0
        %471 = vmatpush1.bf16.msra.mxu0 0
        %472 = vmatprep.subr.bf16.mxu0 0
        %473 = vmatpush1.bf16.msra.mxu0 0
        %474 = vmatprep.subr.bf16.mxu0 0
        %475 = vmatpush1.bf16.msra.mxu0 0
        %476 = vmatprep.subr.bf16.mxu0 0
        %477 = vmatpush1.bf16.msra.mxu0 0
        %478 = vmatprep.subr.bf16.mxu0 0
        %479 = vmatpush1.bf16.msra.mxu0 0
        %480 = vmatprep.mubr.bf16.mxu0 0
        %481 = vmatmul.mubr.bf16.gmra.mrb[0].mxu0 %v433
        %v482 = vpop.f32.mrb[0].mxu0
        %v483 = vadd.f32 0.0, %v482
        %v484 = vpop.f32.mrb[0].mxu0
        %v485 = vpop.f32.mrb[0].mxu0
        %v486 = vadd.f32 0.0, %v485
        %v487 = vpop.f32.mrb[0].mxu0
        %488 = vmatprep.mubr.bf16.mxu0 0
        %489 = vmatmul.mubr.bf16.gmra.mrb[0].mxu0 %v436
        %v490 = vpop.f32.mrb[0].mxu0
        %v491 = vadd.f32 0.0, %v490
        %v492 = vpop.f32.mrb[0].mxu0
        %v493 = vpop.f32.mrb[0].mxu0
        %v494 = vadd.f32 0.0, %v493
        %v495 = vpop.f32.mrb[0].mxu0
        %496 = vmatprep.mubr.bf16.mxu0 0
        %497 = vmatmul.mubr.bf16.gmra.mrb[0].mxu0 %v439
        %v498 = vpop.f32.mrb[0].mxu0
        %v499 = vadd.f32 0.0, %v498
        %v500 = vpop.f32.mrb[0].mxu0
        %v501 = vpop.f32.mrb[0].mxu0
        %v502 = vadd.f32 0.0, %v501
        %v503 = vpop.f32.mrb[0].mxu0
        %504 = vmatprep.mubr.bf16.mxu0 0
        %505 = vmatmul.mubr.bf16.gmra.mrb[0].mxu0 %v442
        %v506 = vpop.f32.mrb[0].mxu0
        %v507 = vadd.f32 0.0, %v506
        %v508 = vpop.f32.mrb[0].mxu0
        %v509 = vpop.f32.mrb[0].mxu0
        %v510 = vadd.f32 0.0, %v509
        %v511 = vpop.f32.mrb[0].mxu0
        %512 = vdwg.mxu0
        %v521 = vunpack.c.l.b16 %v392
        %v522 = vunpack.c.l.b16 %v393
        %v523 = vunpack.c.l.b16 %v394
        %v524 = vunpack.c.l.b16 %v395
        %v525 = vunpack.c.l.b16 %v396
        %v526 = vunpack.c.l.b16 %v397
        %v527 = vunpack.c.l.b16 %v398
        %v528 = vunpack.c.l.b16 %v399
        %v529 = vpack.c.b16 %v522, %v521
        %v530 = vpack.c.b16 %v524, %v523
        %v531 = vpack.c.b16 %v526, %v525
        %v532 = vpack.c.b16 %v528, %v527
        %v534 = vsel %vm431, %v529, 0
        %v537 = vsel %vm431, %v530, 0
        %v540 = vsel %vm431, %v531, 0
        %v543 = vsel %vm431, %v532, 0
        %v546 = vsel %vm444, %v400, 0
        %548 = vmatprep.subr.bf16.mxu0 0
        %549 = vmatpush1.bf16.msra.mxu0 %v546
        %550 = vmatprep.subr.bf16.mxu0 0
        %551 = vmatpush1.bf16.msra.mxu0 0
        %552 = vmatprep.subr.bf16.mxu0 0
        %553 = vmatpush1.bf16.msra.mxu0 0
        %554 = vmatprep.subr.bf16.mxu0 0
        %555 = vmatpush1.bf16.msra.mxu0 0
        %556 = vmatprep.subr.bf16.mxu0 0
        %557 = vmatpush1.bf16.msra.mxu0 0
        %558 = vmatprep.subr.bf16.mxu0 0
        %559 = vmatpush1.bf16.msra.mxu0 0
        %560 = vmatprep.subr.bf16.mxu0 0
        %561 = vmatpush1.bf16.msra.mxu0 0
        %562 = vmatprep.subr.bf16.mxu0 0
        %563 = vmatpush1.bf16.msra.mxu0 0
        %564 = vmatprep.subr.bf16.mxu0 0
        %565 = vmatpush1.bf16.msra.mxu0 0
        %566 = vmatprep.subr.bf16.mxu0 0
        %567 = vmatpush1.bf16.msra.mxu0 0
        %568 = vmatprep.subr.bf16.mxu0 0
        %569 = vmatpush1.bf16.msra.mxu0 0
        %570 = vmatprep.subr.bf16.mxu0 0
        %571 = vmatpush1.bf16.msra.mxu0 0
        %572 = vmatprep.subr.bf16.mxu0 0
        %573 = vmatpush1.bf16.msra.mxu0 0
        %574 = vmatprep.subr.bf16.mxu0 0
        %575 = vmatpush1.bf16.msra.mxu0 0
        %576 = vmatprep.subr.bf16.mxu0 0
        %577 = vmatpush1.bf16.msra.mxu0 0
        %578 = vmatprep.subr.bf16.mxu0 0
        %579 = vmatpush1.bf16.msra.mxu0 0
        %580 = vmatprep.mubr.bf16.mxu0 0
        %581 = vmatmul.mubr.bf16.gmra.mrb[0].mxu0 %v534
        %v582 = vpop.f32.mrb[0].mxu0
        %v583 = vadd.f32 %v483, %v582
        %v584 = vpop.f32.mrb[0].mxu0
        %v585 = vpop.f32.mrb[0].mxu0
        %v586 = vadd.f32 %v486, %v585
        %v587 = vpop.f32.mrb[0].mxu0
        %588 = vmatprep.mubr.bf16.mxu0 0
        %589 = vmatmul.mubr.bf16.gmra.mrb[0].mxu0 %v537
        %v590 = vpop.f32.mrb[0].mxu0
        %v591 = vadd.f32 %v491, %v590
        %v592 = vpop.f32.mrb[0].mxu0
        %v593 = vpop.f32.mrb[0].mxu0
        %v594 = vadd.f32 %v494, %v593
        %v595 = vpop.f32.mrb[0].mxu0
        %596 = vmatprep.mubr.bf16.mxu0 0
        %597 = vmatmul.mubr.bf16.gmra.mrb[0].mxu0 %v540
        %v598 = vpop.f32.mrb[0].mxu0
        %v599 = vadd.f32 %v499, %v598
        %v600 = vpop.f32.mrb[0].mxu0
        %v601 = vpop.f32.mrb[0].mxu0
        %v602 = vadd.f32 %v502, %v601
        %v603 = vpop.f32.mrb[0].mxu0
        %604 = vmatprep.mubr.bf16.mxu0 0
        %605 = vmatmul.mubr.bf16.gmra.mrb[0].mxu0 %v543
        %v606 = vpop.f32.mrb[0].mxu0
        %v607 = vadd.f32 %v507, %v606
        %v608 = vpop.f32.mrb[0].mxu0
        %v609 = vpop.f32.mrb[0].mxu0
        %v610 = vadd.f32 %v510, %v609
        %v611 = vpop.f32.mrb[0].mxu0
        %612 = vdwg.mxu0
        %v613 = vld [vmem:[%s375] sm:$0xf]
        %v614 = vld [vmem:[%s375 + $0x4] sm:$0x1]
        %v615 = vld [vmem:[%s375 + $0x8] sm:$0xf]
        %v616 = vld [vmem:[%s375 + $0xc] sm:$0x1]
        %v617 = vld [vmem:[%s375 + $0x10] sm:$0xf]
        %v618 = vld [vmem:[%s375 + $0x14] sm:$0x1]
        %v619 = vld [vmem:[%s375 + $0x18] sm:$0xf]
        %v620 = vld [vmem:[%s375 + $0x1c] sm:$0x1]
        %v621 = vld [vmem:[%s375 + $0x20] sm:$0xf]
        %v622 = vld [vmem:[%s375 + $0x24] sm:$0x1]
        %v623 = vld [vmem:[%s375 + $0x28] sm:$0xf]
        %v624 = vld [vmem:[%s375 + $0x2c] sm:$0x1]
        %v625 = vld [vmem:[%s375 + $0x30] sm:$0xf]
        %v626 = vld [vmem:[%s375 + $0x34] sm:$0x1]
        %v627 = vld [vmem:[%s375 + $0x38] sm:$0xf]
        %v628 = vld [vmem:[%s375 + $0x3c] sm:$0x1]
        %vm629 = vsmask.f32 3328
        %vm630 = vsmask.f32 7440
        %vm631 = vmor %vm629, %vm630
        %v633 = vshrl.u32 %v613, 16
        %v635 = vrot.slane %v633, 4
        %v636 = vshll.u32 %v613, 16
        %v638 = vrot.slane %v636, 5
        %v639 = vor.u32 %v635, %v638
        %v640 = vrot.slane %v639, 4
        %v642 = vshll.u32 %v614, 16
        %v644 = vrot.slane %v642, 5
        %v645 = vsel %vm631, %v640, %v644
        %v647 = vshrl.u32 %v615, 16
        %v649 = vrot.slane %v647, 4
        %v650 = vshll.u32 %v615, 16
        %v652 = vrot.slane %v650, 5
        %v653 = vor.u32 %v649, %v652
        %v654 = vrot.slane %v653, 4
        %v656 = vshll.u32 %v616, 16
        %v658 = vrot.slane %v656, 5
        %v659 = vsel %vm631, %v654, %v658
        %v661 = vshrl.u32 %v617, 16
        %v663 = vrot.slane %v661, 4
        %v664 = vshll.u32 %v617, 16
        %v666 = vrot.slane %v664, 5
        %v667 = vor.u32 %v663, %v666
        %v668 = vrot.slane %v667, 4
        %v670 = vshll.u32 %v618, 16
        %v672 = vrot.slane %v670, 5
        %v673 = vsel %vm631, %v668, %v672
        %v675 = vshrl.u32 %v619, 16
        %v677 = vrot.slane %v675, 4
        %v678 = vshll.u32 %v619, 16
        %v680 = vrot.slane %v678, 5
        %v681 = vor.u32 %v677, %v680
        %v682 = vrot.slane %v681, 4
        %v684 = vshll.u32 %v620, 16
        %v686 = vrot.slane %v684, 5
        %v687 = vsel %vm631, %v682, %v686
        %v689 = vshrl.u32 %v621, 16
        %v691 = vrot.slane %v689, 4
        %v692 = vshll.u32 %v621, 16
        %v694 = vrot.slane %v692, 5
        %v695 = vor.u32 %v691, %v694
        %v696 = vrot.slane %v695, 4
        %v698 = vshll.u32 %v622, 16
        %v700 = vrot.slane %v698, 5
        %v701 = vsel %vm631, %v696, %v700
        %v703 = vshrl.u32 %v623, 16
        %v705 = vrot.slane %v703, 4
        %v706 = vshll.u32 %v623, 16
        %v708 = vrot.slane %v706, 5
        %v709 = vor.u32 %v705, %v708
        %v710 = vrot.slane %v709, 4
        %v712 = vshll.u32 %v624, 16
        %v714 = vrot.slane %v712, 5
        %v715 = vsel %vm631, %v710, %v714
        %v717 = vshrl.u32 %v625, 16
        %v719 = vrot.slane %v717, 4
        %v720 = vshll.u32 %v625, 16
        %v722 = vrot.slane %v720, 5
        %v723 = vor.u32 %v719, %v722
        %v724 = vrot.slane %v723, 4
        %v726 = vshll.u32 %v626, 16
        %v728 = vrot.slane %v726, 5
        %v729 = vsel %vm631, %v724, %v728
        %v731 = vshrl.u32 %v627, 16
        %v733 = vrot.slane %v731, 4
        %v734 = vshll.u32 %v627, 16
        %v736 = vrot.slane %v734, 5
        %v737 = vor.u32 %v733, %v736
        %v738 = vrot.slane %v737, 4
        %v740 = vshll.u32 %v628, 16
        %v742 = vrot.slane %v740, 5
        %v743 = vsel %vm631, %v738, %v742
        %s744 = scalar_lea.vmem %s4, 4
        %v745 = vld [vmem:[%s744] sm:$0x3]
        %v746 = vunpack.c.l.b16 %v645
        %v747 = vunpack.c.l.b16 %v659
        %v748 = vunpack.c.l.b16 %v673
        %v749 = vunpack.c.l.b16 %v687
        %v750 = vunpack.c.l.b16 %v701
        %v751 = vunpack.c.l.b16 %v715
        %v752 = vunpack.c.l.b16 %v729
        %v753 = vunpack.c.l.b16 %v743
        %v754 = vpack.c.b16 %v747, %v746
        %v755 = vpack.c.b16 %v749, %v748
        %v756 = vpack.c.b16 %v751, %v750
        %v757 = vpack.c.b16 %v753, %v752
        %v759 = vsel %vm431, %v754, 0
        %v762 = vsel %vm431, %v755, 0
        %v765 = vsel %vm431, %v756, 0
        %v768 = vsel %vm431, %v757, 0
        %v771 = vsel %vm444, %v745, 0
        %773 = vmatprep.subr.bf16.mxu0 0
        %774 = vmatpush1.bf16.msra.mxu0 %v771
        %775 = vmatprep.subr.bf16.mxu0 0
        %776 = vmatpush1.bf16.msra.mxu0 0
        %777 = vmatprep.subr.bf16.mxu0 0
        %778 = vmatpush1.bf16.msra.mxu0 0
        %779 = vmatprep.subr.bf16.mxu0 0
        %780 = vmatpush1.bf16.msra.mxu0 0
        %781 = vmatprep.subr.bf16.mxu0 0
        %782 = vmatpush1.bf16.msra.mxu0 0
        %783 = vmatprep.subr.bf16.mxu0 0
        %784 = vmatpush1.bf16.msra.mxu0 0
        %785 = vmatprep.subr.bf16.mxu0 0
        %786 = vmatpush1.bf16.msra.mxu0 0
        %787 = vmatprep.subr.bf16.mxu0 0
        %788 = vmatpush1.bf16.msra.mxu0 0
        %789 = vmatprep.subr.bf16.mxu0 0
        %790 = vmatpush1.bf16.msra.mxu0 0
        %791 = vmatprep.subr.bf16.mxu0 0
        %792 = vmatpush1.bf16.msra.mxu0 0
        %793 = vmatprep.subr.bf16.mxu0 0
        %794 = vmatpush1.bf16.msra.mxu0 0
        %795 = vmatprep.subr.bf16.mxu0 0
        %796 = vmatpush1.bf16.msra.mxu0 0
        %797 = vmatprep.subr.bf16.mxu0 0
        %798 = vmatpush1.bf16.msra.mxu0 0
        %799 = vmatprep.subr.bf16.mxu0 0
        %800 = vmatpush1.bf16.msra.mxu0 0
        %801 = vmatprep.subr.bf16.mxu0 0
        %802 = vmatpush1.bf16.msra.mxu0 0
        %803 = vmatprep.subr.bf16.mxu0 0
        %804 = vmatpush1.bf16.msra.mxu0 0
        %805 = vmatprep.mubr.bf16.mxu0 0
        %806 = vmatmul.mubr.bf16.gmra.mrb[0].mxu0 %v759
        %v807 = vpop.f32.mrb[0].mxu0
        %v808 = vadd.f32 0.0, %v807
        %v809 = vpop.f32.mrb[0].mxu0
        %v810 = vpop.f32.mrb[0].mxu0
        %v811 = vadd.f32 0.0, %v810
        %v812 = vpop.f32.mrb[0].mxu0
        %813 = vmatprep.mubr.bf16.mxu0 0
        %814 = vmatmul.mubr.bf16.gmra.mrb[0].mxu0 %v762
        %v815 = vpop.f32.mrb[0].mxu0
        %v816 = vadd.f32 0.0, %v815
        %v817 = vpop.f32.mrb[0].mxu0
        %v818 = vpop.f32.mrb[0].mxu0
        %v819 = vadd.f32 0.0, %v818
        %v820 = vpop.f32.mrb[0].mxu0
        %821 = vmatprep.mubr.bf16.mxu0 0
        %822 = vmatmul.mubr.bf16.gmra.mrb[0].mxu0 %v765
        %v823 = vpop.f32.mrb[0].mxu0
        %v824 = vadd.f32 0.0, %v823
        %v825 = vpop.f32.mrb[0].mxu0
        %v826 = vpop.f32.mrb[0].mxu0
        %v827 = vadd.f32 0.0, %v826
        %v828 = vpop.f32.mrb[0].mxu0
        %829 = vmatprep.mubr.bf16.mxu0 0
        %830 = vmatmul.mubr.bf16.gmra.mrb[0].mxu0 %v768
        %v831 = vpop.f32.mrb[0].mxu0
        %v832 = vadd.f32 0.0, %v831
        %v833 = vpop.f32.mrb[0].mxu0
        %v834 = vpop.f32.mrb[0].mxu0
        %v835 = vadd.f32 0.0, %v834
        %v836 = vpop.f32.mrb[0].mxu0
        %837 = vdwg.mxu0
        %v838 = vadd.f32 %v583, %v808
        %v839 = vadd.f32 %v586, %v811
        %v840 = vadd.f32 %v591, %v816
        %v841 = vadd.f32 %v594, %v819
        %v842 = vadd.f32 %v599, %v824
        %v843 = vadd.f32 %v602, %v827
        %v844 = vadd.f32 %v607, %v832
        %v845 = vadd.f32 %v610, %v835
        %v846 = vld [vmem:[%s385] sm:$0xf]
        %v847 = vld [vmem:[%s385 + $0x8] sm:$0xf]
        %v848 = vld [vmem:[%s385 + $0x10] sm:$0xf]
        %v849 = vld [vmem:[%s385 + $0x18] sm:$0xf]
        %v850 = vld [vmem:[%s385 + $0x20] sm:$0xf]
        %v851 = vld [vmem:[%s385 + $0x28] sm:$0xf]
        %v852 = vld [vmem:[%s385 + $0x30] sm:$0xf]
        %v853 = vld [vmem:[%s385 + $0x38] sm:$0xf]
        %s854 = scalar_lea.vmem %s4, 6
        %v855 = vld [vmem:[%s854] sm:$0x3]
        %v864 = vunpack.c.l.b16 %v846
        %v865 = vunpack.c.l.b16 %v847
        %v866 = vunpack.c.l.b16 %v848
        %v867 = vunpack.c.l.b16 %v849
        %v868 = vunpack.c.l.b16 %v850
        %v869 = vunpack.c.l.b16 %v851
        %v870 = vunpack.c.l.b16 %v852
        %v871 = vunpack.c.l.b16 %v853
        %v872 = vpack.c.b16 %v865, %v864
        %v873 = vpack.c.b16 %v867, %v866
        %v874 = vpack.c.b16 %v869, %v868
        %v875 = vpack.c.b16 %v871, %v870
        %v877 = vsel %vm431, %v872, 0
        %v880 = vsel %vm431, %v873, 0
        %v883 = vsel %vm431, %v874, 0
        %v886 = vsel %vm431, %v875, 0
        %v889 = vsel %vm444, %v855, 0
        %891 = vmatprep.subr.bf16.mxu0 0
        %892 = vmatpush1.bf16.msra.mxu0 %v889
        %893 = vmatprep.subr.bf16.mxu0 0
        %894 = vmatpush1.bf16.msra.mxu0 0
        %895 = vmatprep.subr.bf16.mxu0 0
        %896 = vmatpush1.bf16.msra.mxu0 0
        %897 = vmatprep.subr.bf16.mxu0 0
        %898 = vmatpush1.bf16.msra.mxu0 0
        %899 = vmatprep.subr.bf16.mxu0 0
        %900 = vmatpush1.bf16.msra.mxu0 0
        %901 = vmatprep.subr.bf16.mxu0 0
        %902 = vmatpush1.bf16.msra.mxu0 0
        %903 = vmatprep.subr.bf16.mxu0 0
        %904 = vmatpush1.bf16.msra.mxu0 0
        %905 = vmatprep.subr.bf16.mxu0 0
        %906 = vmatpush1.bf16.msra.mxu0 0
        %907 = vmatprep.subr.bf16.mxu0 0
        %908 = vmatpush1.bf16.msra.mxu0 0
        %909 = vmatprep.subr.bf16.mxu0 0
        %910 = vmatpush1.bf16.msra.mxu0 0
        %911 = vmatprep.subr.bf16.mxu0 0
        %912 = vmatpush1.bf16.msra.mxu0 0
        %913 = vmatprep.subr.bf16.mxu0 0
        %914 = vmatpush1.bf16.msra.mxu0 0
        %915 = vmatprep.subr.bf16.mxu0 0
        %916 = vmatpush1.bf16.msra.mxu0 0
        %917 = vmatprep.subr.bf16.mxu0 0
        %918 = vmatpush1.bf16.msra.mxu0 0
        %919 = vmatprep.subr.bf16.mxu0 0
        %920 = vmatpush1.bf16.msra.mxu0 0
        %921 = vmatprep.subr.bf16.mxu0 0
        %922 = vmatpush1.bf16.msra.mxu0 0
        %923 = vmatprep.mubr.bf16.mxu0 0
        %924 = vmatmul.mubr.bf16.gmra.mrb[0].mxu0 %v877
        %v925 = vpop.f32.mrb[0].mxu0
        %v926 = vadd.f32 0.0, %v925
        %v927 = vpop.f32.mrb[0].mxu0
        %v928 = vpop.f32.mrb[0].mxu0
        %v929 = vadd.f32 0.0, %v928
        %v930 = vpop.f32.mrb[0].mxu0
        %931 = vmatprep.mubr.bf16.mxu0 0
        %932 = vmatmul.mubr.bf16.gmra.mrb[0].mxu0 %v880
        %v933 = vpop.f32.mrb[0].mxu0
        %v934 = vadd.f32 0.0, %v933
        %v935 = vpop.f32.mrb[0].mxu0
        %v936 = vpop.f32.mrb[0].mxu0
        %v937 = vadd.f32 0.0, %v936
        %v938 = vpop.f32.mrb[0].mxu0
        %939 = vmatprep.mubr.bf16.mxu0 0
        %940 = vmatmul.mubr.bf16.gmra.mrb[0].mxu0 %v883
        %v941 = vpop.f32.mrb[0].mxu0
        %v942 = vadd.f32 0.0, %v941
        %v943 = vpop.f32.mrb[0].mxu0
        %v944 = vpop.f32.mrb[0].mxu0
        %v945 = vadd.f32 0.0, %v944
        %v946 = vpop.f32.mrb[0].mxu0
        %947 = vmatprep.mubr.bf16.mxu0 0
        %948 = vmatmul.mubr.bf16.gmra.mrb[0].mxu0 %v886
        %v949 = vpop.f32.mrb[0].mxu0
        %v950 = vadd.f32 0.0, %v949
        %v951 = vpop.f32.mrb[0].mxu0
        %v952 = vpop.f32.mrb[0].mxu0
        %v953 = vadd.f32 0.0, %v952
        %v954 = vpop.f32.mrb[0].mxu0
        %955 = vdwg.mxu0
        %v956 = vadd.f32 %v838, %v926
        %v957 = vadd.f32 %v839, %v929
        %v958 = vadd.f32 %v840, %v934
        %v959 = vadd.f32 %v841, %v937
        %v960 = vadd.f32 %v842, %v942
        %v961 = vadd.f32 %v843, %v945
        %v962 = vadd.f32 %v844, %v950
        %v963 = vadd.f32 %v845, %v953
        %v964 = vld [vmem:[%s390] sm:$0xf]
        %v965 = vld [vmem:[%s390 + $0x8] sm:$0xf]
        %v966 = vld [vmem:[%s390 + $0x10] sm:$0xf]
        %v967 = vld [vmem:[%s390 + $0x18] sm:$0xf]
        %v968 = vld [vmem:[%s390 + $0x20] sm:$0xf]
        %v969 = vld [vmem:[%s390 + $0x28] sm:$0xf]
        %v970 = vld [vmem:[%s390 + $0x30] sm:$0xf]
        %v971 = vld [vmem:[%s390 + $0x38] sm:$0xf]
        %s972 = scalar_lea.vmem %s4, 8
        %v973 = vld [vmem:[%s972] sm:$0x3]
        %v982 = vunpack.c.l.b16 %v964
        %v983 = vunpack.c.l.b16 %v965
        %v984 = vunpack.c.l.b16 %v966
        %v985 = vunpack.c.l.b16 %v967
        %v986 = vunpack.c.l.b16 %v968
        %v987 = vunpack.c.l.b16 %v969
        %v988 = vunpack.c.l.b16 %v970
        %v989 = vunpack.c.l.b16 %v971
        %v990 = vpack.c.b16 %v983, %v982
        %v991 = vpack.c.b16 %v985, %v984
        %v992 = vpack.c.b16 %v987, %v986
        %v993 = vpack.c.b16 %v989, %v988
        %v995 = vsel %vm431, %v990, 0
        %v998 = vsel %vm431, %v991, 0
        %v1001 = vsel %vm431, %v992, 0
        %v1004 = vsel %vm431, %v993, 0
        %v1007 = vsel %vm444, %v973, 0
        %1009 = vmatprep.subr.bf16.mxu0 0
        %1010 = vmatpush1.bf16.msra.mxu0 %v1007
        %1011 = vmatprep.subr.bf16.mxu0 0
        %1012 = vmatpush1.bf16.msra.mxu0 0
        %1013 = vmatprep.subr.bf16.mxu0 0
        %1014 = vmatpush1.bf16.msra.mxu0 0
        %1015 = vmatprep.subr.bf16.mxu0 0
        %1016 = vmatpush1.bf16.msra.mxu0 0
        %1017 = vmatprep.subr.bf16.mxu0 0
        %1018 = vmatpush1.bf16.msra.mxu0 0
        %1019 = vmatprep.subr.bf16.mxu0 0
        %1020 = vmatpush1.bf16.msra.mxu0 0
        %1021 = vmatprep.subr.bf16.mxu0 0
        %1022 = vmatpush1.bf16.msra.mxu0 0
        %1023 = vmatprep.subr.bf16.mxu0 0
        %1024 = vmatpush1.bf16.msra.mxu0 0
        %1025 = vmatprep.subr.bf16.mxu0 0
        %1026 = vmatpush1.bf16.msra.mxu0 0
        %1027 = vmatprep.subr.bf16.mxu0 0
        %1028 = vmatpush1.bf16.msra.mxu0 0
        %1029 = vmatprep.subr.bf16.mxu0 0
        %1030 = vmatpush1.bf16.msra.mxu0 0
        %1031 = vmatprep.subr.bf16.mxu0 0
        %1032 = vmatpush1.bf16.msra.mxu0 0
        %1033 = vmatprep.subr.bf16.mxu0 0
        %1034 = vmatpush1.bf16.msra.mxu0 0
        %1035 = vmatprep.subr.bf16.mxu0 0
        %1036 = vmatpush1.bf16.msra.mxu0 0
        %1037 = vmatprep.subr.bf16.mxu0 0
        %1038 = vmatpush1.bf16.msra.mxu0 0
        %1039 = vmatprep.subr.bf16.mxu0 0
        %1040 = vmatpush1.bf16.msra.mxu0 0
        %1041 = vmatprep.mubr.bf16.mxu0 0
        %1042 = vmatmul.mubr.bf16.gmra.mrb[0].mxu0 %v995
        %v1043 = vpop.f32.mrb[0].mxu0
        %v1044 = vadd.f32 0.0, %v1043
        %v1045 = vpop.f32.mrb[0].mxu0
        %v1046 = vpop.f32.mrb[0].mxu0
        %v1047 = vadd.f32 0.0, %v1046
        %v1048 = vpop.f32.mrb[0].mxu0
        %1049 = vmatprep.mubr.bf16.mxu0 0
        %1050 = vmatmul.mubr.bf16.gmra.mrb[0].mxu0 %v998
        %v1051 = vpop.f32.mrb[0].mxu0
        %v1052 = vadd.f32 0.0, %v1051
        %v1053 = vpop.f32.mrb[0].mxu0
        %v1054 = vpop.f32.mrb[0].mxu0
        %v1055 = vadd.f32 0.0, %v1054
        %v1056 = vpop.f32.mrb[0].mxu0
        %1057 = vmatprep.mubr.bf16.mxu0 0
        %1058 = vmatmul.mubr.bf16.gmra.mrb[0].mxu0 %v1001
        %v1059 = vpop.f32.mrb[0].mxu0
        %v1060 = vadd.f32 0.0, %v1059
        %v1061 = vpop.f32.mrb[0].mxu0
        %v1062 = vpop.f32.mrb[0].mxu0
        %v1063 = vadd.f32 0.0, %v1062
        %v1064 = vpop.f32.mrb[0].mxu0
        %1065 = vmatprep.mubr.bf16.mxu0 0
        %1066 = vmatmul.mubr.bf16.gmra.mrb[0].mxu0 %v1004
        %v1067 = vpop.f32.mrb[0].mxu0
        %v1068 = vadd.f32 0.0, %v1067
        %v1069 = vpop.f32.mrb[0].mxu0
        %v1070 = vpop.f32.mrb[0].mxu0
        %v1071 = vadd.f32 0.0, %v1070
        %v1072 = vpop.f32.mrb[0].mxu0
        %1073 = vdwg.mxu0
        %v1074 = vadd.f32 %v956, %v1044
        %v1075 = vadd.f32 %v957, %v1047
        %v1076 = vadd.f32 %v958, %v1052
        %v1077 = vadd.f32 %v959, %v1055
        %v1078 = vadd.f32 %v960, %v1060
        %v1079 = vadd.f32 %v961, %v1063
        %v1080 = vadd.f32 %v962, %v1068
        %v1081 = vadd.f32 %v963, %v1071
        %v1082 = vld [vmem:[%s385] sm:$0xf]
        %v1083 = vld [vmem:[%s385 + $0x4] sm:$0x1]
        %v1084 = vld [vmem:[%s385 + $0x8] sm:$0xf]
        %v1085 = vld [vmem:[%s385 + $0xc] sm:$0x1]
        %v1086 = vld [vmem:[%s385 + $0x10] sm:$0xf]
        %v1087 = vld [vmem:[%s385 + $0x14] sm:$0x1]
        %v1088 = vld [vmem:[%s385 + $0x18] sm:$0xf]
        %v1089 = vld [vmem:[%s385 + $0x1c] sm:$0x1]
        %v1090 = vld [vmem:[%s385 + $0x20] sm:$0xf]
        %v1091 = vld [vmem:[%s385 + $0x24] sm:$0x1]
        %v1092 = vld [vmem:[%s385 + $0x28] sm:$0xf]
        %v1093 = vld [vmem:[%s385 + $0x2c] sm:$0x1]
        %v1094 = vld [vmem:[%s385 + $0x30] sm:$0xf]
        %v1095 = vld [vmem:[%s385 + $0x34] sm:$0x1]
        %v1096 = vld [vmem:[%s385 + $0x38] sm:$0xf]
        %v1097 = vld [vmem:[%s385 + $0x3c] sm:$0x1]
        %v1099 = vshrl.u32 %v1082, 16
        %v1101 = vrot.slane %v1099, 4
        %v1102 = vshll.u32 %v1082, 16
        %v1104 = vrot.slane %v1102, 5
        %v1105 = vor.u32 %v1101, %v1104
        %v1106 = vrot.slane %v1105, 4
        %v1108 = vshll.u32 %v1083, 16
        %v1110 = vrot.slane %v1108, 5
        %v1111 = vsel %vm631, %v1106, %v1110
        %v1113 = vshrl.u32 %v1084, 16
        %v1115 = vrot.slane %v1113, 4
        %v1116 = vshll.u32 %v1084, 16
        %v1118 = vrot.slane %v1116, 5
        %v1119 = vor.u32 %v1115, %v1118
        %v1120 = vrot.slane %v1119, 4
        %v1122 = vshll.u32 %v1085, 16
        %v1124 = vrot.slane %v1122, 5
        %v1125 = vsel %vm631, %v1120, %v1124
        %v1127 = vshrl.u32 %v1086, 16
        %v1129 = vrot.slane %v1127, 4
        %v1130 = vshll.u32 %v1086, 16
        %v1132 = vrot.slane %v1130, 5
        %v1133 = vor.u32 %v1129, %v1132
        %v1134 = vrot.slane %v1133, 4
        %v1136 = vshll.u32 %v1087, 16
        %v1138 = vrot.slane %v1136, 5
        %v1139 = vsel %vm631, %v1134, %v1138
        %v1141 = vshrl.u32 %v1088, 16
        %v1143 = vrot.slane %v1141, 4
        %v1144 = vshll.u32 %v1088, 16
        %v1146 = vrot.slane %v1144, 5
        %v1147 = vor.u32 %v1143, %v1146
        %v1148 = vrot.slane %v1147, 4
        %v1150 = vshll.u32 %v1089, 16
        %v1152 = vrot.slane %v1150, 5
        %v1153 = vsel %vm631, %v1148, %v1152
        %v1155 = vshrl.u32 %v1090, 16
        %v1157 = vrot.slane %v1155, 4
        %v1158 = vshll.u32 %v1090, 16
        %v1160 = vrot.slane %v1158, 5
        %v1161 = vor.u32 %v1157, %v1160
        %v1162 = vrot.slane %v1161, 4
        %v1164 = vshll.u32 %v1091, 16
        %v1166 = vrot.slane %v1164, 5
        %v1167 = vsel %vm631, %v1162, %v1166
        %v1169 = vshrl.u32 %v1092, 16
        %v1171 = vrot.slane %v1169, 4
        %v1172 = vshll.u32 %v1092, 16
        %v1174 = vrot.slane %v1172, 5
        %v1175 = vor.u32 %v1171, %v1174
        %v1176 = vrot.slane %v1175, 4
        %v1178 = vshll.u32 %v1093, 16
        %v1180 = vrot.slane %v1178, 5
        %v1181 = vsel %vm631, %v1176, %v1180
        %v1183 = vshrl.u32 %v1094, 16
        %v1185 = vrot.slane %v1183, 4
        %v1186 = vshll.u32 %v1094, 16
        %v1188 = vrot.slane %v1186, 5
        %v1189 = vor.u32 %v1185, %v1188
        %v1190 = vrot.slane %v1189, 4
        %v1192 = vshll.u32 %v1095, 16
        %v1194 = vrot.slane %v1192, 5
        %v1195 = vsel %vm631, %v1190, %v1194
        %v1197 = vshrl.u32 %v1096, 16
        %v1199 = vrot.slane %v1197, 4
        %v1200 = vshll.u32 %v1096, 16
        %v1202 = vrot.slane %v1200, 5
        %v1203 = vor.u32 %v1199, %v1202
        %v1204 = vrot.slane %v1203, 4
        %v1206 = vshll.u32 %v1097, 16
        %v1208 = vrot.slane %v1206, 5
        %v1209 = vsel %vm631, %v1204, %v1208
        %s1210 = scalar_lea.vmem %s4, 10
        %v1211 = vld [vmem:[%s1210] sm:$0x3]
        %v1212 = vunpack.c.l.b16 %v1111
        %v1213 = vunpack.c.l.b16 %v1125
        %v1214 = vunpack.c.l.b16 %v1139
        %v1215 = vunpack.c.l.b16 %v1153
        %v1216 = vunpack.c.l.b16 %v1167
        %v1217 = vunpack.c.l.b16 %v1181
        %v1218 = vunpack.c.l.b16 %v1195
        %v1219 = vunpack.c.l.b16 %v1209
        %v1220 = vpack.c.b16 %v1213, %v1212
        %v1221 = vpack.c.b16 %v1215, %v1214
        %v1222 = vpack.c.b16 %v1217, %v1216
        %v1223 = vpack.c.b16 %v1219, %v1218
        %v1225 = vsel %vm431, %v1220, 0
        %v1228 = vsel %vm431, %v1221, 0
        %v1231 = vsel %vm431, %v1222, 0
        %v1234 = vsel %vm431, %v1223, 0
        %v1237 = vsel %vm444, %v1211, 0
        %1239 = vmatprep.subr.bf16.mxu0 0
        %1240 = vmatpush1.bf16.msra.mxu0 %v1237
        %1241 = vmatprep.subr.bf16.mxu0 0
        %1242 = vmatpush1.bf16.msra.mxu0 0
        %1243 = vmatprep.subr.bf16.mxu0 0
        %1244 = vmatpush1.bf16.msra.mxu0 0
        %1245 = vmatprep.subr.bf16.mxu0 0
        %1246 = vmatpush1.bf16.msra.mxu0 0
        %1247 = vmatprep.subr.bf16.mxu0 0
        %1248 = vmatpush1.bf16.msra.mxu0 0
        %1249 = vmatprep.subr.bf16.mxu0 0
        %1250 = vmatpush1.bf16.msra.mxu0 0
        %1251 = vmatprep.subr.bf16.mxu0 0
        %1252 = vmatpush1.bf16.msra.mxu0 0
        %1253 = vmatprep.subr.bf16.mxu0 0
        %1254 = vmatpush1.bf16.msra.mxu0 0
        %1255 = vmatprep.subr.bf16.mxu0 0
        %1256 = vmatpush1.bf16.msra.mxu0 0
        %1257 = vmatprep.subr.bf16.mxu0 0
        %1258 = vmatpush1.bf16.msra.mxu0 0
        %1259 = vmatprep.subr.bf16.mxu0 0
        %1260 = vmatpush1.bf16.msra.mxu0 0
        %1261 = vmatprep.subr.bf16.mxu0 0
        %1262 = vmatpush1.bf16.msra.mxu0 0
        %1263 = vmatprep.subr.bf16.mxu0 0
        %1264 = vmatpush1.bf16.msra.mxu0 0
        %1265 = vmatprep.subr.bf16.mxu0 0
        %1266 = vmatpush1.bf16.msra.mxu0 0
        %1267 = vmatprep.subr.bf16.mxu0 0
        %1268 = vmatpush1.bf16.msra.mxu0 0
        %1269 = vmatprep.subr.bf16.mxu0 0
        %1270 = vmatpush1.bf16.msra.mxu0 0
        %1271 = vmatprep.mubr.bf16.mxu0 0
        %1272 = vmatmul.mubr.bf16.gmra.mrb[0].mxu0 %v1225
        %v1273 = vpop.f32.mrb[0].mxu0
        %v1274 = vadd.f32 0.0, %v1273
        %v1275 = vpop.f32.mrb[0].mxu0
        %v1276 = vpop.f32.mrb[0].mxu0
        %v1277 = vadd.f32 0.0, %v1276
        %v1278 = vpop.f32.mrb[0].mxu0
        %1279 = vmatprep.mubr.bf16.mxu0 0
        %1280 = vmatmul.mubr.bf16.gmra.mrb[0].mxu0 %v1228
        %v1281 = vpop.f32.mrb[0].mxu0
        %v1282 = vadd.f32 0.0, %v1281
        %v1283 = vpop.f32.mrb[0].mxu0
        %v1284 = vpop.f32.mrb[0].mxu0
        %v1285 = vadd.f32 0.0, %v1284
        %v1286 = vpop.f32.mrb[0].mxu0
        %1287 = vmatprep.mubr.bf16.mxu0 0
        %1288 = vmatmul.mubr.bf16.gmra.mrb[0].mxu0 %v1231
        %v1289 = vpop.f32.mrb[0].mxu0
        %v1290 = vadd.f32 0.0, %v1289
        %v1291 = vpop.f32.mrb[0].mxu0
        %v1292 = vpop.f32.mrb[0].mxu0
        %v1293 = vadd.f32 0.0, %v1292
        %v1294 = vpop.f32.mrb[0].mxu0
        %1295 = vmatprep.mubr.bf16.mxu0 0
        %1296 = vmatmul.mubr.bf16.gmra.mrb[0].mxu0 %v1234
        %v1297 = vpop.f32.mrb[0].mxu0
        %v1298 = vadd.f32 0.0, %v1297
        %v1299 = vpop.f32.mrb[0].mxu0
        %v1300 = vpop.f32.mrb[0].mxu0
        %v1301 = vadd.f32 0.0, %v1300
        %v1302 = vpop.f32.mrb[0].mxu0
        %1303 = vdwg.mxu0
        %v1304 = vadd.f32 %v1074, %v1274
        %v1305 = vadd.f32 %v1075, %v1277
        %v1306 = vadd.f32 %v1076, %v1282
        %v1307 = vadd.f32 %v1077, %v1285
        %v1308 = vadd.f32 %v1078, %v1290
        %v1309 = vadd.f32 %v1079, %v1293
        %v1310 = vadd.f32 %v1080, %v1298
        %v1311 = vadd.f32 %v1081, %v1301
        %s1312 = scalar_lea.vmem %s375, 8
        %v1313 = vld [vmem:[%s1312] sm:$0xf]
        %v1314 = vld [vmem:[%s1312 + $0x8] sm:$0xf]
        %v1315 = vld [vmem:[%s1312 + $0x10] sm:$0xf]
        %v1316 = vld [vmem:[%s1312 + $0x18] sm:$0xf]
        %v1317 = vld [vmem:[%s1312 + $0x20] sm:$0xf]
        %v1318 = vld [vmem:[%s1312 + $0x28] sm:$0xf]
        %v1319 = vld [vmem:[%s1312 + $0x30] sm:$0xf]
        %v1320 = vld [vmem:[%s1312 + $0x38] sm:$0xf]
        %s1321 = scalar_lea.vmem %s4, 12
        %v1322 = vld [vmem:[%s1321] sm:$0x3]
        %v1331 = vunpack.c.l.b16 %v1313
        %v1332 = vunpack.c.l.b16 %v1314
        %v1333 = vunpack.c.l.b16 %v1315
        %v1334 = vunpack.c.l.b16 %v1316
        %v1335 = vunpack.c.l.b16 %v1317
        %v1336 = vunpack.c.l.b16 %v1318
        %v1337 = vunpack.c.l.b16 %v1319
        %v1338 = vunpack.c.l.b16 %v1320
        %v1339 = vpack.c.b16 %v1332, %v1331
        %v1340 = vpack.c.b16 %v1334, %v1333
        %v1341 = vpack.c.b16 %v1336, %v1335
        %v1342 = vpack.c.b16 %v1338, %v1337
        %v1344 = vsel %vm431, %v1339, 0
        %v1347 = vsel %vm431, %v1340, 0
        %v1350 = vsel %vm431, %v1341, 0
        %v1353 = vsel %vm431, %v1342, 0
        %v1356 = vsel %vm444, %v1322, 0
        %1358 = vmatprep.subr.bf16.mxu0 0
        %1359 = vmatpush1.bf16.msra.mxu0 %v1356
        %1360 = vmatprep.subr.bf16.mxu0 0
        %1361 = vmatpush1.bf16.msra.mxu0 0
        %1362 = vmatprep.subr.bf16.mxu0 0
        %1363 = vmatpush1.bf16.msra.mxu0 0
        %1364 = vmatprep.subr.bf16.mxu0 0
        %1365 = vmatpush1.bf16.msra.mxu0 0
        %1366 = vmatprep.subr.bf16.mxu0 0
        %1367 = vmatpush1.bf16.msra.mxu0 0
        %1368 = vmatprep.subr.bf16.mxu0 0
        %1369 = vmatpush1.bf16.msra.mxu0 0
        %1370 = vmatprep.subr.bf16.mxu0 0
        %1371 = vmatpush1.bf16.msra.mxu0 0
        %1372 = vmatprep.subr.bf16.mxu0 0
        %1373 = vmatpush1.bf16.msra.mxu0 0
        %1374 = vmatprep.subr.bf16.mxu0 0
        %1375 = vmatpush1.bf16.msra.mxu0 0
        %1376 = vmatprep.subr.bf16.mxu0 0
        %1377 = vmatpush1.bf16.msra.mxu0 0
        %1378 = vmatprep.subr.bf16.mxu0 0
        %1379 = vmatpush1.bf16.msra.mxu0 0
        %1380 = vmatprep.subr.bf16.mxu0 0
        %1381 = vmatpush1.bf16.msra.mxu0 0
        %1382 = vmatprep.subr.bf16.mxu0 0
        %1383 = vmatpush1.bf16.msra.mxu0 0
        %1384 = vmatprep.subr.bf16.mxu0 0
        %1385 = vmatpush1.bf16.msra.mxu0 0
        %1386 = vmatprep.subr.bf16.mxu0 0
        %1387 = vmatpush1.bf16.msra.mxu0 0
        %1388 = vmatprep.subr.bf16.mxu0 0
        %1389 = vmatpush1.bf16.msra.mxu0 0
        %1390 = vmatprep.mubr.bf16.mxu0 0
        %1391 = vmatmul.mubr.bf16.gmra.mrb[0].mxu0 %v1344
        %v1392 = vpop.f32.mrb[0].mxu0
        %v1393 = vadd.f32 0.0, %v1392
        %v1394 = vpop.f32.mrb[0].mxu0
        %v1395 = vpop.f32.mrb[0].mxu0
        %v1396 = vadd.f32 0.0, %v1395
        %v1397 = vpop.f32.mrb[0].mxu0
        %1398 = vmatprep.mubr.bf16.mxu0 0
        %1399 = vmatmul.mubr.bf16.gmra.mrb[0].mxu0 %v1347
        %v1400 = vpop.f32.mrb[0].mxu0
        %v1401 = vadd.f32 0.0, %v1400
        %v1402 = vpop.f32.mrb[0].mxu0
        %v1403 = vpop.f32.mrb[0].mxu0
        %v1404 = vadd.f32 0.0, %v1403
        %v1405 = vpop.f32.mrb[0].mxu0
        %1406 = vmatprep.mubr.bf16.mxu0 0
        %1407 = vmatmul.mubr.bf16.gmra.mrb[0].mxu0 %v1350
        %v1408 = vpop.f32.mrb[0].mxu0
        %v1409 = vadd.f32 0.0, %v1408
        %v1410 = vpop.f32.mrb[0].mxu0
        %v1411 = vpop.f32.mrb[0].mxu0
        %v1412 = vadd.f32 0.0, %v1411
        %v1413 = vpop.f32.mrb[0].mxu0
        %1414 = vmatprep.mubr.bf16.mxu0 0
        %1415 = vmatmul.mubr.bf16.gmra.mrb[0].mxu0 %v1353
        %v1416 = vpop.f32.mrb[0].mxu0
        %v1417 = vadd.f32 0.0, %v1416
        %v1418 = vpop.f32.mrb[0].mxu0
        %v1419 = vpop.f32.mrb[0].mxu0
        %v1420 = vadd.f32 0.0, %v1419
        %v1421 = vpop.f32.mrb[0].mxu0
        %1422 = vdwg.mxu0
        %v1423 = vadd.f32 %v1304, %v1393
        %v1424 = vadd.f32 %v1305, %v1396
        %v1425 = vadd.f32 %v1306, %v1401
        %v1426 = vadd.f32 %v1307, %v1404
        %v1427 = vadd.f32 %v1308, %v1409
        %v1428 = vadd.f32 %v1309, %v1412
        %v1429 = vadd.f32 %v1310, %v1417
        %v1430 = vadd.f32 %v1311, %v1420
        %s1431 = scalar_lea.vmem %s380, 8
        %v1432 = vld [vmem:[%s1431] sm:$0xf]
        %v1433 = vld [vmem:[%s1431 + $0x8] sm:$0xf]
        %v1434 = vld [vmem:[%s1431 + $0x10] sm:$0xf]
        %v1435 = vld [vmem:[%s1431 + $0x18] sm:$0xf]
        %v1436 = vld [vmem:[%s1431 + $0x20] sm:$0xf]
        %v1437 = vld [vmem:[%s1431 + $0x28] sm:$0xf]
        %v1438 = vld [vmem:[%s1431 + $0x30] sm:$0xf]
        %v1439 = vld [vmem:[%s1431 + $0x38] sm:$0xf]
        %s1440 = scalar_lea.vmem %s4, 14
        %v1441 = vld [vmem:[%s1440] sm:$0x3]
        %v1450 = vunpack.c.l.b16 %v1432
        %v1451 = vunpack.c.l.b16 %v1433
        %v1452 = vunpack.c.l.b16 %v1434
        %v1453 = vunpack.c.l.b16 %v1435
        %v1454 = vunpack.c.l.b16 %v1436
        %v1455 = vunpack.c.l.b16 %v1437
        %v1456 = vunpack.c.l.b16 %v1438
        %v1457 = vunpack.c.l.b16 %v1439
        %v1458 = vpack.c.b16 %v1451, %v1450
        %v1459 = vpack.c.b16 %v1453, %v1452
        %v1460 = vpack.c.b16 %v1455, %v1454
        %v1461 = vpack.c.b16 %v1457, %v1456
        %v1463 = vsel %vm431, %v1458, 0
        %v1466 = vsel %vm431, %v1459, 0
        %v1469 = vsel %vm431, %v1460, 0
        %v1472 = vsel %vm431, %v1461, 0
        %v1475 = vsel %vm444, %v1441, 0
        %1477 = vmatprep.subr.bf16.mxu0 0
        %1478 = vmatpush1.bf16.msra.mxu0 %v1475
        %1479 = vmatprep.subr.bf16.mxu0 0
        %1480 = vmatpush1.bf16.msra.mxu0 0
        %1481 = vmatprep.subr.bf16.mxu0 0
        %1482 = vmatpush1.bf16.msra.mxu0 0
        %1483 = vmatprep.subr.bf16.mxu0 0
        %1484 = vmatpush1.bf16.msra.mxu0 0
        %1485 = vmatprep.subr.bf16.mxu0 0
        %1486 = vmatpush1.bf16.msra.mxu0 0
        %1487 = vmatprep.subr.bf16.mxu0 0
        %1488 = vmatpush1.bf16.msra.mxu0 0
        %1489 = vmatprep.subr.bf16.mxu0 0
        %1490 = vmatpush1.bf16.msra.mxu0 0
        %1491 = vmatprep.subr.bf16.mxu0 0
        %1492 = vmatpush1.bf16.msra.mxu0 0
        %1493 = vmatprep.subr.bf16.mxu0 0
        %1494 = vmatpush1.bf16.msra.mxu0 0
        %1495 = vmatprep.subr.bf16.mxu0 0
        %1496 = vmatpush1.bf16.msra.mxu0 0
        %1497 = vmatprep.subr.bf16.mxu0 0
        %1498 = vmatpush1.bf16.msra.mxu0 0
        %1499 = vmatprep.subr.bf16.mxu0 0
        %1500 = vmatpush1.bf16.msra.mxu0 0
        %1501 = vmatprep.subr.bf16.mxu0 0
        %1502 = vmatpush1.bf16.msra.mxu0 0
        %1503 = vmatprep.subr.bf16.mxu0 0
        %1504 = vmatpush1.bf16.msra.mxu0 0
        %1505 = vmatprep.subr.bf16.mxu0 0
        %1506 = vmatpush1.bf16.msra.mxu0 0
        %1507 = vmatprep.subr.bf16.mxu0 0
        %1508 = vmatpush1.bf16.msra.mxu0 0
        %1509 = vmatprep.mubr.bf16.mxu0 0
        %1510 = vmatmul.mubr.bf16.gmra.mrb[0].mxu0 %v1463
        %v1511 = vpop.f32.mrb[0].mxu0
        %v1512 = vadd.f32 0.0, %v1511
        %v1513 = vpop.f32.mrb[0].mxu0
        %v1514 = vpop.f32.mrb[0].mxu0
        %v1515 = vadd.f32 0.0, %v1514
        %v1516 = vpop.f32.mrb[0].mxu0
        %1517 = vmatprep.mubr.bf16.mxu0 0
        %1518 = vmatmul.mubr.bf16.gmra.mrb[0].mxu0 %v1466
        %v1519 = vpop.f32.mrb[0].mxu0
        %v1520 = vadd.f32 0.0, %v1519
        %v1521 = vpop.f32.mrb[0].mxu0
        %v1522 = vpop.f32.mrb[0].mxu0
        %v1523 = vadd.f32 0.0, %v1522
        %v1524 = vpop.f32.mrb[0].mxu0
        %1525 = vmatprep.mubr.bf16.mxu0 0
        %1526 = vmatmul.mubr.bf16.gmra.mrb[0].mxu0 %v1469
        %v1527 = vpop.f32.mrb[0].mxu0
        %v1528 = vadd.f32 0.0, %v1527
        %v1529 = vpop.f32.mrb[0].mxu0
        %v1530 = vpop.f32.mrb[0].mxu0
        %v1531 = vadd.f32 0.0, %v1530
        %v1532 = vpop.f32.mrb[0].mxu0
        %1533 = vmatprep.mubr.bf16.mxu0 0
        %1534 = vmatmul.mubr.bf16.gmra.mrb[0].mxu0 %v1472
        %v1535 = vpop.f32.mrb[0].mxu0
        %v1536 = vadd.f32 0.0, %v1535
        %v1537 = vpop.f32.mrb[0].mxu0
        %v1538 = vpop.f32.mrb[0].mxu0
        %v1539 = vadd.f32 0.0, %v1538
        %v1540 = vpop.f32.mrb[0].mxu0
        %1541 = vdwg.mxu0
        %v1542 = vadd.f32 %v1423, %v1512
        %v1543 = vadd.f32 %v1424, %v1515
        %v1544 = vadd.f32 %v1425, %v1520
        %v1545 = vadd.f32 %v1426, %v1523
        %v1546 = vadd.f32 %v1427, %v1528
        %v1547 = vadd.f32 %v1428, %v1531
        %v1548 = vadd.f32 %v1429, %v1536
        %v1549 = vadd.f32 %v1430, %v1539
        %v1550 = vld [vmem:[%s1312] sm:$0xf]
        %v1551 = vld [vmem:[%s1312 + $0x4] sm:$0x1]
        %v1552 = vld [vmem:[%s1312 + $0x8] sm:$0xf]
        %v1553 = vld [vmem:[%s1312 + $0xc] sm:$0x1]
        %v1554 = vld [vmem:[%s1312 + $0x10] sm:$0xf]
        %v1555 = vld [vmem:[%s1312 + $0x14] sm:$0x1]
        %v1556 = vld [vmem:[%s1312 + $0x18] sm:$0xf]
        %v1557 = vld [vmem:[%s1312 + $0x1c] sm:$0x1]
        %v1558 = vld [vmem:[%s1312 + $0x20] sm:$0xf]
        %v1559 = vld [vmem:[%s1312 + $0x24] sm:$0x1]
        %v1560 = vld [vmem:[%s1312 + $0x28] sm:$0xf]
        %v1561 = vld [vmem:[%s1312 + $0x2c] sm:$0x1]
        %v1562 = vld [vmem:[%s1312 + $0x30] sm:$0xf]
        %v1563 = vld [vmem:[%s1312 + $0x34] sm:$0x1]
        %v1564 = vld [vmem:[%s1312 + $0x38] sm:$0xf]
        %v1565 = vld [vmem:[%s1312 + $0x3c] sm:$0x1]
        %v1567 = vshrl.u32 %v1550, 16
        %v1569 = vrot.slane %v1567, 4
        %v1570 = vshll.u32 %v1550, 16
        %v1572 = vrot.slane %v1570, 5
        %v1573 = vor.u32 %v1569, %v1572
        %v1574 = vrot.slane %v1573, 4
        %v1576 = vshll.u32 %v1551, 16
        %v1578 = vrot.slane %v1576, 5
        %v1579 = vsel %vm631, %v1574, %v1578
        %v1581 = vshrl.u32 %v1552, 16
        %v1583 = vrot.slane %v1581, 4
        %v1584 = vshll.u32 %v1552, 16
        %v1586 = vrot.slane %v1584, 5
        %v1587 = vor.u32 %v1583, %v1586
        %v1588 = vrot.slane %v1587, 4
        %v1590 = vshll.u32 %v1553, 16
        %v1592 = vrot.slane %v1590, 5
        %v1593 = vsel %vm631, %v1588, %v1592
        %v1595 = vshrl.u32 %v1554, 16
        %v1597 = vrot.slane %v1595, 4
        %v1598 = vshll.u32 %v1554, 16
        %v1600 = vrot.slane %v1598, 5
        %v1601 = vor.u32 %v1597, %v1600
        %v1602 = vrot.slane %v1601, 4
        %v1604 = vshll.u32 %v1555, 16
        %v1606 = vrot.slane %v1604, 5
        %v1607 = vsel %vm631, %v1602, %v1606
        %v1609 = vshrl.u32 %v1556, 16
        %v1611 = vrot.slane %v1609, 4
        %v1612 = vshll.u32 %v1556, 16
        %v1614 = vrot.slane %v1612, 5
        %v1615 = vor.u32 %v1611, %v1614
        %v1616 = vrot.slane %v1615, 4
        %v1618 = vshll.u32 %v1557, 16
        %v1620 = vrot.slane %v1618, 5
        %v1621 = vsel %vm631, %v1616, %v1620
        %v1623 = vshrl.u32 %v1558, 16
        %v1625 = vrot.slane %v1623, 4
        %v1626 = vshll.u32 %v1558, 16
        %v1628 = vrot.slane %v1626, 5
        %v1629 = vor.u32 %v1625, %v1628
        %v1630 = vrot.slane %v1629, 4
        %v1632 = vshll.u32 %v1559, 16
        %v1634 = vrot.slane %v1632, 5
        %v1635 = vsel %vm631, %v1630, %v1634
        %v1637 = vshrl.u32 %v1560, 16
        %v1639 = vrot.slane %v1637, 4
        %v1640 = vshll.u32 %v1560, 16
        %v1642 = vrot.slane %v1640, 5
        %v1643 = vor.u32 %v1639, %v1642
        %v1644 = vrot.slane %v1643, 4
        %v1646 = vshll.u32 %v1561, 16
        %v1648 = vrot.slane %v1646, 5
        %v1649 = vsel %vm631, %v1644, %v1648
        %v1651 = vshrl.u32 %v1562, 16
        %v1653 = vrot.slane %v1651, 4
        %v1654 = vshll.u32 %v1562, 16
        %v1656 = vrot.slane %v1654, 5
        %v1657 = vor.u32 %v1653, %v1656
        %v1658 = vrot.slane %v1657, 4
        %v1660 = vshll.u32 %v1563, 16
        %v1662 = vrot.slane %v1660, 5
        %v1663 = vsel %vm631, %v1658, %v1662
        %v1665 = vshrl.u32 %v1564, 16
        %v1667 = vrot.slane %v1665, 4
        %v1668 = vshll.u32 %v1564, 16
        %v1670 = vrot.slane %v1668, 5
        %v1671 = vor.u32 %v1667, %v1670
        %v1672 = vrot.slane %v1671, 4
        %v1674 = vshll.u32 %v1565, 16
        %v1676 = vrot.slane %v1674, 5
        %v1677 = vsel %vm631, %v1672, %v1676
        %s1678 = scalar_lea.vmem %s4, 16
        %v1679 = vld [vmem:[%s1678] sm:$0x3]
        %v1680 = vunpack.c.l.b16 %v1579
        %v1681 = vunpack.c.l.b16 %v1593
        %v1682 = vunpack.c.l.b16 %v1607
        %v1683 = vunpack.c.l.b16 %v1621
        %v1684 = vunpack.c.l.b16 %v1635
        %v1685 = vunpack.c.l.b16 %v1649
        %v1686 = vunpack.c.l.b16 %v1663
        %v1687 = vunpack.c.l.b16 %v1677
        %v1688 = vpack.c.b16 %v1681, %v1680
        %v1689 = vpack.c.b16 %v1683, %v1682
        %v1690 = vpack.c.b16 %v1685, %v1684
        %v1691 = vpack.c.b16 %v1687, %v1686
        %v1693 = vsel %vm431, %v1688, 0
        %v1696 = vsel %vm431, %v1689, 0
        %v1699 = vsel %vm431, %v1690, 0
        %v1702 = vsel %vm431, %v1691, 0
        %v1705 = vsel %vm444, %v1679, 0
        %1707 = vmatprep.subr.bf16.mxu0 0
        %1708 = vmatpush1.bf16.msra.mxu0 %v1705
        %1709 = vmatprep.subr.bf16.mxu0 0
        %1710 = vmatpush1.bf16.msra.mxu0 0
        %1711 = vmatprep.subr.bf16.mxu0 0
        %1712 = vmatpush1.bf16.msra.mxu0 0
        %1713 = vmatprep.subr.bf16.mxu0 0
        %1714 = vmatpush1.bf16.msra.mxu0 0
        %1715 = vmatprep.subr.bf16.mxu0 0
        %1716 = vmatpush1.bf16.msra.mxu0 0
        %1717 = vmatprep.subr.bf16.mxu0 0
        %1718 = vmatpush1.bf16.msra.mxu0 0
        %1719 = vmatprep.subr.bf16.mxu0 0
        %1720 = vmatpush1.bf16.msra.mxu0 0
        %1721 = vmatprep.subr.bf16.mxu0 0
        %1722 = vmatpush1.bf16.msra.mxu0 0
        %1723 = vmatprep.subr.bf16.mxu0 0
        %1724 = vmatpush1.bf16.msra.mxu0 0
        %1725 = vmatprep.subr.bf16.mxu0 0
        %1726 = vmatpush1.bf16.msra.mxu0 0
        %1727 = vmatprep.subr.bf16.mxu0 0
        %1728 = vmatpush1.bf16.msra.mxu0 0
        %1729 = vmatprep.subr.bf16.mxu0 0
        %1730 = vmatpush1.bf16.msra.mxu0 0
        %1731 = vmatprep.subr.bf16.mxu0 0
        %1732 = vmatpush1.bf16.msra.mxu0 0
        %1733 = vmatprep.subr.bf16.mxu0 0
        %1734 = vmatpush1.bf16.msra.mxu0 0
        %1735 = vmatprep.subr.bf16.mxu0 0
        %1736 = vmatpush1.bf16.msra.mxu0 0
        %1737 = vmatprep.subr.bf16.mxu0 0
        %1738 = vmatpush1.bf16.msra.mxu0 0
        %1739 = vmatprep.mubr.bf16.mxu0 0
        %1740 = vmatmul.mubr.bf16.gmra.mrb[0].mxu0 %v1693
        %v1741 = vpop.f32.mrb[0].mxu0
        %v1742 = vadd.f32 0.0, %v1741
        %v1743 = vpop.f32.mrb[0].mxu0
        %v1744 = vpop.f32.mrb[0].mxu0
        %v1745 = vadd.f32 0.0, %v1744
        %v1746 = vpop.f32.mrb[0].mxu0
        %1747 = vmatprep.mubr.bf16.mxu0 0
        %1748 = vmatmul.mubr.bf16.gmra.mrb[0].mxu0 %v1696
        %v1749 = vpop.f32.mrb[0].mxu0
        %v1750 = vadd.f32 0.0, %v1749
        %v1751 = vpop.f32.mrb[0].mxu0
        %v1752 = vpop.f32.mrb[0].mxu0
        %v1753 = vadd.f32 0.0, %v1752
        %v1754 = vpop.f32.mrb[0].mxu0
        %1755 = vmatprep.mubr.bf16.mxu0 0
        %1756 = vmatmul.mubr.bf16.gmra.mrb[0].mxu0 %v1699
        %v1757 = vpop.f32.mrb[0].mxu0
        %v1758 = vadd.f32 0.0, %v1757
        %v1759 = vpop.f32.mrb[0].mxu0
        %v1760 = vpop.f32.mrb[0].mxu0
        %v1761 = vadd.f32 0.0, %v1760
        %v1762 = vpop.f32.mrb[0].mxu0
        %1763 = vmatprep.mubr.bf16.mxu0 0
        %1764 = vmatmul.mubr.bf16.gmra.mrb[0].mxu0 %v1702
        %v1765 = vpop.f32.mrb[0].mxu0
        %v1766 = vadd.f32 0.0, %v1765
        %v1767 = vpop.f32.mrb[0].mxu0
        %v1768 = vpop.f32.mrb[0].mxu0
        %v1769 = vadd.f32 0.0, %v1768
        %v1770 = vpop.f32.mrb[0].mxu0
        %1771 = vdwg.mxu0
        %v1772 = vadd.f32 %v1542, %v1742
        %v1773 = vadd.f32 %v1543, %v1745
        %v1774 = vadd.f32 %v1544, %v1750
        %v1775 = vadd.f32 %v1545, %v1753
        %v1776 = vadd.f32 %v1546, %v1758
        %v1777 = vadd.f32 %v1547, %v1761
        %v1778 = vadd.f32 %v1548, %v1766
        %v1779 = vadd.f32 %v1549, %v1769
        %v1780 = vld [vmem:[%s5] sm:$0x1]
        %v1782 = vlaneseq
        %v1783 = vshrl.u32 %v1782, 7
        %v1784 = vsub.s32 0, %v1783
        %v1785 = vrot.slane %v1780, %v1784
        %v1787 = vadd.f32 %v1772, %v1785
        %v1788 = vadd.f32 %v1773, %v1785
        %v1789 = vadd.f32 %v1774, %v1785
        %v1790 = vadd.f32 %v1775, %v1785
        %v1791 = vadd.f32 %v1776, %v1785
        %v1792 = vadd.f32 %v1777, %v1785
        %v1793 = vadd.f32 %v1778, %v1785
        %v1794 = vadd.f32 %v1779, %v1785
        %v1795 = vmax.f32 %v1787, 0.0
        %v1796 = vmax.f32 %v1788, 0.0
        %v1797 = vmax.f32 %v1789, 0.0
        %v1798 = vmax.f32 %v1790, 0.0
        %v1799 = vmax.f32 %v1791, 0.0
        %v1800 = vmax.f32 %v1792, 0.0
        %v1801 = vmax.f32 %v1793, 0.0
        %v1802 = vmax.f32 %v1794, 0.0
        %v1803 = vpack.c.bf16 %v1796, %v1795
        %v1804 = vpack.c.bf16 %v1798, %v1797
        %v1805 = vpack.c.bf16 %v1800, %v1799
        %v1806 = vpack.c.bf16 %v1802, %v1801
        %vm1807 = vcmask 60416
        %1808 = vst.msk [vmem:[#allocation2] sm:$0xf] %vm1807, 0
        %vm1809 = vcmask 57344
        %1810 = vst.msk [vmem:[#allocation2 + $0x4] sm:$0x1] %vm1809, 0
        %1811 = vst.msk [vmem:[#allocation2 + $0x8] sm:$0xf] %vm1807, 0
        %1812 = vst.msk [vmem:[#allocation2 + $0xc] sm:$0x1] %vm1809, 0
        %1813 = vst.msk [vmem:[#allocation2 + $0x10] sm:$0xf] %vm1807, 0
        %1814 = vst.msk [vmem:[#allocation2 + $0x14] sm:$0x1] %vm1809, 0
        %1815 = vst.msk [vmem:[#allocation2 + $0x18] sm:$0xf] %vm1807, 0
        %1816 = vst.msk [vmem:[#allocation2 + $0x1c] sm:$0x1] %vm1809, 0
        %1817 = vst.msk [vmem:[#allocation2 + $0x20] sm:$0xf] %vm1807, 0
        %1818 = vst.msk [vmem:[#allocation2 + $0x24] sm:$0x1] %vm1809, 0
        %1819 = vst.msk [vmem:[#allocation2 + $0x28] sm:$0xf] %vm1807, 0
        %1820 = vst.msk [vmem:[#allocation2 + $0x2c] sm:$0x1] %vm1809, 0
        %1821 = vst.msk [vmem:[#allocation2 + $0x30] sm:$0xf] %vm1807, 0
        %1822 = vst.msk [vmem:[#allocation2 + $0x34] sm:$0x1] %vm1809, 0
        %1823 = vst.msk [vmem:[#allocation2 + $0x38] sm:$0xf] %vm1807, 0
        %1824 = vst.msk [vmem:[#allocation2 + $0x3c] sm:$0x1] %vm1809, 0
        %1825 = vst.msk [vmem:[#allocation2 + $0x40] sm:$0xf] %vm1807, 0
        %1826 = vst.msk [vmem:[#allocation2 + $0x44] sm:$0x1] %vm1809, 0
        %1827 = vst.msk [vmem:[#allocation2 + $0x48] sm:$0xf] %vm1807, 0
        %1828 = vst.msk [vmem:[#allocation2 + $0x4c] sm:$0x1] %vm1809, 0
        %v1833 = vunpack.c.l.b16 %v1803
        %v1834 = vunpack.c.h.b16 %v1803
        %v1835 = vunpack.c.l.b16 %v1804
        %v1836 = vunpack.c.h.b16 %v1804
        %v1837 = vunpack.c.l.b16 %v1805
        %v1838 = vunpack.c.h.b16 %v1805
        %v1839 = vunpack.c.l.b16 %v1806
        %v1840 = vunpack.c.h.b16 %v1806
        %v1841 = vpack.c.b16 %v1833, %v1833
        %v1842 = vpack.c.b16 %v1834, %v1834
        %v1843 = vpack.c.b16 %v1835, %v1835
        %v1844 = vpack.c.b16 %v1836, %v1836
        %v1845 = vpack.c.b16 %v1837, %v1837
        %v1846 = vpack.c.b16 %v1838, %v1838
        %v1847 = vpack.c.b16 %v1839, %v1839
        %v1848 = vpack.c.b16 %v1840, %v1840
        %v1850 = vshrl.u32 %v1841, 16
        %v1852 = vrot.slane %v1850, 7
        %v1853 = vshll.u32 %v1841, 16
        %v1855 = vor.u32 %v1852, %v1853
        %v1856 = vrot.slane %v1852, 4
        %v1858 = vshrl.u32 %v1842, 16
        %v1860 = vrot.slane %v1858, 7
        %v1861 = vshll.u32 %v1842, 16
        %v1863 = vor.u32 %v1860, %v1861
        %v1864 = vrot.slane %v1860, 4
        %v1866 = vshrl.u32 %v1843, 16
        %v1868 = vrot.slane %v1866, 7
        %v1869 = vshll.u32 %v1843, 16
        %v1871 = vor.u32 %v1868, %v1869
        %v1872 = vrot.slane %v1868, 4
        %v1874 = vshrl.u32 %v1844, 16
        %v1876 = vrot.slane %v1874, 7
        %v1877 = vshll.u32 %v1844, 16
        %v1879 = vor.u32 %v1876, %v1877
        %v1880 = vrot.slane %v1876, 4
        %v1882 = vshrl.u32 %v1845, 16
        %v1884 = vrot.slane %v1882, 7
        %v1885 = vshll.u32 %v1845, 16
        %v1887 = vor.u32 %v1884, %v1885
        %v1888 = vrot.slane %v1884, 4
        %v1890 = vshrl.u32 %v1846, 16
        %v1892 = vrot.slane %v1890, 7
        %v1893 = vshll.u32 %v1846, 16
        %v1895 = vor.u32 %v1892, %v1893
        %v1896 = vrot.slane %v1892, 4
        %v1898 = vshrl.u32 %v1847, 16
        %v1900 = vrot.slane %v1898, 7
        %v1901 = vshll.u32 %v1847, 16
        %v1903 = vor.u32 %v1900, %v1901
        %v1904 = vrot.slane %v1900, 4
        %v1906 = vshrl.u32 %v1848, 16
        %v1908 = vrot.slane %v1906, 7
        %v1909 = vshll.u32 %v1848, 16
        %v1911 = vor.u32 %v1908, %v1909
        %v1912 = vrot.slane %v1908, 4
        %s1929 = scalar_lea.vmem [#allocation2], 8
        %vm1930 = vcmask 60416
        %vm1931 = vsmask.f32 7938
        %vm1932 = vmand %vm1930, %vm1931
        %v1933 = vld [vmem:[%s1929] sm:$0xf]
        %v1934 = vsel %vm1932, %v1855, %v1933
        %1935 = vst [vmem:[%s1929] sm:$0xf] %v1934
        %vm1936 = vcmask 57344
        %vm1937 = vsmask.f32 256
        %vm1938 = vmand %vm1936, %vm1937
        %v1939 = vld [vmem:[%s1929 + $0x4] sm:$0x1]
        %v1940 = vsel %vm1938, %v1856, %v1939
        %1941 = vst [vmem:[%s1929 + $0x4] sm:$0x1] %v1940
        %v1942 = vld [vmem:[%s1929 + $0x8] sm:$0xf]
        %v1943 = vsel %vm1932, %v1863, %v1942
        %1944 = vst [vmem:[%s1929 + $0x8] sm:$0xf] %v1943
        %v1945 = vld [vmem:[%s1929 + $0xc] sm:$0x1]
        %v1946 = vsel %vm1938, %v1864, %v1945
        %1947 = vst [vmem:[%s1929 + $0xc] sm:$0x1] %v1946
        %v1948 = vld [vmem:[%s1929 + $0x10] sm:$0xf]
        %v1949 = vsel %vm1932, %v1871, %v1948
        %1950 = vst [vmem:[%s1929 + $0x10] sm:$0xf] %v1949
        %v1951 = vld [vmem:[%s1929 + $0x14] sm:$0x1]
        %v1952 = vsel %vm1938, %v1872, %v1951
        %1953 = vst [vmem:[%s1929 + $0x14] sm:$0x1] %v1952
        %v1954 = vld [vmem:[%s1929 + $0x18] sm:$0xf]
        %v1955 = vsel %vm1932, %v1879, %v1954
        %1956 = vst [vmem:[%s1929 + $0x18] sm:$0xf] %v1955
        %v1957 = vld [vmem:[%s1929 + $0x1c] sm:$0x1]
        %v1958 = vsel %vm1938, %v1880, %v1957
        %1959 = vst [vmem:[%s1929 + $0x1c] sm:$0x1] %v1958
        %v1960 = vld [vmem:[%s1929 + $0x20] sm:$0xf]
        %v1961 = vsel %vm1932, %v1887, %v1960
        %1962 = vst [vmem:[%s1929 + $0x20] sm:$0xf] %v1961
        %v1963 = vld [vmem:[%s1929 + $0x24] sm:$0x1]
        %v1964 = vsel %vm1938, %v1888, %v1963
        %1965 = vst [vmem:[%s1929 + $0x24] sm:$0x1] %v1964
        %v1966 = vld [vmem:[%s1929 + $0x28] sm:$0xf]
        %v1967 = vsel %vm1932, %v1895, %v1966
        %1968 = vst [vmem:[%s1929 + $0x28] sm:$0xf] %v1967
        %v1969 = vld [vmem:[%s1929 + $0x2c] sm:$0x1]
        %v1970 = vsel %vm1938, %v1896, %v1969
        %1971 = vst [vmem:[%s1929 + $0x2c] sm:$0x1] %v1970
        %v1972 = vld [vmem:[%s1929 + $0x30] sm:$0xf]
        %v1973 = vsel %vm1932, %v1903, %v1972
        %1974 = vst [vmem:[%s1929 + $0x30] sm:$0xf] %v1973
        %v1975 = vld [vmem:[%s1929 + $0x34] sm:$0x1]
        %v1976 = vsel %vm1938, %v1904, %v1975
        %1977 = vst [vmem:[%s1929 + $0x34] sm:$0x1] %v1976
        %v1978 = vld [vmem:[%s1929 + $0x38] sm:$0xf]
        %v1979 = vsel %vm1932, %v1911, %v1978
        %1980 = vst [vmem:[%s1929 + $0x38] sm:$0xf] %v1979
        %v1981 = vld [vmem:[%s1929 + $0x3c] sm:$0x1]
        %v1982 = vsel %vm1938, %v1912, %v1981
        %1983 = vst [vmem:[%s1929 + $0x3c] sm:$0x1] %v1982
        %v1984 = vld [vmem:[#allocation2] sm:$0xf]
        %v1985 = vld [vmem:[#allocation2 + $0x8] sm:$0xf]
        %v1986 = vld [vmem:[#allocation2 + $0x10] sm:$0xf]
        %v1987 = vld [vmem:[#allocation2 + $0x18] sm:$0xf]
        %v1988 = vld [vmem:[#allocation2 + $0x20] sm:$0xf]
        %v1989 = vld [vmem:[#allocation2 + $0x28] sm:$0xf]
        %v1990 = vld [vmem:[#allocation2 + $0x30] sm:$0xf]
        %v1991 = vld [vmem:[#allocation2 + $0x38] sm:$0xf]
        %v1992 = vld [vmem:[%s6] sm:$0xf]
        %v1993 = vld [vmem:[#allocation2 + $0x4] sm:$0x1]
        %v1994 = vld [vmem:[#allocation2 + $0xc] sm:$0x1]
        %v1995 = vld [vmem:[#allocation2 + $0x14] sm:$0x1]
        %v1996 = vld [vmem:[#allocation2 + $0x1c] sm:$0x1]
        %v1997 = vld [vmem:[#allocation2 + $0x24] sm:$0x1]
        %v1998 = vld [vmem:[#allocation2 + $0x2c] sm:$0x1]
        %v1999 = vld [vmem:[#allocation2 + $0x34] sm:$0x1]
        %v2000 = vld [vmem:[#allocation2 + $0x3c] sm:$0x1]
        %v2002 = vshrl.u32 %v1984, 16
        %v2004 = vrot.slane %v2002, 4
        %v2005 = vshll.u32 %v1984, 16
        %v2007 = vrot.slane %v2005, 5
        %v2008 = vor.u32 %v2004, %v2007
        %v2009 = vrot.slane %v2008, 4
        %v2011 = vshll.u32 %v1993, 16
        %v2013 = vrot.slane %v2011, 5
        %v2014 = vsel %vm631, %v2009, %v2013
        %v2016 = vshrl.u32 %v1985, 16
        %v2018 = vrot.slane %v2016, 4
        %v2019 = vshll.u32 %v1985, 16
        %v2021 = vrot.slane %v2019, 5
        %v2022 = vor.u32 %v2018, %v2021
        %v2023 = vrot.slane %v2022, 4
        %v2025 = vshll.u32 %v1994, 16
        %v2027 = vrot.slane %v2025, 5
        %v2028 = vsel %vm631, %v2023, %v2027
        %v2030 = vshrl.u32 %v1986, 16
        %v2032 = vrot.slane %v2030, 4
        %v2033 = vshll.u32 %v1986, 16
        %v2035 = vrot.slane %v2033, 5
        %v2036 = vor.u32 %v2032, %v2035
        %v2037 = vrot.slane %v2036, 4
        %v2039 = vshll.u32 %v1995, 16
        %v2041 = vrot.slane %v2039, 5
        %v2042 = vsel %vm631, %v2037, %v2041
        %v2044 = vshrl.u32 %v1987, 16
        %v2046 = vrot.slane %v2044, 4
        %v2047 = vshll.u32 %v1987, 16
        %v2049 = vrot.slane %v2047, 5
        %v2050 = vor.u32 %v2046, %v2049
        %v2051 = vrot.slane %v2050, 4
        %v2053 = vshll.u32 %v1996, 16
        %v2055 = vrot.slane %v2053, 5
        %v2056 = vsel %vm631, %v2051, %v2055
        %v2058 = vshrl.u32 %v1988, 16
        %v2060 = vrot.slane %v2058, 4
        %v2061 = vshll.u32 %v1988, 16
        %v2063 = vrot.slane %v2061, 5
        %v2064 = vor.u32 %v2060, %v2063
        %v2065 = vrot.slane %v2064, 4
        %v2067 = vshll.u32 %v1997, 16
        %v2069 = vrot.slane %v2067, 5
        %v2070 = vsel %vm631, %v2065, %v2069
        %v2072 = vshrl.u32 %v1989, 16
        %v2074 = vrot.slane %v2072, 4
        %v2075 = vshll.u32 %v1989, 16
        %v2077 = vrot.slane %v2075, 5
        %v2078 = vor.u32 %v2074, %v2077
        %v2079 = vrot.slane %v2078, 4
        %v2081 = vshll.u32 %v1998, 16
        %v2083 = vrot.slane %v2081, 5
        %v2084 = vsel %vm631, %v2079, %v2083
        %v2086 = vshrl.u32 %v1990, 16
        %v2088 = vrot.slane %v2086, 4
        %v2089 = vshll.u32 %v1990, 16
        %v2091 = vrot.slane %v2089, 5
        %v2092 = vor.u32 %v2088, %v2091
        %v2093 = vrot.slane %v2092, 4
        %v2095 = vshll.u32 %v1999, 16
        %v2097 = vrot.slane %v2095, 5
        %v2098 = vsel %vm631, %v2093, %v2097
        %v2100 = vshrl.u32 %v1991, 16
        %v2102 = vrot.slane %v2100, 4
        %v2103 = vshll.u32 %v1991, 16
        %v2105 = vrot.slane %v2103, 5
        %v2106 = vor.u32 %v2102, %v2105
        %v2107 = vrot.slane %v2106, 4
        %v2109 = vshll.u32 %v2000, 16
        %v2111 = vrot.slane %v2109, 5
        %v2112 = vsel %vm631, %v2107, %v2111
        %s2113 = scalar_lea.vmem %s6, 4
        %v2114 = vld [vmem:[%s2113] sm:$0xf]
        %v2115 = vunpack.c.l.b16 %v2014
        %v2116 = vunpack.c.l.b16 %v2028
        %v2117 = vunpack.c.l.b16 %v2042
        %v2118 = vunpack.c.l.b16 %v2056
        %v2119 = vunpack.c.l.b16 %v2070
        %v2120 = vunpack.c.l.b16 %v2084
        %v2121 = vunpack.c.l.b16 %v2098
        %v2122 = vunpack.c.l.b16 %v2112
        %v2123 = vpack.c.b16 %v2116, %v2115
        %v2124 = vpack.c.b16 %v2118, %v2117
        %v2125 = vpack.c.b16 %v2120, %v2119
        %v2126 = vpack.c.b16 %v2122, %v2121
        %vm2127 = vcmask 64512
        %v2129 = vsel %vm2127, %v2123, 0
        %v2132 = vsel %vm2127, %v2124, 0
        %v2135 = vsel %vm2127, %v2125, 0
        %v2138 = vsel %vm2127, %v2126, 0
        %vm2140 = vcmask 1043456
        %v2142 = vsel %vm2140, %v2114, 0
        %2144 = vmatprep.subr.bf16.mxu0 0
        %2145 = vmatpush1.bf16.msra.mxu0 %v2142
        %2146 = vmatprep.subr.bf16.mxu0 0
        %2147 = vmatpush1.bf16.msra.mxu0 0
        %2148 = vmatprep.subr.bf16.mxu0 0
        %2149 = vmatpush1.bf16.msra.mxu0 0
        %2150 = vmatprep.subr.bf16.mxu0 0
        %2151 = vmatpush1.bf16.msra.mxu0 0
        %2152 = vmatprep.subr.bf16.mxu0 0
        %2153 = vmatpush1.bf16.msra.mxu0 0
        %2154 = vmatprep.subr.bf16.mxu0 0
        %2155 = vmatpush1.bf16.msra.mxu0 0
        %2156 = vmatprep.subr.bf16.mxu0 0
        %2157 = vmatpush1.bf16.msra.mxu0 0
        %2158 = vmatprep.subr.bf16.mxu0 0
        %2159 = vmatpush1.bf16.msra.mxu0 0
        %2160 = vmatprep.subr.bf16.mxu0 0
        %2161 = vmatpush1.bf16.msra.mxu0 0
        %2162 = vmatprep.subr.bf16.mxu0 0
        %2163 = vmatpush1.bf16.msra.mxu0 0
        %2164 = vmatprep.subr.bf16.mxu0 0
        %2165 = vmatpush1.bf16.msra.mxu0 0
        %2166 = vmatprep.subr.bf16.mxu0 0
        %2167 = vmatpush1.bf16.msra.mxu0 0
        %2168 = vmatprep.subr.bf16.mxu0 0
        %2169 = vmatpush1.bf16.msra.mxu0 0
        %2170 = vmatprep.subr.bf16.mxu0 0
        %2171 = vmatpush1.bf16.msra.mxu0 0
        %2172 = vmatprep.subr.bf16.mxu0 0
        %2173 = vmatpush1.bf16.msra.mxu0 0
        %2174 = vmatprep.subr.bf16.mxu0 0
        %2175 = vmatpush1.bf16.msra.mxu0 0
        %2176 = vmatprep.mubr.bf16.mxu0 0
        %2177 = vmatmul.mubr.bf16.gmra.mrb[0].mxu0 %v2129
        %v2178 = vpop.f32.mrb[0].mxu0
        %v2179 = vadd.f32 0.0, %v2178
        %v2180 = vpop.f32.mrb[0].mxu0
        %v2181 = vpop.f32.mrb[0].mxu0
        %v2182 = vadd.f32 0.0, %v2181
        %v2183 = vpop.f32.mrb[0].mxu0
        %2184 = vmatprep.mubr.bf16.mxu0 0
        %2185 = vmatmul.mubr.bf16.gmra.mrb[0].mxu0 %v2132
        %v2186 = vpop.f32.mrb[0].mxu0
        %v2187 = vadd.f32 0.0, %v2186
        %v2188 = vpop.f32.mrb[0].mxu0
        %v2189 = vpop.f32.mrb[0].mxu0
        %v2190 = vadd.f32 0.0, %v2189
        %v2191 = vpop.f32.mrb[0].mxu0
        %2192 = vmatprep.mubr.bf16.mxu0 0
        %2193 = vmatmul.mubr.bf16.gmra.mrb[0].mxu0 %v2135
        %v2194 = vpop.f32.mrb[0].mxu0
        %v2195 = vadd.f32 0.0, %v2194
        %v2196 = vpop.f32.mrb[0].mxu0
        %v2197 = vpop.f32.mrb[0].mxu0
        %v2198 = vadd.f32 0.0, %v2197
        %v2199 = vpop.f32.mrb[0].mxu0
        %2200 = vmatprep.mubr.bf16.mxu0 0
        %2201 = vmatmul.mubr.bf16.gmra.mrb[0].mxu0 %v2138
        %v2202 = vpop.f32.mrb[0].mxu0
        %v2203 = vadd.f32 0.0, %v2202
        %v2204 = vpop.f32.mrb[0].mxu0
        %v2205 = vpop.f32.mrb[0].mxu0
        %v2206 = vadd.f32 0.0, %v2205
        %v2207 = vpop.f32.mrb[0].mxu0
        %2208 = vdwg.mxu0
        %v2217 = vunpack.c.l.b16 %v1984
        %v2218 = vunpack.c.l.b16 %v1985
        %v2219 = vunpack.c.l.b16 %v1986
        %v2220 = vunpack.c.l.b16 %v1987
        %v2221 = vunpack.c.l.b16 %v1988
        %v2222 = vunpack.c.l.b16 %v1989
        %v2223 = vunpack.c.l.b16 %v1990
        %v2224 = vunpack.c.l.b16 %v1991
        %v2225 = vpack.c.b16 %v2218, %v2217
        %v2226 = vpack.c.b16 %v2220, %v2219
        %v2227 = vpack.c.b16 %v2222, %v2221
        %v2228 = vpack.c.b16 %v2224, %v2223
        %v2230 = vsel %vm2127, %v2225, 0
        %v2233 = vsel %vm2127, %v2226, 0
        %v2236 = vsel %vm2127, %v2227, 0
        %v2239 = vsel %vm2127, %v2228, 0
        %v2242 = vsel %vm2140, %v1992, 0
        %2244 = vmatprep.subr.bf16.mxu0 0
        %2245 = vmatpush1.bf16.msra.mxu0 %v2242
        %2246 = vmatprep.subr.bf16.mxu0 0
        %2247 = vmatpush1.bf16.msra.mxu0 0
        %2248 = vmatprep.subr.bf16.mxu0 0
        %2249 = vmatpush1.bf16.msra.mxu0 0
        %2250 = vmatprep.subr.bf16.mxu0 0
        %2251 = vmatpush1.bf16.msra.mxu0 0
        %2252 = vmatprep.subr.bf16.mxu0 0
        %2253 = vmatpush1.bf16.msra.mxu0 0
        %2254 = vmatprep.subr.bf16.mxu0 0
        %2255 = vmatpush1.bf16.msra.mxu0 0
        %2256 = vmatprep.subr.bf16.mxu0 0
        %2257 = vmatpush1.bf16.msra.mxu0 0
        %2258 = vmatprep.subr.bf16.mxu0 0
        %2259 = vmatpush1.bf16.msra.mxu0 0
        %2260 = vmatprep.subr.bf16.mxu0 0
        %2261 = vmatpush1.bf16.msra.mxu0 0
        %2262 = vmatprep.subr.bf16.mxu0 0
        %2263 = vmatpush1.bf16.msra.mxu0 0
        %2264 = vmatprep.subr.bf16.mxu0 0
        %2265 = vmatpush1.bf16.msra.mxu0 0
        %2266 = vmatprep.subr.bf16.mxu0 0
        %2267 = vmatpush1.bf16.msra.mxu0 0
        %2268 = vmatprep.subr.bf16.mxu0 0
        %2269 = vmatpush1.bf16.msra.mxu0 0
        %2270 = vmatprep.subr.bf16.mxu0 0
        %2271 = vmatpush1.bf16.msra.mxu0 0
        %2272 = vmatprep.subr.bf16.mxu0 0
        %2273 = vmatpush1.bf16.msra.mxu0 0
        %2274 = vmatprep.subr.bf16.mxu0 0
        %2275 = vmatpush1.bf16.msra.mxu0 0
        %2276 = vmatprep.mubr.bf16.mxu0 0
        %2277 = vmatmul.mubr.bf16.gmra.mrb[0].mxu0 %v2230
        %v2278 = vpop.f32.mrb[0].mxu0
        %v2279 = vadd.f32 %v2179, %v2278
        %v2280 = vpop.f32.mrb[0].mxu0
        %v2281 = vpop.f32.mrb[0].mxu0
        %v2282 = vadd.f32 %v2182, %v2281
        %v2283 = vpop.f32.mrb[0].mxu0
        %2284 = vmatprep.mubr.bf16.mxu0 0
        %2285 = vmatmul.mubr.bf16.gmra.mrb[0].mxu0 %v2233
        %v2286 = vpop.f32.mrb[0].mxu0
        %v2287 = vadd.f32 %v2187, %v2286
        %v2288 = vpop.f32.mrb[0].mxu0
        %v2289 = vpop.f32.mrb[0].mxu0
        %v2290 = vadd.f32 %v2190, %v2289
        %v2291 = vpop.f32.mrb[0].mxu0
        %2292 = vmatprep.mubr.bf16.mxu0 0
        %2293 = vmatmul.mubr.bf16.gmra.mrb[0].mxu0 %v2236
        %v2294 = vpop.f32.mrb[0].mxu0
        %v2295 = vadd.f32 %v2195, %v2294
        %v2296 = vpop.f32.mrb[0].mxu0
        %v2297 = vpop.f32.mrb[0].mxu0
        %v2298 = vadd.f32 %v2198, %v2297
        %v2299 = vpop.f32.mrb[0].mxu0
        %2300 = vmatprep.mubr.bf16.mxu0 0
        %2301 = vmatmul.mubr.bf16.gmra.mrb[0].mxu0 %v2239
        %v2302 = vpop.f32.mrb[0].mxu0
        %v2303 = vadd.f32 %v2203, %v2302
        %v2304 = vpop.f32.mrb[0].mxu0
        %v2305 = vpop.f32.mrb[0].mxu0
        %v2306 = vadd.f32 %v2206, %v2305
        %v2307 = vpop.f32.mrb[0].mxu0
        %2308 = vdwg.mxu0
        %v2309 = vld [vmem:[#allocation2] sm:$0xe]
        %v2310 = vld [vmem:[#allocation2 + $0x8] sm:$0xe]
        %v2311 = vld [vmem:[#allocation2 + $0x10] sm:$0xe]
        %v2312 = vld [vmem:[#allocation2 + $0x18] sm:$0xe]
        %v2313 = vld [vmem:[#allocation2 + $0x20] sm:$0xe]
        %v2314 = vld [vmem:[#allocation2 + $0x28] sm:$0xe]
        %v2315 = vld [vmem:[#allocation2 + $0x30] sm:$0xe]
        %v2316 = vld [vmem:[#allocation2 + $0x38] sm:$0xe]
        %vm2333 = vcmask 1042432
        %vm2334 = vcmask 1046532
        %vm2335 = vmor %vm2333, %vm2334
        %v2336 = vrot.slane %v2309, 5
        %v2337 = vrot.slane %v2336, 4
        %v2338 = vrot.slane %v1993, 5
        %v2339 = vsel %vm2335, %v2337, %v2338
        %v2340 = vrot.slane %v2310, 5
        %v2341 = vrot.slane %v2340, 4
        %v2342 = vrot.slane %v1994, 5
        %v2343 = vsel %vm2335, %v2341, %v2342
        %v2344 = vrot.slane %v2311, 5
        %v2345 = vrot.slane %v2344, 4
        %v2346 = vrot.slane %v1995, 5
        %v2347 = vsel %vm2335, %v2345, %v2346
        %v2348 = vrot.slane %v2312, 5
        %v2349 = vrot.slane %v2348, 4
        %v2350 = vrot.slane %v1996, 5
        %v2351 = vsel %vm2335, %v2349, %v2350
        %v2352 = vrot.slane %v2313, 5
        %v2353 = vrot.slane %v2352, 4
        %v2354 = vrot.slane %v1997, 5
        %v2355 = vsel %vm2335, %v2353, %v2354
        %v2356 = vrot.slane %v2314, 5
        %v2357 = vrot.slane %v2356, 4
        %v2358 = vrot.slane %v1998, 5
        %v2359 = vsel %vm2335, %v2357, %v2358
        %v2360 = vrot.slane %v2315, 5
        %v2361 = vrot.slane %v2360, 4
        %v2362 = vrot.slane %v1999, 5
        %v2363 = vsel %vm2335, %v2361, %v2362
        %v2364 = vrot.slane %v2316, 5
        %v2365 = vrot.slane %v2364, 4
        %v2366 = vrot.slane %v2000, 5
        %v2367 = vsel %vm2335, %v2365, %v2366
        %s2368 = scalar_lea.vmem %s6, 8
        %v2369 = vld [vmem:[%s2368] sm:$0xf]
        %v2370 = vunpack.c.l.b16 %v2339
        %v2371 = vunpack.c.l.b16 %v2343
        %v2372 = vunpack.c.l.b16 %v2347
        %v2373 = vunpack.c.l.b16 %v2351
        %v2374 = vunpack.c.l.b16 %v2355
        %v2375 = vunpack.c.l.b16 %v2359
        %v2376 = vunpack.c.l.b16 %v2363
        %v2377 = vunpack.c.l.b16 %v2367
        %v2378 = vpack.c.b16 %v2371, %v2370
        %v2379 = vpack.c.b16 %v2373, %v2372
        %v2380 = vpack.c.b16 %v2375, %v2374
        %v2381 = vpack.c.b16 %v2377, %v2376
        %v2383 = vsel %vm2127, %v2378, 0
        %v2386 = vsel %vm2127, %v2379, 0
        %v2389 = vsel %vm2127, %v2380, 0
        %v2392 = vsel %vm2127, %v2381, 0
        %v2395 = vsel %vm2140, %v2369, 0
        %2397 = vmatprep.subr.bf16.mxu0 0
        %2398 = vmatpush1.bf16.msra.mxu0 %v2395
        %2399 = vmatprep.subr.bf16.mxu0 0
        %2400 = vmatpush1.bf16.msra.mxu0 0
        %2401 = vmatprep.subr.bf16.mxu0 0
        %2402 = vmatpush1.bf16.msra.mxu0 0
        %2403 = vmatprep.subr.bf16.mxu0 0
        %2404 = vmatpush1.bf16.msra.mxu0 0
        %2405 = vmatprep.subr.bf16.mxu0 0
        %2406 = vmatpush1.bf16.msra.mxu0 0
        %2407 = vmatprep.subr.bf16.mxu0 0
        %2408 = vmatpush1.bf16.msra.mxu0 0
        %2409 = vmatprep.subr.bf16.mxu0 0
        %2410 = vmatpush1.bf16.msra.mxu0 0
        %2411 = vmatprep.subr.bf16.mxu0 0
        %2412 = vmatpush1.bf16.msra.mxu0 0
        %2413 = vmatprep.subr.bf16.mxu0 0
        %2414 = vmatpush1.bf16.msra.mxu0 0
        %2415 = vmatprep.subr.bf16.mxu0 0
        %2416 = vmatpush1.bf16.msra.mxu0 0
        %2417 = vmatprep.subr.bf16.mxu0 0
        %2418 = vmatpush1.bf16.msra.mxu0 0
        %2419 = vmatprep.subr.bf16.mxu0 0
        %2420 = vmatpush1.bf16.msra.mxu0 0
        %2421 = vmatprep.subr.bf16.mxu0 0
        %2422 = vmatpush1.bf16.msra.mxu0 0
        %2423 = vmatprep.subr.bf16.mxu0 0
        %2424 = vmatpush1.bf16.msra.mxu0 0
        %2425 = vmatprep.subr.bf16.mxu0 0
        %2426 = vmatpush1.bf16.msra.mxu0 0
        %2427 = vmatprep.subr.bf16.mxu0 0
        %2428 = vmatpush1.bf16.msra.mxu0 0
        %2429 = vmatprep.mubr.bf16.mxu0 0
        %2430 = vmatmul.mubr.bf16.gmra.mrb[0].mxu0 %v2383
        %v2431 = vpop.f32.mrb[0].mxu0
        %v2432 = vadd.f32 0.0, %v2431
        %v2433 = vpop.f32.mrb[0].mxu0
        %v2434 = vpop.f32.mrb[0].mxu0
        %v2435 = vadd.f32 0.0, %v2434
        %v2436 = vpop.f32.mrb[0].mxu0
        %2437 = vmatprep.mubr.bf16.mxu0 0
        %2438 = vmatmul.mubr.bf16.gmra.mrb[0].mxu0 %v2386
        %v2439 = vpop.f32.mrb[0].mxu0
        %v2440 = vadd.f32 0.0, %v2439
        %v2441 = vpop.f32.mrb[0].mxu0
        %v2442 = vpop.f32.mrb[0].mxu0
        %v2443 = vadd.f32 0.0, %v2442
        %v2444 = vpop.f32.mrb[0].mxu0
        %2445 = vmatprep.mubr.bf16.mxu0 0
        %2446 = vmatmul.mubr.bf16.gmra.mrb[0].mxu0 %v2389
        %v2447 = vpop.f32.mrb[0].mxu0
        %v2448 = vadd.f32 0.0, %v2447
        %v2449 = vpop.f32.mrb[0].mxu0
        %v2450 = vpop.f32.mrb[0].mxu0
        %v2451 = vadd.f32 0.0, %v2450
        %v2452 = vpop.f32.mrb[0].mxu0
        %2453 = vmatprep.mubr.bf16.mxu0 0
        %2454 = vmatmul.mubr.bf16.gmra.mrb[0].mxu0 %v2392
        %v2455 = vpop.f32.mrb[0].mxu0
        %v2456 = vadd.f32 0.0, %v2455
        %v2457 = vpop.f32.mrb[0].mxu0
        %v2458 = vpop.f32.mrb[0].mxu0
        %v2459 = vadd.f32 0.0, %v2458
        %v2460 = vpop.f32.mrb[0].mxu0
        %2461 = vdwg.mxu0
        %v2462 = vadd.f32 %v2279, %v2432
        %v2463 = vadd.f32 %v2282, %v2435
        %v2464 = vadd.f32 %v2287, %v2440
        %v2465 = vadd.f32 %v2290, %v2443
        %v2466 = vadd.f32 %v2295, %v2448
        %v2467 = vadd.f32 %v2298, %v2451
        %v2468 = vadd.f32 %v2303, %v2456
        %v2469 = vadd.f32 %v2306, %v2459
        %v2470 = vld [vmem:[%s1929] sm:$0xf]
        %v2471 = vld [vmem:[%s1929 + $0x8] sm:$0xf]
        %v2472 = vld [vmem:[%s1929 + $0x10] sm:$0xf]
        %v2473 = vld [vmem:[%s1929 + $0x18] sm:$0xf]
        %v2474 = vld [vmem:[%s1929 + $0x20] sm:$0xf]
        %v2475 = vld [vmem:[%s1929 + $0x28] sm:$0xf]
        %v2476 = vld [vmem:[%s1929 + $0x30] sm:$0xf]
        %v2477 = vld [vmem:[%s1929 + $0x38] sm:$0xf]
        %s2478 = scalar_lea.vmem %s6, 12
        %v2479 = vld [vmem:[%s2478] sm:$0xf]
        %v2488 = vunpack.c.l.b16 %v2470
        %v2489 = vunpack.c.l.b16 %v2471
        %v2490 = vunpack.c.l.b16 %v2472
        %v2491 = vunpack.c.l.b16 %v2473
        %v2492 = vunpack.c.l.b16 %v2474
        %v2493 = vunpack.c.l.b16 %v2475
        %v2494 = vunpack.c.l.b16 %v2476
        %v2495 = vunpack.c.l.b16 %v2477
        %v2496 = vpack.c.b16 %v2489, %v2488
        %v2497 = vpack.c.b16 %v2491, %v2490
        %v2498 = vpack.c.b16 %v2493, %v2492
        %v2499 = vpack.c.b16 %v2495, %v2494
        %v2501 = vsel %vm2127, %v2496, 0
        %v2504 = vsel %vm2127, %v2497, 0
        %v2507 = vsel %vm2127, %v2498, 0
        %v2510 = vsel %vm2127, %v2499, 0
        %v2513 = vsel %vm2140, %v2479, 0
        %2515 = vmatprep.subr.bf16.mxu0 0
        %2516 = vmatpush1.bf16.msra.mxu0 %v2513
        %2517 = vmatprep.subr.bf16.mxu0 0
        %2518 = vmatpush1.bf16.msra.mxu0 0
        %2519 = vmatprep.subr.bf16.mxu0 0
        %2520 = vmatpush1.bf16.msra.mxu0 0
        %2521 = vmatprep.subr.bf16.mxu0 0
        %2522 = vmatpush1.bf16.msra.mxu0 0
        %2523 = vmatprep.subr.bf16.mxu0 0
        %2524 = vmatpush1.bf16.msra.mxu0 0
        %2525 = vmatprep.subr.bf16.mxu0 0
        %2526 = vmatpush1.bf16.msra.mxu0 0
        %2527 = vmatprep.subr.bf16.mxu0 0
        %2528 = vmatpush1.bf16.msra.mxu0 0
        %2529 = vmatprep.subr.bf16.mxu0 0
        %2530 = vmatpush1.bf16.msra.mxu0 0
        %2531 = vmatprep.subr.bf16.mxu0 0
        %2532 = vmatpush1.bf16.msra.mxu0 0
        %2533 = vmatprep.subr.bf16.mxu0 0
        %2534 = vmatpush1.bf16.msra.mxu0 0
        %2535 = vmatprep.subr.bf16.mxu0 0
        %2536 = vmatpush1.bf16.msra.mxu0 0
        %2537 = vmatprep.subr.bf16.mxu0 0
        %2538 = vmatpush1.bf16.msra.mxu0 0
        %2539 = vmatprep.subr.bf16.mxu0 0
        %2540 = vmatpush1.bf16.msra.mxu0 0
        %2541 = vmatprep.subr.bf16.mxu0 0
        %2542 = vmatpush1.bf16.msra.mxu0 0
        %2543 = vmatprep.subr.bf16.mxu0 0
        %2544 = vmatpush1.bf16.msra.mxu0 0
        %2545 = vmatprep.subr.bf16.mxu0 0
        %2546 = vmatpush1.bf16.msra.mxu0 0
        %2547 = vmatprep.mubr.bf16.mxu0 0
        %2548 = vmatmul.mubr.bf16.gmra.mrb[0].mxu0 %v2501
        %v2549 = vpop.f32.mrb[0].mxu0
        %v2550 = vadd.f32 0.0, %v2549
        %v2551 = vpop.f32.mrb[0].mxu0
        %v2552 = vpop.f32.mrb[0].mxu0
        %v2553 = vadd.f32 0.0, %v2552
        %v2554 = vpop.f32.mrb[0].mxu0
        %2555 = vmatprep.mubr.bf16.mxu0 0
        %2556 = vmatmul.mubr.bf16.gmra.mrb[0].mxu0 %v2504
        %v2557 = vpop.f32.mrb[0].mxu0
        %v2558 = vadd.f32 0.0, %v2557
        %v2559 = vpop.f32.mrb[0].mxu0
        %v2560 = vpop.f32.mrb[0].mxu0
        %v2561 = vadd.f32 0.0, %v2560
        %v2562 = vpop.f32.mrb[0].mxu0
        %2563 = vmatprep.mubr.bf16.mxu0 0
        %2564 = vmatmul.mubr.bf16.gmra.mrb[0].mxu0 %v2507
        %v2565 = vpop.f32.mrb[0].mxu0
        %v2566 = vadd.f32 0.0, %v2565
        %v2567 = vpop.f32.mrb[0].mxu0
        %v2568 = vpop.f32.mrb[0].mxu0
        %v2569 = vadd.f32 0.0, %v2568
        %v2570 = vpop.f32.mrb[0].mxu0
        %2571 = vmatprep.mubr.bf16.mxu0 0
        %2572 = vmatmul.mubr.bf16.gmra.mrb[0].mxu0 %v2510
        %v2573 = vpop.f32.mrb[0].mxu0
        %v2574 = vadd.f32 0.0, %v2573
        %v2575 = vpop.f32.mrb[0].mxu0
        %v2576 = vpop.f32.mrb[0].mxu0
        %v2577 = vadd.f32 0.0, %v2576
        %v2578 = vpop.f32.mrb[0].mxu0
        %2579 = vdwg.mxu0
        %v2580 = vadd.f32 %v2462, %v2550
        %v2581 = vadd.f32 %v2463, %v2553
        %v2582 = vadd.f32 %v2464, %v2558
        %v2583 = vadd.f32 %v2465, %v2561
        %v2584 = vadd.f32 %v2466, %v2566
        %v2585 = vadd.f32 %v2467, %v2569
        %v2586 = vadd.f32 %v2468, %v2574
        %v2587 = vadd.f32 %v2469, %v2577
        %v2588 = vld [vmem:[%s1929] sm:$0xf]
        %v2589 = vld [vmem:[%s1929 + $0x4] sm:$0x1]
        %v2590 = vld [vmem:[%s1929 + $0x8] sm:$0xf]
        %v2591 = vld [vmem:[%s1929 + $0xc] sm:$0x1]
        %v2592 = vld [vmem:[%s1929 + $0x10] sm:$0xf]
        %v2593 = vld [vmem:[%s1929 + $0x14] sm:$0x1]
        %v2594 = vld [vmem:[%s1929 + $0x18] sm:$0xf]
        %v2595 = vld [vmem:[%s1929 + $0x1c] sm:$0x1]
        %v2596 = vld [vmem:[%s1929 + $0x20] sm:$0xf]
        %v2597 = vld [vmem:[%s1929 + $0x24] sm:$0x1]
        %v2598 = vld [vmem:[%s1929 + $0x28] sm:$0xf]
        %v2599 = vld [vmem:[%s1929 + $0x2c] sm:$0x1]
        %v2600 = vld [vmem:[%s1929 + $0x30] sm:$0xf]
        %v2601 = vld [vmem:[%s1929 + $0x34] sm:$0x1]
        %v2602 = vld [vmem:[%s1929 + $0x38] sm:$0xf]
        %v2603 = vld [vmem:[%s1929 + $0x3c] sm:$0x1]
        %v2605 = vshrl.u32 %v2588, 16
        %v2607 = vrot.slane %v2605, 4
        %v2608 = vshll.u32 %v2588, 16
        %v2610 = vrot.slane %v2608, 5
        %v2611 = vor.u32 %v2607, %v2610
        %v2612 = vrot.slane %v2611, 4
        %v2614 = vshll.u32 %v2589, 16
        %v2616 = vrot.slane %v2614, 5
        %v2617 = vsel %vm631, %v2612, %v2616
        %v2619 = vshrl.u32 %v2590, 16
        %v2621 = vrot.slane %v2619, 4
        %v2622 = vshll.u32 %v2590, 16
        %v2624 = vrot.slane %v2622, 5
        %v2625 = vor.u32 %v2621, %v2624
        %v2626 = vrot.slane %v2625, 4
        %v2628 = vshll.u32 %v2591, 16
        %v2630 = vrot.slane %v2628, 5
        %v2631 = vsel %vm631, %v2626, %v2630
        %v2633 = vshrl.u32 %v2592, 16
        %v2635 = vrot.slane %v2633, 4
        %v2636 = vshll.u32 %v2592, 16
        %v2638 = vrot.slane %v2636, 5
        %v2639 = vor.u32 %v2635, %v2638
        %v2640 = vrot.slane %v2639, 4
        %v2642 = vshll.u32 %v2593, 16
        %v2644 = vrot.slane %v2642, 5
        %v2645 = vsel %vm631, %v2640, %v2644
        %v2647 = vshrl.u32 %v2594, 16
        %v2649 = vrot.slane %v2647, 4
        %v2650 = vshll.u32 %v2594, 16
        %v2652 = vrot.slane %v2650, 5
        %v2653 = vor.u32 %v2649, %v2652
        %v2654 = vrot.slane %v2653, 4
        %v2656 = vshll.u32 %v2595, 16
        %v2658 = vrot.slane %v2656, 5
        %v2659 = vsel %vm631, %v2654, %v2658
        %v2661 = vshrl.u32 %v2596, 16
        %v2663 = vrot.slane %v2661, 4
        %v2664 = vshll.u32 %v2596, 16
        %v2666 = vrot.slane %v2664, 5
        %v2667 = vor.u32 %v2663, %v2666
        %v2668 = vrot.slane %v2667, 4
        %v2670 = vshll.u32 %v2597, 16
        %v2672 = vrot.slane %v2670, 5
        %v2673 = vsel %vm631, %v2668, %v2672
        %v2675 = vshrl.u32 %v2598, 16
        %v2677 = vrot.slane %v2675, 4
        %v2678 = vshll.u32 %v2598, 16
        %v2680 = vrot.slane %v2678, 5
        %v2681 = vor.u32 %v2677, %v2680
        %v2682 = vrot.slane %v2681, 4
        %v2684 = vshll.u32 %v2599, 16
        %v2686 = vrot.slane %v2684, 5
        %v2687 = vsel %vm631, %v2682, %v2686
        %v2689 = vshrl.u32 %v2600, 16
        %v2691 = vrot.slane %v2689, 4
        %v2692 = vshll.u32 %v2600, 16
        %v2694 = vrot.slane %v2692, 5
        %v2695 = vor.u32 %v2691, %v2694
        %v2696 = vrot.slane %v2695, 4
        %v2698 = vshll.u32 %v2601, 16
        %v2700 = vrot.slane %v2698, 5
        %v2701 = vsel %vm631, %v2696, %v2700
        %v2703 = vshrl.u32 %v2602, 16
        %v2705 = vrot.slane %v2703, 4
        %v2706 = vshll.u32 %v2602, 16
        %v2708 = vrot.slane %v2706, 5
        %v2709 = vor.u32 %v2705, %v2708
        %v2710 = vrot.slane %v2709, 4
        %v2712 = vshll.u32 %v2603, 16
        %v2714 = vrot.slane %v2712, 5
        %v2715 = vsel %vm631, %v2710, %v2714
        %s2716 = scalar_lea.vmem %s6, 16
        %v2717 = vld [vmem:[%s2716] sm:$0xf]
        %v2718 = vunpack.c.l.b16 %v2617
        %v2719 = vunpack.c.l.b16 %v2631
        %v2720 = vunpack.c.l.b16 %v2645
        %v2721 = vunpack.c.l.b16 %v2659
        %v2722 = vunpack.c.l.b16 %v2673
        %v2723 = vunpack.c.l.b16 %v2687
        %v2724 = vunpack.c.l.b16 %v2701
        %v2725 = vunpack.c.l.b16 %v2715
        %v2726 = vpack.c.b16 %v2719, %v2718
        %v2727 = vpack.c.b16 %v2721, %v2720
        %v2728 = vpack.c.b16 %v2723, %v2722
        %v2729 = vpack.c.b16 %v2725, %v2724
        %v2731 = vsel %vm2127, %v2726, 0
        %v2734 = vsel %vm2127, %v2727, 0
        %v2737 = vsel %vm2127, %v2728, 0
        %v2740 = vsel %vm2127, %v2729, 0
        %v2743 = vsel %vm2140, %v2717, 0
        %2745 = vmatprep.subr.bf16.mxu0 0
        %2746 = vmatpush1.bf16.msra.mxu0 %v2743
        %2747 = vmatprep.subr.bf16.mxu0 0
        %2748 = vmatpush1.bf16.msra.mxu0 0
        %2749 = vmatprep.subr.bf16.mxu0 0
        %2750 = vmatpush1.bf16.msra.mxu0 0
        %2751 = vmatprep.subr.bf16.mxu0 0
        %2752 = vmatpush1.bf16.msra.mxu0 0
        %2753 = vmatprep.subr.bf16.mxu0 0
        %2754 = vmatpush1.bf16.msra.mxu0 0
        %2755 = vmatprep.subr.bf16.mxu0 0
        %2756 = vmatpush1.bf16.msra.mxu0 0
        %2757 = vmatprep.subr.bf16.mxu0 0
        %2758 = vmatpush1.bf16.msra.mxu0 0
        %2759 = vmatprep.subr.bf16.mxu0 0
        %2760 = vmatpush1.bf16.msra.mxu0 0
        %2761 = vmatprep.subr.bf16.mxu0 0
        %2762 = vmatpush1.bf16.msra.mxu0 0
        %2763 = vmatprep.subr.bf16.mxu0 0
        %2764 = vmatpush1.bf16.msra.mxu0 0
        %2765 = vmatprep.subr.bf16.mxu0 0
        %2766 = vmatpush1.bf16.msra.mxu0 0
        %2767 = vmatprep.subr.bf16.mxu0 0
        %2768 = vmatpush1.bf16.msra.mxu0 0
        %2769 = vmatprep.subr.bf16.mxu0 0
        %2770 = vmatpush1.bf16.msra.mxu0 0
        %2771 = vmatprep.subr.bf16.mxu0 0
        %2772 = vmatpush1.bf16.msra.mxu0 0
        %2773 = vmatprep.subr.bf16.mxu0 0
        %2774 = vmatpush1.bf16.msra.mxu0 0
        %2775 = vmatprep.subr.bf16.mxu0 0
        %2776 = vmatpush1.bf16.msra.mxu0 0
        %2777 = vmatprep.mubr.bf16.mxu0 0
        %2778 = vmatmul.mubr.bf16.gmra.mrb[0].mxu0 %v2731
        %v2779 = vpop.f32.mrb[0].mxu0
        %v2780 = vadd.f32 0.0, %v2779
        %v2781 = vpop.f32.mrb[0].mxu0
        %v2782 = vpop.f32.mrb[0].mxu0
        %v2783 = vadd.f32 0.0, %v2782
        %v2784 = vpop.f32.mrb[0].mxu0
        %2785 = vmatprep.mubr.bf16.mxu0 0
        %2786 = vmatmul.mubr.bf16.gmra.mrb[0].mxu0 %v2734
        %v2787 = vpop.f32.mrb[0].mxu0
        %v2788 = vadd.f32 0.0, %v2787
        %v2789 = vpop.f32.mrb[0].mxu0
        %v2790 = vpop.f32.mrb[0].mxu0
        %v2791 = vadd.f32 0.0, %v2790
        %v2792 = vpop.f32.mrb[0].mxu0
        %2793 = vmatprep.mubr.bf16.mxu0 0
        %2794 = vmatmul.mubr.bf16.gmra.mrb[0].mxu0 %v2737
        %v2795 = vpop.f32.mrb[0].mxu0
        %v2796 = vadd.f32 0.0, %v2795
        %v2797 = vpop.f32.mrb[0].mxu0
        %v2798 = vpop.f32.mrb[0].mxu0
        %v2799 = vadd.f32 0.0, %v2798
        %v2800 = vpop.f32.mrb[0].mxu0
        %2801 = vmatprep.mubr.bf16.mxu0 0
        %2802 = vmatmul.mubr.bf16.gmra.mrb[0].mxu0 %v2740
        %v2803 = vpop.f32.mrb[0].mxu0
        %v2804 = vadd.f32 0.0, %v2803
        %v2805 = vpop.f32.mrb[0].mxu0
        %v2806 = vpop.f32.mrb[0].mxu0
        %v2807 = vadd.f32 0.0, %v2806
        %v2808 = vpop.f32.mrb[0].mxu0
        %2809 = vdwg.mxu0
        %v2810 = vadd.f32 %v2580, %v2780
        %v2811 = vadd.f32 %v2581, %v2783
        %v2812 = vadd.f32 %v2582, %v2788
        %v2813 = vadd.f32 %v2583, %v2791
        %v2814 = vadd.f32 %v2584, %v2796
        %v2815 = vadd.f32 %v2585, %v2799
        %v2816 = vadd.f32 %v2586, %v2804
        %v2817 = vadd.f32 %v2587, %v2807
        %v2818 = vld [vmem:[%s1929] sm:$0xe]
        %v2819 = vld [vmem:[%s1929 + $0x8] sm:$0xe]
        %v2820 = vld [vmem:[%s1929 + $0x10] sm:$0xe]
        %v2821 = vld [vmem:[%s1929 + $0x18] sm:$0xe]
        %v2822 = vld [vmem:[%s1929 + $0x20] sm:$0xe]
        %v2823 = vld [vmem:[%s1929 + $0x28] sm:$0xe]
        %v2824 = vld [vmem:[%s1929 + $0x30] sm:$0xe]
        %v2825 = vld [vmem:[%s1929 + $0x38] sm:$0xe]
        %v2842 = vrot.slane %v2818, 5
        %v2843 = vrot.slane %v2842, 4
        %v2844 = vrot.slane %v2589, 5
        %v2845 = vsel %vm2335, %v2843, %v2844
        %v2846 = vrot.slane %v2819, 5
        %v2847 = vrot.slane %v2846, 4
        %v2848 = vrot.slane %v2591, 5
        %v2849 = vsel %vm2335, %v2847, %v2848
        %v2850 = vrot.slane %v2820, 5
        %v2851 = vrot.slane %v2850, 4
        %v2852 = vrot.slane %v2593, 5
        %v2853 = vsel %vm2335, %v2851, %v2852
        %v2854 = vrot.slane %v2821, 5
        %v2855 = vrot.slane %v2854, 4
        %v2856 = vrot.slane %v2595, 5
        %v2857 = vsel %vm2335, %v2855, %v2856
        %v2858 = vrot.slane %v2822, 5
        %v2859 = vrot.slane %v2858, 4
        %v2860 = vrot.slane %v2597, 5
        %v2861 = vsel %vm2335, %v2859, %v2860
        %v2862 = vrot.slane %v2823, 5
        %v2863 = vrot.slane %v2862, 4
        %v2864 = vrot.slane %v2599, 5
        %v2865 = vsel %vm2335, %v2863, %v2864
        %v2866 = vrot.slane %v2824, 5
        %v2867 = vrot.slane %v2866, 4
        %v2868 = vrot.slane %v2601, 5
        %v2869 = vsel %vm2335, %v2867, %v2868
        %v2870 = vrot.slane %v2825, 5
        %v2871 = vrot.slane %v2870, 4
        %v2872 = vrot.slane %v2603, 5
        %v2873 = vsel %vm2335, %v2871, %v2872
        %s2874 = scalar_lea.vmem %s6, 20
        %v2875 = vld [vmem:[%s2874] sm:$0xf]
        %v2876 = vunpack.c.l.b16 %v2845
        %v2877 = vunpack.c.l.b16 %v2849
        %v2878 = vunpack.c.l.b16 %v2853
        %v2879 = vunpack.c.l.b16 %v2857
        %v2880 = vunpack.c.l.b16 %v2861
        %v2881 = vunpack.c.l.b16 %v2865
        %v2882 = vunpack.c.l.b16 %v2869
        %v2883 = vunpack.c.l.b16 %v2873
        %v2884 = vpack.c.b16 %v2877, %v2876
        %v2885 = vpack.c.b16 %v2879, %v2878
        %v2886 = vpack.c.b16 %v2881, %v2880
        %v2887 = vpack.c.b16 %v2883, %v2882
        %v2889 = vsel %vm2127, %v2884, 0
        %v2892 = vsel %vm2127, %v2885, 0
        %v2895 = vsel %vm2127, %v2886, 0
        %v2898 = vsel %vm2127, %v2887, 0
        %v2901 = vsel %vm2140, %v2875, 0
        %2903 = vmatprep.subr.bf16.mxu0 0
        %2904 = vmatpush1.bf16.msra.mxu0 %v2901
        %2905 = vmatprep.subr.bf16.mxu0 0
        %2906 = vmatpush1.bf16.msra.mxu0 0
        %2907 = vmatprep.subr.bf16.mxu0 0
        %2908 = vmatpush1.bf16.msra.mxu0 0
        %2909 = vmatprep.subr.bf16.mxu0 0
        %2910 = vmatpush1.bf16.msra.mxu0 0
        %2911 = vmatprep.subr.bf16.mxu0 0
        %2912 = vmatpush1.bf16.msra.mxu0 0
        %2913 = vmatprep.subr.bf16.mxu0 0
        %2914 = vmatpush1.bf16.msra.mxu0 0
        %2915 = vmatprep.subr.bf16.mxu0 0
        %2916 = vmatpush1.bf16.msra.mxu0 0
        %2917 = vmatprep.subr.bf16.mxu0 0
        %2918 = vmatpush1.bf16.msra.mxu0 0
        %2919 = vmatprep.subr.bf16.mxu0 0
        %2920 = vmatpush1.bf16.msra.mxu0 0
        %2921 = vmatprep.subr.bf16.mxu0 0
        %2922 = vmatpush1.bf16.msra.mxu0 0
        %2923 = vmatprep.subr.bf16.mxu0 0
        %2924 = vmatpush1.bf16.msra.mxu0 0
        %2925 = vmatprep.subr.bf16.mxu0 0
        %2926 = vmatpush1.bf16.msra.mxu0 0
        %2927 = vmatprep.subr.bf16.mxu0 0
        %2928 = vmatpush1.bf16.msra.mxu0 0
        %2929 = vmatprep.subr.bf16.mxu0 0
        %2930 = vmatpush1.bf16.msra.mxu0 0
        %2931 = vmatprep.subr.bf16.mxu0 0
        %2932 = vmatpush1.bf16.msra.mxu0 0
        %2933 = vmatprep.subr.bf16.mxu0 0
        %2934 = vmatpush1.bf16.msra.mxu0 0
        %2935 = vmatprep.mubr.bf16.mxu0 0
        %2936 = vmatmul.mubr.bf16.gmra.mrb[0].mxu0 %v2889
        %v2937 = vpop.f32.mrb[0].mxu0
        %v2938 = vadd.f32 0.0, %v2937
        %v2939 = vpop.f32.mrb[0].mxu0
        %v2940 = vpop.f32.mrb[0].mxu0
        %v2941 = vadd.f32 0.0, %v2940
        %v2942 = vpop.f32.mrb[0].mxu0
        %2943 = vmatprep.mubr.bf16.mxu0 0
        %2944 = vmatmul.mubr.bf16.gmra.mrb[0].mxu0 %v2892
        %v2945 = vpop.f32.mrb[0].mxu0
        %v2946 = vadd.f32 0.0, %v2945
        %v2947 = vpop.f32.mrb[0].mxu0
        %v2948 = vpop.f32.mrb[0].mxu0
        %v2949 = vadd.f32 0.0, %v2948
        %v2950 = vpop.f32.mrb[0].mxu0
        %2951 = vmatprep.mubr.bf16.mxu0 0
        %2952 = vmatmul.mubr.bf16.gmra.mrb[0].mxu0 %v2895
        %v2953 = vpop.f32.mrb[0].mxu0
        %v2954 = vadd.f32 0.0, %v2953
        %v2955 = vpop.f32.mrb[0].mxu0
        %v2956 = vpop.f32.mrb[0].mxu0
        %v2957 = vadd.f32 0.0, %v2956
        %v2958 = vpop.f32.mrb[0].mxu0
        %2959 = vmatprep.mubr.bf16.mxu0 0
        %2960 = vmatmul.mubr.bf16.gmra.mrb[0].mxu0 %v2898
        %v2961 = vpop.f32.mrb[0].mxu0
        %v2962 = vadd.f32 0.0, %v2961
        %v2963 = vpop.f32.mrb[0].mxu0
        %v2964 = vpop.f32.mrb[0].mxu0
        %v2965 = vadd.f32 0.0, %v2964
        %v2966 = vpop.f32.mrb[0].mxu0
        %2967 = vdwg.mxu0
        %v2968 = vadd.f32 %v2810, %v2938
        %v2969 = vadd.f32 %v2811, %v2941
        %v2970 = vadd.f32 %v2812, %v2946
        %v2971 = vadd.f32 %v2813, %v2949
        %v2972 = vadd.f32 %v2814, %v2954
        %v2973 = vadd.f32 %v2815, %v2957
        %v2974 = vadd.f32 %v2816, %v2962
        %v2975 = vadd.f32 %v2817, %v2965
        %s2976 = scalar_lea.vmem [#allocation2], 16
        %v2977 = vld [vmem:[%s2976] sm:$0xf]
        %v2978 = vld [vmem:[%s2976 + $0x8] sm:$0xf]
        %v2979 = vld [vmem:[%s2976 + $0x10] sm:$0xf]
        %v2980 = vld [vmem:[%s2976 + $0x18] sm:$0xf]
        %v2981 = vld [vmem:[%s2976 + $0x20] sm:$0xf]
        %v2982 = vld [vmem:[%s2976 + $0x28] sm:$0xf]
        %v2983 = vld [vmem:[%s2976 + $0x30] sm:$0xf]
        %v2984 = vld [vmem:[%s2976 + $0x38] sm:$0xf]
        %s2985 = scalar_lea.vmem %s6, 24
        %v2986 = vld [vmem:[%s2985] sm:$0xf]
        %v2995 = vunpack.c.l.b16 %v2977
        %v2996 = vunpack.c.l.b16 %v2978
        %v2997 = vunpack.c.l.b16 %v2979
        %v2998 = vunpack.c.l.b16 %v2980
        %v2999 = vunpack.c.l.b16 %v2981
        %v3000 = vunpack.c.l.b16 %v2982
        %v3001 = vunpack.c.l.b16 %v2983
        %v3002 = vunpack.c.l.b16 %v2984
        %v3003 = vpack.c.b16 %v2996, %v2995
        %v3004 = vpack.c.b16 %v2998, %v2997
        %v3005 = vpack.c.b16 %v3000, %v2999
        %v3006 = vpack.c.b16 %v3002, %v3001
        %v3008 = vsel %vm2127, %v3003, 0
        %v3011 = vsel %vm2127, %v3004, 0
        %v3014 = vsel %vm2127, %v3005, 0
        %v3017 = vsel %vm2127, %v3006, 0
        %v3020 = vsel %vm2140, %v2986, 0
        %3022 = vmatprep.subr.bf16.mxu0 0
        %3023 = vmatpush1.bf16.msra.mxu0 %v3020
        %3024 = vmatprep.subr.bf16.mxu0 0
        %3025 = vmatpush1.bf16.msra.mxu0 0
        %3026 = vmatprep.subr.bf16.mxu0 0
        %3027 = vmatpush1.bf16.msra.mxu0 0
        %3028 = vmatprep.subr.bf16.mxu0 0
        %3029 = vmatpush1.bf16.msra.mxu0 0
        %3030 = vmatprep.subr.bf16.mxu0 0
        %3031 = vmatpush1.bf16.msra.mxu0 0
        %3032 = vmatprep.subr.bf16.mxu0 0
        %3033 = vmatpush1.bf16.msra.mxu0 0
        %3034 = vmatprep.subr.bf16.mxu0 0
        %3035 = vmatpush1.bf16.msra.mxu0 0
        %3036 = vmatprep.subr.bf16.mxu0 0
        %3037 = vmatpush1.bf16.msra.mxu0 0
        %3038 = vmatprep.subr.bf16.mxu0 0
        %3039 = vmatpush1.bf16.msra.mxu0 0
        %3040 = vmatprep.subr.bf16.mxu0 0
        %3041 = vmatpush1.bf16.msra.mxu0 0
        %3042 = vmatprep.subr.bf16.mxu0 0
        %3043 = vmatpush1.bf16.msra.mxu0 0
        %3044 = vmatprep.subr.bf16.mxu0 0
        %3045 = vmatpush1.bf16.msra.mxu0 0
        %3046 = vmatprep.subr.bf16.mxu0 0
        %3047 = vmatpush1.bf16.msra.mxu0 0
        %3048 = vmatprep.subr.bf16.mxu0 0
        %3049 = vmatpush1.bf16.msra.mxu0 0
        %3050 = vmatprep.subr.bf16.mxu0 0
        %3051 = vmatpush1.bf16.msra.mxu0 0
        %3052 = vmatprep.subr.bf16.mxu0 0
        %3053 = vmatpush1.bf16.msra.mxu0 0
        %3054 = vmatprep.mubr.bf16.mxu0 0
        %3055 = vmatmul.mubr.bf16.gmra.mrb[0].mxu0 %v3008
        %v3056 = vpop.f32.mrb[0].mxu0
        %v3057 = vadd.f32 0.0, %v3056
        %v3058 = vpop.f32.mrb[0].mxu0
        %v3059 = vpop.f32.mrb[0].mxu0
        %v3060 = vadd.f32 0.0, %v3059
        %v3061 = vpop.f32.mrb[0].mxu0
        %3062 = vmatprep.mubr.bf16.mxu0 0
        %3063 = vmatmul.mubr.bf16.gmra.mrb[0].mxu0 %v3011
        %v3064 = vpop.f32.mrb[0].mxu0
        %v3065 = vadd.f32 0.0, %v3064
        %v3066 = vpop.f32.mrb[0].mxu0
        %v3067 = vpop.f32.mrb[0].mxu0
        %v3068 = vadd.f32 0.0, %v3067
        %v3069 = vpop.f32.mrb[0].mxu0
        %3070 = vmatprep.mubr.bf16.mxu0 0
        %3071 = vmatmul.mubr.bf16.gmra.mrb[0].mxu0 %v3014
        %v3072 = vpop.f32.mrb[0].mxu0
        %v3073 = vadd.f32 0.0, %v3072
        %v3074 = vpop.f32.mrb[0].mxu0
        %v3075 = vpop.f32.mrb[0].mxu0
        %v3076 = vadd.f32 0.0, %v3075
        %v3077 = vpop.f32.mrb[0].mxu0
        %3078 = vmatprep.mubr.bf16.mxu0 0
        %3079 = vmatmul.mubr.bf16.gmra.mrb[0].mxu0 %v3017
        %v3080 = vpop.f32.mrb[0].mxu0
        %v3081 = vadd.f32 0.0, %v3080
        %v3082 = vpop.f32.mrb[0].mxu0
        %v3083 = vpop.f32.mrb[0].mxu0
        %v3084 = vadd.f32 0.0, %v3083
        %v3085 = vpop.f32.mrb[0].mxu0
        %3086 = vdwg.mxu0
        %v3087 = vadd.f32 %v2968, %v3057
        %v3088 = vadd.f32 %v2969, %v3060
        %v3089 = vadd.f32 %v2970, %v3065
        %v3090 = vadd.f32 %v2971, %v3068
        %v3091 = vadd.f32 %v2972, %v3073
        %v3092 = vadd.f32 %v2973, %v3076
        %v3093 = vadd.f32 %v2974, %v3081
        %v3094 = vadd.f32 %v2975, %v3084
        %v3095 = vld [vmem:[%s2976] sm:$0xf]
        %v3096 = vld [vmem:[%s2976 + $0x4] sm:$0x1]
        %v3097 = vld [vmem:[%s2976 + $0x8] sm:$0xf]
        %v3098 = vld [vmem:[%s2976 + $0xc] sm:$0x1]
        %v3099 = vld [vmem:[%s2976 + $0x10] sm:$0xf]
        %v3100 = vld [vmem:[%s2976 + $0x14] sm:$0x1]
        %v3101 = vld [vmem:[%s2976 + $0x18] sm:$0xf]
        %v3102 = vld [vmem:[%s2976 + $0x1c] sm:$0x1]
        %v3103 = vld [vmem:[%s2976 + $0x20] sm:$0xf]
        %v3104 = vld [vmem:[%s2976 + $0x24] sm:$0x1]
        %v3105 = vld [vmem:[%s2976 + $0x28] sm:$0xf]
        %v3106 = vld [vmem:[%s2976 + $0x2c] sm:$0x1]
        %v3107 = vld [vmem:[%s2976 + $0x30] sm:$0xf]
        %v3108 = vld [vmem:[%s2976 + $0x34] sm:$0x1]
        %v3109 = vld [vmem:[%s2976 + $0x38] sm:$0xf]
        %v3110 = vld [vmem:[%s2976 + $0x3c] sm:$0x1]
        %v3112 = vshrl.u32 %v3095, 16
        %v3114 = vrot.slane %v3112, 4
        %v3115 = vshll.u32 %v3095, 16
        %v3117 = vrot.slane %v3115, 5
        %v3118 = vor.u32 %v3114, %v3117
        %v3119 = vrot.slane %v3118, 4
        %v3121 = vshll.u32 %v3096, 16
        %v3123 = vrot.slane %v3121, 5
        %v3124 = vsel %vm631, %v3119, %v3123
        %v3126 = vshrl.u32 %v3097, 16
        %v3128 = vrot.slane %v3126, 4
        %v3129 = vshll.u32 %v3097, 16
        %v3131 = vrot.slane %v3129, 5
        %v3132 = vor.u32 %v3128, %v3131
        %v3133 = vrot.slane %v3132, 4
        %v3135 = vshll.u32 %v3098, 16
        %v3137 = vrot.slane %v3135, 5
        %v3138 = vsel %vm631, %v3133, %v3137
        %v3140 = vshrl.u32 %v3099, 16
        %v3142 = vrot.slane %v3140, 4
        %v3143 = vshll.u32 %v3099, 16
        %v3145 = vrot.slane %v3143, 5
        %v3146 = vor.u32 %v3142, %v3145
        %v3147 = vrot.slane %v3146, 4
        %v3149 = vshll.u32 %v3100, 16
        %v3151 = vrot.slane %v3149, 5
        %v3152 = vsel %vm631, %v3147, %v3151
        %v3154 = vshrl.u32 %v3101, 16
        %v3156 = vrot.slane %v3154, 4
        %v3157 = vshll.u32 %v3101, 16
        %v3159 = vrot.slane %v3157, 5
        %v3160 = vor.u32 %v3156, %v3159
        %v3161 = vrot.slane %v3160, 4
        %v3163 = vshll.u32 %v3102, 16
        %v3165 = vrot.slane %v3163, 5
        %v3166 = vsel %vm631, %v3161, %v3165
        %v3168 = vshrl.u32 %v3103, 16
        %v3170 = vrot.slane %v3168, 4
        %v3171 = vshll.u32 %v3103, 16
        %v3173 = vrot.slane %v3171, 5
        %v3174 = vor.u32 %v3170, %v3173
        %v3175 = vrot.slane %v3174, 4
        %v3177 = vshll.u32 %v3104, 16
        %v3179 = vrot.slane %v3177, 5
        %v3180 = vsel %vm631, %v3175, %v3179
        %v3182 = vshrl.u32 %v3105, 16
        %v3184 = vrot.slane %v3182, 4
        %v3185 = vshll.u32 %v3105, 16
        %v3187 = vrot.slane %v3185, 5
        %v3188 = vor.u32 %v3184, %v3187
        %v3189 = vrot.slane %v3188, 4
        %v3191 = vshll.u32 %v3106, 16
        %v3193 = vrot.slane %v3191, 5
        %v3194 = vsel %vm631, %v3189, %v3193
        %v3196 = vshrl.u32 %v3107, 16
        %v3198 = vrot.slane %v3196, 4
        %v3199 = vshll.u32 %v3107, 16
        %v3201 = vrot.slane %v3199, 5
        %v3202 = vor.u32 %v3198, %v3201
        %v3203 = vrot.slane %v3202, 4
        %v3205 = vshll.u32 %v3108, 16
        %v3207 = vrot.slane %v3205, 5
        %v3208 = vsel %vm631, %v3203, %v3207
        %v3210 = vshrl.u32 %v3109, 16
        %v3212 = vrot.slane %v3210, 4
        %v3213 = vshll.u32 %v3109, 16
        %v3215 = vrot.slane %v3213, 5
        %v3216 = vor.u32 %v3212, %v3215
        %v3217 = vrot.slane %v3216, 4
        %v3219 = vshll.u32 %v3110, 16
        %v3221 = vrot.slane %v3219, 5
        %v3222 = vsel %vm631, %v3217, %v3221
        %s3223 = scalar_lea.vmem %s6, 28
        %v3224 = vld [vmem:[%s3223] sm:$0xf]
        %v3225 = vunpack.c.l.b16 %v3124
        %v3226 = vunpack.c.l.b16 %v3138
        %v3227 = vunpack.c.l.b16 %v3152
        %v3228 = vunpack.c.l.b16 %v3166
        %v3229 = vunpack.c.l.b16 %v3180
        %v3230 = vunpack.c.l.b16 %v3194
        %v3231 = vunpack.c.l.b16 %v3208
        %v3232 = vunpack.c.l.b16 %v3222
        %v3233 = vpack.c.b16 %v3226, %v3225
        %v3234 = vpack.c.b16 %v3228, %v3227
        %v3235 = vpack.c.b16 %v3230, %v3229
        %v3236 = vpack.c.b16 %v3232, %v3231
        %v3238 = vsel %vm2127, %v3233, 0
        %v3241 = vsel %vm2127, %v3234, 0
        %v3244 = vsel %vm2127, %v3235, 0
        %v3247 = vsel %vm2127, %v3236, 0
        %v3250 = vsel %vm2140, %v3224, 0
        %3252 = vmatprep.subr.bf16.mxu0 0
        %3253 = vmatpush1.bf16.msra.mxu0 %v3250
        %3254 = vmatprep.subr.bf16.mxu0 0
        %3255 = vmatpush1.bf16.msra.mxu0 0
        %3256 = vmatprep.subr.bf16.mxu0 0
        %3257 = vmatpush1.bf16.msra.mxu0 0
        %3258 = vmatprep.subr.bf16.mxu0 0
        %3259 = vmatpush1.bf16.msra.mxu0 0
        %3260 = vmatprep.subr.bf16.mxu0 0
        %3261 = vmatpush1.bf16.msra.mxu0 0
        %3262 = vmatprep.subr.bf16.mxu0 0
        %3263 = vmatpush1.bf16.msra.mxu0 0
        %3264 = vmatprep.subr.bf16.mxu0 0
        %3265 = vmatpush1.bf16.msra.mxu0 0
        %3266 = vmatprep.subr.bf16.mxu0 0
        %3267 = vmatpush1.bf16.msra.mxu0 0
        %3268 = vmatprep.subr.bf16.mxu0 0
        %3269 = vmatpush1.bf16.msra.mxu0 0
        %3270 = vmatprep.subr.bf16.mxu0 0
        %3271 = vmatpush1.bf16.msra.mxu0 0
        %3272 = vmatprep.subr.bf16.mxu0 0
        %3273 = vmatpush1.bf16.msra.mxu0 0
        %3274 = vmatprep.subr.bf16.mxu0 0
        %3275 = vmatpush1.bf16.msra.mxu0 0
        %3276 = vmatprep.subr.bf16.mxu0 0
        %3277 = vmatpush1.bf16.msra.mxu0 0
        %3278 = vmatprep.subr.bf16.mxu0 0
        %3279 = vmatpush1.bf16.msra.mxu0 0
        %3280 = vmatprep.subr.bf16.mxu0 0
        %3281 = vmatpush1.bf16.msra.mxu0 0
        %3282 = vmatprep.subr.bf16.mxu0 0
        %3283 = vmatpush1.bf16.msra.mxu0 0
        %3284 = vmatprep.mubr.bf16.mxu0 0
        %3285 = vmatmul.mubr.bf16.gmra.mrb[0].mxu0 %v3238
        %v3286 = vpop.f32.mrb[0].mxu0
        %v3287 = vadd.f32 0.0, %v3286
        %v3288 = vpop.f32.mrb[0].mxu0
        %v3289 = vpop.f32.mrb[0].mxu0
        %v3290 = vadd.f32 0.0, %v3289
        %v3291 = vpop.f32.mrb[0].mxu0
        %3292 = vmatprep.mubr.bf16.mxu0 0
        %3293 = vmatmul.mubr.bf16.gmra.mrb[0].mxu0 %v3241
        %v3294 = vpop.f32.mrb[0].mxu0
        %v3295 = vadd.f32 0.0, %v3294
        %v3296 = vpop.f32.mrb[0].mxu0
        %v3297 = vpop.f32.mrb[0].mxu0
        %v3298 = vadd.f32 0.0, %v3297
        %v3299 = vpop.f32.mrb[0].mxu0
        %3300 = vmatprep.mubr.bf16.mxu0 0
        %3301 = vmatmul.mubr.bf16.gmra.mrb[0].mxu0 %v3244
        %v3302 = vpop.f32.mrb[0].mxu0
        %v3303 = vadd.f32 0.0, %v3302
        %v3304 = vpop.f32.mrb[0].mxu0
        %v3305 = vpop.f32.mrb[0].mxu0
        %v3306 = vadd.f32 0.0, %v3305
        %v3307 = vpop.f32.mrb[0].mxu0
        %3308 = vmatprep.mubr.bf16.mxu0 0
        %3309 = vmatmul.mubr.bf16.gmra.mrb[0].mxu0 %v3247
        %v3310 = vpop.f32.mrb[0].mxu0
        %v3311 = vadd.f32 0.0, %v3310
        %v3312 = vpop.f32.mrb[0].mxu0
        %v3313 = vpop.f32.mrb[0].mxu0
        %v3314 = vadd.f32 0.0, %v3313
        %v3315 = vpop.f32.mrb[0].mxu0
        %3316 = vdwg.mxu0
        %v3317 = vadd.f32 %v3087, %v3287
        %v3318 = vadd.f32 %v3088, %v3290
        %v3319 = vadd.f32 %v3089, %v3295
        %v3320 = vadd.f32 %v3090, %v3298
        %v3321 = vadd.f32 %v3091, %v3303
        %v3322 = vadd.f32 %v3092, %v3306
        %v3323 = vadd.f32 %v3093, %v3311
        %v3324 = vadd.f32 %v3094, %v3314
        %v3325 = vld [vmem:[%s2976] sm:$0xe]
        %v3326 = vld [vmem:[%s2976 + $0x8] sm:$0xe]
        %v3327 = vld [vmem:[%s2976 + $0x10] sm:$0xe]
        %v3328 = vld [vmem:[%s2976 + $0x18] sm:$0xe]
        %v3329 = vld [vmem:[%s2976 + $0x20] sm:$0xe]
        %v3330 = vld [vmem:[%s2976 + $0x28] sm:$0xe]
        %v3331 = vld [vmem:[%s2976 + $0x30] sm:$0xe]
        %v3332 = vld [vmem:[%s2976 + $0x38] sm:$0xe]
        %v3349 = vrot.slane %v3325, 5
        %v3350 = vrot.slane %v3349, 4
        %v3351 = vrot.slane %v3096, 5
        %v3352 = vsel %vm2335, %v3350, %v3351
        %v3353 = vrot.slane %v3326, 5
        %v3354 = vrot.slane %v3353, 4
        %v3355 = vrot.slane %v3098, 5
        %v3356 = vsel %vm2335, %v3354, %v3355
        %v3357 = vrot.slane %v3327, 5
        %v3358 = vrot.slane %v3357, 4
        %v3359 = vrot.slane %v3100, 5
        %v3360 = vsel %vm2335, %v3358, %v3359
        %v3361 = vrot.slane %v3328, 5
        %v3362 = vrot.slane %v3361, 4
        %v3363 = vrot.slane %v3102, 5
        %v3364 = vsel %vm2335, %v3362, %v3363
        %v3365 = vrot.slane %v3329, 5
        %v3366 = vrot.slane %v3365, 4
        %v3367 = vrot.slane %v3104, 5
        %v3368 = vsel %vm2335, %v3366, %v3367
        %v3369 = vrot.slane %v3330, 5
        %v3370 = vrot.slane %v3369, 4
        %v3371 = vrot.slane %v3106, 5
        %v3372 = vsel %vm2335, %v3370, %v3371
        %v3373 = vrot.slane %v3331, 5
        %v3374 = vrot.slane %v3373, 4
        %v3375 = vrot.slane %v3108, 5
        %v3376 = vsel %vm2335, %v3374, %v3375
        %v3377 = vrot.slane %v3332, 5
        %v3378 = vrot.slane %v3377, 4
        %v3379 = vrot.slane %v3110, 5
        %v3380 = vsel %vm2335, %v3378, %v3379
        %s3381 = scalar_lea.vmem %s6, 32
        %v3382 = vld [vmem:[%s3381] sm:$0xf]
        %v3383 = vunpack.c.l.b16 %v3352
        %v3384 = vunpack.c.l.b16 %v3356
        %v3385 = vunpack.c.l.b16 %v3360
        %v3386 = vunpack.c.l.b16 %v3364
        %v3387 = vunpack.c.l.b16 %v3368
        %v3388 = vunpack.c.l.b16 %v3372
        %v3389 = vunpack.c.l.b16 %v3376
        %v3390 = vunpack.c.l.b16 %v3380
        %v3391 = vpack.c.b16 %v3384, %v3383
        %v3392 = vpack.c.b16 %v3386, %v3385
        %v3393 = vpack.c.b16 %v3388, %v3387
        %v3394 = vpack.c.b16 %v3390, %v3389
        %v3396 = vsel %vm2127, %v3391, 0
        %v3399 = vsel %vm2127, %v3392, 0
        %v3402 = vsel %vm2127, %v3393, 0
        %v3405 = vsel %vm2127, %v3394, 0
        %v3408 = vsel %vm2140, %v3382, 0
        %3410 = vmatprep.subr.bf16.mxu0 0
        %3411 = vmatpush1.bf16.msra.mxu0 %v3408
        %3412 = vmatprep.subr.bf16.mxu0 0
        %3413 = vmatpush1.bf16.msra.mxu0 0
        %3414 = vmatprep.subr.bf16.mxu0 0
        %3415 = vmatpush1.bf16.msra.mxu0 0
        %3416 = vmatprep.subr.bf16.mxu0 0
        %3417 = vmatpush1.bf16.msra.mxu0 0
        %3418 = vmatprep.subr.bf16.mxu0 0
        %3419 = vmatpush1.bf16.msra.mxu0 0
        %3420 = vmatprep.subr.bf16.mxu0 0
        %3421 = vmatpush1.bf16.msra.mxu0 0
        %3422 = vmatprep.subr.bf16.mxu0 0
        %3423 = vmatpush1.bf16.msra.mxu0 0
        %3424 = vmatprep.subr.bf16.mxu0 0
        %3425 = vmatpush1.bf16.msra.mxu0 0
        %3426 = vmatprep.subr.bf16.mxu0 0
        %3427 = vmatpush1.bf16.msra.mxu0 0
        %3428 = vmatprep.subr.bf16.mxu0 0
        %3429 = vmatpush1.bf16.msra.mxu0 0
        %3430 = vmatprep.subr.bf16.mxu0 0
        %3431 = vmatpush1.bf16.msra.mxu0 0
        %3432 = vmatprep.subr.bf16.mxu0 0
        %3433 = vmatpush1.bf16.msra.mxu0 0
        %3434 = vmatprep.subr.bf16.mxu0 0
        %3435 = vmatpush1.bf16.msra.mxu0 0
        %3436 = vmatprep.subr.bf16.mxu0 0
        %3437 = vmatpush1.bf16.msra.mxu0 0
        %3438 = vmatprep.subr.bf16.mxu0 0
        %3439 = vmatpush1.bf16.msra.mxu0 0
        %3440 = vmatprep.subr.bf16.mxu0 0
        %3441 = vmatpush1.bf16.msra.mxu0 0
        %3442 = vmatprep.mubr.bf16.mxu0 0
        %3443 = vmatmul.mubr.bf16.gmra.mrb[0].mxu0 %v3396
        %v3444 = vpop.f32.mrb[0].mxu0
        %v3445 = vadd.f32 0.0, %v3444
        %v3446 = vpop.f32.mrb[0].mxu0
        %v3447 = vpop.f32.mrb[0].mxu0
        %v3448 = vadd.f32 0.0, %v3447
        %v3449 = vpop.f32.mrb[0].mxu0
        %3450 = vmatprep.mubr.bf16.mxu0 0
        %3451 = vmatmul.mubr.bf16.gmra.mrb[0].mxu0 %v3399
        %v3452 = vpop.f32.mrb[0].mxu0
        %v3453 = vadd.f32 0.0, %v3452
        %v3454 = vpop.f32.mrb[0].mxu0
        %v3455 = vpop.f32.mrb[0].mxu0
        %v3456 = vadd.f32 0.0, %v3455
        %v3457 = vpop.f32.mrb[0].mxu0
        %3458 = vmatprep.mubr.bf16.mxu0 0
        %3459 = vmatmul.mubr.bf16.gmra.mrb[0].mxu0 %v3402
        %v3460 = vpop.f32.mrb[0].mxu0
        %v3461 = vadd.f32 0.0, %v3460
        %v3462 = vpop.f32.mrb[0].mxu0
        %v3463 = vpop.f32.mrb[0].mxu0
        %v3464 = vadd.f32 0.0, %v3463
        %v3465 = vpop.f32.mrb[0].mxu0
        %3466 = vmatprep.mubr.bf16.mxu0 0
        %3467 = vmatmul.mubr.bf16.gmra.mrb[0].mxu0 %v3405
        %v3468 = vpop.f32.mrb[0].mxu0
        %v3469 = vadd.f32 0.0, %v3468
        %v3470 = vpop.f32.mrb[0].mxu0
        %v3471 = vpop.f32.mrb[0].mxu0
        %v3472 = vadd.f32 0.0, %v3471
        %v3473 = vpop.f32.mrb[0].mxu0
        %3474 = vdwg.mxu0
        %v3475 = vadd.f32 %v3317, %v3445
        %v3476 = vadd.f32 %v3318, %v3448
        %v3477 = vadd.f32 %v3319, %v3453
        %v3478 = vadd.f32 %v3320, %v3456
        %v3479 = vadd.f32 %v3321, %v3461
        %v3480 = vadd.f32 %v3322, %v3464
        %v3481 = vadd.f32 %v3323, %v3469
        %v3482 = vadd.f32 %v3324, %v3472
        %v3483 = vld [vmem:[%s7] sm:$0x1]
        %v3485 = vlaneseq
        %v3486 = vshrl.u32 %v3485, 7
        %v3487 = vsub.s32 0, %v3486
        %v3488 = vrot.slane %v3483, %v3487
        %v3490 = vadd.f32 %v3475, %v3488
        %v3491 = vadd.f32 %v3476, %v3488
        %v3492 = vadd.f32 %v3477, %v3488
        %v3493 = vadd.f32 %v3478, %v3488
        %v3494 = vadd.f32 %v3479, %v3488
        %v3495 = vadd.f32 %v3480, %v3488
        %v3496 = vadd.f32 %v3481, %v3488
        %v3497 = vadd.f32 %v3482, %v3488
        %v3498 = vld [vmem:[%s390] sm:$0xf]
        %v3499 = vld [vmem:[%s390 + $0x8] sm:$0xf]
        %v3500 = vld [vmem:[%s390 + $0x10] sm:$0xf]
        %v3501 = vld [vmem:[%s390 + $0x18] sm:$0xf]
        %v3502 = vld [vmem:[%s390 + $0x20] sm:$0xf]
        %v3503 = vld [vmem:[%s390 + $0x28] sm:$0xf]
        %v3504 = vld [vmem:[%s390 + $0x30] sm:$0xf]
        %v3505 = vld [vmem:[%s390 + $0x38] sm:$0xf]
        %v3506 = vld [vmem:[%s8] sm:$0x3]
        %v3515 = vunpack.c.l.b16 %v3498
        %v3516 = vunpack.c.l.b16 %v3499
        %v3517 = vunpack.c.l.b16 %v3500
        %v3518 = vunpack.c.l.b16 %v3501
        %v3519 = vunpack.c.l.b16 %v3502
        %v3520 = vunpack.c.l.b16 %v3503
        %v3521 = vunpack.c.l.b16 %v3504
        %v3522 = vunpack.c.l.b16 %v3505
        %v3523 = vpack.c.b16 %v3516, %v3515
        %v3524 = vpack.c.b16 %v3518, %v3517
        %v3525 = vpack.c.b16 %v3520, %v3519
        %v3526 = vpack.c.b16 %v3522, %v3521
        %v3528 = vsel %vm431, %v3523, 0
        %v3531 = vsel %vm431, %v3524, 0
        %v3534 = vsel %vm431, %v3525, 0
        %v3537 = vsel %vm431, %v3526, 0
        %v3540 = vsel %vm444, %v3506, 0
        %3542 = vmatprep.subr.bf16.mxu0 0
        %3543 = vmatpush1.bf16.msra.mxu0 %v3540
        %3544 = vmatprep.subr.bf16.mxu0 0
        %3545 = vmatpush1.bf16.msra.mxu0 0
        %3546 = vmatprep.subr.bf16.mxu0 0
        %3547 = vmatpush1.bf16.msra.mxu0 0
        %3548 = vmatprep.subr.bf16.mxu0 0
        %3549 = vmatpush1.bf16.msra.mxu0 0
        %3550 = vmatprep.subr.bf16.mxu0 0
        %3551 = vmatpush1.bf16.msra.mxu0 0
        %3552 = vmatprep.subr.bf16.mxu0 0
        %3553 = vmatpush1.bf16.msra.mxu0 0
        %3554 = vmatprep.subr.bf16.mxu0 0
        %3555 = vmatpush1.bf16.msra.mxu0 0
        %3556 = vmatprep.subr.bf16.mxu0 0
        %3557 = vmatpush1.bf16.msra.mxu0 0
        %3558 = vmatprep.subr.bf16.mxu0 0
        %3559 = vmatpush1.bf16.msra.mxu0 0
        %3560 = vmatprep.subr.bf16.mxu0 0
        %3561 = vmatpush1.bf16.msra.mxu0 0
        %3562 = vmatprep.subr.bf16.mxu0 0
        %3563 = vmatpush1.bf16.msra.mxu0 0
        %3564 = vmatprep.subr.bf16.mxu0 0
        %3565 = vmatpush1.bf16.msra.mxu0 0
        %3566 = vmatprep.subr.bf16.mxu0 0
        %3567 = vmatpush1.bf16.msra.mxu0 0
        %3568 = vmatprep.subr.bf16.mxu0 0
        %3569 = vmatpush1.bf16.msra.mxu0 0
        %3570 = vmatprep.subr.bf16.mxu0 0
        %3571 = vmatpush1.bf16.msra.mxu0 0
        %3572 = vmatprep.subr.bf16.mxu0 0
        %3573 = vmatpush1.bf16.msra.mxu0 0
        %3574 = vmatprep.mubr.bf16.mxu0 0
        %3575 = vmatmul.mubr.bf16.gmra.mrb[0].mxu0 %v3528
        %v3576 = vpop.f32.mrb[0].mxu0
        %v3577 = vadd.f32 0.0, %v3576
        %v3578 = vpop.f32.mrb[0].mxu0
        %v3579 = vpop.f32.mrb[0].mxu0
        %v3580 = vadd.f32 0.0, %v3579
        %v3581 = vpop.f32.mrb[0].mxu0
        %3582 = vmatprep.mubr.bf16.mxu0 0
        %3583 = vmatmul.mubr.bf16.gmra.mrb[0].mxu0 %v3531
        %v3584 = vpop.f32.mrb[0].mxu0
        %v3585 = vadd.f32 0.0, %v3584
        %v3586 = vpop.f32.mrb[0].mxu0
        %v3587 = vpop.f32.mrb[0].mxu0
        %v3588 = vadd.f32 0.0, %v3587
        %v3589 = vpop.f32.mrb[0].mxu0
        %3590 = vmatprep.mubr.bf16.mxu0 0
        %3591 = vmatmul.mubr.bf16.gmra.mrb[0].mxu0 %v3534
        %v3592 = vpop.f32.mrb[0].mxu0
        %v3593 = vadd.f32 0.0, %v3592
        %v3594 = vpop.f32.mrb[0].mxu0
        %v3595 = vpop.f32.mrb[0].mxu0
        %v3596 = vadd.f32 0.0, %v3595
        %v3597 = vpop.f32.mrb[0].mxu0
        %3598 = vmatprep.mubr.bf16.mxu0 0
        %3599 = vmatmul.mubr.bf16.gmra.mrb[0].mxu0 %v3537
        %v3600 = vpop.f32.mrb[0].mxu0
        %v3601 = vadd.f32 0.0, %v3600
        %v3602 = vpop.f32.mrb[0].mxu0
        %v3603 = vpop.f32.mrb[0].mxu0
        %v3604 = vadd.f32 0.0, %v3603
        %v3605 = vpop.f32.mrb[0].mxu0
        %3606 = vdwg.mxu0
        %v3607 = vadd.f32 %v3490, %v3577
        %v3608 = vadd.f32 %v3491, %v3580
        %v3609 = vadd.f32 %v3492, %v3585
        %v3610 = vadd.f32 %v3493, %v3588
        %v3611 = vadd.f32 %v3494, %v3593
        %v3612 = vadd.f32 %v3495, %v3596
        %v3613 = vadd.f32 %v3496, %v3601
        %v3614 = vadd.f32 %v3497, %v3604
        %v3615 = vmax.f32 %v3607, 0.0
        %v3616 = vmax.f32 %v3608, 0.0
        %v3617 = vmax.f32 %v3609, 0.0
        %v3618 = vmax.f32 %v3610, 0.0
        %v3619 = vmax.f32 %v3611, 0.0
        %v3620 = vmax.f32 %v3612, 0.0
        %v3621 = vmax.f32 %v3613, 0.0
        %v3622 = vmax.f32 %v3614, 0.0
        %v3623 = vpack.c.bf16 %v3615, %v3615
        %v3624 = vpack.c.bf16 %v3616, %v3616
        %v3625 = vpack.c.bf16 %v3617, %v3617
        %v3626 = vpack.c.bf16 %v3618, %v3618
        %v3627 = vpack.c.bf16 %v3619, %v3619
        %v3628 = vpack.c.bf16 %v3620, %v3620
        %v3629 = vpack.c.bf16 %v3621, %v3621
        %v3630 = vpack.c.bf16 %v3622, %v3622
        %3631 = vst.msk [vmem:[%s370] sm:$0xf] %vm1807, %v3623
        %3632 = vst.msk [vmem:[%s370 + $0x4] sm:$0xf] %vm1807, %v3624
        %3633 = vst.msk [vmem:[%s370 + $0x8] sm:$0xf] %vm1807, %v3625
        %3634 = vst.msk [vmem:[%s370 + $0xc] sm:$0xf] %vm1807, %v3626
        %3635 = vst.msk [vmem:[%s370 + $0x10] sm:$0xf] %vm1807, %v3627
        %3636 = vst.msk [vmem:[%s370 + $0x14] sm:$0xf] %vm1807, %v3628
        %3637 = vst.msk [vmem:[%s370 + $0x18] sm:$0xf] %vm1807, %v3629
        %3638 = vst.msk [vmem:[%s370 + $0x1c] sm:$0xf] %vm1807, %v3630
        %s3639 = sand.u32 %s240, 1
        %s3640 = scalar_lea.sflag [#allocation4], %s3639
        %s3641 = sand.u32 %s240, 1
        %s3642 = smul.addr %s3641, 32
        %s3643 = scalar_lea.vmem [#allocation3], %s3642
        // Predicated region
        $region57: #{tpu_custom_call.1} parent=55 // pred_check
          %p3644 = pneg %p250
        $region58: #{tpu_custom_call.1} parent=55 // pred_check_branch
          %3646 = sbr.rel (%p3644) target = $region60
        $region59: #{tpu_custom_call.1} parent=55 // pred_region
          %s3648 = ssub.s32 512, 512
          %3649 = vsyncadd %s3640, %s3648
          %s3650 = smul.addr %s23, 8
          %s3651 = smul.addr %s3650, 64
          %s3652 = scalar_lea.hbm %s9, %s3651
          %s3653 = sshll.u32 %s3643, 4
          %s3654 = int_to_ptr.vmem [resolvable:$true] %s3653
          %3659 = dma.vmem_to_hbm [thread:$0]  %s3654, 512, %s3652, %s3640, 64, 64, 4
        $region60: #{tpu_custom_call.1} parent=55 // pred_fallthru
          _
      $region56: #{tpu_custom_call.1} parent=5 // pred_fallthru
        _
      %p3660 = scmp.le.s32.totalorder 2, %s18
      // Predicated region
      $region61: #{tpu_custom_call.1} parent=5 // pred_check
        %p3661 = pneg %p3660
      $region62: #{tpu_custom_call.1} parent=5 // pred_check_branch
        %3663 = sbr.rel (%p3661) target = $region64
      $region63: #{tpu_custom_call.1} parent=5 // pred_region
        %s3664 = ssub.s32 %s18, 2
        // Predicated region
        $region65: #{tpu_custom_call.1} parent=63 // pred_check
          %p3665 = pneg %p256
        $region66: #{tpu_custom_call.1} parent=63 // pred_check_branch
          %3667 = sbr.rel (%p3665) target = $region68
        $region67: #{tpu_custom_call.1} parent=63 // pred_region
          %s3668 = sand.u32 %s241, 1
          %s3669 = scalar_lea.sflag [#allocation4], %s3668
          %s3670 = sand.u32 %s241, 1
          %s3671 = smul.addr %s3670, 32
          %s3672 = scalar_lea.vmem [#allocation3], %s3671
          %3673 = dma.done %s3669, 512
        $region68: #{tpu_custom_call.1} parent=63 // pred_fallthru
          _
      $region64: #{tpu_custom_call.1} parent=5 // pred_fallthru
        _
    $region6: #{tpu_custom_call.1} parent=1 // loop_footer
      %s22 = sadd.s32 1, %s18
    $region7: #{tpu_custom_call.1} parent=1 // loop_footer_branch
      %17 = sbr.rel target = $region3
    $region8: #{tpu_custom_call.1} parent=1 // loop_exit
      _
    %3674 = vsyncpa [#allocation4], 1
    %s3675 = scalar_lea.sflag [#allocation4], 1
    %3676 = vsyncpa %s3675, 1

// kernel: tpu_custom_call.1
$region0: #{tpu_custom_call.1}
  #allocation0 [shape = 'u32[]', space=smem, size = 0x4, offset = 0x4, fixed_abs, tag = 'smem constant byte address 0x4 - core index']
  #allocation1 [shape = 'u32[144,128]{1,0:T(1,128)}', space=vmem, size = 0x12000, scoped, tag = 'internal scratch']
  #allocation2 [shape = 'bf16[10,10,8]{2,1,0:T(8,128)(2,1)}', space=vmem, size = 0xa000, scoped, tag = 'scratch operand']
  %s0 = inlined_call_operand.vmem [shape: bf16[2,9,9,4], index: 0, kind: input, shape index: {}]
  %s1 = inlined_call_operand.vmem [shape: bf16[2,9,9,4], index: 1, kind: input, shape index: {}]
  %s2 = inlined_call_operand.vmem [shape: bf16[2,9,9,4], index: 2, kind: input, shape index: {}]
  %s3 = inlined_call_operand.vmem [shape: bf16[2,9,9,4], index: 3, kind: input, shape index: {}]
  %s4 = inlined_call_operand.vmem [shape: bf16[9,4,8], index: 4, kind: input, shape index: {}]
  %s5 = inlined_call_operand.vmem [shape: f32[1,8], index: 5, kind: input, shape index: {}]
  %s6 = inlined_call_operand.vmem [shape: bf16[9,8,8], index: 6, kind: input, shape index: {}]
  %s7 = inlined_call_operand.vmem [shape: f32[1,8], index: 7, kind: input, shape index: {}]
  %s8 = inlined_call_operand.vmem [shape: bf16[4,8], index: 8, kind: input, shape index: {}]
  %s9 = inlined_call_operand.hbm [shape: bf16[2,8,8,8], index: 9, kind: output, shape index: {}]
  %s10 = sld [smem:[#allocation0]]
  $region69: #{tpu_custom_call.1} parent=0
    _
  %s12 = ssub.s32 1, %s10
  %s13 = scalar_select 0, %s12, %s10
  $region1: #{tpu_custom_call.1} parent=0
    #allocation3 [shape = 'u8[32768]{0}', space=vmem, size = 0x8000, scoped, tag = 'output window, operand 0']
    #allocation4 [shape = 's32[2]{0}', space=sflag, size = 0x8, scoped, tag = 'scoped memory for tpu_custom_call.1']
    %14 = vsyncpa [#allocation4], 0
    %s15 = scalar_lea.sflag [#allocation4], 1
    %16 = vsyncpa %s15, 0
    loop: start=0, step=1, limit=4
    $region2: #{tpu_custom_call.1} parent=1 // loop_pre_header
      _
    $region3: #{tpu_custom_call.1} parent=1 // loop_header
      %s18 = sphi 0, %s22
      %p19 = scmp.ge.s32.totalorder %s18, 4
      %s28 = sphi 0, %s30
      %s31 = sphi 0, %s28
      %s32 = sphi 0, %s31
      %s48 = sphi 0, %s32
      %s54 = sphi 0, %s56
      %s57 = sphi 0, %s54
      %s58 = sphi 0, %s57
      %s74 = sphi 0, %s58
      %s80 = sphi 0, %s82
      %s83 = sphi 0, %s80
      %s84 = sphi 0, %s83
      %s100 = sphi 0, %s84
      %s106 = sphi 0, %s108
      %s109 = sphi 0, %s106
      %s110 = sphi 0, %s109
      %s126 = sphi 0, %s110
      %s130 = sphi 0, %s130
      %s132 = sphi 0, %s130
      %s133 = sphi 0, %s132
      %s147 = sphi 0, %s133
      %s151 = sphi 0, %s151
      %s153 = sphi 0, %s151
      %s154 = sphi 0, %s153
      %s168 = sphi 0, %s154
      %s172 = sphi 0, %s172
      %s174 = sphi 0, %s172
      %s175 = sphi 0, %s174
      %s189 = sphi 0, %s175
      %s193 = sphi 0, %s193
      %s195 = sphi 0, %s193
      %s196 = sphi 0, %s195
      %s210 = sphi 0, %s196
      %s214 = sphi 0, %s214
      %s216 = sphi 0, %s214
      %s217 = sphi 0, %s216
      %s231 = sphi 0, %s217
      %s237 = sphi 0, %s239
      %s240 = sphi 0, %s237
      %s241 = sphi 0, %s240
      %s257 = sphi 0, %s241
    $region4: #{tpu_custom_call.1} parent=1 // loop_header_branch
      %21 = sbr.rel (%p19) target = $region8
    $region5: #{tpu_custom_call.1} parent=1 // loop_body
      %s23 = ssub.s32 %s18, 1
      %s24 = ssub.s32 %s18, 2
      %s25 = sadd.s32 %s18, 1
      %s26 = ssub.s32 %s18, %s25
      %p27 = scmp.eq.s32.totalorder %s26, 0
      %s29 = sadd.s32 %s28, 1
      %s30 = scalar_select %p27, %s28, %s29
      %p33 = pneg %p27
      %p34 = scmp.eq.s32.totalorder %s18, 1
      %p35 = por %p33, %p34
      %p36 = scmp.ne.s32.totalorder %s28, %s31
      %p37 = scmp.eq.s32.totalorder %s18, 0
      %p38 = por %p36, %p37
      %p39 = scmp.ne.s32.totalorder %s28, %s31
      %p40 = scmp.eq.s32.totalorder %s23, 1
      %p41 = por %p39, %p40
      %p42 = scmp.ne.s32.totalorder %s31, %s32
      %p43 = scmp.eq.s32.totalorder %s23, 0
      %p44 = por %p42, %p43
      %p45 = scmp.ne.s32.totalorder %s31, %s32
      %p46 = scmp.eq.s32.totalorder %s24, 1
      %p47 = por %p45, %p46
      %p49 = scmp.ne.s32.totalorder %s32, %s48
      %p50 = scmp.eq.s32.totalorder %s24, 0
      %p51 = por %p49, %p50
      %s52 = ssub.s32 %s18, %s25
      %p53 = scmp.eq.s32.totalorder %s52, 0
      %s55 = sadd.s32 %s54, 1
      %s56 = scalar_select %p53, %s54, %s55
      %p59 = pneg %p53
      %p60 = scmp.eq.s32.totalorder %s18, 1
      %p61 = por %p59, %p60
      %p62 = scmp.ne.s32.totalorder %s54, %s57
      %p63 = scmp.eq.s32.totalorder %s18, 0
      %p64 = por %p62, %p63
      %p65 = scmp.ne.s32.totalorder %s54, %s57
      %p66 = scmp.eq.s32.totalorder %s23, 1
      %p67 = por %p65, %p66
      %p68 = scmp.ne.s32.totalorder %s57, %s58
      %p69 = scmp.eq.s32.totalorder %s23, 0
      %p70 = por %p68, %p69
      %p71 = scmp.ne.s32.totalorder %s57, %s58
      %p72 = scmp.eq.s32.totalorder %s24, 1
      %p73 = por %p71, %p72
      %p75 = scmp.ne.s32.totalorder %s58, %s74
      %p76 = scmp.eq.s32.totalorder %s24, 0
      %p77 = por %p75, %p76
      %s78 = ssub.s32 %s18, %s25
      %p79 = scmp.eq.s32.totalorder %s78, 0
      %s81 = sadd.s32 %s80, 1
      %s82 = scalar_select %p79, %s80, %s81
      %p85 = pneg %p79
      %p86 = scmp.eq.s32.totalorder %s18, 1
      %p87 = por %p85, %p86
      %p88 = scmp.ne.s32.totalorder %s80, %s83
      %p89 = scmp.eq.s32.totalorder %s18, 0
      %p90 = por %p88, %p89
      %p91 = scmp.ne.s32.totalorder %s80, %s83
      %p92 = scmp.eq.s32.totalorder %s23, 1
      %p93 = por %p91, %p92
      %p94 = scmp.ne.s32.totalorder %s83, %s84
      %p95 = scmp.eq.s32.totalorder %s23, 0
      %p96 = por %p94, %p95
      %p97 = scmp.ne.s32.totalorder %s83, %s84
      %p98 = scmp.eq.s32.totalorder %s24, 1
      %p99 = por %p97, %p98
      %p101 = scmp.ne.s32.totalorder %s84, %s100
      %p102 = scmp.eq.s32.totalorder %s24, 0
      %p103 = por %p101, %p102
      %s104 = ssub.s32 %s18, %s25
      %p105 = scmp.eq.s32.totalorder %s104, 0
      %s107 = sadd.s32 %s106, 1
      %s108 = scalar_select %p105, %s106, %s107
      %p111 = pneg %p105
      %p112 = scmp.eq.s32.totalorder %s18, 1
      %p113 = por %p111, %p112
      %p114 = scmp.ne.s32.totalorder %s106, %s109
      %p115 = scmp.eq.s32.totalorder %s18, 0
      %p116 = por %p114, %p115
      %p117 = scmp.ne.s32.totalorder %s106, %s109
      %p118 = scmp.eq.s32.totalorder %s23, 1
      %p119 = por %p117, %p118
      %p120 = scmp.ne.s32.totalorder %s109, %s110
      %p121 = scmp.eq.s32.totalorder %s23, 0
      %p122 = por %p120, %p121
      %p123 = scmp.ne.s32.totalorder %s109, %s110
      %p124 = scmp.eq.s32.totalorder %s24, 1
      %p125 = por %p123, %p124
      %p127 = scmp.ne.s32.totalorder %s110, %s126
      %p128 = scmp.eq.s32.totalorder %s24, 0
      %p129 = por %p127, %p128
      %s131 = sadd.s32 %s130, 1
      %p134 = scmp.eq.s32.totalorder %s18, 1
      %p135 = scmp.ne.s32.totalorder %s130, %s132
      %p136 = scmp.eq.s32.totalorder %s18, 0
      %p137 = por %p135, %p136
      %p138 = scmp.ne.s32.totalorder %s130, %s132
      %p139 = scmp.eq.s32.totalorder %s23, 1
      %p140 = por %p138, %p139
      %p141 = scmp.ne.s32.totalorder %s132, %s133
      %p142 = scmp.eq.s32.totalorder %s23, 0
      %p143 = por %p141, %p142
      %p144 = scmp.ne.s32.totalorder %s132, %s133
      %p145 = scmp.eq.s32.totalorder %s24, 1
      %p146 = por %p144, %p145
      %p148 = scmp.ne.s32.totalorder %s133, %s147
      %p149 = scmp.eq.s32.totalorder %s24, 0
      %p150 = por %p148, %p149
      %s152 = sadd.s32 %s151, 1
      %p155 = scmp.eq.s32.totalorder %s18, 1
      %p156 = scmp.ne.s32.totalorder %s151, %s153
      %p157 = scmp.eq.s32.totalorder %s18, 0
      %p158 = por %p156, %p157
      %p159 = scmp.ne.s32.totalorder %s151, %s153
      %p160 = scmp.eq.s32.totalorder %s23, 1
      %p161 = por %p159, %p160
      %p162 = scmp.ne.s32.totalorder %s153, %s154
      %p163 = scmp.eq.s32.totalorder %s23, 0
      %p164 = por %p162, %p163
      %p165 = scmp.ne.s32.totalorder %s153, %s154
      %p166 = scmp.eq.s32.totalorder %s24, 1
      %p167 = por %p165, %p166
      %p169 = scmp.ne.s32.totalorder %s154, %s168
      %p170 = scmp.eq.s32.totalorder %s24, 0
      %p171 = por %p169, %p170
      %s173 = sadd.s32 %s172, 1
      %p176 = scmp.eq.s32.totalorder %s18, 1
      %p177 = scmp.ne.s32.totalorder %s172, %s174
      %p178 = scmp.eq.s32.totalorder %s18, 0
      %p179 = por %p177, %p178
      %p180 = scmp.ne.s32.totalorder %s172, %s174
      %p181 = scmp.eq.s32.totalorder %s23, 1
      %p182 = por %p180, %p181
      %p183 = scmp.ne.s32.totalorder %s174, %s175
      %p184 = scmp.eq.s32.totalorder %s23, 0
      %p185 = por %p183, %p184
      %p186 = scmp.ne.s32.totalorder %s174, %s175
      %p187 = scmp.eq.s32.totalorder %s24, 1
      %p188 = por %p186, %p187
      %p190 = scmp.ne.s32.totalorder %s175, %s189
      %p191 = scmp.eq.s32.totalorder %s24, 0
      %p192 = por %p190, %p191
      %s194 = sadd.s32 %s193, 1
      %p197 = scmp.eq.s32.totalorder %s18, 1
      %p198 = scmp.ne.s32.totalorder %s193, %s195
      %p199 = scmp.eq.s32.totalorder %s18, 0
      %p200 = por %p198, %p199
      %p201 = scmp.ne.s32.totalorder %s193, %s195
      %p202 = scmp.eq.s32.totalorder %s23, 1
      %p203 = por %p201, %p202
      %p204 = scmp.ne.s32.totalorder %s195, %s196
      %p205 = scmp.eq.s32.totalorder %s23, 0
      %p206 = por %p204, %p205
      %p207 = scmp.ne.s32.totalorder %s195, %s196
      %p208 = scmp.eq.s32.totalorder %s24, 1
      %p209 = por %p207, %p208
      %p211 = scmp.ne.s32.totalorder %s196, %s210
      %p212 = scmp.eq.s32.totalorder %s24, 0
      %p213 = por %p211, %p212
      %s215 = sadd.s32 %s214, 1
      %p218 = scmp.eq.s32.totalorder %s18, 1
      %p219 = scmp.ne.s32.totalorder %s214, %s216
      %p220 = scmp.eq.s32.totalorder %s18, 0
      %p221 = por %p219, %p220
      %p222 = scmp.ne.s32.totalorder %s214, %s216
      %p223 = scmp.eq.s32.totalorder %s23, 1
      %p224 = por %p222, %p223
      %p225 = scmp.ne.s32.totalorder %s216, %s217
      %p226 = scmp.eq.s32.totalorder %s23, 0
      %p227 = por %p225, %p226
      %p228 = scmp.ne.s32.totalorder %s216, %s217
      %p229 = scmp.eq.s32.totalorder %s24, 1
      %p230 = por %p228, %p229
      %p232 = scmp.ne.s32.totalorder %s217, %s231
      %p233 = scmp.eq.s32.totalorder %s24, 0
      %p234 = por %p232, %p233
      %s235 = ssub.s32 %s18, %s25
      %p236 = scmp.eq.s32.totalorder %s235, 0
      %s238 = sadd.s32 %s237, 1
      %s239 = scalar_select %p236, %s237, %s238
      %p242 = pneg %p236
      %p243 = scmp.eq.s32.totalorder %s18, 1
      %p244 = por %p242, %p243
      %p245 = scmp.ne.s32.totalorder %s237, %s240
      %p246 = scmp.eq.s32.totalorder %s18, 0
      %p247 = por %p245, %p246
      %p248 = scmp.ne.s32.totalorder %s237, %s240
      %p249 = scmp.eq.s32.totalorder %s23, 1
      %p250 = por %p248, %p249
      %p251 = scmp.ne.s32.totalorder %s240, %s241
      %p252 = scmp.eq.s32.totalorder %s23, 0
      %p253 = por %p251, %p252
      %p254 = scmp.ne.s32.totalorder %s240, %s241
      %p255 = scmp.eq.s32.totalorder %s24, 1
      %p256 = por %p254, %p255
      %p258 = scmp.ne.s32.totalorder %s241, %s257
      %p259 = scmp.eq.s32.totalorder %s24, 0
      %p260 = por %p258, %p259
      %p261 = scmp.le.s32.totalorder 1, %s18
      %p262 = scmp.lt.s32.totalorder %s18, 3
      %p263 = pnand %p261, %p262
      %p264 = pneg %p263
      // Predicated region
      $region9: #{tpu_custom_call.1} parent=5 // pred_check
        _
      $region10: #{tpu_custom_call.1} parent=5 // pred_check_branch
        %266 = sbr.rel (%p263) target = $region12
      $region11: #{tpu_custom_call.1} parent=5 // pred_region
        %s267 = ssub.s32 %s18, 1
        // Predicated region
        $region13: #{tpu_custom_call.1} parent=11 // pred_check
          %p268 = pneg %p143
        $region14: #{tpu_custom_call.1} parent=11 // pred_check_branch
          %270 = sbr.rel (%p268) target = $region16
        $region15: #{tpu_custom_call.1} parent=11 // pred_region
          _
        $region16: #{tpu_custom_call.1} parent=11 // pred_fallthru
          _
        // Predicated region
        $region17: #{tpu_custom_call.1} parent=11 // pred_check
          %p271 = pneg %p164
        $region18: #{tpu_custom_call.1} parent=11 // pred_check_branch
          %273 = sbr.rel (%p271) target = $region20
        $region19: #{tpu_custom_call.1} parent=11 // pred_region
          _
        $region20: #{tpu_custom_call.1} parent=11 // pred_fallthru
          _
        // Predicated region
        $region21: #{tpu_custom_call.1} parent=11 // pred_check
          %p274 = pneg %p185
        $region22: #{tpu_custom_call.1} parent=11 // pred_check_branch
          %276 = sbr.rel (%p274) target = $region24
        $region23: #{tpu_custom_call.1} parent=11 // pred_region
          _
        $region24: #{tpu_custom_call.1} parent=11 // pred_fallthru
          _
        // Predicated region
        $region25: #{tpu_custom_call.1} parent=11 // pred_check
          %p277 = pneg %p206
        $region26: #{tpu_custom_call.1} parent=11 // pred_check_branch
          %279 = sbr.rel (%p277) target = $region28
        $region27: #{tpu_custom_call.1} parent=11 // pred_region
          _
        $region28: #{tpu_custom_call.1} parent=11 // pred_fallthru
          _
        // Predicated region
        $region29: #{tpu_custom_call.1} parent=11 // pred_check
          %p280 = pneg %p227
        $region30: #{tpu_custom_call.1} parent=11 // pred_check_branch
          %282 = sbr.rel (%p280) target = $region32
        $region31: #{tpu_custom_call.1} parent=11 // pred_region
          _
        $region32: #{tpu_custom_call.1} parent=11 // pred_fallthru
          _
      $region12: #{tpu_custom_call.1} parent=5 // pred_fallthru
        _
      %p283 = scmp.lt.s32.totalorder %s18, 2
      // Predicated region
      $region33: #{tpu_custom_call.1} parent=5 // pred_check
        %p284 = pneg %p283
      $region34: #{tpu_custom_call.1} parent=5 // pred_check_branch
        %286 = sbr.rel (%p284) target = $region36
      $region35: #{tpu_custom_call.1} parent=5 // pred_region
        // Predicated region
        $region37: #{tpu_custom_call.1} parent=35 // pred_check
          %p287 = pneg %p38
        $region38: #{tpu_custom_call.1} parent=35 // pred_check_branch
          %289 = sbr.rel (%p287) target = $region40
        $region39: #{tpu_custom_call.1} parent=35 // pred_region
          %p290 = scmp.lt.s32.totalorder %s18, 1
          %s291 = scalar_select %p290, %s18, 1
          %s292 = smul.addr %s291, 18
          %s293 = smul.addr %s292, 4
          %s294 = scalar_lea.vmem %s0, %s293
        $region40: #{tpu_custom_call.1} parent=35 // pred_fallthru
          _
        // Predicated region
        $region41: #{tpu_custom_call.1} parent=35 // pred_check
          %p295 = pneg %p64
        $region42: #{tpu_custom_call.1} parent=35 // pred_check_branch
          %297 = sbr.rel (%p295) target = $region44
        $region43: #{tpu_custom_call.1} parent=35 // pred_region
          %p298 = scmp.lt.s32.totalorder %s18, 1
          %s299 = scalar_select %p298, %s18, 1
          %s300 = smul.addr %s299, 18
          %s301 = smul.addr %s300, 4
          %s302 = scalar_lea.vmem %s1, %s301
        $region44: #{tpu_custom_call.1} parent=35 // pred_fallthru
          _
        // Predicated region
        $region45: #{tpu_custom_call.1} parent=35 // pred_check
          %p303 = pneg %p90
        $region46: #{tpu_custom_call.1} parent=35 // pred_check_branch
          %305 = sbr.rel (%p303) target = $region48
        $region47: #{tpu_custom_call.1} parent=35 // pred_region
          %p306 = scmp.lt.s32.totalorder %s18, 1
          %s307 = scalar_select %p306, %s18, 1
          %s308 = smul.addr %s307, 18
          %s309 = smul.addr %s308, 4
          %s310 = scalar_lea.vmem %s2, %s309
        $region48: #{tpu_custom_call.1} parent=35 // pred_fallthru
          _
        // Predicated region
        $region49: #{tpu_custom_call.1} parent=35 // pred_check
          %p311 = pneg %p116
        $region50: #{tpu_custom_call.1} parent=35 // pred_check_branch
          %313 = sbr.rel (%p311) target = $region52
        $region51: #{tpu_custom_call.1} parent=35 // pred_region
          %p314 = scmp.lt.s32.totalorder %s18, 1
          %s315 = scalar_select %p314, %s18, 1
          %s316 = smul.addr %s315, 18
          %s317 = smul.addr %s316, 4
          %s318 = scalar_lea.vmem %s3, %s317
        $region52: #{tpu_custom_call.1} parent=35 // pred_fallthru
          _
      $region36: #{tpu_custom_call.1} parent=5 // pred_fallthru
        _
      %p319 = scmp.le.s32.totalorder 1, %s18
      %p320 = scmp.lt.s32.totalorder %s18, 3
      %p321 = pnand %p319, %p320
      %p322 = pneg %p321
      // Predicated region
      $region53: #{tpu_custom_call.1} parent=5 // pred_check
        _
      $region54: #{tpu_custom_call.1} parent=5 // pred_check_branch
        %324 = sbr.rel (%p321) target = $region56
      $region55: #{tpu_custom_call.1} parent=5 // pred_region
        %s325 = ssub.s32 %s18, 1
        %p326 = scmp.lt.s32.totalorder %s23, 1
        %s327 = scalar_select %p326, %s23, 1
        %s328 = smul.addr %s327, 18
        %s329 = smul.addr %s328, 4
        %s330 = scalar_lea.vmem %s0, %s329
        %p331 = pneg %p44
        %p332 = pneg %p41
        %p333 = scmp.lt.s32.totalorder %s23, 1
        %s334 = scalar_select %p333, %s23, 1
        %s335 = smul.addr %s334, 18
        %s336 = smul.addr %s335, 4
        %s337 = scalar_lea.vmem %s1, %s336
        %p338 = pneg %p70
        %p339 = pneg %p67
        %p340 = scmp.lt.s32.totalorder %s23, 1
        %s341 = scalar_select %p340, %s23, 1
        %s342 = smul.addr %s341, 18
        %s343 = smul.addr %s342, 4
        %s344 = scalar_lea.vmem %s2, %s343
        %p345 = pneg %p96
        %p346 = pneg %p93
        %p347 = scmp.lt.s32.totalorder %s23, 1
        %s348 = scalar_select %p347, %s23, 1
        %s349 = smul.addr %s348, 18
        %s350 = smul.addr %s349, 4
        %s351 = scalar_lea.vmem %s3, %s350
        %p352 = pneg %p122
        %p353 = pneg %p119
        %p354 = pneg %p143
        %p355 = pneg %p140
        %p356 = pneg %p164
        %p357 = pneg %p161
        %p358 = pneg %p185
        %p359 = pneg %p182
        %p360 = pneg %p206
        %p361 = pneg %p203
        %p362 = pneg %p227
        %p363 = pneg %p224
        %p364 = pneg %p253
        %p365 = pneg %p250
        %s366 = sand.u32 %s240, 1
        %s367 = scalar_lea.sflag [#allocation4], %s366
        %s368 = sand.u32 %s240, 1
        %s369 = smul.addr %s368, 32
        %s370 = scalar_lea.vmem [#allocation3], %s369
        %p371 = scmp.lt.s32.totalorder %s23, 1
        %s372 = scalar_select %p371, %s23, 1
        %s373 = smul.addr %s372, 18
        %s374 = smul.addr %s373, 4
        %s375 = scalar_lea.vmem %s0, %s374
        %p376 = scmp.lt.s32.totalorder %s23, 1
        %s377 = scalar_select %p376, %s23, 1
        %s378 = smul.addr %s377, 18
        %s379 = smul.addr %s378, 4
        %s380 = scalar_lea.vmem %s1, %s379
        %p381 = scmp.lt.s32.totalorder %s23, 1
        %s382 = scalar_select %p381, %s23, 1
        %s383 = smul.addr %s382, 18
        %s384 = smul.addr %s383, 4
        %s385 = scalar_lea.vmem %s2, %s384
        %p386 = scmp.lt.s32.totalorder %s23, 1
        %s387 = scalar_select %p386, %s23, 1
        %s388 = smul.addr %s387, 18
        %s389 = smul.addr %s388, 4
        %s390 = scalar_lea.vmem %s3, %s389
        %v392 = vld [vmem:[%s375] sm:$0xf]
        %v393 = vld [vmem:[%s375 + $0x8] sm:$0xf]
        %v394 = vld [vmem:[%s375 + $0x10] sm:$0xf]
        %v395 = vld [vmem:[%s375 + $0x18] sm:$0xf]
        %v396 = vld [vmem:[%s375 + $0x20] sm:$0xf]
        %v397 = vld [vmem:[%s375 + $0x28] sm:$0xf]
        %v398 = vld [vmem:[%s375 + $0x30] sm:$0xf]
        %v399 = vld [vmem:[%s375 + $0x38] sm:$0xf]
        %v400 = vld [vmem:[%s4] sm:$0x3]
        %v401 = vld [vmem:[%s380] sm:$0xf]
        %v402 = vld [vmem:[%s380 + $0x8] sm:$0xf]
        %v403 = vld [vmem:[%s380 + $0x10] sm:$0xf]
        %v404 = vld [vmem:[%s380 + $0x18] sm:$0xf]
        %v405 = vld [vmem:[%s380 + $0x20] sm:$0xf]
        %v406 = vld [vmem:[%s380 + $0x28] sm:$0xf]
        %v407 = vld [vmem:[%s380 + $0x30] sm:$0xf]
        %v408 = vld [vmem:[%s380 + $0x38] sm:$0xf]
        %s409 = scalar_lea.vmem %s4, 2
        %v410 = vld [vmem:[%s409] sm:$0x3]
        %v419 = vunpack.c.l.b16 %v401
        %v420 = vunpack.c.l.b16 %v402
        %v421 = vunpack.c.l.b16 %v403
        %v422 = vunpack.c.l.b16 %v404
        %v423 = vunpack.c.l.b16 %v405
        %v424 = vunpack.c.l.b16 %v406
        %v425 = vunpack.c.l.b16 %v407
        %v426 = vunpack.c.l.b16 %v408
        %v427 = vpack.c.b16 %v420, %v419
        %v428 = vpack.c.b16 %v422, %v421
        %v429 = vpack.c.b16 %v424, %v423
        %v430 = vpack.c.b16 %v426, %v425
        %vm431 = vcmask 31744
        %v433 = vsel %vm431, %v427, 0
        %v436 = vsel %vm431, %v428, 0
        %v439 = vsel %vm431, %v429, 0
        %v442 = vsel %vm431, %v430, 0
        %vm444 = vcmask 1041408
        %v446 = vsel %vm444, %v410, 0
        %448 = vmatprep.subr.bf16.mxu0 0
        %449 = vmatpush1.bf16.msra.mxu0 %v446
        %450 = vmatprep.subr.bf16.mxu0 0
        %451 = vmatpush1.bf16.msra.mxu0 0
        %452 = vmatprep.subr.bf16.mxu0 0
        %453 = vmatpush1.bf16.msra.mxu0 0
        %454 = vmatprep.subr.bf16.mxu0 0
        %455 = vmatpush1.bf16.msra.mxu0 0
        %456 = vmatprep.subr.bf16.mxu0 0
        %457 = vmatpush1.bf16.msra.mxu0 0
        %458 = vmatprep.subr.bf16.mxu0 0
        %459 = vmatpush1.bf16.msra.mxu0 0
        %460 = vmatprep.subr.bf16.mxu0 0
        %461 = vmatpush1.bf16.msra.mxu0 0
        %462 = vmatprep.subr.bf16.mxu0 0
        %463 = vmatpush1.bf16.msra.mxu0 0
        %464 = vmatprep.subr.bf16.mxu0 0
        %465 = vmatpush1.bf16.msra.mxu0 0
        %466 = vmatprep.subr.bf16.mxu0 0
        %467 = vmatpush1.bf16.msra.mxu0 0
        %468 = vmatprep.subr.bf16.mxu0 0
        %469 = vmatpush1.bf16.msra.mxu0 0
        %470 = vmatprep.subr.bf16.mxu0 0
        %471 = vmatpush1.bf16.msra.mxu0 0
        %472 = vmatprep.subr.bf16.mxu0 0
        %473 = vmatpush1.bf16.msra.mxu0 0
        %474 = vmatprep.subr.bf16.mxu0 0
        %475 = vmatpush1.bf16.msra.mxu0 0
        %476 = vmatprep.subr.bf16.mxu0 0
        %477 = vmatpush1.bf16.msra.mxu0 0
        %478 = vmatprep.subr.bf16.mxu0 0
        %479 = vmatpush1.bf16.msra.mxu0 0
        %480 = vmatprep.mubr.bf16.mxu0 0
        %481 = vmatmul.mubr.bf16.gmra.mrb[0].mxu0 %v433
        %v482 = vpop.f32.mrb[0].mxu0
        %v483 = vadd.f32 0.0, %v482
        %v484 = vpop.f32.mrb[0].mxu0
        %v485 = vpop.f32.mrb[0].mxu0
        %v486 = vadd.f32 0.0, %v485
        %v487 = vpop.f32.mrb[0].mxu0
        %488 = vmatprep.mubr.bf16.mxu0 0
        %489 = vmatmul.mubr.bf16.gmra.mrb[0].mxu0 %v436
        %v490 = vpop.f32.mrb[0].mxu0
        %v491 = vadd.f32 0.0, %v490
        %v492 = vpop.f32.mrb[0].mxu0
        %v493 = vpop.f32.mrb[0].mxu0
        %v494 = vadd.f32 0.0, %v493
        %v495 = vpop.f32.mrb[0].mxu0
        %496 = vmatprep.mubr.bf16.mxu0 0
        %497 = vmatmul.mubr.bf16.gmra.mrb[0].mxu0 %v439
        %v498 = vpop.f32.mrb[0].mxu0
        %v499 = vadd.f32 0.0, %v498
        %v500 = vpop.f32.mrb[0].mxu0
        %v501 = vpop.f32.mrb[0].mxu0
        %v502 = vadd.f32 0.0, %v501
        %v503 = vpop.f32.mrb[0].mxu0
        %504 = vmatprep.mubr.bf16.mxu0 0
        %505 = vmatmul.mubr.bf16.gmra.mrb[0].mxu0 %v442
        %v506 = vpop.f32.mrb[0].mxu0
        %v507 = vadd.f32 0.0, %v506
        %v508 = vpop.f32.mrb[0].mxu0
        %v509 = vpop.f32.mrb[0].mxu0
        %v510 = vadd.f32 0.0, %v509
        %v511 = vpop.f32.mrb[0].mxu0
        %512 = vdwg.mxu0
        %v521 = vunpack.c.l.b16 %v392
        %v522 = vunpack.c.l.b16 %v393
        %v523 = vunpack.c.l.b16 %v394
        %v524 = vunpack.c.l.b16 %v395
        %v525 = vunpack.c.l.b16 %v396
        %v526 = vunpack.c.l.b16 %v397
        %v527 = vunpack.c.l.b16 %v398
        %v528 = vunpack.c.l.b16 %v399
        %v529 = vpack.c.b16 %v522, %v521
        %v530 = vpack.c.b16 %v524, %v523
        %v531 = vpack.c.b16 %v526, %v525
        %v532 = vpack.c.b16 %v528, %v527
        %v534 = vsel %vm431, %v529, 0
        %v537 = vsel %vm431, %v530, 0
        %v540 = vsel %vm431, %v531, 0
        %v543 = vsel %vm431, %v532, 0
        %v546 = vsel %vm444, %v400, 0
        %548 = vmatprep.subr.bf16.mxu0 0
        %549 = vmatpush1.bf16.msra.mxu0 %v546
        %550 = vmatprep.subr.bf16.mxu0 0
        %551 = vmatpush1.bf16.msra.mxu0 0
        %552 = vmatprep.subr.bf16.mxu0 0
        %553 = vmatpush1.bf16.msra.mxu0 0
        %554 = vmatprep.subr.bf16.mxu0 0
        %555 = vmatpush1.bf16.msra.mxu0 0
        %556 = vmatprep.subr.bf16.mxu0 0
        %557 = vmatpush1.bf16.msra.mxu0 0
        %558 = vmatprep.subr.bf16.mxu0 0
        %559 = vmatpush1.bf16.msra.mxu0 0
        %560 = vmatprep.subr.bf16.mxu0 0
        %561 = vmatpush1.bf16.msra.mxu0 0
        %562 = vmatprep.subr.bf16.mxu0 0
        %563 = vmatpush1.bf16.msra.mxu0 0
        %564 = vmatprep.subr.bf16.mxu0 0
        %565 = vmatpush1.bf16.msra.mxu0 0
        %566 = vmatprep.subr.bf16.mxu0 0
        %567 = vmatpush1.bf16.msra.mxu0 0
        %568 = vmatprep.subr.bf16.mxu0 0
        %569 = vmatpush1.bf16.msra.mxu0 0
        %570 = vmatprep.subr.bf16.mxu0 0
        %571 = vmatpush1.bf16.msra.mxu0 0
        %572 = vmatprep.subr.bf16.mxu0 0
        %573 = vmatpush1.bf16.msra.mxu0 0
        %574 = vmatprep.subr.bf16.mxu0 0
        %575 = vmatpush1.bf16.msra.mxu0 0
        %576 = vmatprep.subr.bf16.mxu0 0
        %577 = vmatpush1.bf16.msra.mxu0 0
        %578 = vmatprep.subr.bf16.mxu0 0
        %579 = vmatpush1.bf16.msra.mxu0 0
        %580 = vmatprep.mubr.bf16.mxu0 0
        %581 = vmatmul.mubr.bf16.gmra.mrb[0].mxu0 %v534
        %v582 = vpop.f32.mrb[0].mxu0
        %v583 = vadd.f32 %v483, %v582
        %v584 = vpop.f32.mrb[0].mxu0
        %v585 = vpop.f32.mrb[0].mxu0
        %v586 = vadd.f32 %v486, %v585
        %v587 = vpop.f32.mrb[0].mxu0
        %588 = vmatprep.mubr.bf16.mxu0 0
        %589 = vmatmul.mubr.bf16.gmra.mrb[0].mxu0 %v537
        %v590 = vpop.f32.mrb[0].mxu0
        %v591 = vadd.f32 %v491, %v590
        %v592 = vpop.f32.mrb[0].mxu0
        %v593 = vpop.f32.mrb[0].mxu0
        %v594 = vadd.f32 %v494, %v593
        %v595 = vpop.f32.mrb[0].mxu0
        %596 = vmatprep.mubr.bf16.mxu0 0
        %597 = vmatmul.mubr.bf16.gmra.mrb[0].mxu0 %v540
        %v598 = vpop.f32.mrb[0].mxu0
        %v599 = vadd.f32 %v499, %v598
        %v600 = vpop.f32.mrb[0].mxu0
        %v601 = vpop.f32.mrb[0].mxu0
        %v602 = vadd.f32 %v502, %v601
        %v603 = vpop.f32.mrb[0].mxu0
        %604 = vmatprep.mubr.bf16.mxu0 0
        %605 = vmatmul.mubr.bf16.gmra.mrb[0].mxu0 %v543
        %v606 = vpop.f32.mrb[0].mxu0
        %v607 = vadd.f32 %v507, %v606
        %v608 = vpop.f32.mrb[0].mxu0
        %v609 = vpop.f32.mrb[0].mxu0
        %v610 = vadd.f32 %v510, %v609
        %v611 = vpop.f32.mrb[0].mxu0
        %612 = vdwg.mxu0
        %v613 = vld [vmem:[%s375] sm:$0xf]
        %v614 = vld [vmem:[%s375 + $0x4] sm:$0x1]
        %v615 = vld [vmem:[%s375 + $0x8] sm:$0xf]
        %v616 = vld [vmem:[%s375 + $0xc] sm:$0x1]
        %v617 = vld [vmem:[%s375 + $0x10] sm:$0xf]
        %v618 = vld [vmem:[%s375 + $0x14] sm:$0x1]
        %v619 = vld [vmem:[%s375 + $0x18] sm:$0xf]
        %v620 = vld [vmem:[%s375 + $0x1c] sm:$0x1]
        %v621 = vld [vmem:[%s375 + $0x20] sm:$0xf]
        %v622 = vld [vmem:[%s375 + $0x24] sm:$0x1]
        %v623 = vld [vmem:[%s375 + $0x28] sm:$0xf]
        %v624 = vld [vmem:[%s375 + $0x2c] sm:$0x1]
        %v625 = vld [vmem:[%s375 + $0x30] sm:$0xf]
        %v626 = vld [vmem:[%s375 + $0x34] sm:$0x1]
        %v627 = vld [vmem:[%s375 + $0x38] sm:$0xf]
        %v628 = vld [vmem:[%s375 + $0x3c] sm:$0x1]
        %vm629 = vsmask.f32 3328
        %vm630 = vsmask.f32 7440
        %vm631 = vmor %vm629, %vm630
        %v633 = vshrl.u32 %v613, 16
        %v635 = vrot.slane %v633, 4
        %v636 = vshll.u32 %v613, 16
        %v638 = vrot.slane %v636, 5
        %v639 = vor.u32 %v635, %v638
        %v640 = vrot.slane %v639, 4
        %v642 = vshll.u32 %v614, 16
        %v644 = vrot.slane %v642, 5
        %v645 = vsel %vm631, %v640, %v644
        %v647 = vshrl.u32 %v615, 16
        %v649 = vrot.slane %v647, 4
        %v650 = vshll.u32 %v615, 16
        %v652 = vrot.slane %v650, 5
        %v653 = vor.u32 %v649, %v652
        %v654 = vrot.slane %v653, 4
        %v656 = vshll.u32 %v616, 16
        %v658 = vrot.slane %v656, 5
        %v659 = vsel %vm631, %v654, %v658
        %v661 = vshrl.u32 %v617, 16
        %v663 = vrot.slane %v661, 4
        %v664 = vshll.u32 %v617, 16
        %v666 = vrot.slane %v664, 5
        %v667 = vor.u32 %v663, %v666
        %v668 = vrot.slane %v667, 4
        %v670 = vshll.u32 %v618, 16
        %v672 = vrot.slane %v670, 5
        %v673 = vsel %vm631, %v668, %v672
        %v675 = vshrl.u32 %v619, 16
        %v677 = vrot.slane %v675, 4
        %v678 = vshll.u32 %v619, 16
        %v680 = vrot.slane %v678, 5
        %v681 = vor.u32 %v677, %v680
        %v682 = vrot.slane %v681, 4
        %v684 = vshll.u32 %v620, 16
        %v686 = vrot.slane %v684, 5
        %v687 = vsel %vm631, %v682, %v686
        %v689 = vshrl.u32 %v621, 16
        %v691 = vrot.slane %v689, 4
        %v692 = vshll.u32 %v621, 16
        %v694 = vrot.slane %v692, 5
        %v695 = vor.u32 %v691, %v694
        %v696 = vrot.slane %v695, 4
        %v698 = vshll.u32 %v622, 16
        %v700 = vrot.slane %v698, 5
        %v701 = vsel %vm631, %v696, %v700
        %v703 = vshrl.u32 %v623, 16
        %v705 = vrot.slane %v703, 4
        %v706 = vshll.u32 %v623, 16
        %v708 = vrot.slane %v706, 5
        %v709 = vor.u32 %v705, %v708
        %v710 = vrot.slane %v709, 4
        %v712 = vshll.u32 %v624, 16
        %v714 = vrot.slane %v712, 5
        %v715 = vsel %vm631, %v710, %v714
        %v717 = vshrl.u32 %v625, 16
        %v719 = vrot.slane %v717, 4
        %v720 = vshll.u32 %v625, 16
        %v722 = vrot.slane %v720, 5
        %v723 = vor.u32 %v719, %v722
        %v724 = vrot.slane %v723, 4
        %v726 = vshll.u32 %v626, 16
        %v728 = vrot.slane %v726, 5
        %v729 = vsel %vm631, %v724, %v728
        %v731 = vshrl.u32 %v627, 16
        %v733 = vrot.slane %v731, 4
        %v734 = vshll.u32 %v627, 16
        %v736 = vrot.slane %v734, 5
        %v737 = vor.u32 %v733, %v736
        %v738 = vrot.slane %v737, 4
        %v740 = vshll.u32 %v628, 16
        %v742 = vrot.slane %v740, 5
        %v743 = vsel %vm631, %v738, %v742
        %s744 = scalar_lea.vmem %s4, 4
        %v745 = vld [vmem:[%s744] sm:$0x3]
        %v746 = vunpack.c.l.b16 %v645
        %v747 = vunpack.c.l.b16 %v659
        %v748 = vunpack.c.l.b16 %v673
        %v749 = vunpack.c.l.b16 %v687
        %v750 = vunpack.c.l.b16 %v701
        %v751 = vunpack.c.l.b16 %v715
        %v752 = vunpack.c.l.b16 %v729
        %v753 = vunpack.c.l.b16 %v743
        %v754 = vpack.c.b16 %v747, %v746
        %v755 = vpack.c.b16 %v749, %v748
        %v756 = vpack.c.b16 %v751, %v750
        %v757 = vpack.c.b16 %v753, %v752
        %v759 = vsel %vm431, %v754, 0
        %v762 = vsel %vm431, %v755, 0
        %v765 = vsel %vm431, %v756, 0
        %v768 = vsel %vm431, %v757, 0
        %v771 = vsel %vm444, %v745, 0
        %773 = vmatprep.subr.bf16.mxu0 0
        %774 = vmatpush1.bf16.msra.mxu0 %v771
        %775 = vmatprep.subr.bf16.mxu0 0
        %776 = vmatpush1.bf16.msra.mxu0 0
        %777 = vmatprep.subr.bf16.mxu0 0
        %778 = vmatpush1.bf16.msra.mxu0 0
        %779 = vmatprep.subr.bf16.mxu0 0
        %780 = vmatpush1.bf16.msra.mxu0 0
        %781 = vmatprep.subr.bf16.mxu0 0
        %782 = vmatpush1.bf16.msra.mxu0 0
        %783 = vmatprep.subr.bf16.mxu0 0
        %784 = vmatpush1.bf16.msra.mxu0 0
        %785 = vmatprep.subr.bf16.mxu0 0
        %786 = vmatpush1.bf16.msra.mxu0 0
        %787 = vmatprep.subr.bf16.mxu0 0
        %788 = vmatpush1.bf16.msra.mxu0 0
        %789 = vmatprep.subr.bf16.mxu0 0
        %790 = vmatpush1.bf16.msra.mxu0 0
        %791 = vmatprep.subr.bf16.mxu0 0
        %792 = vmatpush1.bf16.msra.mxu0 0
        %793 = vmatprep.subr.bf16.mxu0 0
        %794 = vmatpush1.bf16.msra.mxu0 0
        %795 = vmatprep.subr.bf16.mxu0 0
        %796 = vmatpush1.bf16.msra.mxu0 0
        %797 = vmatprep.subr.bf16.mxu0 0
        %798 = vmatpush1.bf16.msra.mxu0 0
        %799 = vmatprep.subr.bf16.mxu0 0
        %800 = vmatpush1.bf16.msra.mxu0 0
        %801 = vmatprep.subr.bf16.mxu0 0
        %802 = vmatpush1.bf16.msra.mxu0 0
        %803 = vmatprep.subr.bf16.mxu0 0
        %804 = vmatpush1.bf16.msra.mxu0 0
        %805 = vmatprep.mubr.bf16.mxu0 0
        %806 = vmatmul.mubr.bf16.gmra.mrb[0].mxu0 %v759
        %v807 = vpop.f32.mrb[0].mxu0
        %v808 = vadd.f32 0.0, %v807
        %v809 = vpop.f32.mrb[0].mxu0
        %v810 = vpop.f32.mrb[0].mxu0
        %v811 = vadd.f32 0.0, %v810
        %v812 = vpop.f32.mrb[0].mxu0
        %813 = vmatprep.mubr.bf16.mxu0 0
        %814 = vmatmul.mubr.bf16.gmra.mrb[0].mxu0 %v762
        %v815 = vpop.f32.mrb[0].mxu0
        %v816 = vadd.f32 0.0, %v815
        %v817 = vpop.f32.mrb[0].mxu0
        %v818 = vpop.f32.mrb[0].mxu0
        %v819 = vadd.f32 0.0, %v818
        %v820 = vpop.f32.mrb[0].mxu0
        %821 = vmatprep.mubr.bf16.mxu0 0
        %822 = vmatmul.mubr.bf16.gmra.mrb[0].mxu0 %v765
        %v823 = vpop.f32.mrb[0].mxu0
        %v824 = vadd.f32 0.0, %v823
        %v825 = vpop.f32.mrb[0].mxu0
        %v826 = vpop.f32.mrb[0].mxu0
        %v827 = vadd.f32 0.0, %v826
        %v828 = vpop.f32.mrb[0].mxu0
        %829 = vmatprep.mubr.bf16.mxu0 0
        %830 = vmatmul.mubr.bf16.gmra.mrb[0].mxu0 %v768
        %v831 = vpop.f32.mrb[0].mxu0
        %v832 = vadd.f32 0.0, %v831
        %v833 = vpop.f32.mrb[0].mxu0
        %v834 = vpop.f32.mrb[0].mxu0
        %v835 = vadd.f32 0.0, %v834
        %v836 = vpop.f32.mrb[0].mxu0
        %837 = vdwg.mxu0
        %v838 = vadd.f32 %v583, %v808
        %v839 = vadd.f32 %v586, %v811
        %v840 = vadd.f32 %v591, %v816
        %v841 = vadd.f32 %v594, %v819
        %v842 = vadd.f32 %v599, %v824
        %v843 = vadd.f32 %v602, %v827
        %v844 = vadd.f32 %v607, %v832
        %v845 = vadd.f32 %v610, %v835
        %v846 = vld [vmem:[%s385] sm:$0xf]
        %v847 = vld [vmem:[%s385 + $0x8] sm:$0xf]
        %v848 = vld [vmem:[%s385 + $0x10] sm:$0xf]
        %v849 = vld [vmem:[%s385 + $0x18] sm:$0xf]
        %v850 = vld [vmem:[%s385 + $0x20] sm:$0xf]
        %v851 = vld [vmem:[%s385 + $0x28] sm:$0xf]
        %v852 = vld [vmem:[%s385 + $0x30] sm:$0xf]
        %v853 = vld [vmem:[%s385 + $0x38] sm:$0xf]
        %s854 = scalar_lea.vmem %s4, 6
        %v855 = vld [vmem:[%s854] sm:$0x3]
        %v864 = vunpack.c.l.b16 %v846
        %v865 = vunpack.c.l.b16 %v847
        %v866 = vunpack.c.l.b16 %v848
        %v867 = vunpack.c.l.b16 %v849
        %v868 = vunpack.c.l.b16 %v850
        %v869 = vunpack.c.l.b16 %v851
        %v870 = vunpack.c.l.b16 %v852
        %v871 = vunpack.c.l.b16 %v853
        %v872 = vpack.c.b16 %v865, %v864
        %v873 = vpack.c.b16 %v867, %v866
        %v874 = vpack.c.b16 %v869, %v868
        %v875 = vpack.c.b16 %v871, %v870
        %v877 = vsel %vm431, %v872, 0
        %v880 = vsel %vm431, %v873, 0
        %v883 = vsel %vm431, %v874, 0
        %v886 = vsel %vm431, %v875, 0
        %v889 = vsel %vm444, %v855, 0
        %891 = vmatprep.subr.bf16.mxu0 0
        %892 = vmatpush1.bf16.msra.mxu0 %v889
        %893 = vmatprep.subr.bf16.mxu0 0
        %894 = vmatpush1.bf16.msra.mxu0 0
        %895 = vmatprep.subr.bf16.mxu0 0
        %896 = vmatpush1.bf16.msra.mxu0 0
        %897 = vmatprep.subr.bf16.mxu0 0
        %898 = vmatpush1.bf16.msra.mxu0 0
        %899 = vmatprep.subr.bf16.mxu0 0
        %900 = vmatpush1.bf16.msra.mxu0 0
        %901 = vmatprep.subr.bf16.mxu0 0
        %902 = vmatpush1.bf16.msra.mxu0 0
        %903 = vmatprep.subr.bf16.mxu0 0
        %904 = vmatpush1.bf16.msra.mxu0 0
        %905 = vmatprep.subr.bf16.mxu0 0
        %906 = vmatpush1.bf16.msra.mxu0 0
        %907 = vmatprep.subr.bf16.mxu0 0
        %908 = vmatpush1.bf16.msra.mxu0 0
        %909 = vmatprep.subr.bf16.mxu0 0
        %910 = vmatpush1.bf16.msra.mxu0 0
        %911 = vmatprep.subr.bf16.mxu0 0
        %912 = vmatpush1.bf16.msra.mxu0 0
        %913 = vmatprep.subr.bf16.mxu0 0
        %914 = vmatpush1.bf16.msra.mxu0 0
        %915 = vmatprep.subr.bf16.mxu0 0
        %916 = vmatpush1.bf16.msra.mxu0 0
        %917 = vmatprep.subr.bf16.mxu0 0
        %918 = vmatpush1.bf16.msra.mxu0 0
        %919 = vmatprep.subr.bf16.mxu0 0
        %920 = vmatpush1.bf16.msra.mxu0 0
        %921 = vmatprep.subr.bf16.mxu0 0
        %922 = vmatpush1.bf16.msra.mxu0 0
        %923 = vmatprep.mubr.bf16.mxu0 0
        %924 = vmatmul.mubr.bf16.gmra.mrb[0].mxu0 %v877
        %v925 = vpop.f32.mrb[0].mxu0
        %v926 = vadd.f32 0.0, %v925
        %v927 = vpop.f32.mrb[0].mxu0
        %v928 = vpop.f32.mrb[0].mxu0
        %v929 = vadd.f32 0.0, %v928
        %v930 = vpop.f32.mrb[0].mxu0
        %931 = vmatprep.mubr.bf16.mxu0 0
        %932 = vmatmul.mubr.bf16.gmra.mrb[0].mxu0 %v880
        %v933 = vpop.f32.mrb[0].mxu0
        %v934 = vadd.f32 0.0, %v933
        %v935 = vpop.f32.mrb[0].mxu0
        %v936 = vpop.f32.mrb[0].mxu0
        %v937 = vadd.f32 0.0, %v936
        %v938 = vpop.f32.mrb[0].mxu0
        %939 = vmatprep.mubr.bf16.mxu0 0
        %940 = vmatmul.mubr.bf16.gmra.mrb[0].mxu0 %v883
        %v941 = vpop.f32.mrb[0].mxu0
        %v942 = vadd.f32 0.0, %v941
        %v943 = vpop.f32.mrb[0].mxu0
        %v944 = vpop.f32.mrb[0].mxu0
        %v945 = vadd.f32 0.0, %v944
        %v946 = vpop.f32.mrb[0].mxu0
        %947 = vmatprep.mubr.bf16.mxu0 0
        %948 = vmatmul.mubr.bf16.gmra.mrb[0].mxu0 %v886
        %v949 = vpop.f32.mrb[0].mxu0
        %v950 = vadd.f32 0.0, %v949
        %v951 = vpop.f32.mrb[0].mxu0
        %v952 = vpop.f32.mrb[0].mxu0
        %v953 = vadd.f32 0.0, %v952
        %v954 = vpop.f32.mrb[0].mxu0
        %955 = vdwg.mxu0
        %v956 = vadd.f32 %v838, %v926
        %v957 = vadd.f32 %v839, %v929
        %v958 = vadd.f32 %v840, %v934
        %v959 = vadd.f32 %v841, %v937
        %v960 = vadd.f32 %v842, %v942
        %v961 = vadd.f32 %v843, %v945
        %v962 = vadd.f32 %v844, %v950
        %v963 = vadd.f32 %v845, %v953
        %v964 = vld [vmem:[%s390] sm:$0xf]
        %v965 = vld [vmem:[%s390 + $0x8] sm:$0xf]
        %v966 = vld [vmem:[%s390 + $0x10] sm:$0xf]
        %v967 = vld [vmem:[%s390 + $0x18] sm:$0xf]
        %v968 = vld [vmem:[%s390 + $0x20] sm:$0xf]
        %v969 = vld [vmem:[%s390 + $0x28] sm:$0xf]
        %v970 = vld [vmem:[%s390 + $0x30] sm:$0xf]
        %v971 = vld [vmem:[%s390 + $0x38] sm:$0xf]
        %s972 = scalar_lea.vmem %s4, 8
        %v973 = vld [vmem:[%s972] sm:$0x3]
        %v982 = vunpack.c.l.b16 %v964
        %v983 = vunpack.c.l.b16 %v965
        %v984 = vunpack.c.l.b16 %v966
        %v985 = vunpack.c.l.b16 %v967
        %v986 = vunpack.c.l.b16 %v968
        %v987 = vunpack.c.l.b16 %v969
        %v988 = vunpack.c.l.b16 %v970
        %v989 = vunpack.c.l.b16 %v971
        %v990 = vpack.c.b16 %v983, %v982
        %v991 = vpack.c.b16 %v985, %v984
        %v992 = vpack.c.b16 %v987, %v986
        %v993 = vpack.c.b16 %v989, %v988
        %v995 = vsel %vm431, %v990, 0
        %v998 = vsel %vm431, %v991, 0
        %v1001 = vsel %vm431, %v992, 0
        %v1004 = vsel %vm431, %v993, 0
        %v1007 = vsel %vm444, %v973, 0
        %1009 = vmatprep.subr.bf16.mxu0 0
        %1010 = vmatpush1.bf16.msra.mxu0 %v1007
        %1011 = vmatprep.subr.bf16.mxu0 0
        %1012 = vmatpush1.bf16.msra.mxu0 0
        %1013 = vmatprep.subr.bf16.mxu0 0
        %1014 = vmatpush1.bf16.msra.mxu0 0
        %1015 = vmatprep.subr.bf16.mxu0 0
        %1016 = vmatpush1.bf16.msra.mxu0 0
        %1017 = vmatprep.subr.bf16.mxu0 0
        %1018 = vmatpush1.bf16.msra.mxu0 0
        %1019 = vmatprep.subr.bf16.mxu0 0
        %1020 = vmatpush1.bf16.msra.mxu0 0
        %1021 = vmatprep.subr.bf16.mxu0 0
        %1022 = vmatpush1.bf16.msra.mxu0 0
        %1023 = vmatprep.subr.bf16.mxu0 0
        %1024 = vmatpush1.bf16.msra.mxu0 0
        %1025 = vmatprep.subr.bf16.mxu0 0
        %1026 = vmatpush1.bf16.msra.mxu0 0
        %1027 = vmatprep.subr.bf16.mxu0 0
        %1028 = vmatpush1.bf16.msra.mxu0 0
        %1029 = vmatprep.subr.bf16.mxu0 0
        %1030 = vmatpush1.bf16.msra.mxu0 0
        %1031 = vmatprep.subr.bf16.mxu0 0
        %1032 = vmatpush1.bf16.msra.mxu0 0
        %1033 = vmatprep.subr.bf16.mxu0 0
        %1034 = vmatpush1.bf16.msra.mxu0 0
        %1035 = vmatprep.subr.bf16.mxu0 0
        %1036 = vmatpush1.bf16.msra.mxu0 0
        %1037 = vmatprep.subr.bf16.mxu0 0
        %1038 = vmatpush1.bf16.msra.mxu0 0
        %1039 = vmatprep.subr.bf16.mxu0 0
        %1040 = vmatpush1.bf16.msra.mxu0 0
        %1041 = vmatprep.mubr.bf16.mxu0 0
        %1042 = vmatmul.mubr.bf16.gmra.mrb[0].mxu0 %v995
        %v1043 = vpop.f32.mrb[0].mxu0
        %v1044 = vadd.f32 0.0, %v1043
        %v1045 = vpop.f32.mrb[0].mxu0
        %v1046 = vpop.f32.mrb[0].mxu0
        %v1047 = vadd.f32 0.0, %v1046
        %v1048 = vpop.f32.mrb[0].mxu0
        %1049 = vmatprep.mubr.bf16.mxu0 0
        %1050 = vmatmul.mubr.bf16.gmra.mrb[0].mxu0 %v998
        %v1051 = vpop.f32.mrb[0].mxu0
        %v1052 = vadd.f32 0.0, %v1051
        %v1053 = vpop.f32.mrb[0].mxu0
        %v1054 = vpop.f32.mrb[0].mxu0
        %v1055 = vadd.f32 0.0, %v1054
        %v1056 = vpop.f32.mrb[0].mxu0
        %1057 = vmatprep.mubr.bf16.mxu0 0
        %1058 = vmatmul.mubr.bf16.gmra.mrb[0].mxu0 %v1001
        %v1059 = vpop.f32.mrb[0].mxu0
        %v1060 = vadd.f32 0.0, %v1059
        %v1061 = vpop.f32.mrb[0].mxu0
        %v1062 = vpop.f32.mrb[0].mxu0
        %v1063 = vadd.f32 0.0, %v1062
        %v1064 = vpop.f32.mrb[0].mxu0
        %1065 = vmatprep.mubr.bf16.mxu0 0
        %1066 = vmatmul.mubr.bf16.gmra.mrb[0].mxu0 %v1004
        %v1067 = vpop.f32.mrb[0].mxu0
        %v1068 = vadd.f32 0.0, %v1067
        %v1069 = vpop.f32.mrb[0].mxu0
        %v1070 = vpop.f32.mrb[0].mxu0
        %v1071 = vadd.f32 0.0, %v1070
        %v1072 = vpop.f32.mrb[0].mxu0
        %1073 = vdwg.mxu0
        %v1074 = vadd.f32 %v956, %v1044
        %v1075 = vadd.f32 %v957, %v1047
        %v1076 = vadd.f32 %v958, %v1052
        %v1077 = vadd.f32 %v959, %v1055
        %v1078 = vadd.f32 %v960, %v1060
        %v1079 = vadd.f32 %v961, %v1063
        %v1080 = vadd.f32 %v962, %v1068
        %v1081 = vadd.f32 %v963, %v1071
        %v1082 = vld [vmem:[%s385] sm:$0xf]
        %v1083 = vld [vmem:[%s385 + $0x4] sm:$0x1]
        %v1084 = vld [vmem:[%s385 + $0x8] sm:$0xf]
        %v1085 = vld [vmem:[%s385 + $0xc] sm:$0x1]
        %v1086 = vld [vmem:[%s385 + $0x10] sm:$0xf]
        %v1087 = vld [vmem:[%s385 + $0x14] sm:$0x1]
        %v1088 = vld [vmem:[%s385 + $0x18] sm:$0xf]
        %v1089 = vld [vmem:[%s385 + $0x1c] sm:$0x1]
        %v1090 = vld [vmem:[%s385 + $0x20] sm:$0xf]
        %v1091 = vld [vmem:[%s385 + $0x24] sm:$0x1]
        %v1092 = vld [vmem:[%s385 + $0x28] sm:$0xf]
        %v1093 = vld [vmem:[%s385 + $0x2c] sm:$0x1]
        %v1094 = vld [vmem:[%s385 + $0x30] sm:$0xf]
        %v1095 = vld [vmem:[%s385 + $0x34] sm:$0x1]
        %v1096 = vld [vmem:[%s385 + $0x38] sm:$0xf]
        %v1097 = vld [vmem:[%s385 + $0x3c] sm:$0x1]
        %v1099 = vshrl.u32 %v1082, 16
        %v1101 = vrot.slane %v1099, 4
        %v1102 = vshll.u32 %v1082, 16
        %v1104 = vrot.slane %v1102, 5
        %v1105 = vor.u32 %v1101, %v1104
        %v1106 = vrot.slane %v1105, 4
        %v1108 = vshll.u32 %v1083, 16
        %v1110 = vrot.slane %v1108, 5
        %v1111 = vsel %vm631, %v1106, %v1110
        %v1113 = vshrl.u32 %v1084, 16
        %v1115 = vrot.slane %v1113, 4
        %v1116 = vshll.u32 %v1084, 16
        %v1118 = vrot.slane %v1116, 5
        %v1119 = vor.u32 %v1115, %v1118
        %v1120 = vrot.slane %v1119, 4
        %v1122 = vshll.u32 %v1085, 16
        %v1124 = vrot.slane %v1122, 5
        %v1125 = vsel %vm631, %v1120, %v1124
        %v1127 = vshrl.u32 %v1086, 16
        %v1129 = vrot.slane %v1127, 4
        %v1130 = vshll.u32 %v1086, 16
        %v1132 = vrot.slane %v1130, 5
        %v1133 = vor.u32 %v1129, %v1132
        %v1134 = vrot.slane %v1133, 4
        %v1136 = vshll.u32 %v1087, 16
        %v1138 = vrot.slane %v1136, 5
        %v1139 = vsel %vm631, %v1134, %v1138
        %v1141 = vshrl.u32 %v1088, 16
        %v1143 = vrot.slane %v1141, 4
        %v1144 = vshll.u32 %v1088, 16
        %v1146 = vrot.slane %v1144, 5
        %v1147 = vor.u32 %v1143, %v1146
        %v1148 = vrot.slane %v1147, 4
        %v1150 = vshll.u32 %v1089, 16
        %v1152 = vrot.slane %v1150, 5
        %v1153 = vsel %vm631, %v1148, %v1152
        %v1155 = vshrl.u32 %v1090, 16
        %v1157 = vrot.slane %v1155, 4
        %v1158 = vshll.u32 %v1090, 16
        %v1160 = vrot.slane %v1158, 5
        %v1161 = vor.u32 %v1157, %v1160
        %v1162 = vrot.slane %v1161, 4
        %v1164 = vshll.u32 %v1091, 16
        %v1166 = vrot.slane %v1164, 5
        %v1167 = vsel %vm631, %v1162, %v1166
        %v1169 = vshrl.u32 %v1092, 16
        %v1171 = vrot.slane %v1169, 4
        %v1172 = vshll.u32 %v1092, 16
        %v1174 = vrot.slane %v1172, 5
        %v1175 = vor.u32 %v1171, %v1174
        %v1176 = vrot.slane %v1175, 4
        %v1178 = vshll.u32 %v1093, 16
        %v1180 = vrot.slane %v1178, 5
        %v1181 = vsel %vm631, %v1176, %v1180
        %v1183 = vshrl.u32 %v1094, 16
        %v1185 = vrot.slane %v1183, 4
        %v1186 = vshll.u32 %v1094, 16
        %v1188 = vrot.slane %v1186, 5
        %v1189 = vor.u32 %v1185, %v1188
        %v1190 = vrot.slane %v1189, 4
        %v1192 = vshll.u32 %v1095, 16
        %v1194 = vrot.slane %v1192, 5
        %v1195 = vsel %vm631, %v1190, %v1194
        %v1197 = vshrl.u32 %v1096, 16
        %v1199 = vrot.slane %v1197, 4
        %v1200 = vshll.u32 %v1096, 16
        %v1202 = vrot.slane %v1200, 5
        %v1203 = vor.u32 %v1199, %v1202
        %v1204 = vrot.slane %v1203, 4
        %v1206 = vshll.u32 %v1097, 16
        %v1208 = vrot.slane %v1206, 5
        %v1209 = vsel %vm631, %v1204, %v1208
        %s1210 = scalar_lea.vmem %s4, 10
        %v1211 = vld [vmem:[%s1210] sm:$0x3]
        %v1212 = vunpack.c.l.b16 %v1111
        %v1213 = vunpack.c.l.b16 %v1125
        %v1214 = vunpack.c.l.b16 %v1139
        %v1215 = vunpack.c.l.b16 %v1153
        %v1216 = vunpack.c.l.b16 %v1167
        %v1217 = vunpack.c.l.b16 %v1181
        %v1218 = vunpack.c.l.b16 %v1195
        %v1219 = vunpack.c.l.b16 %v1209
        %v1220 = vpack.c.b16 %v1213, %v1212
        %v1221 = vpack.c.b16 %v1215, %v1214
        %v1222 = vpack.c.b16 %v1217, %v1216
        %v1223 = vpack.c.b16 %v1219, %v1218
        %v1225 = vsel %vm431, %v1220, 0
        %v1228 = vsel %vm431, %v1221, 0
        %v1231 = vsel %vm431, %v1222, 0
        %v1234 = vsel %vm431, %v1223, 0
        %v1237 = vsel %vm444, %v1211, 0
        %1239 = vmatprep.subr.bf16.mxu0 0
        %1240 = vmatpush1.bf16.msra.mxu0 %v1237
        %1241 = vmatprep.subr.bf16.mxu0 0
        %1242 = vmatpush1.bf16.msra.mxu0 0
        %1243 = vmatprep.subr.bf16.mxu0 0
        %1244 = vmatpush1.bf16.msra.mxu0 0
        %1245 = vmatprep.subr.bf16.mxu0 0
        %1246 = vmatpush1.bf16.msra.mxu0 0
        %1247 = vmatprep.subr.bf16.mxu0 0
        %1248 = vmatpush1.bf16.msra.mxu0 0
        %1249 = vmatprep.subr.bf16.mxu0 0
        %1250 = vmatpush1.bf16.msra.mxu0 0
        %1251 = vmatprep.subr.bf16.mxu0 0
        %1252 = vmatpush1.bf16.msra.mxu0 0
        %1253 = vmatprep.subr.bf16.mxu0 0
        %1254 = vmatpush1.bf16.msra.mxu0 0
        %1255 = vmatprep.subr.bf16.mxu0 0
        %1256 = vmatpush1.bf16.msra.mxu0 0
        %1257 = vmatprep.subr.bf16.mxu0 0
        %1258 = vmatpush1.bf16.msra.mxu0 0
        %1259 = vmatprep.subr.bf16.mxu0 0
        %1260 = vmatpush1.bf16.msra.mxu0 0
        %1261 = vmatprep.subr.bf16.mxu0 0
        %1262 = vmatpush1.bf16.msra.mxu0 0
        %1263 = vmatprep.subr.bf16.mxu0 0
        %1264 = vmatpush1.bf16.msra.mxu0 0
        %1265 = vmatprep.subr.bf16.mxu0 0
        %1266 = vmatpush1.bf16.msra.mxu0 0
        %1267 = vmatprep.subr.bf16.mxu0 0
        %1268 = vmatpush1.bf16.msra.mxu0 0
        %1269 = vmatprep.subr.bf16.mxu0 0
        %1270 = vmatpush1.bf16.msra.mxu0 0
        %1271 = vmatprep.mubr.bf16.mxu0 0
        %1272 = vmatmul.mubr.bf16.gmra.mrb[0].mxu0 %v1225
        %v1273 = vpop.f32.mrb[0].mxu0
        %v1274 = vadd.f32 0.0, %v1273
        %v1275 = vpop.f32.mrb[0].mxu0
        %v1276 = vpop.f32.mrb[0].mxu0
        %v1277 = vadd.f32 0.0, %v1276
        %v1278 = vpop.f32.mrb[0].mxu0
        %1279 = vmatprep.mubr.bf16.mxu0 0
        %1280 = vmatmul.mubr.bf16.gmra.mrb[0].mxu0 %v1228
        %v1281 = vpop.f32.mrb[0].mxu0
        %v1282 = vadd.f32 0.0, %v1281
        %v1283 = vpop.f32.mrb[0].mxu0
        %v1284 = vpop.f32.mrb[0].mxu0
        %v1285 = vadd.f32 0.0, %v1284
        %v1286 = vpop.f32.mrb[0].mxu0
        %1287 = vmatprep.mubr.bf16.mxu0 0
        %1288 = vmatmul.mubr.bf16.gmra.mrb[0].mxu0 %v1231
        %v1289 = vpop.f32.mrb[0].mxu0
        %v1290 = vadd.f32 0.0, %v1289
        %v1291 = vpop.f32.mrb[0].mxu0
        %v1292 = vpop.f32.mrb[0].mxu0
        %v1293 = vadd.f32 0.0, %v1292
        %v1294 = vpop.f32.mrb[0].mxu0
        %1295 = vmatprep.mubr.bf16.mxu0 0
        %1296 = vmatmul.mubr.bf16.gmra.mrb[0].mxu0 %v1234
        %v1297 = vpop.f32.mrb[0].mxu0
        %v1298 = vadd.f32 0.0, %v1297
        %v1299 = vpop.f32.mrb[0].mxu0
        %v1300 = vpop.f32.mrb[0].mxu0
        %v1301 = vadd.f32 0.0, %v1300
        %v1302 = vpop.f32.mrb[0].mxu0
        %1303 = vdwg.mxu0
        %v1304 = vadd.f32 %v1074, %v1274
        %v1305 = vadd.f32 %v1075, %v1277
        %v1306 = vadd.f32 %v1076, %v1282
        %v1307 = vadd.f32 %v1077, %v1285
        %v1308 = vadd.f32 %v1078, %v1290
        %v1309 = vadd.f32 %v1079, %v1293
        %v1310 = vadd.f32 %v1080, %v1298
        %v1311 = vadd.f32 %v1081, %v1301
        %s1312 = scalar_lea.vmem %s375, 8
        %v1313 = vld [vmem:[%s1312] sm:$0xf]
        %v1314 = vld [vmem:[%s1312 + $0x8] sm:$0xf]
        %v1315 = vld [vmem:[%s1312 + $0x10] sm:$0xf]
        %v1316 = vld [vmem:[%s1312 + $0x18] sm:$0xf]
        %v1317 = vld [vmem:[%s1312 + $0x20] sm:$0xf]
        %v1318 = vld [vmem:[%s1312 + $0x28] sm:$0xf]
        %v1319 = vld [vmem:[%s1312 + $0x30] sm:$0xf]
        %v1320 = vld [vmem:[%s1312 + $0x38] sm:$0xf]
        %s1321 = scalar_lea.vmem %s4, 12
        %v1322 = vld [vmem:[%s1321] sm:$0x3]
        %v1331 = vunpack.c.l.b16 %v1313
        %v1332 = vunpack.c.l.b16 %v1314
        %v1333 = vunpack.c.l.b16 %v1315
        %v1334 = vunpack.c.l.b16 %v1316
        %v1335 = vunpack.c.l.b16 %v1317
        %v1336 = vunpack.c.l.b16 %v1318
        %v1337 = vunpack.c.l.b16 %v1319
        %v1338 = vunpack.c.l.b16 %v1320
        %v1339 = vpack.c.b16 %v1332, %v1331
        %v1340 = vpack.c.b16 %v1334, %v1333
        %v1341 = vpack.c.b16 %v1336, %v1335
        %v1342 = vpack.c.b16 %v1338, %v1337
        %v1344 = vsel %vm431, %v1339, 0
        %v1347 = vsel %vm431, %v1340, 0
        %v1350 = vsel %vm431, %v1341, 0
        %v1353 = vsel %vm431, %v1342, 0
        %v1356 = vsel %vm444, %v1322, 0
        %1358 = vmatprep.subr.bf16.mxu0 0
        %1359 = vmatpush1.bf16.msra.mxu0 %v1356
        %1360 = vmatprep.subr.bf16.mxu0 0
        %1361 = vmatpush1.bf16.msra.mxu0 0
        %1362 = vmatprep.subr.bf16.mxu0 0
        %1363 = vmatpush1.bf16.msra.mxu0 0
        %1364 = vmatprep.subr.bf16.mxu0 0
        %1365 = vmatpush1.bf16.msra.mxu0 0
        %1366 = vmatprep.subr.bf16.mxu0 0
        %1367 = vmatpush1.bf16.msra.mxu0 0
        %1368 = vmatprep.subr.bf16.mxu0 0
        %1369 = vmatpush1.bf16.msra.mxu0 0
        %1370 = vmatprep.subr.bf16.mxu0 0
        %1371 = vmatpush1.bf16.msra.mxu0 0
        %1372 = vmatprep.subr.bf16.mxu0 0
        %1373 = vmatpush1.bf16.msra.mxu0 0
        %1374 = vmatprep.subr.bf16.mxu0 0
        %1375 = vmatpush1.bf16.msra.mxu0 0
        %1376 = vmatprep.subr.bf16.mxu0 0
        %1377 = vmatpush1.bf16.msra.mxu0 0
        %1378 = vmatprep.subr.bf16.mxu0 0
        %1379 = vmatpush1.bf16.msra.mxu0 0
        %1380 = vmatprep.subr.bf16.mxu0 0
        %1381 = vmatpush1.bf16.msra.mxu0 0
        %1382 = vmatprep.subr.bf16.mxu0 0
        %1383 = vmatpush1.bf16.msra.mxu0 0
        %1384 = vmatprep.subr.bf16.mxu0 0
        %1385 = vmatpush1.bf16.msra.mxu0 0
        %1386 = vmatprep.subr.bf16.mxu0 0
        %1387 = vmatpush1.bf16.msra.mxu0 0
        %1388 = vmatprep.subr.bf16.mxu0 0
        %1389 = vmatpush1.bf16.msra.mxu0 0
        %1390 = vmatprep.mubr.bf16.mxu0 0
        %1391 = vmatmul.mubr.bf16.gmra.mrb[0].mxu0 %v1344
        %v1392 = vpop.f32.mrb[0].mxu0
        %v1393 = vadd.f32 0.0, %v1392
        %v1394 = vpop.f32.mrb[0].mxu0
        %v1395 = vpop.f32.mrb[0].mxu0
        %v1396 = vadd.f32 0.0, %v1395
        %v1397 = vpop.f32.mrb[0].mxu0
        %1398 = vmatprep.mubr.bf16.mxu0 0
        %1399 = vmatmul.mubr.bf16.gmra.mrb[0].mxu0 %v1347
        %v1400 = vpop.f32.mrb[0].mxu0
        %v1401 = vadd.f32 0.0, %v1400
        %v1402 = vpop.f32.mrb[0].mxu0
        %v1403 = vpop.f32.mrb[0].mxu0
        %v1404 = vadd.f32 0.0, %v1403
        %v1405 = vpop.f32.mrb[0].mxu0
        %1406 = vmatprep.mubr.bf16.mxu0 0
        %1407 = vmatmul.mubr.bf16.gmra.mrb[0].mxu0 %v1350
        %v1408 = vpop.f32.mrb[0].mxu0
        %v1409 = vadd.f32 0.0, %v1408
        %v1410 = vpop.f32.mrb[0].mxu0
        %v1411 = vpop.f32.mrb[0].mxu0
        %v1412 = vadd.f32 0.0, %v1411
        %v1413 = vpop.f32.mrb[0].mxu0
        %1414 = vmatprep.mubr.bf16.mxu0 0
        %1415 = vmatmul.mubr.bf16.gmra.mrb[0].mxu0 %v1353
        %v1416 = vpop.f32.mrb[0].mxu0
        %v1417 = vadd.f32 0.0, %v1416
        %v1418 = vpop.f32.mrb[0].mxu0
        %v1419 = vpop.f32.mrb[0].mxu0
        %v1420 = vadd.f32 0.0, %v1419
        %v1421 = vpop.f32.mrb[0].mxu0
        %1422 = vdwg.mxu0
        %v1423 = vadd.f32 %v1304, %v1393
        %v1424 = vadd.f32 %v1305, %v1396
        %v1425 = vadd.f32 %v1306, %v1401
        %v1426 = vadd.f32 %v1307, %v1404
        %v1427 = vadd.f32 %v1308, %v1409
        %v1428 = vadd.f32 %v1309, %v1412
        %v1429 = vadd.f32 %v1310, %v1417
        %v1430 = vadd.f32 %v1311, %v1420
        %s1431 = scalar_lea.vmem %s380, 8
        %v1432 = vld [vmem:[%s1431] sm:$0xf]
        %v1433 = vld [vmem:[%s1431 + $0x8] sm:$0xf]
        %v1434 = vld [vmem:[%s1431 + $0x10] sm:$0xf]
        %v1435 = vld [vmem:[%s1431 + $0x18] sm:$0xf]
        %v1436 = vld [vmem:[%s1431 + $0x20] sm:$0xf]
        %v1437 = vld [vmem:[%s1431 + $0x28] sm:$0xf]
        %v1438 = vld [vmem:[%s1431 + $0x30] sm:$0xf]
        %v1439 = vld [vmem:[%s1431 + $0x38] sm:$0xf]
        %s1440 = scalar_lea.vmem %s4, 14
        %v1441 = vld [vmem:[%s1440] sm:$0x3]
        %v1450 = vunpack.c.l.b16 %v1432
        %v1451 = vunpack.c.l.b16 %v1433
        %v1452 = vunpack.c.l.b16 %v1434
        %v1453 = vunpack.c.l.b16 %v1435
        %v1454 = vunpack.c.l.b16 %v1436
        %v1455 = vunpack.c.l.b16 %v1437
        %v1456 = vunpack.c.l.b16 %v1438
        %v1457 = vunpack.c.l.b16 %v1439
        %v1458 = vpack.c.b16 %v1451, %v1450
        %v1459 = vpack.c.b16 %v1453, %v1452
        %v1460 = vpack.c.b16 %v1455, %v1454
        %v1461 = vpack.c.b16 %v1457, %v1456
        %v1463 = vsel %vm431, %v1458, 0
        %v1466 = vsel %vm431, %v1459, 0
        %v1469 = vsel %vm431, %v1460, 0
        %v1472 = vsel %vm431, %v1461, 0
        %v1475 = vsel %vm444, %v1441, 0
        %1477 = vmatprep.subr.bf16.mxu0 0
        %1478 = vmatpush1.bf16.msra.mxu0 %v1475
        %1479 = vmatprep.subr.bf16.mxu0 0
        %1480 = vmatpush1.bf16.msra.mxu0 0
        %1481 = vmatprep.subr.bf16.mxu0 0
        %1482 = vmatpush1.bf16.msra.mxu0 0
        %1483 = vmatprep.subr.bf16.mxu0 0
        %1484 = vmatpush1.bf16.msra.mxu0 0
        %1485 = vmatprep.subr.bf16.mxu0 0
        %1486 = vmatpush1.bf16.msra.mxu0 0
        %1487 = vmatprep.subr.bf16.mxu0 0
        %1488 = vmatpush1.bf16.msra.mxu0 0
        %1489 = vmatprep.subr.bf16.mxu0 0
        %1490 = vmatpush1.bf16.msra.mxu0 0
        %1491 = vmatprep.subr.bf16.mxu0 0
        %1492 = vmatpush1.bf16.msra.mxu0 0
        %1493 = vmatprep.subr.bf16.mxu0 0
        %1494 = vmatpush1.bf16.msra.mxu0 0
        %1495 = vmatprep.subr.bf16.mxu0 0
        %1496 = vmatpush1.bf16.msra.mxu0 0
        %1497 = vmatprep.subr.bf16.mxu0 0
        %1498 = vmatpush1.bf16.msra.mxu0 0
        %1499 = vmatprep.subr.bf16.mxu0 0
        %1500 = vmatpush1.bf16.msra.mxu0 0
        %1501 = vmatprep.subr.bf16.mxu0 0
        %1502 = vmatpush1.bf16.msra.mxu0 0
        %1503 = vmatprep.subr.bf16.mxu0 0
        %1504 = vmatpush1.bf16.msra.mxu0 0
        %1505 = vmatprep.subr.bf16.mxu0 0
        %1506 = vmatpush1.bf16.msra.mxu0 0
        %1507 = vmatprep.subr.bf16.mxu0 0
        %1508 = vmatpush1.bf16.msra.mxu0 0
        %1509 = vmatprep.mubr.bf16.mxu0 0
        %1510 = vmatmul.mubr.bf16.gmra.mrb[0].mxu0 %v1463
        %v1511 = vpop.f32.mrb[0].mxu0
        %v1512 = vadd.f32 0.0, %v1511
        %v1513 = vpop.f32.mrb[0].mxu0
        %v1514 = vpop.f32.mrb[0].mxu0
        %v1515 = vadd.f32 0.0, %v1514
        %v1516 = vpop.f32.mrb[0].mxu0
        %1517 = vmatprep.mubr.bf16.mxu0 0
        %1518 = vmatmul.mubr.bf16.gmra.mrb[0].mxu0 %v1466
        %v1519 = vpop.f32.mrb[0].mxu0
        %v1520 = vadd.f32 0.0, %v1519
        %v1521 = vpop.f32.mrb[0].mxu0
        %v1522 = vpop.f32.mrb[0].mxu0
        %v1523 = vadd.f32 0.0, %v1522
        %v1524 = vpop.f32.mrb[0].mxu0
        %1525 = vmatprep.mubr.bf16.mxu0 0
        %1526 = vmatmul.mubr.bf16.gmra.mrb[0].mxu0 %v1469
        %v1527 = vpop.f32.mrb[0].mxu0
        %v1528 = vadd.f32 0.0, %v1527
        %v1529 = vpop.f32.mrb[0].mxu0
        %v1530 = vpop.f32.mrb[0].mxu0
        %v1531 = vadd.f32 0.0, %v1530
        %v1532 = vpop.f32.mrb[0].mxu0
        %1533 = vmatprep.mubr.bf16.mxu0 0
        %1534 = vmatmul.mubr.bf16.gmra.mrb[0].mxu0 %v1472
        %v1535 = vpop.f32.mrb[0].mxu0
        %v1536 = vadd.f32 0.0, %v1535
        %v1537 = vpop.f32.mrb[0].mxu0
        %v1538 = vpop.f32.mrb[0].mxu0
        %v1539 = vadd.f32 0.0, %v1538
        %v1540 = vpop.f32.mrb[0].mxu0
        %1541 = vdwg.mxu0
        %v1542 = vadd.f32 %v1423, %v1512
        %v1543 = vadd.f32 %v1424, %v1515
        %v1544 = vadd.f32 %v1425, %v1520
        %v1545 = vadd.f32 %v1426, %v1523
        %v1546 = vadd.f32 %v1427, %v1528
        %v1547 = vadd.f32 %v1428, %v1531
        %v1548 = vadd.f32 %v1429, %v1536
        %v1549 = vadd.f32 %v1430, %v1539
        %v1550 = vld [vmem:[%s1312] sm:$0xf]
        %v1551 = vld [vmem:[%s1312 + $0x4] sm:$0x1]
        %v1552 = vld [vmem:[%s1312 + $0x8] sm:$0xf]
        %v1553 = vld [vmem:[%s1312 + $0xc] sm:$0x1]
        %v1554 = vld [vmem:[%s1312 + $0x10] sm:$0xf]
        %v1555 = vld [vmem:[%s1312 + $0x14] sm:$0x1]
        %v1556 = vld [vmem:[%s1312 + $0x18] sm:$0xf]
        %v1557 = vld [vmem:[%s1312 + $0x1c] sm:$0x1]
        %v1558 = vld [vmem:[%s1312 + $0x20] sm:$0xf]
        %v1559 = vld [vmem:[%s1312 + $0x24] sm:$0x1]
        %v1560 = vld [vmem:[%s1312 + $0x28] sm:$0xf]
        %v1561 = vld [vmem:[%s1312 + $0x2c] sm:$0x1]
        %v1562 = vld [vmem:[%s1312 + $0x30] sm:$0xf]
        %v1563 = vld [vmem:[%s1312 + $0x34] sm:$0x1]
        %v1564 = vld [vmem:[%s1312 + $0x38] sm:$0xf]
        %v1565 = vld [vmem:[%s1312 + $0x3c] sm:$0x1]
        %v1567 = vshrl.u32 %v1550, 16
        %v1569 = vrot.slane %v1567, 4
        %v1570 = vshll.u32 %v1550, 16
        %v1572 = vrot.slane %v1570, 5
        %v1573 = vor.u32 %v1569, %v1572
        %v1574 = vrot.slane %v1573, 4
        %v1576 = vshll.u32 %v1551, 16
        %v1578 = vrot.slane %v1576, 5
        %v1579 = vsel %vm631, %v1574, %v1578
        %v1581 = vshrl.u32 %v1552, 16
        %v1583 = vrot.slane %v1581, 4
        %v1584 = vshll.u32 %v1552, 16
        %v1586 = vrot.slane %v1584, 5
        %v1587 = vor.u32 %v1583, %v1586
        %v1588 = vrot.slane %v1587, 4
        %v1590 = vshll.u32 %v1553, 16
        %v1592 = vrot.slane %v1590, 5
        %v1593 = vsel %vm631, %v1588, %v1592
        %v1595 = vshrl.u32 %v1554, 16
        %v1597 = vrot.slane %v1595, 4
        %v1598 = vshll.u32 %v1554, 16
        %v1600 = vrot.slane %v1598, 5
        %v1601 = vor.u32 %v1597, %v1600
        %v1602 = vrot.slane %v1601, 4
        %v1604 = vshll.u32 %v1555, 16
        %v1606 = vrot.slane %v1604, 5
        %v1607 = vsel %vm631, %v1602, %v1606
        %v1609 = vshrl.u32 %v1556, 16
        %v1611 = vrot.slane %v1609, 4
        %v1612 = vshll.u32 %v1556, 16
        %v1614 = vrot.slane %v1612, 5
        %v1615 = vor.u32 %v1611, %v1614
        %v1616 = vrot.slane %v1615, 4
        %v1618 = vshll.u32 %v1557, 16
        %v1620 = vrot.slane %v1618, 5
        %v1621 = vsel %vm631, %v1616, %v1620
        %v1623 = vshrl.u32 %v1558, 16
        %v1625 = vrot.slane %v1623, 4
        %v1626 = vshll.u32 %v1558, 16
        %v1628 = vrot.slane %v1626, 5
        %v1629 = vor.u32 %v1625, %v1628
        %v1630 = vrot.slane %v1629, 4
        %v1632 = vshll.u32 %v1559, 16
        %v1634 = vrot.slane %v1632, 5
        %v1635 = vsel %vm631, %v1630, %v1634
        %v1637 = vshrl.u32 %v1560, 16
        %v1639 = vrot.slane %v1637, 4
        %v1640 = vshll.u32 %v1560, 16
        %v1642 = vrot.slane %v1640, 5
        %v1643 = vor.u32 %v1639, %v1642
        %v1644 = vrot.slane %v1643, 4
        %v1646 = vshll.u32 %v1561, 16
        %v1648 = vrot.slane %v1646, 5
        %v1649 = vsel %vm631, %v1644, %v1648
        %v1651 = vshrl.u32 %v1562, 16
        %v1653 = vrot.slane %v1651, 4
        %v1654 = vshll.u32 %v1562, 16
        %v1656 = vrot.slane %v1654, 5
        %v1657 = vor.u32 %v1653, %v1656
        %v1658 = vrot.slane %v1657, 4
        %v1660 = vshll.u32 %v1563, 16
        %v1662 = vrot.slane %v1660, 5
        %v1663 = vsel %vm631, %v1658, %v1662
        %v1665 = vshrl.u32 %v1564, 16
        %v1667 = vrot.slane %v1665, 4
        %v1668 = vshll.u32 %v1564, 16
        %v1670 = vrot.slane %v1668, 5
        %v1671 = vor.u32 %v1667, %v1670
        %v1672 = vrot.slane %v1671, 4
        %v1674 = vshll.u32 %v1565, 16
        %v1676 = vrot.slane %v1674, 5
        %v1677 = vsel %vm631, %v1672, %v1676
        %s1678 = scalar_lea.vmem %s4, 16
        %v1679 = vld [vmem:[%s1678] sm:$0x3]
        %v1680 = vunpack.c.l.b16 %v1579
        %v1681 = vunpack.c.l.b16 %v1593
        %v1682 = vunpack.c.l.b16 %v1607
        %v1683 = vunpack.c.l.b16 %v1621
        %v1684 = vunpack.c.l.b16 %v1635
        %v1685 = vunpack.c.l.b16 %v1649
        %v1686 = vunpack.c.l.b16 %v1663
        %v1687 = vunpack.c.l.b16 %v1677
        %v1688 = vpack.c.b16 %v1681, %v1680
        %v1689 = vpack.c.b16 %v1683, %v1682
        %v1690 = vpack.c.b16 %v1685, %v1684
        %v1691 = vpack.c.b16 %v1687, %v1686
        %v1693 = vsel %vm431, %v1688, 0
        %v1696 = vsel %vm431, %v1689, 0
        %v1699 = vsel %vm431, %v1690, 0
        %v1702 = vsel %vm431, %v1691, 0
        %v1705 = vsel %vm444, %v1679, 0
        %1707 = vmatprep.subr.bf16.mxu0 0
        %1708 = vmatpush1.bf16.msra.mxu0 %v1705
        %1709 = vmatprep.subr.bf16.mxu0 0
        %1710 = vmatpush1.bf16.msra.mxu0 0
        %1711 = vmatprep.subr.bf16.mxu0 0
        %1712 = vmatpush1.bf16.msra.mxu0 0
        %1713 = vmatprep.subr.bf16.mxu0 0
        %1714 = vmatpush1.bf16.msra.mxu0 0
        %1715 = vmatprep.subr.bf16.mxu0 0
        %1716 = vmatpush1.bf16.msra.mxu0 0
        %1717 = vmatprep.subr.bf16.mxu0 0
        %1718 = vmatpush1.bf16.msra.mxu0 0
        %1719 = vmatprep.subr.bf16.mxu0 0
        %1720 = vmatpush1.bf16.msra.mxu0 0
        %1721 = vmatprep.subr.bf16.mxu0 0
        %1722 = vmatpush1.bf16.msra.mxu0 0
        %1723 = vmatprep.subr.bf16.mxu0 0
        %1724 = vmatpush1.bf16.msra.mxu0 0
        %1725 = vmatprep.subr.bf16.mxu0 0
        %1726 = vmatpush1.bf16.msra.mxu0 0
        %1727 = vmatprep.subr.bf16.mxu0 0
        %1728 = vmatpush1.bf16.msra.mxu0 0
        %1729 = vmatprep.subr.bf16.mxu0 0
        %1730 = vmatpush1.bf16.msra.mxu0 0
        %1731 = vmatprep.subr.bf16.mxu0 0
        %1732 = vmatpush1.bf16.msra.mxu0 0
        %1733 = vmatprep.subr.bf16.mxu0 0
        %1734 = vmatpush1.bf16.msra.mxu0 0
        %1735 = vmatprep.subr.bf16.mxu0 0
        %1736 = vmatpush1.bf16.msra.mxu0 0
        %1737 = vmatprep.subr.bf16.mxu0 0
        %1738 = vmatpush1.bf16.msra.mxu0 0
        %1739 = vmatprep.mubr.bf16.mxu0 0
        %1740 = vmatmul.mubr.bf16.gmra.mrb[0].mxu0 %v1693
        %v1741 = vpop.f32.mrb[0].mxu0
        %v1742 = vadd.f32 0.0, %v1741
        %v1743 = vpop.f32.mrb[0].mxu0
        %v1744 = vpop.f32.mrb[0].mxu0
        %v1745 = vadd.f32 0.0, %v1744
        %v1746 = vpop.f32.mrb[0].mxu0
        %1747 = vmatprep.mubr.bf16.mxu0 0
        %1748 = vmatmul.mubr.bf16.gmra.mrb[0].mxu0 %v1696
        %v1749 = vpop.f32.mrb[0].mxu0
        %v1750 = vadd.f32 0.0, %v1749
        %v1751 = vpop.f32.mrb[0].mxu0
        %v1752 = vpop.f32.mrb[0].mxu0
        %v1753 = vadd.f32 0.0, %v1752
        %v1754 = vpop.f32.mrb[0].mxu0
        %1755 = vmatprep.mubr.bf16.mxu0 0
        %1756 = vmatmul.mubr.bf16.gmra.mrb[0].mxu0 %v1699
        %v1757 = vpop.f32.mrb[0].mxu0
        %v1758 = vadd.f32 0.0, %v1757
        %v1759 = vpop.f32.mrb[0].mxu0
        %v1760 = vpop.f32.mrb[0].mxu0
        %v1761 = vadd.f32 0.0, %v1760
        %v1762 = vpop.f32.mrb[0].mxu0
        %1763 = vmatprep.mubr.bf16.mxu0 0
        %1764 = vmatmul.mubr.bf16.gmra.mrb[0].mxu0 %v1702
        %v1765 = vpop.f32.mrb[0].mxu0
        %v1766 = vadd.f32 0.0, %v1765
        %v1767 = vpop.f32.mrb[0].mxu0
        %v1768 = vpop.f32.mrb[0].mxu0
        %v1769 = vadd.f32 0.0, %v1768
        %v1770 = vpop.f32.mrb[0].mxu0
        %1771 = vdwg.mxu0
        %v1772 = vadd.f32 %v1542, %v1742
        %v1773 = vadd.f32 %v1543, %v1745
        %v1774 = vadd.f32 %v1544, %v1750
        %v1775 = vadd.f32 %v1545, %v1753
        %v1776 = vadd.f32 %v1546, %v1758
        %v1777 = vadd.f32 %v1547, %v1761
        %v1778 = vadd.f32 %v1548, %v1766
        %v1779 = vadd.f32 %v1549, %v1769
        %v1780 = vld [vmem:[%s5] sm:$0x1]
        %v1782 = vlaneseq
        %v1783 = vshrl.u32 %v1782, 7
        %v1784 = vsub.s32 0, %v1783
        %v1785 = vrot.slane %v1780, %v1784
        %v1787 = vadd.f32 %v1772, %v1785
        %v1788 = vadd.f32 %v1773, %v1785
        %v1789 = vadd.f32 %v1774, %v1785
        %v1790 = vadd.f32 %v1775, %v1785
        %v1791 = vadd.f32 %v1776, %v1785
        %v1792 = vadd.f32 %v1777, %v1785
        %v1793 = vadd.f32 %v1778, %v1785
        %v1794 = vadd.f32 %v1779, %v1785
        %v1795 = vmax.f32 %v1787, 0.0
        %v1796 = vmax.f32 %v1788, 0.0
        %v1797 = vmax.f32 %v1789, 0.0
        %v1798 = vmax.f32 %v1790, 0.0
        %v1799 = vmax.f32 %v1791, 0.0
        %v1800 = vmax.f32 %v1792, 0.0
        %v1801 = vmax.f32 %v1793, 0.0
        %v1802 = vmax.f32 %v1794, 0.0
        %v1803 = vpack.c.bf16 %v1796, %v1795
        %v1804 = vpack.c.bf16 %v1798, %v1797
        %v1805 = vpack.c.bf16 %v1800, %v1799
        %v1806 = vpack.c.bf16 %v1802, %v1801
        %vm1807 = vcmask 60416
        %1808 = vst.msk [vmem:[#allocation2] sm:$0xf] %vm1807, 0
        %vm1809 = vcmask 57344
        %1810 = vst.msk [vmem:[#allocation2 + $0x4] sm:$0x1] %vm1809, 0
        %1811 = vst.msk [vmem:[#allocation2 + $0x8] sm:$0xf] %vm1807, 0
        %1812 = vst.msk [vmem:[#allocation2 + $0xc] sm:$0x1] %vm1809, 0
        %1813 = vst.msk [vmem:[#allocation2 + $0x10] sm:$0xf] %vm1807, 0
        %1814 = vst.msk [vmem:[#allocation2 + $0x14] sm:$0x1] %vm1809, 0
        %1815 = vst.msk [vmem:[#allocation2 + $0x18] sm:$0xf] %vm1807, 0
        %1816 = vst.msk [vmem:[#allocation2 + $0x1c] sm:$0x1] %vm1809, 0
        %1817 = vst.msk [vmem:[#allocation2 + $0x20] sm:$0xf] %vm1807, 0
        %1818 = vst.msk [vmem:[#allocation2 + $0x24] sm:$0x1] %vm1809, 0
        %1819 = vst.msk [vmem:[#allocation2 + $0x28] sm:$0xf] %vm1807, 0
        %1820 = vst.msk [vmem:[#allocation2 + $0x2c] sm:$0x1] %vm1809, 0
        %1821 = vst.msk [vmem:[#allocation2 + $0x30] sm:$0xf] %vm1807, 0
        %1822 = vst.msk [vmem:[#allocation2 + $0x34] sm:$0x1] %vm1809, 0
        %1823 = vst.msk [vmem:[#allocation2 + $0x38] sm:$0xf] %vm1807, 0
        %1824 = vst.msk [vmem:[#allocation2 + $0x3c] sm:$0x1] %vm1809, 0
        %1825 = vst.msk [vmem:[#allocation2 + $0x40] sm:$0xf] %vm1807, 0
        %1826 = vst.msk [vmem:[#allocation2 + $0x44] sm:$0x1] %vm1809, 0
        %1827 = vst.msk [vmem:[#allocation2 + $0x48] sm:$0xf] %vm1807, 0
        %1828 = vst.msk [vmem:[#allocation2 + $0x4c] sm:$0x1] %vm1809, 0
        %v1833 = vunpack.c.l.b16 %v1803
        %v1834 = vunpack.c.h.b16 %v1803
        %v1835 = vunpack.c.l.b16 %v1804
        %v1836 = vunpack.c.h.b16 %v1804
        %v1837 = vunpack.c.l.b16 %v1805
        %v1838 = vunpack.c.h.b16 %v1805
        %v1839 = vunpack.c.l.b16 %v1806
        %v1840 = vunpack.c.h.b16 %v1806
        %v1841 = vpack.c.b16 %v1833, %v1833
        %v1842 = vpack.c.b16 %v1834, %v1834
        %v1843 = vpack.c.b16 %v1835, %v1835
        %v1844 = vpack.c.b16 %v1836, %v1836
        %v1845 = vpack.c.b16 %v1837, %v1837
        %v1846 = vpack.c.b16 %v1838, %v1838
        %v1847 = vpack.c.b16 %v1839, %v1839
        %v1848 = vpack.c.b16 %v1840, %v1840
        %v1850 = vshrl.u32 %v1841, 16
        %v1852 = vrot.slane %v1850, 7
        %v1853 = vshll.u32 %v1841, 16
        %v1855 = vor.u32 %v1852, %v1853
        %v1856 = vrot.slane %v1852, 4
        %v1858 = vshrl.u32 %v1842, 16
        %v1860 = vrot.slane %v1858, 7
        %v1861 = vshll.u32 %v1842, 16
        %v1863 = vor.u32 %v1860, %v1861
        %v1864 = vrot.slane %v1860, 4
        %v1866 = vshrl.u32 %v1843, 16
        %v1868 = vrot.slane %v1866, 7
        %v1869 = vshll.u32 %v1843, 16
        %v1871 = vor.u32 %v1868, %v1869
        %v1872 = vrot.slane %v1868, 4
        %v1874 = vshrl.u32 %v1844, 16
        %v1876 = vrot.slane %v1874, 7
        %v1877 = vshll.u32 %v1844, 16
        %v1879 = vor.u32 %v1876, %v1877
        %v1880 = vrot.slane %v1876, 4
        %v1882 = vshrl.u32 %v1845, 16
        %v1884 = vrot.slane %v1882, 7
        %v1885 = vshll.u32 %v1845, 16
        %v1887 = vor.u32 %v1884, %v1885
        %v1888 = vrot.slane %v1884, 4
        %v1890 = vshrl.u32 %v1846, 16
        %v1892 = vrot.slane %v1890, 7
        %v1893 = vshll.u32 %v1846, 16
        %v1895 = vor.u32 %v1892, %v1893
        %v1896 = vrot.slane %v1892, 4
        %v1898 = vshrl.u32 %v1847, 16
        %v1900 = vrot.slane %v1898, 7
        %v1901 = vshll.u32 %v1847, 16
        %v1903 = vor.u32 %v1900, %v1901
        %v1904 = vrot.slane %v1900, 4
        %v1906 = vshrl.u32 %v1848, 16
        %v1908 = vrot.slane %v1906, 7
        %v1909 = vshll.u32 %v1848, 16
        %v1911 = vor.u32 %v1908, %v1909
        %v1912 = vrot.slane %v1908, 4
        %s1929 = scalar_lea.vmem [#allocation2], 8
        %vm1930 = vcmask 60416
        %vm1931 = vsmask.f32 7938
        %vm1932 = vmand %vm1930, %vm1931
        %v1933 = vld [vmem:[%s1929] sm:$0xf]
        %v1934 = vsel %vm1932, %v1855, %v1933
        %1935 = vst [vmem:[%s1929] sm:$0xf] %v1934
        %vm1936 = vcmask 57344
        %vm1937 = vsmask.f32 256
        %vm1938 = vmand %vm1936, %vm1937
        %v1939 = vld [vmem:[%s1929 + $0x4] sm:$0x1]
        %v1940 = vsel %vm1938, %v1856, %v1939
        %1941 = vst [vmem:[%s1929 + $0x4] sm:$0x1] %v1940
        %v1942 = vld [vmem:[%s1929 + $0x8] sm:$0xf]
        %v1943 = vsel %vm1932, %v1863, %v1942
        %1944 = vst [vmem:[%s1929 + $0x8] sm:$0xf] %v1943
        %v1945 = vld [vmem:[%s1929 + $0xc] sm:$0x1]
        %v1946 = vsel %vm1938, %v1864, %v1945
        %1947 = vst [vmem:[%s1929 + $0xc] sm:$0x1] %v1946
        %v1948 = vld [vmem:[%s1929 + $0x10] sm:$0xf]
        %v1949 = vsel %vm1932, %v1871, %v1948
        %1950 = vst [vmem:[%s1929 + $0x10] sm:$0xf] %v1949
        %v1951 = vld [vmem:[%s1929 + $0x14] sm:$0x1]
        %v1952 = vsel %vm1938, %v1872, %v1951
        %1953 = vst [vmem:[%s1929 + $0x14] sm:$0x1] %v1952
        %v1954 = vld [vmem:[%s1929 + $0x18] sm:$0xf]
        %v1955 = vsel %vm1932, %v1879, %v1954
        %1956 = vst [vmem:[%s1929 + $0x18] sm:$0xf] %v1955
        %v1957 = vld [vmem:[%s1929 + $0x1c] sm:$0x1]
        %v1958 = vsel %vm1938, %v1880, %v1957
        %1959 = vst [vmem:[%s1929 + $0x1c] sm:$0x1] %v1958
        %v1960 = vld [vmem:[%s1929 + $0x20] sm:$0xf]
        %v1961 = vsel %vm1932, %v1887, %v1960
        %1962 = vst [vmem:[%s1929 + $0x20] sm:$0xf] %v1961
        %v1963 = vld [vmem:[%s1929 + $0x24] sm:$0x1]
        %v1964 = vsel %vm1938, %v1888, %v1963
        %1965 = vst [vmem:[%s1929 + $0x24] sm:$0x1] %v1964
        %v1966 = vld [vmem:[%s1929 + $0x28] sm:$0xf]
        %v1967 = vsel %vm1932, %v1895, %v1966
        %1968 = vst [vmem:[%s1929 + $0x28] sm:$0xf] %v1967
        %v1969 = vld [vmem:[%s1929 + $0x2c] sm:$0x1]
        %v1970 = vsel %vm1938, %v1896, %v1969
        %1971 = vst [vmem:[%s1929 + $0x2c] sm:$0x1] %v1970
        %v1972 = vld [vmem:[%s1929 + $0x30] sm:$0xf]
        %v1973 = vsel %vm1932, %v1903, %v1972
        %1974 = vst [vmem:[%s1929 + $0x30] sm:$0xf] %v1973
        %v1975 = vld [vmem:[%s1929 + $0x34] sm:$0x1]
        %v1976 = vsel %vm1938, %v1904, %v1975
        %1977 = vst [vmem:[%s1929 + $0x34] sm:$0x1] %v1976
        %v1978 = vld [vmem:[%s1929 + $0x38] sm:$0xf]
        %v1979 = vsel %vm1932, %v1911, %v1978
        %1980 = vst [vmem:[%s1929 + $0x38] sm:$0xf] %v1979
        %v1981 = vld [vmem:[%s1929 + $0x3c] sm:$0x1]
        %v1982 = vsel %vm1938, %v1912, %v1981
        %1983 = vst [vmem:[%s1929 + $0x3c] sm:$0x1] %v1982
        %v1984 = vld [vmem:[#allocation2] sm:$0xf]
        %v1985 = vld [vmem:[#allocation2 + $0x8] sm:$0xf]
        %v1986 = vld [vmem:[#allocation2 + $0x10] sm:$0xf]
        %v1987 = vld [vmem:[#allocation2 + $0x18] sm:$0xf]
        %v1988 = vld [vmem:[#allocation2 + $0x20] sm:$0xf]
        %v1989 = vld [vmem:[#allocation2 + $0x28] sm:$0xf]
        %v1990 = vld [vmem:[#allocation2 + $0x30] sm:$0xf]
        %v1991 = vld [vmem:[#allocation2 + $0x38] sm:$0xf]
        %v1992 = vld [vmem:[%s6] sm:$0xf]
        %v1993 = vld [vmem:[#allocation2 + $0x4] sm:$0x1]
        %v1994 = vld [vmem:[#allocation2 + $0xc] sm:$0x1]
        %v1995 = vld [vmem:[#allocation2 + $0x14] sm:$0x1]
        %v1996 = vld [vmem:[#allocation2 + $0x1c] sm:$0x1]
        %v1997 = vld [vmem:[#allocation2 + $0x24] sm:$0x1]
        %v1998 = vld [vmem:[#allocation2 + $0x2c] sm:$0x1]
        %v1999 = vld [vmem:[#allocation2 + $0x34] sm:$0x1]
        %v2000 = vld [vmem:[#allocation2 + $0x3c] sm:$0x1]
        %v2002 = vshrl.u32 %v1984, 16
        %v2004 = vrot.slane %v2002, 4
        %v2005 = vshll.u32 %v1984, 16
        %v2007 = vrot.slane %v2005, 5
        %v2008 = vor.u32 %v2004, %v2007
        %v2009 = vrot.slane %v2008, 4
        %v2011 = vshll.u32 %v1993, 16
        %v2013 = vrot.slane %v2011, 5
        %v2014 = vsel %vm631, %v2009, %v2013
        %v2016 = vshrl.u32 %v1985, 16
        %v2018 = vrot.slane %v2016, 4
        %v2019 = vshll.u32 %v1985, 16
        %v2021 = vrot.slane %v2019, 5
        %v2022 = vor.u32 %v2018, %v2021
        %v2023 = vrot.slane %v2022, 4
        %v2025 = vshll.u32 %v1994, 16
        %v2027 = vrot.slane %v2025, 5
        %v2028 = vsel %vm631, %v2023, %v2027
        %v2030 = vshrl.u32 %v1986, 16
        %v2032 = vrot.slane %v2030, 4
        %v2033 = vshll.u32 %v1986, 16
        %v2035 = vrot.slane %v2033, 5
        %v2036 = vor.u32 %v2032, %v2035
        %v2037 = vrot.slane %v2036, 4
        %v2039 = vshll.u32 %v1995, 16
        %v2041 = vrot.slane %v2039, 5
        %v2042 = vsel %vm631, %v2037, %v2041
        %v2044 = vshrl.u32 %v1987, 16
        %v2046 = vrot.slane %v2044, 4
        %v2047 = vshll.u32 %v1987, 16
        %v2049 = vrot.slane %v2047, 5
        %v2050 = vor.u32 %v2046, %v2049
        %v2051 = vrot.slane %v2050, 4
        %v2053 = vshll.u32 %v1996, 16
        %v2055 = vrot.slane %v2053, 5
        %v2056 = vsel %vm631, %v2051, %v2055
        %v2058 = vshrl.u32 %v1988, 16
        %v2060 = vrot.slane %v2058, 4
        %v2061 = vshll.u32 %v1988, 16
        %v2063 = vrot.slane %v2061, 5
        %v2064 = vor.u32 %v2060, %v2063
        %v2065 = vrot.slane %v2064, 4
        %v2067 = vshll.u32 %v1997, 16
        %v2069 = vrot.slane %v2067, 5
        %v2070 = vsel %vm631, %v2065, %v2069
        %v2072 = vshrl.u32 %v1989, 16
        %v2074 = vrot.slane %v2072, 4
        %v2075 = vshll.u32 %v1989, 16
        %v2077 = vrot.slane %v2075, 5
        %v2078 = vor.u32 %v2074, %v2077
        %v2079 = vrot.slane %v2078, 4
        %v2081 = vshll.u32 %v1998, 16
        %v2083 = vrot.slane %v2081, 5
        %v2084 = vsel %vm631, %v2079, %v2083
        %v2086 = vshrl.u32 %v1990, 16
        %v2088 = vrot.slane %v2086, 4
        %v2089 = vshll.u32 %v1990, 16
        %v2091 = vrot.slane %v2089, 5
        %v2092 = vor.u32 %v2088, %v2091
        %v2093 = vrot.slane %v2092, 4
        %v2095 = vshll.u32 %v1999, 16
        %v2097 = vrot.slane %v2095, 5
        %v2098 = vsel %vm631, %v2093, %v2097
        %v2100 = vshrl.u32 %v1991, 16
        %v2102 = vrot.slane %v2100, 4
        %v2103 = vshll.u32 %v1991, 16
        %v2105 = vrot.slane %v2103, 5
        %v2106 = vor.u32 %v2102, %v2105
        %v2107 = vrot.slane %v2106, 4
        %v2109 = vshll.u32 %v2000, 16
        %v2111 = vrot.slane %v2109, 5
        %v2112 = vsel %vm631, %v2107, %v2111
        %s2113 = scalar_lea.vmem %s6, 4
        %v2114 = vld [vmem:[%s2113] sm:$0xf]
        %v2115 = vunpack.c.l.b16 %v2014
        %v2116 = vunpack.c.l.b16 %v2028
        %v2117 = vunpack.c.l.b16 %v2042
        %v2118 = vunpack.c.l.b16 %v2056
        %v2119 = vunpack.c.l.b16 %v2070
        %v2120 = vunpack.c.l.b16 %v2084
        %v2121 = vunpack.c.l.b16 %v2098
        %v2122 = vunpack.c.l.b16 %v2112
        %v2123 = vpack.c.b16 %v2116, %v2115
        %v2124 = vpack.c.b16 %v2118, %v2117
        %v2125 = vpack.c.b16 %v2120, %v2119
        %v2126 = vpack.c.b16 %v2122, %v2121
        %vm2127 = vcmask 64512
        %v2129 = vsel %vm2127, %v2123, 0
        %v2132 = vsel %vm2127, %v2124, 0
        %v2135 = vsel %vm2127, %v2125, 0
        %v2138 = vsel %vm2127, %v2126, 0
        %vm2140 = vcmask 1043456
        %v2142 = vsel %vm2140, %v2114, 0
        %2144 = vmatprep.subr.bf16.mxu0 0
        %2145 = vmatpush1.bf16.msra.mxu0 %v2142
        %2146 = vmatprep.subr.bf16.mxu0 0
        %2147 = vmatpush1.bf16.msra.mxu0 0
        %2148 = vmatprep.subr.bf16.mxu0 0
        %2149 = vmatpush1.bf16.msra.mxu0 0
        %2150 = vmatprep.subr.bf16.mxu0 0
        %2151 = vmatpush1.bf16.msra.mxu0 0
        %2152 = vmatprep.subr.bf16.mxu0 0
        %2153 = vmatpush1.bf16.msra.mxu0 0
        %2154 = vmatprep.subr.bf16.mxu0 0
        %2155 = vmatpush1.bf16.msra.mxu0 0
        %2156 = vmatprep.subr.bf16.mxu0 0
        %2157 = vmatpush1.bf16.msra.mxu0 0
        %2158 = vmatprep.subr.bf16.mxu0 0
        %2159 = vmatpush1.bf16.msra.mxu0 0
        %2160 = vmatprep.subr.bf16.mxu0 0
        %2161 = vmatpush1.bf16.msra.mxu0 0
        %2162 = vmatprep.subr.bf16.mxu0 0
        %2163 = vmatpush1.bf16.msra.mxu0 0
        %2164 = vmatprep.subr.bf16.mxu0 0
        %2165 = vmatpush1.bf16.msra.mxu0 0
        %2166 = vmatprep.subr.bf16.mxu0 0
        %2167 = vmatpush1.bf16.msra.mxu0 0
        %2168 = vmatprep.subr.bf16.mxu0 0
        %2169 = vmatpush1.bf16.msra.mxu0 0
        %2170 = vmatprep.subr.bf16.mxu0 0
        %2171 = vmatpush1.bf16.msra.mxu0 0
        %2172 = vmatprep.subr.bf16.mxu0 0
        %2173 = vmatpush1.bf16.msra.mxu0 0
        %2174 = vmatprep.subr.bf16.mxu0 0
        %2175 = vmatpush1.bf16.msra.mxu0 0
        %2176 = vmatprep.mubr.bf16.mxu0 0
        %2177 = vmatmul.mubr.bf16.gmra.mrb[0].mxu0 %v2129
        %v2178 = vpop.f32.mrb[0].mxu0
        %v2179 = vadd.f32 0.0, %v2178
        %v2180 = vpop.f32.mrb[0].mxu0
        %v2181 = vpop.f32.mrb[0].mxu0
        %v2182 = vadd.f32 0.0, %v2181
        %v2183 = vpop.f32.mrb[0].mxu0
        %2184 = vmatprep.mubr.bf16.mxu0 0
        %2185 = vmatmul.mubr.bf16.gmra.mrb[0].mxu0 %v2132
        %v2186 = vpop.f32.mrb[0].mxu0
        %v2187 = vadd.f32 0.0, %v2186
        %v2188 = vpop.f32.mrb[0].mxu0
        %v2189 = vpop.f32.mrb[0].mxu0
        %v2190 = vadd.f32 0.0, %v2189
        %v2191 = vpop.f32.mrb[0].mxu0
        %2192 = vmatprep.mubr.bf16.mxu0 0
        %2193 = vmatmul.mubr.bf16.gmra.mrb[0].mxu0 %v2135
        %v2194 = vpop.f32.mrb[0].mxu0
        %v2195 = vadd.f32 0.0, %v2194
        %v2196 = vpop.f32.mrb[0].mxu0
        %v2197 = vpop.f32.mrb[0].mxu0
        %v2198 = vadd.f32 0.0, %v2197
        %v2199 = vpop.f32.mrb[0].mxu0
        %2200 = vmatprep.mubr.bf16.mxu0 0
        %2201 = vmatmul.mubr.bf16.gmra.mrb[0].mxu0 %v2138
        %v2202 = vpop.f32.mrb[0].mxu0
        %v2203 = vadd.f32 0.0, %v2202
        %v2204 = vpop.f32.mrb[0].mxu0
        %v2205 = vpop.f32.mrb[0].mxu0
        %v2206 = vadd.f32 0.0, %v2205
        %v2207 = vpop.f32.mrb[0].mxu0
        %2208 = vdwg.mxu0
        %v2217 = vunpack.c.l.b16 %v1984
        %v2218 = vunpack.c.l.b16 %v1985
        %v2219 = vunpack.c.l.b16 %v1986
        %v2220 = vunpack.c.l.b16 %v1987
        %v2221 = vunpack.c.l.b16 %v1988
        %v2222 = vunpack.c.l.b16 %v1989
        %v2223 = vunpack.c.l.b16 %v1990
        %v2224 = vunpack.c.l.b16 %v1991
        %v2225 = vpack.c.b16 %v2218, %v2217
        %v2226 = vpack.c.b16 %v2220, %v2219
        %v2227 = vpack.c.b16 %v2222, %v2221
        %v2228 = vpack.c.b16 %v2224, %v2223
        %v2230 = vsel %vm2127, %v2225, 0
        %v2233 = vsel %vm2127, %v2226, 0
        %v2236 = vsel %vm2127, %v2227, 0
        %v2239 = vsel %vm2127, %v2228, 0
        %v2242 = vsel %vm2140, %v1992, 0
        %2244 = vmatprep.subr.bf16.mxu0 0
        %2245 = vmatpush1.bf16.msra.mxu0 %v2242
        %2246 = vmatprep.subr.bf16.mxu0 0
        %2247 = vmatpush1.bf16.msra.mxu0 0
        %2248 = vmatprep.subr.bf16.mxu0 0
        %2249 = vmatpush1.bf16.msra.mxu0 0
        %2250 = vmatprep.subr.bf16.mxu0 0
        %2251 = vmatpush1.bf16.msra.mxu0 0
        %2252 = vmatprep.subr.bf16.mxu0 0
        %2253 = vmatpush1.bf16.msra.mxu0 0
        %2254 = vmatprep.subr.bf16.mxu0 0
        %2255 = vmatpush1.bf16.msra.mxu0 0
        %2256 = vmatprep.subr.bf16.mxu0 0
        %2257 = vmatpush1.bf16.msra.mxu0 0
        %2258 = vmatprep.subr.bf16.mxu0 0
        %2259 = vmatpush1.bf16.msra.mxu0 0
        %2260 = vmatprep.subr.bf16.mxu0 0
        %2261 = vmatpush1.bf16.msra.mxu0 0
        %2262 = vmatprep.subr.bf16.mxu0 0
        %2263 = vmatpush1.bf16.msra.mxu0 0
        %2264 = vmatprep.subr.bf16.mxu0 0
        %2265 = vmatpush1.bf16.msra.mxu0 0
        %2266 = vmatprep.subr.bf16.mxu0 0
        %2267 = vmatpush1.bf16.msra.mxu0 0
        %2268 = vmatprep.subr.bf16.mxu0 0
        %2269 = vmatpush1.bf16.msra.mxu0 0
        %2270 = vmatprep.subr.bf16.mxu0 0
        %2271 = vmatpush1.bf16.msra.mxu0 0
        %2272 = vmatprep.subr.bf16.mxu0 0
        %2273 = vmatpush1.bf16.msra.mxu0 0
        %2274 = vmatprep.subr.bf16.mxu0 0
        %2275 = vmatpush1.bf16.msra.mxu0 0
        %2276 = vmatprep.mubr.bf16.mxu0 0
        %2277 = vmatmul.mubr.bf16.gmra.mrb[0].mxu0 %v2230
        %v2278 = vpop.f32.mrb[0].mxu0
        %v2279 = vadd.f32 %v2179, %v2278
        %v2280 = vpop.f32.mrb[0].mxu0
        %v2281 = vpop.f32.mrb[0].mxu0
        %v2282 = vadd.f32 %v2182, %v2281
        %v2283 = vpop.f32.mrb[0].mxu0
        %2284 = vmatprep.mubr.bf16.mxu0 0
        %2285 = vmatmul.mubr.bf16.gmra.mrb[0].mxu0 %v2233
        %v2286 = vpop.f32.mrb[0].mxu0
        %v2287 = vadd.f32 %v2187, %v2286
        %v2288 = vpop.f32.mrb[0].mxu0
        %v2289 = vpop.f32.mrb[0].mxu0
        %v2290 = vadd.f32 %v2190, %v2289
        %v2291 = vpop.f32.mrb[0].mxu0
        %2292 = vmatprep.mubr.bf16.mxu0 0
        %2293 = vmatmul.mubr.bf16.gmra.mrb[0].mxu0 %v2236
        %v2294 = vpop.f32.mrb[0].mxu0
        %v2295 = vadd.f32 %v2195, %v2294
        %v2296 = vpop.f32.mrb[0].mxu0
        %v2297 = vpop.f32.mrb[0].mxu0
        %v2298 = vadd.f32 %v2198, %v2297
        %v2299 = vpop.f32.mrb[0].mxu0
        %2300 = vmatprep.mubr.bf16.mxu0 0
        %2301 = vmatmul.mubr.bf16.gmra.mrb[0].mxu0 %v2239
        %v2302 = vpop.f32.mrb[0].mxu0
        %v2303 = vadd.f32 %v2203, %v2302
        %v2304 = vpop.f32.mrb[0].mxu0
        %v2305 = vpop.f32.mrb[0].mxu0
        %v2306 = vadd.f32 %v2206, %v2305
        %v2307 = vpop.f32.mrb[0].mxu0
        %2308 = vdwg.mxu0
        %v2309 = vld [vmem:[#allocation2] sm:$0xe]
        %v2310 = vld [vmem:[#allocation2 + $0x8] sm:$0xe]
        %v2311 = vld [vmem:[#allocation2 + $0x10] sm:$0xe]
        %v2312 = vld [vmem:[#allocation2 + $0x18] sm:$0xe]
        %v2313 = vld [vmem:[#allocation2 + $0x20] sm:$0xe]
        %v2314 = vld [vmem:[#allocation2 + $0x28] sm:$0xe]
        %v2315 = vld [vmem:[#allocation2 + $0x30] sm:$0xe]
        %v2316 = vld [vmem:[#allocation2 + $0x38] sm:$0xe]
        %vm2333 = vcmask 1042432
        %vm2334 = vcmask 1046532
        %vm2335 = vmor %vm2333, %vm2334
        %v2336 = vrot.slane %v2309, 5
        %v2337 = vrot.slane %v2336, 4
        %v2338 = vrot.slane %v1993, 5
        %v2339 = vsel %vm2335, %v2337, %v2338
        %v2340 = vrot.slane %v2310, 5
        %v2341 = vrot.slane %v2340, 4
        %v2342 = vrot.slane %v1994, 5
        %v2343 = vsel %vm2335, %v2341, %v2342
        %v2344 = vrot.slane %v2311, 5
        %v2345 = vrot.slane %v2344, 4
        %v2346 = vrot.slane %v1995, 5
        %v2347 = vsel %vm2335, %v2345, %v2346
        %v2348 = vrot.slane %v2312, 5
        %v2349 = vrot.slane %v2348, 4
        %v2350 = vrot.slane %v1996, 5
        %v2351 = vsel %vm2335, %v2349, %v2350
        %v2352 = vrot.slane %v2313, 5
        %v2353 = vrot.slane %v2352, 4
        %v2354 = vrot.slane %v1997, 5
        %v2355 = vsel %vm2335, %v2353, %v2354
        %v2356 = vrot.slane %v2314, 5
        %v2357 = vrot.slane %v2356, 4
        %v2358 = vrot.slane %v1998, 5
        %v2359 = vsel %vm2335, %v2357, %v2358
        %v2360 = vrot.slane %v2315, 5
        %v2361 = vrot.slane %v2360, 4
        %v2362 = vrot.slane %v1999, 5
        %v2363 = vsel %vm2335, %v2361, %v2362
        %v2364 = vrot.slane %v2316, 5
        %v2365 = vrot.slane %v2364, 4
        %v2366 = vrot.slane %v2000, 5
        %v2367 = vsel %vm2335, %v2365, %v2366
        %s2368 = scalar_lea.vmem %s6, 8
        %v2369 = vld [vmem:[%s2368] sm:$0xf]
        %v2370 = vunpack.c.l.b16 %v2339
        %v2371 = vunpack.c.l.b16 %v2343
        %v2372 = vunpack.c.l.b16 %v2347
        %v2373 = vunpack.c.l.b16 %v2351
        %v2374 = vunpack.c.l.b16 %v2355
        %v2375 = vunpack.c.l.b16 %v2359
        %v2376 = vunpack.c.l.b16 %v2363
        %v2377 = vunpack.c.l.b16 %v2367
        %v2378 = vpack.c.b16 %v2371, %v2370
        %v2379 = vpack.c.b16 %v2373, %v2372
        %v2380 = vpack.c.b16 %v2375, %v2374
        %v2381 = vpack.c.b16 %v2377, %v2376
        %v2383 = vsel %vm2127, %v2378, 0
        %v2386 = vsel %vm2127, %v2379, 0
        %v2389 = vsel %vm2127, %v2380, 0
        %v2392 = vsel %vm2127, %v2381, 0
        %v2395 = vsel %vm2140, %v2369, 0
        %2397 = vmatprep.subr.bf16.mxu0 0
        %2398 = vmatpush1.bf16.msra.mxu0 %v2395
        %2399 = vmatprep.subr.bf16.mxu0 0
        %2400 = vmatpush1.bf16.msra.mxu0 0
        %2401 = vmatprep.subr.bf16.mxu0 0
        %2402 = vmatpush1.bf16.msra.mxu0 0
        %2403 = vmatprep.subr.bf16.mxu0 0
        %2404 = vmatpush1.bf16.msra.mxu0 0
        %2405 = vmatprep.subr.bf16.mxu0 0
        %2406 = vmatpush1.bf16.msra.mxu0 0
        %2407 = vmatprep.subr.bf16.mxu0 0
        %2408 = vmatpush1.bf16.msra.mxu0 0
        %2409 = vmatprep.subr.bf16.mxu0 0
        %2410 = vmatpush1.bf16.msra.mxu0 0
        %2411 = vmatprep.subr.bf16.mxu0 0
        %2412 = vmatpush1.bf16.msra.mxu0 0
        %2413 = vmatprep.subr.bf16.mxu0 0
        %2414 = vmatpush1.bf16.msra.mxu0 0
        %2415 = vmatprep.subr.bf16.mxu0 0
        %2416 = vmatpush1.bf16.msra.mxu0 0
        %2417 = vmatprep.subr.bf16.mxu0 0
        %2418 = vmatpush1.bf16.msra.mxu0 0
        %2419 = vmatprep.subr.bf16.mxu0 0
        %2420 = vmatpush1.bf16.msra.mxu0 0
        %2421 = vmatprep.subr.bf16.mxu0 0
        %2422 = vmatpush1.bf16.msra.mxu0 0
        %2423 = vmatprep.subr.bf16.mxu0 0
        %2424 = vmatpush1.bf16.msra.mxu0 0
        %2425 = vmatprep.subr.bf16.mxu0 0
        %2426 = vmatpush1.bf16.msra.mxu0 0
        %2427 = vmatprep.subr.bf16.mxu0 0
        %2428 = vmatpush1.bf16.msra.mxu0 0
        %2429 = vmatprep.mubr.bf16.mxu0 0
        %2430 = vmatmul.mubr.bf16.gmra.mrb[0].mxu0 %v2383
        %v2431 = vpop.f32.mrb[0].mxu0
        %v2432 = vadd.f32 0.0, %v2431
        %v2433 = vpop.f32.mrb[0].mxu0
        %v2434 = vpop.f32.mrb[0].mxu0
        %v2435 = vadd.f32 0.0, %v2434
        %v2436 = vpop.f32.mrb[0].mxu0
        %2437 = vmatprep.mubr.bf16.mxu0 0
        %2438 = vmatmul.mubr.bf16.gmra.mrb[0].mxu0 %v2386
        %v2439 = vpop.f32.mrb[0].mxu0
        %v2440 = vadd.f32 0.0, %v2439
        %v2441 = vpop.f32.mrb[0].mxu0
        %v2442 = vpop.f32.mrb[0].mxu0
        %v2443 = vadd.f32 0.0, %v2442
        %v2444 = vpop.f32.mrb[0].mxu0
        %2445 = vmatprep.mubr.bf16.mxu0 0
        %2446 = vmatmul.mubr.bf16.gmra.mrb[0].mxu0 %v2389
        %v2447 = vpop.f32.mrb[0].mxu0
        %v2448 = vadd.f32 0.0, %v2447
        %v2449 = vpop.f32.mrb[0].mxu0
        %v2450 = vpop.f32.mrb[0].mxu0
        %v2451 = vadd.f32 0.0, %v2450
        %v2452 = vpop.f32.mrb[0].mxu0
        %2453 = vmatprep.mubr.bf16.mxu0 0
        %2454 = vmatmul.mubr.bf16.gmra.mrb[0].mxu0 %v2392
        %v2455 = vpop.f32.mrb[0].mxu0
        %v2456 = vadd.f32 0.0, %v2455
        %v2457 = vpop.f32.mrb[0].mxu0
        %v2458 = vpop.f32.mrb[0].mxu0
        %v2459 = vadd.f32 0.0, %v2458
        %v2460 = vpop.f32.mrb[0].mxu0
        %2461 = vdwg.mxu0
        %v2462 = vadd.f32 %v2279, %v2432
        %v2463 = vadd.f32 %v2282, %v2435
        %v2464 = vadd.f32 %v2287, %v2440
        %v2465 = vadd.f32 %v2290, %v2443
        %v2466 = vadd.f32 %v2295, %v2448
        %v2467 = vadd.f32 %v2298, %v2451
        %v2468 = vadd.f32 %v2303, %v2456
        %v2469 = vadd.f32 %v2306, %v2459
        %v2470 = vld [vmem:[%s1929] sm:$0xf]
        %v2471 = vld [vmem:[%s1929 + $0x8] sm:$0xf]
        %v2472 = vld [vmem:[%s1929 + $0x10] sm:$0xf]
        %v2473 = vld [vmem:[%s1929 + $0x18] sm:$0xf]
        %v2474 = vld [vmem:[%s1929 + $0x20] sm:$0xf]
        %v2475 = vld [vmem:[%s1929 + $0x28] sm:$0xf]
        %v2476 = vld [vmem:[%s1929 + $0x30] sm:$0xf]
        %v2477 = vld [vmem:[%s1929 + $0x38] sm:$0xf]
        %s2478 = scalar_lea.vmem %s6, 12
        %v2479 = vld [vmem:[%s2478] sm:$0xf]
        %v2488 = vunpack.c.l.b16 %v2470
        %v2489 = vunpack.c.l.b16 %v2471
        %v2490 = vunpack.c.l.b16 %v2472
        %v2491 = vunpack.c.l.b16 %v2473
        %v2492 = vunpack.c.l.b16 %v2474
        %v2493 = vunpack.c.l.b16 %v2475
        %v2494 = vunpack.c.l.b16 %v2476
        %v2495 = vunpack.c.l.b16 %v2477
        %v2496 = vpack.c.b16 %v2489, %v2488
        %v2497 = vpack.c.b16 %v2491, %v2490
        %v2498 = vpack.c.b16 %v2493, %v2492
        %v2499 = vpack.c.b16 %v2495, %v2494
        %v2501 = vsel %vm2127, %v2496, 0
        %v2504 = vsel %vm2127, %v2497, 0
        %v2507 = vsel %vm2127, %v2498, 0
        %v2510 = vsel %vm2127, %v2499, 0
        %v2513 = vsel %vm2140, %v2479, 0
        %2515 = vmatprep.subr.bf16.mxu0 0
        %2516 = vmatpush1.bf16.msra.mxu0 %v2513
        %2517 = vmatprep.subr.bf16.mxu0 0
        %2518 = vmatpush1.bf16.msra.mxu0 0
        %2519 = vmatprep.subr.bf16.mxu0 0
        %2520 = vmatpush1.bf16.msra.mxu0 0
        %2521 = vmatprep.subr.bf16.mxu0 0
        %2522 = vmatpush1.bf16.msra.mxu0 0
        %2523 = vmatprep.subr.bf16.mxu0 0
        %2524 = vmatpush1.bf16.msra.mxu0 0
        %2525 = vmatprep.subr.bf16.mxu0 0
        %2526 = vmatpush1.bf16.msra.mxu0 0
        %2527 = vmatprep.subr.bf16.mxu0 0
        %2528 = vmatpush1.bf16.msra.mxu0 0
        %2529 = vmatprep.subr.bf16.mxu0 0
        %2530 = vmatpush1.bf16.msra.mxu0 0
        %2531 = vmatprep.subr.bf16.mxu0 0
        %2532 = vmatpush1.bf16.msra.mxu0 0
        %2533 = vmatprep.subr.bf16.mxu0 0
        %2534 = vmatpush1.bf16.msra.mxu0 0
        %2535 = vmatprep.subr.bf16.mxu0 0
        %2536 = vmatpush1.bf16.msra.mxu0 0
        %2537 = vmatprep.subr.bf16.mxu0 0
        %2538 = vmatpush1.bf16.msra.mxu0 0
        %2539 = vmatprep.subr.bf16.mxu0 0
        %2540 = vmatpush1.bf16.msra.mxu0 0
        %2541 = vmatprep.subr.bf16.mxu0 0
        %2542 = vmatpush1.bf16.msra.mxu0 0
        %2543 = vmatprep.subr.bf16.mxu0 0
        %2544 = vmatpush1.bf16.msra.mxu0 0
        %2545 = vmatprep.subr.bf16.mxu0 0
        %2546 = vmatpush1.bf16.msra.mxu0 0
        %2547 = vmatprep.mubr.bf16.mxu0 0
        %2548 = vmatmul.mubr.bf16.gmra.mrb[0].mxu0 %v2501
        %v2549 = vpop.f32.mrb[0].mxu0
        %v2550 = vadd.f32 0.0, %v2549
        %v2551 = vpop.f32.mrb[0].mxu0
        %v2552 = vpop.f32.mrb[0].mxu0
        %v2553 = vadd.f32 0.0, %v2552
        %v2554 = vpop.f32.mrb[0].mxu0
        %2555 = vmatprep.mubr.bf16.mxu0 0
        %2556 = vmatmul.mubr.bf16.gmra.mrb[0].mxu0 %v2504
        %v2557 = vpop.f32.mrb[0].mxu0
        %v2558 = vadd.f32 0.0, %v2557
        %v2559 = vpop.f32.mrb[0].mxu0
        %v2560 = vpop.f32.mrb[0].mxu0
        %v2561 = vadd.f32 0.0, %v2560
        %v2562 = vpop.f32.mrb[0].mxu0
        %2563 = vmatprep.mubr.bf16.mxu0 0
        %2564 = vmatmul.mubr.bf16.gmra.mrb[0].mxu0 %v2507
        %v2565 = vpop.f32.mrb[0].mxu0
        %v2566 = vadd.f32 0.0, %v2565
        %v2567 = vpop.f32.mrb[0].mxu0
        %v2568 = vpop.f32.mrb[0].mxu0
        %v2569 = vadd.f32 0.0, %v2568
        %v2570 = vpop.f32.mrb[0].mxu0
        %2571 = vmatprep.mubr.bf16.mxu0 0
        %2572 = vmatmul.mubr.bf16.gmra.mrb[0].mxu0 %v2510
        %v2573 = vpop.f32.mrb[0].mxu0
        %v2574 = vadd.f32 0.0, %v2573
        %v2575 = vpop.f32.mrb[0].mxu0
        %v2576 = vpop.f32.mrb[0].mxu0
        %v2577 = vadd.f32 0.0, %v2576
        %v2578 = vpop.f32.mrb[0].mxu0
        %2579 = vdwg.mxu0
        %v2580 = vadd.f32 %v2462, %v2550
        %v2581 = vadd.f32 %v2463, %v2553
        %v2582 = vadd.f32 %v2464, %v2558
        %v2583 = vadd.f32 %v2465, %v2561
        %v2584 = vadd.f32 %v2466, %v2566
        %v2585 = vadd.f32 %v2467, %v2569
        %v2586 = vadd.f32 %v2468, %v2574
        %v2587 = vadd.f32 %v2469, %v2577
        %v2588 = vld [vmem:[%s1929] sm:$0xf]
        %v2589 = vld [vmem:[%s1929 + $0x4] sm:$0x1]
        %v2590 = vld [vmem:[%s1929 + $0x8] sm:$0xf]
        %v2591 = vld [vmem:[%s1929 + $0xc] sm:$0x1]
        %v2592 = vld [vmem:[%s1929 + $0x10] sm:$0xf]
        %v2593 = vld [vmem:[%s1929 + $0x14] sm:$0x1]
        %v2594 = vld [vmem:[%s1929 + $0x18] sm:$0xf]
        %v2595 = vld [vmem:[%s1929 + $0x1c] sm:$0x1]
        %v2596 = vld [vmem:[%s1929 + $0x20] sm:$0xf]
        %v2597 = vld [vmem:[%s1929 + $0x24] sm:$0x1]
        %v2598 = vld [vmem:[%s1929 + $0x28] sm:$0xf]
        %v2599 = vld [vmem:[%s1929 + $0x2c] sm:$0x1]
        %v2600 = vld [vmem:[%s1929 + $0x30] sm:$0xf]
        %v2601 = vld [vmem:[%s1929 + $0x34] sm:$0x1]
        %v2602 = vld [vmem:[%s1929 + $0x38] sm:$0xf]
        %v2603 = vld [vmem:[%s1929 + $0x3c] sm:$0x1]
        %v2605 = vshrl.u32 %v2588, 16
        %v2607 = vrot.slane %v2605, 4
        %v2608 = vshll.u32 %v2588, 16
        %v2610 = vrot.slane %v2608, 5
        %v2611 = vor.u32 %v2607, %v2610
        %v2612 = vrot.slane %v2611, 4
        %v2614 = vshll.u32 %v2589, 16
        %v2616 = vrot.slane %v2614, 5
        %v2617 = vsel %vm631, %v2612, %v2616
        %v2619 = vshrl.u32 %v2590, 16
        %v2621 = vrot.slane %v2619, 4
        %v2622 = vshll.u32 %v2590, 16
        %v2624 = vrot.slane %v2622, 5
        %v2625 = vor.u32 %v2621, %v2624
        %v2626 = vrot.slane %v2625, 4
        %v2628 = vshll.u32 %v2591, 16
        %v2630 = vrot.slane %v2628, 5
        %v2631 = vsel %vm631, %v2626, %v2630
        %v2633 = vshrl.u32 %v2592, 16
        %v2635 = vrot.slane %v2633, 4
        %v2636 = vshll.u32 %v2592, 16
        %v2638 = vrot.slane %v2636, 5
        %v2639 = vor.u32 %v2635, %v2638
        %v2640 = vrot.slane %v2639, 4
        %v2642 = vshll.u32 %v2593, 16
        %v2644 = vrot.slane %v2642, 5
        %v2645 = vsel %vm631, %v2640, %v2644
        %v2647 = vshrl.u32 %v2594, 16
        %v2649 = vrot.slane %v2647, 4
        %v2650 = vshll.u32 %v2594, 16
        %v2652 = vrot.slane %v2650, 5
        %v2653 = vor.u32 %v2649, %v2652
        %v2654 = vrot.slane %v2653, 4
        %v2656 = vshll.u32 %v2595, 16
        %v2658 = vrot.slane %v2656, 5
        %v2659 = vsel %vm631, %v2654, %v2658
        %v2661 = vshrl.u32 %v2596, 16
        %v2663 = vrot.slane %v2661, 4
        %v2664 = vshll.u32 %v2596, 16
        %v2666 = vrot.slane %v2664, 5
        %v2667 = vor.u32 %v2663, %v2666
        %v2668 = vrot.slane %v2667, 4
        %v2670 = vshll.u32 %v2597, 16
        %v2672 = vrot.slane %v2670, 5
        %v2673 = vsel %vm631, %v2668, %v2672
        %v2675 = vshrl.u32 %v2598, 16
        %v2677 = vrot.slane %v2675, 4
        %v2678 = vshll.u32 %v2598, 16
        %v2680 = vrot.slane %v2678, 5
        %v2681 = vor.u32 %v2677, %v2680
        %v2682 = vrot.slane %v2681, 4
        %v2684 = vshll.u32 %v2599, 16
        %v2686 = vrot.slane %v2684, 5
        %v2687 = vsel %vm631, %v2682, %v2686
        %v2689 = vshrl.u32 %v2600, 16
        %v2691 = vrot.slane %v2689, 4
        %v2692 = vshll.u32 %v2600, 16
        %v2694 = vrot.slane %v2692, 5
        %v2695 = vor.u32 %v2691, %v2694
        %v2696 = vrot.slane %v2695, 4
        %v2698 = vshll.u32 %v2601, 16
        %v2700 = vrot.slane %v2698, 5
        %v2701 = vsel %vm631, %v2696, %v2700
        %v2703 = vshrl.u32 %v2602, 16
        %v2705 = vrot.slane %v2703, 4
        %v2706 = vshll.u32 %v2602, 16
        %v2708 = vrot.slane %v2706, 5
        %v2709 = vor.u32 %v2705, %v2708
        %v2710 = vrot.slane %v2709, 4
        %v2712 = vshll.u32 %v2603, 16
        %v2714 = vrot.slane %v2712, 5
        %v2715 = vsel %vm631, %v2710, %v2714
        %s2716 = scalar_lea.vmem %s6, 16
        %v2717 = vld [vmem:[%s2716] sm:$0xf]
        %v2718 = vunpack.c.l.b16 %v2617
        %v2719 = vunpack.c.l.b16 %v2631
        %v2720 = vunpack.c.l.b16 %v2645
        %v2721 = vunpack.c.l.b16 %v2659
        %v2722 = vunpack.c.l.b16 %v2673
        %v2723 = vunpack.c.l.b16 %v2687
        %v2724 = vunpack.c.l.b16 %v2701
        %v2725 = vunpack.c.l.b16 %v2715
        %v2726 = vpack.c.b16 %v2719, %v2718
        %v2727 = vpack.c.b16 %v2721, %v2720
        %v2728 = vpack.c.b16 %v2723, %v2722
        %v2729 = vpack.c.b16 %v2725, %v2724
        %v2731 = vsel %vm2127, %v2726, 0
        %v2734 = vsel %vm2127, %v2727, 0
        %v2737 = vsel %vm2127, %v2728, 0
        %v2740 = vsel %vm2127, %v2729, 0
        %v2743 = vsel %vm2140, %v2717, 0
        %2745 = vmatprep.subr.bf16.mxu0 0
        %2746 = vmatpush1.bf16.msra.mxu0 %v2743
        %2747 = vmatprep.subr.bf16.mxu0 0
        %2748 = vmatpush1.bf16.msra.mxu0 0
        %2749 = vmatprep.subr.bf16.mxu0 0
        %2750 = vmatpush1.bf16.msra.mxu0 0
        %2751 = vmatprep.subr.bf16.mxu0 0
        %2752 = vmatpush1.bf16.msra.mxu0 0
        %2753 = vmatprep.subr.bf16.mxu0 0
        %2754 = vmatpush1.bf16.msra.mxu0 0
        %2755 = vmatprep.subr.bf16.mxu0 0
        %2756 = vmatpush1.bf16.msra.mxu0 0
        %2757 = vmatprep.subr.bf16.mxu0 0
        %2758 = vmatpush1.bf16.msra.mxu0 0
        %2759 = vmatprep.subr.bf16.mxu0 0
        %2760 = vmatpush1.bf16.msra.mxu0 0
        %2761 = vmatprep.subr.bf16.mxu0 0
        %2762 = vmatpush1.bf16.msra.mxu0 0
        %2763 = vmatprep.subr.bf16.mxu0 0
        %2764 = vmatpush1.bf16.msra.mxu0 0
        %2765 = vmatprep.subr.bf16.mxu0 0
        %2766 = vmatpush1.bf16.msra.mxu0 0
        %2767 = vmatprep.subr.bf16.mxu0 0
        %2768 = vmatpush1.bf16.msra.mxu0 0
        %2769 = vmatprep.subr.bf16.mxu0 0
        %2770 = vmatpush1.bf16.msra.mxu0 0
        %2771 = vmatprep.subr.bf16.mxu0 0
        %2772 = vmatpush1.bf16.msra.mxu0 0
        %2773 = vmatprep.subr.bf16.mxu0 0
        %2774 = vmatpush1.bf16.msra.mxu0 0
        %2775 = vmatprep.subr.bf16.mxu0 0
        %2776 = vmatpush1.bf16.msra.mxu0 0
        %2777 = vmatprep.mubr.bf16.mxu0 0
        %2778 = vmatmul.mubr.bf16.gmra.mrb[0].mxu0 %v2731
        %v2779 = vpop.f32.mrb[0].mxu0
        %v2780 = vadd.f32 0.0, %v2779
        %v2781 = vpop.f32.mrb[0].mxu0
        %v2782 = vpop.f32.mrb[0].mxu0
        %v2783 = vadd.f32 0.0, %v2782
        %v2784 = vpop.f32.mrb[0].mxu0
        %2785 = vmatprep.mubr.bf16.mxu0 0
        %2786 = vmatmul.mubr.bf16.gmra.mrb[0].mxu0 %v2734
        %v2787 = vpop.f32.mrb[0].mxu0
        %v2788 = vadd.f32 0.0, %v2787
        %v2789 = vpop.f32.mrb[0].mxu0
        %v2790 = vpop.f32.mrb[0].mxu0
        %v2791 = vadd.f32 0.0, %v2790
        %v2792 = vpop.f32.mrb[0].mxu0
        %2793 = vmatprep.mubr.bf16.mxu0 0
        %2794 = vmatmul.mubr.bf16.gmra.mrb[0].mxu0 %v2737
        %v2795 = vpop.f32.mrb[0].mxu0
        %v2796 = vadd.f32 0.0, %v2795
        %v2797 = vpop.f32.mrb[0].mxu0
        %v2798 = vpop.f32.mrb[0].mxu0
        %v2799 = vadd.f32 0.0, %v2798
        %v2800 = vpop.f32.mrb[0].mxu0
        %2801 = vmatprep.mubr.bf16.mxu0 0
        %2802 = vmatmul.mubr.bf16.gmra.mrb[0].mxu0 %v2740
        %v2803 = vpop.f32.mrb[0].mxu0
        %v2804 = vadd.f32 0.0, %v2803
        %v2805 = vpop.f32.mrb[0].mxu0
        %v2806 = vpop.f32.mrb[0].mxu0
        %v2807 = vadd.f32 0.0, %v2806
        %v2808 = vpop.f32.mrb[0].mxu0
        %2809 = vdwg.mxu0
        %v2810 = vadd.f32 %v2580, %v2780
        %v2811 = vadd.f32 %v2581, %v2783
        %v2812 = vadd.f32 %v2582, %v2788
        %v2813 = vadd.f32 %v2583, %v2791
        %v2814 = vadd.f32 %v2584, %v2796
        %v2815 = vadd.f32 %v2585, %v2799
        %v2816 = vadd.f32 %v2586, %v2804
        %v2817 = vadd.f32 %v2587, %v2807
        %v2818 = vld [vmem:[%s1929] sm:$0xe]
        %v2819 = vld [vmem:[%s1929 + $0x8] sm:$0xe]
        %v2820 = vld [vmem:[%s1929 + $0x10] sm:$0xe]
        %v2821 = vld [vmem:[%s1929 + $0x18] sm:$0xe]
        %v2822 = vld [vmem:[%s1929 + $0x20] sm:$0xe]
        %v2823 = vld [vmem:[%s1929 + $0x28] sm:$0xe]
        %v2824 = vld [vmem:[%s1929 + $0x30] sm:$0xe]
        %v2825 = vld [vmem:[%s1929 + $0x38] sm:$0xe]
        %v2842 = vrot.slane %v2818, 5
        %v2843 = vrot.slane %v2842, 4
        %v2844 = vrot.slane %v2589, 5
        %v2845 = vsel %vm2335, %v2843, %v2844
        %v2846 = vrot.slane %v2819, 5
        %v2847 = vrot.slane %v2846, 4
        %v2848 = vrot.slane %v2591, 5
        %v2849 = vsel %vm2335, %v2847, %v2848
        %v2850 = vrot.slane %v2820, 5
        %v2851 = vrot.slane %v2850, 4
        %v2852 = vrot.slane %v2593, 5
        %v2853 = vsel %vm2335, %v2851, %v2852
        %v2854 = vrot.slane %v2821, 5
        %v2855 = vrot.slane %v2854, 4
        %v2856 = vrot.slane %v2595, 5
        %v2857 = vsel %vm2335, %v2855, %v2856
        %v2858 = vrot.slane %v2822, 5
        %v2859 = vrot.slane %v2858, 4
        %v2860 = vrot.slane %v2597, 5
        %v2861 = vsel %vm2335, %v2859, %v2860
        %v2862 = vrot.slane %v2823, 5
        %v2863 = vrot.slane %v2862, 4
        %v2864 = vrot.slane %v2599, 5
        %v2865 = vsel %vm2335, %v2863, %v2864
        %v2866 = vrot.slane %v2824, 5
        %v2867 = vrot.slane %v2866, 4
        %v2868 = vrot.slane %v2601, 5
        %v2869 = vsel %vm2335, %v2867, %v2868
        %v2870 = vrot.slane %v2825, 5
        %v2871 = vrot.slane %v2870, 4
        %v2872 = vrot.slane %v2603, 5
        %v2873 = vsel %vm2335, %v2871, %v2872
        %s2874 = scalar_lea.vmem %s6, 20
        %v2875 = vld [vmem:[%s2874] sm:$0xf]
        %v2876 = vunpack.c.l.b16 %v2845
        %v2877 = vunpack.c.l.b16 %v2849
        %v2878 = vunpack.c.l.b16 %v2853
        %v2879 = vunpack.c.l.b16 %v2857
        %v2880 = vunpack.c.l.b16 %v2861
        %v2881 = vunpack.c.l.b16 %v2865
        %v2882 = vunpack.c.l.b16 %v2869
        %v2883 = vunpack.c.l.b16 %v2873
        %v2884 = vpack.c.b16 %v2877, %v2876
        %v2885 = vpack.c.b16 %v2879, %v2878
        %v2886 = vpack.c.b16 %v2881, %v2880
        %v2887 = vpack.c.b16 %v2883, %v2882
        %v2889 = vsel %vm2127, %v2884, 0
        %v2892 = vsel %vm2127, %v2885, 0
        %v2895 = vsel %vm2127, %v2886, 0
        %v2898 = vsel %vm2127, %v2887, 0
        %v2901 = vsel %vm2140, %v2875, 0
        %2903 = vmatprep.subr.bf16.mxu0 0
        %2904 = vmatpush1.bf16.msra.mxu0 %v2901
        %2905 = vmatprep.subr.bf16.mxu0 0
        %2906 = vmatpush1.bf16.msra.mxu0 0
        %2907 = vmatprep.subr.bf16.mxu0 0
        %2908 = vmatpush1.bf16.msra.mxu0 0
        %2909 = vmatprep.subr.bf16.mxu0 0
        %2910 = vmatpush1.bf16.msra.mxu0 0
        %2911 = vmatprep.subr.bf16.mxu0 0
        %2912 = vmatpush1.bf16.msra.mxu0 0
        %2913 = vmatprep.subr.bf16.mxu0 0
        %2914 = vmatpush1.bf16.msra.mxu0 0
        %2915 = vmatprep.subr.bf16.mxu0 0
        %2916 = vmatpush1.bf16.msra.mxu0 0
        %2917 = vmatprep.subr.bf16.mxu0 0
        %2918 = vmatpush1.bf16.msra.mxu0 0
        %2919 = vmatprep.subr.bf16.mxu0 0
        %2920 = vmatpush1.bf16.msra.mxu0 0
        %2921 = vmatprep.subr.bf16.mxu0 0
        %2922 = vmatpush1.bf16.msra.mxu0 0
        %2923 = vmatprep.subr.bf16.mxu0 0
        %2924 = vmatpush1.bf16.msra.mxu0 0
        %2925 = vmatprep.subr.bf16.mxu0 0
        %2926 = vmatpush1.bf16.msra.mxu0 0
        %2927 = vmatprep.subr.bf16.mxu0 0
        %2928 = vmatpush1.bf16.msra.mxu0 0
        %2929 = vmatprep.subr.bf16.mxu0 0
        %2930 = vmatpush1.bf16.msra.mxu0 0
        %2931 = vmatprep.subr.bf16.mxu0 0
        %2932 = vmatpush1.bf16.msra.mxu0 0
        %2933 = vmatprep.subr.bf16.mxu0 0
        %2934 = vmatpush1.bf16.msra.mxu0 0
        %2935 = vmatprep.mubr.bf16.mxu0 0
        %2936 = vmatmul.mubr.bf16.gmra.mrb[0].mxu0 %v2889
        %v2937 = vpop.f32.mrb[0].mxu0
        %v2938 = vadd.f32 0.0, %v2937
        %v2939 = vpop.f32.mrb[0].mxu0
        %v2940 = vpop.f32.mrb[0].mxu0
        %v2941 = vadd.f32 0.0, %v2940
        %v2942 = vpop.f32.mrb[0].mxu0
        %2943 = vmatprep.mubr.bf16.mxu0 0
        %2944 = vmatmul.mubr.bf16.gmra.mrb[0].mxu0 %v2892
        %v2945 = vpop.f32.mrb[0].mxu0
        %v2946 = vadd.f32 0.0, %v2945
        %v2947 = vpop.f32.mrb[0].mxu0
        %v2948 = vpop.f32.mrb[0].mxu0
        %v2949 = vadd.f32 0.0, %v2948
        %v2950 = vpop.f32.mrb[0].mxu0
        %2951 = vmatprep.mubr.bf16.mxu0 0
        %2952 = vmatmul.mubr.bf16.gmra.mrb[0].mxu0 %v2895
        %v2953 = vpop.f32.mrb[0].mxu0
        %v2954 = vadd.f32 0.0, %v2953
        %v2955 = vpop.f32.mrb[0].mxu0
        %v2956 = vpop.f32.mrb[0].mxu0
        %v2957 = vadd.f32 0.0, %v2956
        %v2958 = vpop.f32.mrb[0].mxu0
        %2959 = vmatprep.mubr.bf16.mxu0 0
        %2960 = vmatmul.mubr.bf16.gmra.mrb[0].mxu0 %v2898
        %v2961 = vpop.f32.mrb[0].mxu0
        %v2962 = vadd.f32 0.0, %v2961
        %v2963 = vpop.f32.mrb[0].mxu0
        %v2964 = vpop.f32.mrb[0].mxu0
        %v2965 = vadd.f32 0.0, %v2964
        %v2966 = vpop.f32.mrb[0].mxu0
        %2967 = vdwg.mxu0
        %v2968 = vadd.f32 %v2810, %v2938
        %v2969 = vadd.f32 %v2811, %v2941
        %v2970 = vadd.f32 %v2812, %v2946
        %v2971 = vadd.f32 %v2813, %v2949
        %v2972 = vadd.f32 %v2814, %v2954
        %v2973 = vadd.f32 %v2815, %v2957
        %v2974 = vadd.f32 %v2816, %v2962
        %v2975 = vadd.f32 %v2817, %v2965
        %s2976 = scalar_lea.vmem [#allocation2], 16
        %v2977 = vld [vmem:[%s2976] sm:$0xf]
        %v2978 = vld [vmem:[%s2976 + $0x8] sm:$0xf]
        %v2979 = vld [vmem:[%s2976 + $0x10] sm:$0xf]
        %v2980 = vld [vmem:[%s2976 + $0x18] sm:$0xf]
        %v2981 = vld [vmem:[%s2976 + $0x20] sm:$0xf]
        %v2982 = vld [vmem:[%s2976 + $0x28] sm:$0xf]
        %v2983 = vld [vmem:[%s2976 + $0x30] sm:$0xf]
        %v2984 = vld [vmem:[%s2976 + $0x38] sm:$0xf]
        %s2985 = scalar_lea.vmem %s6, 24
        %v2986 = vld [vmem:[%s2985] sm:$0xf]
        %v2995 = vunpack.c.l.b16 %v2977
        %v2996 = vunpack.c.l.b16 %v2978
        %v2997 = vunpack.c.l.b16 %v2979
        %v2998 = vunpack.c.l.b16 %v2980
        %v2999 = vunpack.c.l.b16 %v2981
        %v3000 = vunpack.c.l.b16 %v2982
        %v3001 = vunpack.c.l.b16 %v2983
        %v3002 = vunpack.c.l.b16 %v2984
        %v3003 = vpack.c.b16 %v2996, %v2995
        %v3004 = vpack.c.b16 %v2998, %v2997
        %v3005 = vpack.c.b16 %v3000, %v2999
        %v3006 = vpack.c.b16 %v3002, %v3001
        %v3008 = vsel %vm2127, %v3003, 0
        %v3011 = vsel %vm2127, %v3004, 0
        %v3014 = vsel %vm2127, %v3005, 0
        %v3017 = vsel %vm2127, %v3006, 0
        %v3020 = vsel %vm2140, %v2986, 0
        %3022 = vmatprep.subr.bf16.mxu0 0
        %3023 = vmatpush1.bf16.msra.mxu0 %v3020
        %3024 = vmatprep.subr.bf16.mxu0 0
        %3025 = vmatpush1.bf16.msra.mxu0 0
        %3026 = vmatprep.subr.bf16.mxu0 0
        %3027 = vmatpush1.bf16.msra.mxu0 0
        %3028 = vmatprep.subr.bf16.mxu0 0
        %3029 = vmatpush1.bf16.msra.mxu0 0
        %3030 = vmatprep.subr.bf16.mxu0 0
        %3031 = vmatpush1.bf16.msra.mxu0 0
        %3032 = vmatprep.subr.bf16.mxu0 0
        %3033 = vmatpush1.bf16.msra.mxu0 0
        %3034 = vmatprep.subr.bf16.mxu0 0
        %3035 = vmatpush1.bf16.msra.mxu0 0
        %3036 = vmatprep.subr.bf16.mxu0 0
        %3037 = vmatpush1.bf16.msra.mxu0 0
        %3038 = vmatprep.subr.bf16.mxu0 0
        %3039 = vmatpush1.bf16.msra.mxu0 0
        %3040 = vmatprep.subr.bf16.mxu0 0
        %3041 = vmatpush1.bf16.msra.mxu0 0
        %3042 = vmatprep.subr.bf16.mxu0 0
        %3043 = vmatpush1.bf16.msra.mxu0 0
        %3044 = vmatprep.subr.bf16.mxu0 0
        %3045 = vmatpush1.bf16.msra.mxu0 0
        %3046 = vmatprep.subr.bf16.mxu0 0
        %3047 = vmatpush1.bf16.msra.mxu0 0
        %3048 = vmatprep.subr.bf16.mxu0 0
        %3049 = vmatpush1.bf16.msra.mxu0 0
        %3050 = vmatprep.subr.bf16.mxu0 0
        %3051 = vmatpush1.bf16.msra.mxu0 0
        %3052 = vmatprep.subr.bf16.mxu0 0
        %3053 = vmatpush1.bf16.msra.mxu0 0
        %3054 = vmatprep.mubr.bf16.mxu0 0
        %3055 = vmatmul.mubr.bf16.gmra.mrb[0].mxu0 %v3008
        %v3056 = vpop.f32.mrb[0].mxu0
        %v3057 = vadd.f32 0.0, %v3056
        %v3058 = vpop.f32.mrb[0].mxu0
        %v3059 = vpop.f32.mrb[0].mxu0
        %v3060 = vadd.f32 0.0, %v3059
        %v3061 = vpop.f32.mrb[0].mxu0
        %3062 = vmatprep.mubr.bf16.mxu0 0
        %3063 = vmatmul.mubr.bf16.gmra.mrb[0].mxu0 %v3011
        %v3064 = vpop.f32.mrb[0].mxu0
        %v3065 = vadd.f32 0.0, %v3064
        %v3066 = vpop.f32.mrb[0].mxu0
        %v3067 = vpop.f32.mrb[0].mxu0
        %v3068 = vadd.f32 0.0, %v3067
        %v3069 = vpop.f32.mrb[0].mxu0
        %3070 = vmatprep.mubr.bf16.mxu0 0
        %3071 = vmatmul.mubr.bf16.gmra.mrb[0].mxu0 %v3014
        %v3072 = vpop.f32.mrb[0].mxu0
        %v3073 = vadd.f32 0.0, %v3072
        %v3074 = vpop.f32.mrb[0].mxu0
        %v3075 = vpop.f32.mrb[0].mxu0
        %v3076 = vadd.f32 0.0, %v3075
        %v3077 = vpop.f32.mrb[0].mxu0
        %3078 = vmatprep.mubr.bf16.mxu0 0
        %3079 = vmatmul.mubr.bf16.gmra.mrb[0].mxu0 %v3017
        %v3080 = vpop.f32.mrb[0].mxu0
        %v3081 = vadd.f32 0.0, %v3080
        %v3082 = vpop.f32.mrb[0].mxu0
        %v3083 = vpop.f32.mrb[0].mxu0
        %v3084 = vadd.f32 0.0, %v3083
        %v3085 = vpop.f32.mrb[0].mxu0
        %3086 = vdwg.mxu0
        %v3087 = vadd.f32 %v2968, %v3057
        %v3088 = vadd.f32 %v2969, %v3060
        %v3089 = vadd.f32 %v2970, %v3065
        %v3090 = vadd.f32 %v2971, %v3068
        %v3091 = vadd.f32 %v2972, %v3073
        %v3092 = vadd.f32 %v2973, %v3076
        %v3093 = vadd.f32 %v2974, %v3081
        %v3094 = vadd.f32 %v2975, %v3084
        %v3095 = vld [vmem:[%s2976] sm:$0xf]
        %v3096 = vld [vmem:[%s2976 + $0x4] sm:$0x1]
        %v3097 = vld [vmem:[%s2976 + $0x8] sm:$0xf]
        %v3098 = vld [vmem:[%s2976 + $0xc] sm:$0x1]
        %v3099 = vld [vmem:[%s2976 + $0x10] sm:$0xf]
        %v3100 = vld [vmem:[%s2976 + $0x14] sm:$0x1]
        %v3101 = vld [vmem:[%s2976 + $0x18] sm:$0xf]
        %v3102 = vld [vmem:[%s2976 + $0x1c] sm:$0x1]
        %v3103 = vld [vmem:[%s2976 + $0x20] sm:$0xf]
        %v3104 = vld [vmem:[%s2976 + $0x24] sm:$0x1]
        %v3105 = vld [vmem:[%s2976 + $0x28] sm:$0xf]
        %v3106 = vld [vmem:[%s2976 + $0x2c] sm:$0x1]
        %v3107 = vld [vmem:[%s2976 + $0x30] sm:$0xf]
        %v3108 = vld [vmem:[%s2976 + $0x34] sm:$0x1]
        %v3109 = vld [vmem:[%s2976 + $0x38] sm:$0xf]
        %v3110 = vld [vmem:[%s2976 + $0x3c] sm:$0x1]
        %v3112 = vshrl.u32 %v3095, 16
        %v3114 = vrot.slane %v3112, 4
        %v3115 = vshll.u32 %v3095, 16
        %v3117 = vrot.slane %v3115, 5
        %v3118 = vor.u32 %v3114, %v3117
        %v3119 = vrot.slane %v3118, 4
        %v3121 = vshll.u32 %v3096, 16
        %v3123 = vrot.slane %v3121, 5
        %v3124 = vsel %vm631, %v3119, %v3123
        %v3126 = vshrl.u32 %v3097, 16
        %v3128 = vrot.slane %v3126, 4
        %v3129 = vshll.u32 %v3097, 16
        %v3131 = vrot.slane %v3129, 5
        %v3132 = vor.u32 %v3128, %v3131
        %v3133 = vrot.slane %v3132, 4
        %v3135 = vshll.u32 %v3098, 16
        %v3137 = vrot.slane %v3135, 5
        %v3138 = vsel %vm631, %v3133, %v3137
        %v3140 = vshrl.u32 %v3099, 16
        %v3142 = vrot.slane %v3140, 4
        %v3143 = vshll.u32 %v3099, 16
        %v3145 = vrot.slane %v3143, 5
        %v3146 = vor.u32 %v3142, %v3145
        %v3147 = vrot.slane %v3146, 4
        %v3149 = vshll.u32 %v3100, 16
        %v3151 = vrot.slane %v3149, 5
        %v3152 = vsel %vm631, %v3147, %v3151
        %v3154 = vshrl.u32 %v3101, 16
        %v3156 = vrot.slane %v3154, 4
        %v3157 = vshll.u32 %v3101, 16
        %v3159 = vrot.slane %v3157, 5
        %v3160 = vor.u32 %v3156, %v3159
        %v3161 = vrot.slane %v3160, 4
        %v3163 = vshll.u32 %v3102, 16
        %v3165 = vrot.slane %v3163, 5
        %v3166 = vsel %vm631, %v3161, %v3165
        %v3168 = vshrl.u32 %v3103, 16
        %v3170 = vrot.slane %v3168, 4
        %v3171 = vshll.u32 %v3103, 16
        %v3173 = vrot.slane %v3171, 5
        %v3174 = vor.u32 %v3170, %v3173
        %v3175 = vrot.slane %v3174, 4
        %v3177 = vshll.u32 %v3104, 16
        %v3179 = vrot.slane %v3177, 5
        %v3180 = vsel %vm631, %v3175, %v3179
        %v3182 = vshrl.u32 %v3105, 16
        %v3184 = vrot.slane %v3182, 4
        %v3185 = vshll.u32 %v3105, 16
        %v3187 = vrot.slane %v3185, 5
        %v3188 = vor.u32 %v3184, %v3187
        %v3189 = vrot.slane %v3188, 4
        %v3191 = vshll.u32 %v3106, 16
        %v3193 = vrot.slane %v3191, 5
        %v3194 = vsel %vm631, %v3189, %v3193
        %v3196 = vshrl.u32 %v3107, 16
        %v3198 = vrot.slane %v3196, 4
        %v3199 = vshll.u32 %v3107, 16
        %v3201 = vrot.slane %v3199, 5
        %v3202 = vor.u32 %v3198, %v3201
        %v3203 = vrot.slane %v3202, 4
        %v3205 = vshll.u32 %v3108, 16
        %v3207 = vrot.slane %v3205, 5
        %v3208 = vsel %vm631, %v3203, %v3207
        %v3210 = vshrl.u32 %v3109, 16
        %v3212 = vrot.slane %v3210, 4
        %v3213 = vshll.u32 %v3109, 16
        %v3215 = vrot.slane %v3213, 5
        %v3216 = vor.u32 %v3212, %v3215
        %v3217 = vrot.slane %v3216, 4
        %v3219 = vshll.u32 %v3110, 16
        %v3221 = vrot.slane %v3219, 5
        %v3222 = vsel %vm631, %v3217, %v3221
        %s3223 = scalar_lea.vmem %s6, 28
        %v3224 = vld [vmem:[%s3223] sm:$0xf]
        %v3225 = vunpack.c.l.b16 %v3124
        %v3226 = vunpack.c.l.b16 %v3138
        %v3227 = vunpack.c.l.b16 %v3152
        %v3228 = vunpack.c.l.b16 %v3166
        %v3229 = vunpack.c.l.b16 %v3180
        %v3230 = vunpack.c.l.b16 %v3194
        %v3231 = vunpack.c.l.b16 %v3208
        %v3232 = vunpack.c.l.b16 %v3222
        %v3233 = vpack.c.b16 %v3226, %v3225
        %v3234 = vpack.c.b16 %v3228, %v3227
        %v3235 = vpack.c.b16 %v3230, %v3229
        %v3236 = vpack.c.b16 %v3232, %v3231
        %v3238 = vsel %vm2127, %v3233, 0
        %v3241 = vsel %vm2127, %v3234, 0
        %v3244 = vsel %vm2127, %v3235, 0
        %v3247 = vsel %vm2127, %v3236, 0
        %v3250 = vsel %vm2140, %v3224, 0
        %3252 = vmatprep.subr.bf16.mxu0 0
        %3253 = vmatpush1.bf16.msra.mxu0 %v3250
        %3254 = vmatprep.subr.bf16.mxu0 0
        %3255 = vmatpush1.bf16.msra.mxu0 0
        %3256 = vmatprep.subr.bf16.mxu0 0
        %3257 = vmatpush1.bf16.msra.mxu0 0
        %3258 = vmatprep.subr.bf16.mxu0 0
        %3259 = vmatpush1.bf16.msra.mxu0 0
        %3260 = vmatprep.subr.bf16.mxu0 0
        %3261 = vmatpush1.bf16.msra.mxu0 0
        %3262 = vmatprep.subr.bf16.mxu0 0
        %3263 = vmatpush1.bf16.msra.mxu0 0
        %3264 = vmatprep.subr.bf16.mxu0 0
        %3265 = vmatpush1.bf16.msra.mxu0 0
        %3266 = vmatprep.subr.bf16.mxu0 0
        %3267 = vmatpush1.bf16.msra.mxu0 0
        %3268 = vmatprep.subr.bf16.mxu0 0
        %3269 = vmatpush1.bf16.msra.mxu0 0
        %3270 = vmatprep.subr.bf16.mxu0 0
        %3271 = vmatpush1.bf16.msra.mxu0 0
        %3272 = vmatprep.subr.bf16.mxu0 0
        %3273 = vmatpush1.bf16.msra.mxu0 0
        %3274 = vmatprep.subr.bf16.mxu0 0
        %3275 = vmatpush1.bf16.msra.mxu0 0
        %3276 = vmatprep.subr.bf16.mxu0 0
        %3277 = vmatpush1.bf16.msra.mxu0 0
        %3278 = vmatprep.subr.bf16.mxu0 0
        %3279 = vmatpush1.bf16.msra.mxu0 0
        %3280 = vmatprep.subr.bf16.mxu0 0
        %3281 = vmatpush1.bf16.msra.mxu0 0
        %3282 = vmatprep.subr.bf16.mxu0 0
        %3283 = vmatpush1.bf16.msra.mxu0 0
        %3284 = vmatprep.mubr.bf16.mxu0 0
        %3285 = vmatmul.mubr.bf16.gmra.mrb[0].mxu0 %v3238
        %v3286 = vpop.f32.mrb[0].mxu0
        %v3287 = vadd.f32 0.0, %v3286
        %v3288 = vpop.f32.mrb[0].mxu0
        %v3289 = vpop.f32.mrb[0].mxu0
        %v3290 = vadd.f32 0.0, %v3289
        %v3291 = vpop.f32.mrb[0].mxu0
        %3292 = vmatprep.mubr.bf16.mxu0 0
        %3293 = vmatmul.mubr.bf16.gmra.mrb[0].mxu0 %v3241
        %v3294 = vpop.f32.mrb[0].mxu0
        %v3295 = vadd.f32 0.0, %v3294
        %v3296 = vpop.f32.mrb[0].mxu0
        %v3297 = vpop.f32.mrb[0].mxu0
        %v3298 = vadd.f32 0.0, %v3297
        %v3299 = vpop.f32.mrb[0].mxu0
        %3300 = vmatprep.mubr.bf16.mxu0 0
        %3301 = vmatmul.mubr.bf16.gmra.mrb[0].mxu0 %v3244
        %v3302 = vpop.f32.mrb[0].mxu0
        %v3303 = vadd.f32 0.0, %v3302
        %v3304 = vpop.f32.mrb[0].mxu0
        %v3305 = vpop.f32.mrb[0].mxu0
        %v3306 = vadd.f32 0.0, %v3305
        %v3307 = vpop.f32.mrb[0].mxu0
        %3308 = vmatprep.mubr.bf16.mxu0 0
        %3309 = vmatmul.mubr.bf16.gmra.mrb[0].mxu0 %v3247
        %v3310 = vpop.f32.mrb[0].mxu0
        %v3311 = vadd.f32 0.0, %v3310
        %v3312 = vpop.f32.mrb[0].mxu0
        %v3313 = vpop.f32.mrb[0].mxu0
        %v3314 = vadd.f32 0.0, %v3313
        %v3315 = vpop.f32.mrb[0].mxu0
        %3316 = vdwg.mxu0
        %v3317 = vadd.f32 %v3087, %v3287
        %v3318 = vadd.f32 %v3088, %v3290
        %v3319 = vadd.f32 %v3089, %v3295
        %v3320 = vadd.f32 %v3090, %v3298
        %v3321 = vadd.f32 %v3091, %v3303
        %v3322 = vadd.f32 %v3092, %v3306
        %v3323 = vadd.f32 %v3093, %v3311
        %v3324 = vadd.f32 %v3094, %v3314
        %v3325 = vld [vmem:[%s2976] sm:$0xe]
        %v3326 = vld [vmem:[%s2976 + $0x8] sm:$0xe]
        %v3327 = vld [vmem:[%s2976 + $0x10] sm:$0xe]
        %v3328 = vld [vmem:[%s2976 + $0x18] sm:$0xe]
        %v3329 = vld [vmem:[%s2976 + $0x20] sm:$0xe]
        %v3330 = vld [vmem:[%s2976 + $0x28] sm:$0xe]
        %v3331 = vld [vmem:[%s2976 + $0x30] sm:$0xe]
        %v3332 = vld [vmem:[%s2976 + $0x38] sm:$0xe]
        %v3349 = vrot.slane %v3325, 5
        %v3350 = vrot.slane %v3349, 4
        %v3351 = vrot.slane %v3096, 5
        %v3352 = vsel %vm2335, %v3350, %v3351
        %v3353 = vrot.slane %v3326, 5
        %v3354 = vrot.slane %v3353, 4
        %v3355 = vrot.slane %v3098, 5
        %v3356 = vsel %vm2335, %v3354, %v3355
        %v3357 = vrot.slane %v3327, 5
        %v3358 = vrot.slane %v3357, 4
        %v3359 = vrot.slane %v3100, 5
        %v3360 = vsel %vm2335, %v3358, %v3359
        %v3361 = vrot.slane %v3328, 5
        %v3362 = vrot.slane %v3361, 4
        %v3363 = vrot.slane %v3102, 5
        %v3364 = vsel %vm2335, %v3362, %v3363
        %v3365 = vrot.slane %v3329, 5
        %v3366 = vrot.slane %v3365, 4
        %v3367 = vrot.slane %v3104, 5
        %v3368 = vsel %vm2335, %v3366, %v3367
        %v3369 = vrot.slane %v3330, 5
        %v3370 = vrot.slane %v3369, 4
        %v3371 = vrot.slane %v3106, 5
        %v3372 = vsel %vm2335, %v3370, %v3371
        %v3373 = vrot.slane %v3331, 5
        %v3374 = vrot.slane %v3373, 4
        %v3375 = vrot.slane %v3108, 5
        %v3376 = vsel %vm2335, %v3374, %v3375
        %v3377 = vrot.slane %v3332, 5
        %v3378 = vrot.slane %v3377, 4
        %v3379 = vrot.slane %v3110, 5
        %v3380 = vsel %vm2335, %v3378, %v3379
        %s3381 = scalar_lea.vmem %s6, 32
        %v3382 = vld [vmem:[%s3381] sm:$0xf]
        %v3383 = vunpack.c.l.b16 %v3352
        %v3384 = vunpack.c.l.b16 %v3356
        %v3385 = vunpack.c.l.b16 %v3360
        %v3386 = vunpack.c.l.b16 %v3364
        %v3387 = vunpack.c.l.b16 %v3368
        %v3388 = vunpack.c.l.b16 %v3372
        %v3389 = vunpack.c.l.b16 %v3376
        %v3390 = vunpack.c.l.b16 %v3380
        %v3391 = vpack.c.b16 %v3384, %v3383
        %v3392 = vpack.c.b16 %v3386, %v3385
        %v3393 = vpack.c.b16 %v3388, %v3387
        %v3394 = vpack.c.b16 %v3390, %v3389
        %v3396 = vsel %vm2127, %v3391, 0
        %v3399 = vsel %vm2127, %v3392, 0
        %v3402 = vsel %vm2127, %v3393, 0
        %v3405 = vsel %vm2127, %v3394, 0
        %v3408 = vsel %vm2140, %v3382, 0
        %3410 = vmatprep.subr.bf16.mxu0 0
        %3411 = vmatpush1.bf16.msra.mxu0 %v3408
        %3412 = vmatprep.subr.bf16.mxu0 0
        %3413 = vmatpush1.bf16.msra.mxu0 0
        %3414 = vmatprep.subr.bf16.mxu0 0
        %3415 = vmatpush1.bf16.msra.mxu0 0
        %3416 = vmatprep.subr.bf16.mxu0 0
        %3417 = vmatpush1.bf16.msra.mxu0 0
        %3418 = vmatprep.subr.bf16.mxu0 0
        %3419 = vmatpush1.bf16.msra.mxu0 0
        %3420 = vmatprep.subr.bf16.mxu0 0
        %3421 = vmatpush1.bf16.msra.mxu0 0
        %3422 = vmatprep.subr.bf16.mxu0 0
        %3423 = vmatpush1.bf16.msra.mxu0 0
        %3424 = vmatprep.subr.bf16.mxu0 0
        %3425 = vmatpush1.bf16.msra.mxu0 0
        %3426 = vmatprep.subr.bf16.mxu0 0
        %3427 = vmatpush1.bf16.msra.mxu0 0
        %3428 = vmatprep.subr.bf16.mxu0 0
        %3429 = vmatpush1.bf16.msra.mxu0 0
        %3430 = vmatprep.subr.bf16.mxu0 0
        %3431 = vmatpush1.bf16.msra.mxu0 0
        %3432 = vmatprep.subr.bf16.mxu0 0
        %3433 = vmatpush1.bf16.msra.mxu0 0
        %3434 = vmatprep.subr.bf16.mxu0 0
        %3435 = vmatpush1.bf16.msra.mxu0 0
        %3436 = vmatprep.subr.bf16.mxu0 0
        %3437 = vmatpush1.bf16.msra.mxu0 0
        %3438 = vmatprep.subr.bf16.mxu0 0
        %3439 = vmatpush1.bf16.msra.mxu0 0
        %3440 = vmatprep.subr.bf16.mxu0 0
        %3441 = vmatpush1.bf16.msra.mxu0 0
        %3442 = vmatprep.mubr.bf16.mxu0 0
        %3443 = vmatmul.mubr.bf16.gmra.mrb[0].mxu0 %v3396
        %v3444 = vpop.f32.mrb[0].mxu0
        %v3445 = vadd.f32 0.0, %v3444
        %v3446 = vpop.f32.mrb[0].mxu0
        %v3447 = vpop.f32.mrb[0].mxu0
        %v3448 = vadd.f32 0.0, %v3447
        %v3449 = vpop.f32.mrb[0].mxu0
        %3450 = vmatprep.mubr.bf16.mxu0 0
        %3451 = vmatmul.mubr.bf16.gmra.mrb[0].mxu0 %v3399
        %v3452 = vpop.f32.mrb[0].mxu0
        %v3453 = vadd.f32 0.0, %v3452
        %v3454 = vpop.f32.mrb[0].mxu0
        %v3455 = vpop.f32.mrb[0].mxu0
        %v3456 = vadd.f32 0.0, %v3455
        %v3457 = vpop.f32.mrb[0].mxu0
        %3458 = vmatprep.mubr.bf16.mxu0 0
        %3459 = vmatmul.mubr.bf16.gmra.mrb[0].mxu0 %v3402
        %v3460 = vpop.f32.mrb[0].mxu0
        %v3461 = vadd.f32 0.0, %v3460
        %v3462 = vpop.f32.mrb[0].mxu0
        %v3463 = vpop.f32.mrb[0].mxu0
        %v3464 = vadd.f32 0.0, %v3463
        %v3465 = vpop.f32.mrb[0].mxu0
        %3466 = vmatprep.mubr.bf16.mxu0 0
        %3467 = vmatmul.mubr.bf16.gmra.mrb[0].mxu0 %v3405
        %v3468 = vpop.f32.mrb[0].mxu0
        %v3469 = vadd.f32 0.0, %v3468
        %v3470 = vpop.f32.mrb[0].mxu0
        %v3471 = vpop.f32.mrb[0].mxu0
        %v3472 = vadd.f32 0.0, %v3471
        %v3473 = vpop.f32.mrb[0].mxu0
        %3474 = vdwg.mxu0
        %v3475 = vadd.f32 %v3317, %v3445
        %v3476 = vadd.f32 %v3318, %v3448
        %v3477 = vadd.f32 %v3319, %v3453
        %v3478 = vadd.f32 %v3320, %v3456
        %v3479 = vadd.f32 %v3321, %v3461
        %v3480 = vadd.f32 %v3322, %v3464
        %v3481 = vadd.f32 %v3323, %v3469
        %v3482 = vadd.f32 %v3324, %v3472
        %v3483 = vld [vmem:[%s7] sm:$0x1]
        %v3485 = vlaneseq
        %v3486 = vshrl.u32 %v3485, 7
        %v3487 = vsub.s32 0, %v3486
        %v3488 = vrot.slane %v3483, %v3487
        %v3490 = vadd.f32 %v3475, %v3488
        %v3491 = vadd.f32 %v3476, %v3488
        %v3492 = vadd.f32 %v3477, %v3488
        %v3493 = vadd.f32 %v3478, %v3488
        %v3494 = vadd.f32 %v3479, %v3488
        %v3495 = vadd.f32 %v3480, %v3488
        %v3496 = vadd.f32 %v3481, %v3488
        %v3497 = vadd.f32 %v3482, %v3488
        %v3498 = vld [vmem:[%s390] sm:$0xf]
        %v3499 = vld [vmem:[%s390 + $0x8] sm:$0xf]
        %v3500 = vld [vmem:[%s390 + $0x10] sm:$0xf]
        %v3501 = vld [vmem:[%s390 + $0x18] sm:$0xf]
        %v3502 = vld [vmem:[%s390 + $0x20] sm:$0xf]
        %v3503 = vld [vmem:[%s390 + $0x28] sm:$0xf]
        %v3504 = vld [vmem:[%s390 + $0x30] sm:$0xf]
        %v3505 = vld [vmem:[%s390 + $0x38] sm:$0xf]
        %v3506 = vld [vmem:[%s8] sm:$0x3]
        %v3515 = vunpack.c.l.b16 %v3498
        %v3516 = vunpack.c.l.b16 %v3499
        %v3517 = vunpack.c.l.b16 %v3500
        %v3518 = vunpack.c.l.b16 %v3501
        %v3519 = vunpack.c.l.b16 %v3502
        %v3520 = vunpack.c.l.b16 %v3503
        %v3521 = vunpack.c.l.b16 %v3504
        %v3522 = vunpack.c.l.b16 %v3505
        %v3523 = vpack.c.b16 %v3516, %v3515
        %v3524 = vpack.c.b16 %v3518, %v3517
        %v3525 = vpack.c.b16 %v3520, %v3519
        %v3526 = vpack.c.b16 %v3522, %v3521
        %v3528 = vsel %vm431, %v3523, 0
        %v3531 = vsel %vm431, %v3524, 0
        %v3534 = vsel %vm431, %v3525, 0
        %v3537 = vsel %vm431, %v3526, 0
        %v3540 = vsel %vm444, %v3506, 0
        %3542 = vmatprep.subr.bf16.mxu0 0
        %3543 = vmatpush1.bf16.msra.mxu0 %v3540
        %3544 = vmatprep.subr.bf16.mxu0 0
        %3545 = vmatpush1.bf16.msra.mxu0 0
        %3546 = vmatprep.subr.bf16.mxu0 0
        %3547 = vmatpush1.bf16.msra.mxu0 0
        %3548 = vmatprep.subr.bf16.mxu0 0
        %3549 = vmatpush1.bf16.msra.mxu0 0
        %3550 = vmatprep.subr.bf16.mxu0 0
        %3551 = vmatpush1.bf16.msra.mxu0 0
        %3552 = vmatprep.subr.bf16.mxu0 0
        %3553 = vmatpush1.bf16.msra.mxu0 0
        %3554 = vmatprep.subr.bf16.mxu0 0
        %3555 = vmatpush1.bf16.msra.mxu0 0
        %3556 = vmatprep.subr.bf16.mxu0 0
        %3557 = vmatpush1.bf16.msra.mxu0 0
        %3558 = vmatprep.subr.bf16.mxu0 0
        %3559 = vmatpush1.bf16.msra.mxu0 0
        %3560 = vmatprep.subr.bf16.mxu0 0
        %3561 = vmatpush1.bf16.msra.mxu0 0
        %3562 = vmatprep.subr.bf16.mxu0 0
        %3563 = vmatpush1.bf16.msra.mxu0 0
        %3564 = vmatprep.subr.bf16.mxu0 0
        %3565 = vmatpush1.bf16.msra.mxu0 0
        %3566 = vmatprep.subr.bf16.mxu0 0
        %3567 = vmatpush1.bf16.msra.mxu0 0
        %3568 = vmatprep.subr.bf16.mxu0 0
        %3569 = vmatpush1.bf16.msra.mxu0 0
        %3570 = vmatprep.subr.bf16.mxu0 0
        %3571 = vmatpush1.bf16.msra.mxu0 0
        %3572 = vmatprep.subr.bf16.mxu0 0
        %3573 = vmatpush1.bf16.msra.mxu0 0
        %3574 = vmatprep.mubr.bf16.mxu0 0
        %3575 = vmatmul.mubr.bf16.gmra.mrb[0].mxu0 %v3528
        %v3576 = vpop.f32.mrb[0].mxu0
        %v3577 = vadd.f32 0.0, %v3576
        %v3578 = vpop.f32.mrb[0].mxu0
        %v3579 = vpop.f32.mrb[0].mxu0
        %v3580 = vadd.f32 0.0, %v3579
        %v3581 = vpop.f32.mrb[0].mxu0
        %3582 = vmatprep.mubr.bf16.mxu0 0
        %3583 = vmatmul.mubr.bf16.gmra.mrb[0].mxu0 %v3531
        %v3584 = vpop.f32.mrb[0].mxu0
        %v3585 = vadd.f32 0.0, %v3584
        %v3586 = vpop.f32.mrb[0].mxu0
        %v3587 = vpop.f32.mrb[0].mxu0
        %v3588 = vadd.f32 0.0, %v3587
        %v3589 = vpop.f32.mrb[0].mxu0
        %3590 = vmatprep.mubr.bf16.mxu0 0
        %3591 = vmatmul.mubr.bf16.gmra.mrb[0].mxu0 %v3534
        %v3592 = vpop.f32.mrb[0].mxu0
        %v3593 = vadd.f32 0.0, %v3592
        %v3594 = vpop.f32.mrb[0].mxu0
        %v3595 = vpop.f32.mrb[0].mxu0
        %v3596 = vadd.f32 0.0, %v3595
        %v3597 = vpop.f32.mrb[0].mxu0
        %3598 = vmatprep.mubr.bf16.mxu0 0
        %3599 = vmatmul.mubr.bf16.gmra.mrb[0].mxu0 %v3537
        %v3600 = vpop.f32.mrb[0].mxu0
        %v3601 = vadd.f32 0.0, %v3600
        %v3602 = vpop.f32.mrb[0].mxu0
        %v3603 = vpop.f32.mrb[0].mxu0
        %v3604 = vadd.f32 0.0, %v3603
        %v3605 = vpop.f32.mrb[0].mxu0
        %3606 = vdwg.mxu0
        %v3607 = vadd.f32 %v3490, %v3577
        %v3608 = vadd.f32 %v3491, %v3580
        %v3609 = vadd.f32 %v3492, %v3585
        %v3610 = vadd.f32 %v3493, %v3588
        %v3611 = vadd.f32 %v3494, %v3593
        %v3612 = vadd.f32 %v3495, %v3596
        %v3613 = vadd.f32 %v3496, %v3601
        %v3614 = vadd.f32 %v3497, %v3604
        %v3615 = vmax.f32 %v3607, 0.0
        %v3616 = vmax.f32 %v3608, 0.0
        %v3617 = vmax.f32 %v3609, 0.0
        %v3618 = vmax.f32 %v3610, 0.0
        %v3619 = vmax.f32 %v3611, 0.0
        %v3620 = vmax.f32 %v3612, 0.0
        %v3621 = vmax.f32 %v3613, 0.0
        %v3622 = vmax.f32 %v3614, 0.0
        %v3623 = vpack.c.bf16 %v3615, %v3615
        %v3624 = vpack.c.bf16 %v3616, %v3616
        %v3625 = vpack.c.bf16 %v3617, %v3617
        %v3626 = vpack.c.bf16 %v3618, %v3618
        %v3627 = vpack.c.bf16 %v3619, %v3619
        %v3628 = vpack.c.bf16 %v3620, %v3620
        %v3629 = vpack.c.bf16 %v3621, %v3621
        %v3630 = vpack.c.bf16 %v3622, %v3622
        %3631 = vst.msk [vmem:[%s370] sm:$0xf] %vm1807, %v3623
        %3632 = vst.msk [vmem:[%s370 + $0x4] sm:$0xf] %vm1807, %v3624
        %3633 = vst.msk [vmem:[%s370 + $0x8] sm:$0xf] %vm1807, %v3625
        %3634 = vst.msk [vmem:[%s370 + $0xc] sm:$0xf] %vm1807, %v3626
        %3635 = vst.msk [vmem:[%s370 + $0x10] sm:$0xf] %vm1807, %v3627
        %3636 = vst.msk [vmem:[%s370 + $0x14] sm:$0xf] %vm1807, %v3628
        %3637 = vst.msk [vmem:[%s370 + $0x18] sm:$0xf] %vm1807, %v3629
        %3638 = vst.msk [vmem:[%s370 + $0x1c] sm:$0xf] %vm1807, %v3630
        %s3639 = sand.u32 %s240, 1
        %s3640 = scalar_lea.sflag [#allocation4], %s3639
        %s3641 = sand.u32 %s240, 1
        %s3642 = smul.addr %s3641, 32
        %s3643 = scalar_lea.vmem [#allocation3], %s3642
        // Predicated region
        $region57: #{tpu_custom_call.1} parent=55 // pred_check
          %p3644 = pneg %p250
        $region58: #{tpu_custom_call.1} parent=55 // pred_check_branch
          %3646 = sbr.rel (%p3644) target = $region60
        $region59: #{tpu_custom_call.1} parent=55 // pred_region
          %s3648 = ssub.s32 512, 512
          %3649 = vsyncadd %s3640, %s3648
          %s3650 = smul.addr %s23, 8
          %s3651 = smul.addr %s3650, 64
          %s3652 = scalar_lea.hbm %s9, %s3651
          %s3653 = sshll.u32 %s3643, 4
          %s3654 = int_to_ptr.vmem [resolvable:$true] %s3653
          %3659 = dma.vmem_to_hbm [thread:$0]  %s3654, 512, %s3652, %s3640, 64, 64, 4
        $region60: #{tpu_custom_call.1} parent=55 // pred_fallthru
          _
      $region56: #{tpu_custom_call.1} parent=5 // pred_fallthru
        _
      %p3660 = scmp.le.s32.totalorder 2, %s18
      // Predicated region
      $region61: #{tpu_custom_call.1} parent=5 // pred_check
        %p3661 = pneg %p3660
      $region62: #{tpu_custom_call.1} parent=5 // pred_check_branch
        %3663 = sbr.rel (%p3661) target = $region64
      $region63: #{tpu_custom_call.1} parent=5 // pred_region
        %s3664 = ssub.s32 %s18, 2
        // Predicated region
        $region65: #{tpu_custom_call.1} parent=63 // pred_check
          %p3665 = pneg %p256
        $region66: #{tpu_custom_call.1} parent=63 // pred_check_branch
          %3667 = sbr.rel (%p3665) target = $region68
        $region67: #{tpu_custom_call.1} parent=63 // pred_region
          %s3668 = sand.u32 %s241, 1
          %s3669 = scalar_lea.sflag [#allocation4], %s3668
          %s3670 = sand.u32 %s241, 1
          %s3671 = smul.addr %s3670, 32
          %s3672 = scalar_lea.vmem [#allocation3], %s3671
          %3673 = dma.done %s3669, 512
        $region68: #{tpu_custom_call.1} parent=63 // pred_fallthru
          _
      $region64: #{tpu_custom_call.1} parent=5 // pred_fallthru
        _
    $region6: #{tpu_custom_call.1} parent=1 // loop_footer
      %s22 = sadd.s32 1, %s18
    $region7: #{tpu_custom_call.1} parent=1 // loop_footer_branch
      %17 = sbr.rel target = $region3
    $region8: #{tpu_custom_call.1} parent=1 // loop_exit
      _
    %3674 = vsyncpa [#allocation4], 1
    %s3675 = scalar_lea.sflag [#allocation4], 1
    %3676 = vsyncpa %s3675, 1

</llo_original>
